<compile_context>
chip_gen: v5e
topology: v5e:2x2
jax: 0.10.0
libtpu: 0.0.40
codegen_flags: <defaults>
</compile_context>

<pallas_src>
import functools
import itertools
import math

import numpy as np
import jax
import jax.numpy as jnp
from jax import lax
from jax.experimental import pallas as pl
from jax.experimental.pallas import tpu as pltpu

# ------------------------- small config (consistent with CROMA) -------------------------
BATCH = 2
NUM_PATCHES = 16                                     # 4x4 patch grid
PATCH_SIZE = 4
CHANNELS = 3
IMG_SIZE = int(math.sqrt(NUM_PATCHES)) * PATCH_SIZE  # 16
ENC_DIM = 64
ENC_LAYERS = 2                                       # radar encoder uses ENC_LAYERS // 2 layers
HEADS = 8
DEC_DIM = 32
DEC_LAYERS = 1
DEC_HEADS = 8                                        # DecoderMAE is built with attention_heads=8
FF_MULT = 4
MASK_RATIO = 0.25
LEN_KEEP = int(NUM_PATCHES * (1 - MASK_RATIO))       # 12
PIX_PER_PATCH = PATCH_SIZE * PATCH_SIZE * CHANNELS   # 48
LN_EPS = 1e-5                                        # torch.nn.LayerNorm default

VMEM = pltpu.MemorySpace.VMEM


# ======================================================================================
# In-kernel math helpers (f32, VPU/EUP friendly)
# ======================================================================================
def _ln(x, g, b, eps=LN_EPS):
    mean = jnp.mean(x, axis=-1, keepdims=True)
    var = jnp.mean((x - mean) ** 2, axis=-1, keepdims=True)   # biased, like torch LayerNorm
    return (x - mean) / jnp.sqrt(var + eps) * g + b


def _erf(x):
    # Abramowitz & Stegun 7.1.26 (max abs err ~1.5e-7 ~ f32 noise); only exp/mul/add,
    # so it is guaranteed to lower in Mosaic (lax.erf lowering is not guaranteed).
    a1, a2, a3, a4, a5 = 0.254829592, -0.284496736, 1.421413741, -1.453152027, 1.061405429
    p = 0.3275911
    ax = jnp.abs(x)
    t = 1.0 / (1.0 + p * ax)
    poly = ((((a5 * t + a4) * t + a3) * t + a2) * t + a1) * t
    y = 1.0 - poly * jnp.exp(-ax * ax)
    return jnp.where(x < 0, -y, y)


def _gelu(x):
    # exact (erf) GELU, matching torch nn.GELU() default
    return 0.5 * x * (1.0 + _erf(x * (1.0 / math.sqrt(2.0))))


# ======================================================================================
# Pallas kernels
# ======================================================================================
def _linear_kernel(x_ref, w_ref, b_ref, o_ref):
    o_ref[...] = (
        jnp.dot(x_ref[...], w_ref[...], preferred_element_type=jnp.float32) + b_ref[...]
    )


def linear(x, w, b):
    """x: (M, K) f32, w: (K, N) f32, b: (N,) f32 -> (M, N) f32 (single VMEM block)."""
    M = x.shape[0]
    N = w.shape[1]
    return pl.pallas_call(
        _linear_kernel,
        out_shape=jax.ShapeDtypeStruct((M, N), jnp.float32),
        in_specs=[pl.BlockSpec(memory_space=VMEM)] * 3,
        out_specs=pl.BlockSpec(memory_space=VMEM),
    )(x, w, b.reshape(1, N))


def _block_kernel(*args, B, N, H, Dh, scale, has_bias, final_norm):
    """Fused pre-LN transformer block (self-attn + FFN, residuals, optional final LN)."""
    o_ref, qkv_buf, attn_buf = args[-3], args[-2], args[-1]
    refs = args[:-3]
    idx = 0
    x_ref = refs[idx]; idx += 1
    bias_ref = None
    if has_bias:
        bias_ref = refs[idx]; idx += 1
    (ln1_g, ln1_b, qkv_w, out_w, out_b,
     ln2_g, ln2_b, w1, b1, w2, b2) = refs[idx:idx + 11]
    idx += 11
    lnf_g = lnf_b = None
    if final_norm:
        lnf_g, lnf_b = refs[idx], refs[idx + 1]

    D = H * Dh
    x = x_ref[...]                                                  # (M, D)

    # ---- self-attention ----
    xn = _ln(x, ln1_g[...], ln1_b[...])
    qkv_buf[...] = jnp.dot(xn, qkv_w[...], preferred_element_type=jnp.float32)  # (M, 3D)
    for b in range(B):                                              # unrolled: B*H tiny tiles
        r0, r1 = b * N, (b + 1) * N
        for h in range(H):
            c0 = h * Dh
            q = qkv_buf[r0:r1, c0:c0 + Dh]                          # (N, Dh)
            k = qkv_buf[r0:r1, D + c0:D + c0 + Dh]
            v = qkv_buf[r0:r1, 2 * D + c0:2 * D + c0 + Dh]
            # q @ k^T without materializing a transpose
            s = lax.dot_general(q, k, (((1,), (1,)), ((), ())),
                                preferred_element_type=jnp.float32) * scale
            if has_bias:
                s = s + bias_ref[b * H + h]                         # (N, N) ALiBi slice
            s = s - jnp.max(s, axis=-1, keepdims=True)
            p = jnp.exp(s)
            p = p / jnp.sum(p, axis=-1, keepdims=True)
            attn_buf[r0:r1, c0:c0 + Dh] = jnp.dot(
                p, v, preferred_element_type=jnp.float32)
    # heads already merged as a lane-dense (M, D) slab in attn_buf
    x = x + jnp.dot(attn_buf[...], out_w[...],
                    preferred_element_type=jnp.float32) + out_b[...]

    # ---- FFN ----
    xn2 = _ln(x, ln2_g[...], ln2_b[...])
    hid = jnp.dot(xn2, w1[...], preferred_element_type=jnp.float32) + b1[...]
    hid = _gelu(hid)
    x = x + jnp.dot(hid, w2[...], preferred_element_type=jnp.float32) + b2[...]

    if final_norm:
        x = _ln(x, lnf_g[...], lnf_b[...])
    o_ref[...] = x


def transformer_block(x, blk, bias, heads, scale, final_ln=None):
    """x: (B, N, D); bias: (B, heads, N, N) or None; final_ln: (gamma, beta) or None."""
    B, N, D = x.shape
    Dh = D // heads
    M = B * N
    ap, fp = blk["attn"], blk["ffn"]
    inputs = [x.reshape(M, D)]
    if bias is not None:
        inputs.append(bias.reshape(B * heads, N, N))
    inputs += [
        ap["ln_g"].reshape(1, D), ap["ln_b"].reshape(1, D), ap["qkv_w"],
        ap["out_w"], ap["out_b"].reshape(1, D),
        fp["ln_g"].reshape(1, D), fp["ln_b"].reshape(1, D),
        fp["w1"], fp["b1"].reshape(1, -1), fp["w2"], fp["b2"].reshape(1, D),
    ]
    if final_ln is not None:
        inputs += [final_ln[0].reshape(1, D), final_ln[1].reshape(1, D)]
    kernel = functools.partial(
        _block_kernel, B=B, N=N, H=heads, Dh=Dh, scale=scale,
        has_bias=bias is not None, final_norm=final_ln is not None)
    out = pl.pallas_call(
        kernel,
        out_shape=jax.ShapeDtypeStruct((M, D), jnp.float32),
        in_specs=[pl.BlockSpec(memory_space=VMEM)] * len(inputs),
        out_specs=pl.BlockSpec(memory_space=VMEM),
        scratch_shapes=[pltpu.VMEM((M, 3 * D), jnp.float32),   # qkv slab
                        pltpu.VMEM((M, D), jnp.float32)],      # merged attention out
    )(*inputs)
    return out.reshape(B, N, D)


def _gap_kernel(x_ref, g_ref, b_ref, w1_ref, b1_ref, w2_ref, b2_ref, o_ref):
    x = _ln(x_ref[...], g_ref[...], b_ref[...])
    hid = _gelu(jnp.dot(x, w1_ref[...], preferred_element_type=jnp.float32) + b1_ref[...])
    o_ref[...] = jnp.dot(hid, w2_ref[...], preferred_element_type=jnp.float32) + b2_ref[...]


def gap_ffn(pooled, gp):
    """GAP_FFN_radar: LN -> Linear -> GELU -> Linear, fused.  pooled: (B, D)."""
    B, D = pooled.shape
    return pl.pallas_call(
        _gap_kernel,
        out_shape=jax.ShapeDtypeStruct((B, D), jnp.float32),
        in_specs=[pl.BlockSpec(memory_space=VMEM)] * 7,
        out_specs=pl.BlockSpec(memory_space=VMEM),
    )(pooled, gp["ln_g"].reshape(1, D), gp["ln_b"].reshape(1, D),
      gp["w1"], gp["b1"].reshape(1, -1), gp["w2"], gp["b2"].reshape(1, D))


def _out_loss_kernel(y_ref, w_ref, b_ref, tgt_ref, mask_ref, pred_ref, loss_ref):
    pred = jnp.dot(y_ref[...], w_ref[...], preferred_element_type=jnp.float32) + b_ref[...]
    pred_ref[...] = pred
    tgt = tgt_ref[...]                                      # (B*P, ppp)
    ppp = tgt.shape[-1]
    mean = jnp.mean(tgt, axis=-1, keepdims=True)
    var = jnp.sum((tgt - mean) ** 2, axis=-1, keepdims=True) / (ppp - 1)  # torch .var(): ddof=1
    tgt_n = (tgt - mean) / jnp.sqrt(var + 1e-6)
    per_patch = jnp.mean((pred - tgt_n) ** 2, axis=-1, keepdims=True)     # (B*P, 1)
    mask = mask_ref[...]                                    # (B*P, 1)
    num = jnp.sum(per_patch * mask, axis=(0, 1), keepdims=True)
    den = jnp.sum(mask, axis=(0, 1), keepdims=True) + 1e-8
    loss_ref[...] = num / den


def decoder_output_and_loss(y, out_w, out_b, target, mask):
    """Fused linear_output + target normalization + masked MSE.  y: (B*P, dec_dim)."""
    M = y.shape[0]
    ppp = out_w.shape[1]
    pred, loss = pl.pallas_call(
        _out_loss_kernel,
        out_shape=(jax.ShapeDtypeStruct((M, ppp), jnp.float32),
                   jax.ShapeDtypeStruct((1, 1), jnp.float32)),
        in_specs=[pl.BlockSpec(memory_space=VMEM)] * 5,
        out_specs=(pl.BlockSpec(memory_space=VMEM),
                   pl.BlockSpec(memory_space=VMEM)),
    )(y, out_w, out_b.reshape(1, ppp), target, mask)
    return pred, loss[0, 0]


# ======================================================================================
# Glue: patchify / masks / alibi / sincos pos-embed (plain JAX / numpy setup)
# ======================================================================================
def patchify(imgs, ps):
    # 'b c (h i) (w j) -> b (h w) (c i j)'
    B, C, H, W = imgs.shape
    h, w = H // ps, W // ps
    x = imgs.reshape(B, C, h, ps, w, ps)
    x = jnp.transpose(x, (0, 2, 4, 1, 3, 5))
    return x.reshape(B, h * w, C * ps * ps)


def unpatchify(x, ps, C):
    # 'b (h w) (c ph pw) -> b c (h ph) (w pw)'
    B, P, _ = x.shape
    h = w = int(math.sqrt(P))
    x = x.reshape(B, h, w, C, ps, ps)
    x = jnp.transpose(x, (0, 3, 1, 4, 2, 5))
    return x.reshape(B, C, h * ps, w * ps)


def get_mask(key, bsz, seq_len, mask_ratio):
    len_keep = int(seq_len * (1 - mask_ratio))
    noise = jax.random.uniform(key, (bsz, seq_len))
    ids_shuffle = jnp.argsort(noise, axis=1).astype(jnp.int32)
    ids_restore = jnp.argsort(ids_shuffle, axis=1).astype(jnp.int32)
    ids_keep = ids_shuffle[:, :len_keep]
    mask = jnp.ones((bsz, seq_len), jnp.float32)
    mask = mask.at[:, :len_keep].set(0.0)
    mask = jnp.take_along_axis(mask, ids_restore, axis=1)
    return {"ids_keep": ids_keep, "ids_restore": ids_restore, "mask_for_mae": mask}


def get_alibi(attention_heads, num_patches):
    g = int(math.sqrt(num_patches))
    points = list(itertools.product(range(g), range(g)))

    def get_slopes(n):
        def pow2(n):
            start = 2 ** (-2 ** (-(math.log2(n) - 3)))
            return [start * start ** i for i in range(n)]
        if math.log2(n).is_integer():
            return pow2(n)
        c = 2 ** math.floor(math.log2(n))
        return pow2(c) + get_slopes(2 * c)[0::2][: n - c]

    slopes = np.asarray(get_slopes(attention_heads), dtype=np.float32)          # (H,)
    dists = np.zeros((num_patches, num_patches), dtype=np.float32)
    for a, p1 in enumerate(points):
        for b, p2 in enumerate(points):
            dists[a, b] = math.sqrt((p1[0] - p2[0]) ** 2 + (p1[1] - p2[1]) ** 2)
    return jnp.asarray(-dists[None, :, :] * slopes[:, None, None])              # (H, P, P)


def apply_mask_to_alibi(alibi, ids_keep_q, ids_keep_k, orig_seq_len):
    # alibi: (H, P, P).  Exactly mirrors the torch gather over the flattened (i j) axis.
    H = alibi.shape[0]
    alibi_flat = alibi.reshape(H, orig_seq_len * orig_seq_len)
    idx = ids_keep_q[:, :, None] + ids_keep_k[:, None, :] * orig_seq_len        # (B, lk, lk)
    gathered = alibi_flat[:, idx]                                               # (H, B, lk, lk)
    return jnp.transpose(gathered, (1, 0, 2, 3))                                # (B, H, lk, lk)


def get_1d_sincos_pos_embed_from_grid(embed_dim, pos):
    omega = np.arange(embed_dim // 2, dtype=float)
    omega /= embed_dim / 2.0
    omega = 1.0 / 10000 ** omega
    pos = pos.reshape(-1)
    out = np.einsum("m,d->md", pos, omega)
    return np.concatenate([np.sin(out), np.cos(out)], axis=1)


def get_2d_sincos_pos_embed(embed_dim, grid_size):
    grid_h = np.arange(grid_size, dtype=np.float32)
    grid_w = np.arange(grid_size, dtype=np.float32)
    grid = np.meshgrid(grid_w, grid_h)
    grid = np.stack(grid, axis=0).reshape([2, 1, grid_size, grid_size])
    emb_h = get_1d_sincos_pos_embed_from_grid(embed_dim // 2, grid[0])
    emb_w = get_1d_sincos_pos_embed_from_grid(embed_dim // 2, grid[1])
    return np.concatenate([emb_h, emb_w], axis=1)


# ======================================================================================
# Parameters (deterministic init, shapes from CROMA.__init__)
# ======================================================================================
def _init_linear(key, fan_in, fan_out, bias=True):
    kw, kb = jax.random.split(key)
    w = jax.random.normal(kw, (fan_in, fan_out), jnp.float32) * 0.02
    b = jax.random.normal(kb, (fan_out,), jnp.float32) * 0.02 if bias else None
    return w, b


def _init_block(key, dim, mult):
    k = jax.random.split(key, 4)
    qkv_w, _ = _init_linear(k[0], dim, 3 * dim, bias=False)
    out_w, out_b = _init_linear(k[1], dim, dim)
    w1, b1 = _init_linear(k[2], dim, dim * mult)
    w2, b2 = _init_linear(k[3], dim * mult, dim)
    ones, zeros = jnp.ones((dim,), jnp.float32), jnp.zeros((dim,), jnp.float32)
    return {
        "attn": {"ln_g": ones, "ln_b": zeros, "qkv_w": qkv_w, "out_w": out_w, "out_b": out_b},
        "ffn": {"ln_g": ones, "ln_b": zeros, "w1": w1, "b1": b1, "w2": w2, "b2": b2},
    }


def init_params(key):
    keys = jax.random.split(key, 16)
    enc_blocks = [_init_block(keys[i], ENC_DIM, FF_MULT) for i in range(ENC_LAYERS // 2)]
    dec_blocks = [_init_block(keys[4 + i], DEC_DIM, FF_MULT) for i in range(DEC_LAYERS)]
    in_w, in_b = _init_linear(keys[8], PIX_PER_PATCH, ENC_DIM)
    e2d_w, e2d_b = _init_linear(keys[9], ENC_DIM, DEC_DIM)
    out_w, out_b = _init_linear(keys[10], DEC_DIM, PIX_PER_PATCH)
    g_w1, g_b1 = _init_linear(keys[11], ENC_DIM, 4 * ENC_DIM)
    g_w2, g_b2 = _init_linear(keys[12], 4 * ENC_DIM, ENC_DIM)
    mask_token = jax.random.normal(keys[13], (1, 1, DEC_DIM), jnp.float32) * 0.02
    pos = jnp.asarray(
        get_2d_sincos_pos_embed(DEC_DIM, int(math.sqrt(NUM_PATCHES))), jnp.float32
    )[None]                                                        # (1, P, DEC_DIM)
    return {
        "alibi": get_alibi(HEADS, NUM_PATCHES),                    # (H, P, P)
        "enc": {
            "in_w": in_w, "in_b": in_b, "blocks": enc_blocks,
            "norm_g": jnp.ones((ENC_DIM,)), "norm_b": jnp.zeros((ENC_DIM,)),
        },
        "gap": {
            "ln_g": jnp.ones((ENC_DIM,)), "ln_b": jnp.zeros((ENC_DIM,)),
            "w1": g_w1, "b1": g_b1, "w2": g_w2, "b2": g_b2,
        },
        "dec": {
            "e2d_w": e2d_w, "e2d_b": e2d_b, "mask_token": mask_token, "pos_embed": pos,
            "blocks": dec_blocks,
            "norm_g": jnp.ones((DEC_DIM,)), "norm_b": jnp.zeros((DEC_DIM,)),
            "out_w": out_w, "out_b": out_b,
        },
    }


# ======================================================================================
# CROMA forward
# ======================================================================================
def croma_forward(imgs, mask_info, params):
    ids_keep = mask_info["ids_keep"]            # (B, lk)
    ids_restore = mask_info["ids_restore"]      # (B, P)
    mask_for_mae = mask_info["mask_for_mae"]    # (B, P)
    B = imgs.shape[0]

    # masked ALiBi bias for kept patches
    masked_bias = apply_mask_to_alibi(params["alibi"], ids_keep, ids_keep, NUM_PATCHES)

    # ---- radar ViT encoder (one fused pallas_call per transformer block) ----
    patches = patchify(imgs, PATCH_SIZE)                                       # (B, P, ppp)
    ep = params["enc"]
    x = linear(patches.reshape(B * NUM_PATCHES, PIX_PER_PATCH), ep["in_w"], ep["in_b"])
    x = x.reshape(B, NUM_PATCHES, ENC_DIM)
    # TODO(synk): data-dependent token gather stays in XLA (jnp.take_along_axis).
    keep_idx = jnp.broadcast_to(ids_keep[:, :, None], (B, LEN_KEEP, ENC_DIM))
    x = jnp.take_along_axis(x, keep_idx, axis=1)                               # (B, lk, D)
    enc_scale = (ENC_DIM // HEADS) ** -0.5
    n_enc = len(ep["blocks"])
    for i, blk in enumerate(ep["blocks"]):
        fin = (ep["norm_g"], ep["norm_b"]) if i == n_enc - 1 else None         # fused final LN
        x = transformer_block(x, blk, masked_bias, HEADS, enc_scale, final_ln=fin)
    radar_encodings = x                                                        # (B, lk, D)

    # radar_GAP: computed by the reference forward but unused in its outputs (DCE'd by jit).
    _radar_gap = gap_ffn(jnp.mean(radar_encodings, axis=1), params["gap"])

    # ---- MAE decoder ----
    dp = params["dec"]
    y = linear(radar_encodings.reshape(B * LEN_KEEP, ENC_DIM), dp["e2d_w"], dp["e2d_b"])
    y = y.reshape(B, LEN_KEEP, DEC_DIM)
    n_mask = NUM_PATCHES + 1 - LEN_KEEP                                        # same "+1" as reference
    mask_tokens = jnp.broadcast_to(dp["mask_token"], (B, n_mask, DEC_DIM))
    y = jnp.concatenate([y, mask_tokens], axis=1)                              # (B, P+1, dec)
    ridx = jnp.broadcast_to(ids_restore[:, :, None], (B, NUM_PATCHES, DEC_DIM))
    y = jnp.take_along_axis(y, ridx, axis=1)                                   # (B, P, dec)
    y = y + dp["pos_embed"]
    dec_scale = (DEC_DIM // DEC_HEADS) ** -0.5
    n_dec = len(dp["blocks"])
    for i, blk in enumerate(dp["blocks"]):
        fin = (dp["norm_g"], dp["norm_b"]) if i == n_dec - 1 else None         # fused final LN
        y = transformer_block(y, blk, None, DEC_HEADS, dec_scale, final_ln=fin)  # no bias path

    pred, loss = decoder_output_and_loss(
        y.reshape(B * NUM_PATCHES, DEC_DIM), dp["out_w"], dp["out_b"],
        patches.reshape(B * NUM_PATCHES, PIX_PER_PATCH),
        mask_for_mae.reshape(B * NUM_PATCHES, 1))
    pred_image = unpatchify(pred.reshape(B, NUM_PATCHES, PIX_PER_PATCH),
                            PATCH_SIZE, CHANNELS)                              # (B, C, H, W)
    return loss, pred_image


# ======================================================================================
if __name__ == "__main__":
    key = jax.random.PRNGKey(0)
    k_img, k_mask, k_param = jax.random.split(key, 3)
    imgs = jax.random.normal(k_img, (BATCH, CHANNELS, IMG_SIZE, IMG_SIZE), jnp.float32)
    mask_info = get_mask(k_mask, BATCH, NUM_PATCHES, MASK_RATIO)
    params = init_params(k_param)

    fwd = jax.jit(croma_forward)
    loss, pred_image = fwd(imgs, mask_info, params)
    jax.block_until_ready((loss, pred_image))
    assert pred_image.shape == (BATCH, CHANNELS, IMG_SIZE, IMG_SIZE)
    assert loss.shape == ()
    assert bool(jnp.isfinite(loss))
    print("KERNEL_OK")
</pallas_src>

<mosaic_0001>
module attributes {stable_mosaic.version = 11 : i64} {
  func.func @_linear_kernel(%arg0: memref<32x48xf32, #tpu.memory_space<vmem>>, %arg1: memref<48x64xf32, #tpu.memory_space<vmem>>, %arg2: memref<1x64xf32, #tpu.memory_space<vmem>>, %arg3: memref<32x64xf32, #tpu.memory_space<vmem>>) attributes {dimension_semantics = [], scalar_prefetch = 0 : i64, scratch_operands = 0 : i64, tpu.core_type = #tpu.core_type<tc>} {
    %c0 = arith.constant 0 : index
    %c0_0 = arith.constant 0 : index
    %0 = vector.load %arg0[%c0, %c0_0] : memref<32x48xf32, #tpu.memory_space<vmem>>, vector<32x48xf32>
    %c0_1 = arith.constant 0 : index
    %c0_2 = arith.constant 0 : index
    %1 = vector.load %arg1[%c0_1, %c0_2] : memref<48x64xf32, #tpu.memory_space<vmem>>, vector<48x64xf32>
    %cst = arith.constant dense<0.000000e+00> : vector<32x64xf32>
    %2 = tpu.matmul %0, %1, %cst {dimension_numbers = #tpu.dot_dimension_numbers<[1], [0], [0], [1], [0, 0, 1, 1], [], []>} : vector<32x48xf32>, vector<48x64xf32>, vector<32x64xf32> -> vector<32x64xf32>
    %c0_3 = arith.constant 0 : index
    %c0_4 = arith.constant 0 : index
    %3 = vector.load %arg2[%c0_3, %c0_4] : memref<1x64xf32, #tpu.memory_space<vmem>>, vector<1x64xf32>
    %4 = vector.broadcast %3 : vector<1x64xf32> to vector<32x64xf32>
    %5 = arith.addf %2, %4 : vector<32x64xf32>
    %c0_5 = arith.constant 0 : index
    %c0_6 = arith.constant 0 : index
    %6 = vector.load %arg3[%c0_5, %c0_6] : memref<32x64xf32, #tpu.memory_space<vmem>>, vector<32x64xf32>
    tpu.vector_store %arg3[%c0_5, %c0_6], %5 {strides = array<i32>} : memref<32x64xf32, #tpu.memory_space<vmem>>, vector<32x64xf32>,
    return
  }
}

module attributes {stable_mosaic.version = 11 : i64} {
  func.func @_linear_kernel(%arg0: memref<24x64xf32, #tpu.memory_space<vmem>>, %arg1: memref<64x32xf32, #tpu.memory_space<vmem>>, %arg2: memref<1x32xf32, #tpu.memory_space<vmem>>, %arg3: memref<24x32xf32, #tpu.memory_space<vmem>>) attributes {dimension_semantics = [], scalar_prefetch = 0 : i64, scratch_operands = 0 : i64, tpu.core_type = #tpu.core_type<tc>} {
    %c0 = arith.constant 0 : index
    %c0_0 = arith.constant 0 : index
    %0 = vector.load %arg0[%c0, %c0_0] : memref<24x64xf32, #tpu.memory_space<vmem>>, vector<24x64xf32>
    %c0_1 = arith.constant 0 : index
    %c0_2 = arith.constant 0 : index
    %1 = vector.load %arg1[%c0_1, %c0_2] : memref<64x32xf32, #tpu.memory_space<vmem>>, vector<64x32xf32>
    %cst = arith.constant dense<0.000000e+00> : vector<24x32xf32>
    %2 = tpu.matmul %0, %1, %cst {dimension_numbers = #tpu.dot_dimension_numbers<[1], [0], [0], [1], [0, 0, 1, 1], [], []>} : vector<24x64xf32>, vector<64x32xf32>, vector<24x32xf32> -> vector<24x32xf32>
    %c0_3 = arith.constant 0 : index
    %c0_4 = arith.constant 0 : index
    %3 = vector.load %arg2[%c0_3, %c0_4] : memref<1x32xf32, #tpu.memory_space<vmem>>, vector<1x32xf32>
    %4 = vector.broadcast %3 : vector<1x32xf32> to vector<24x32xf32>
    %5 = arith.addf %2, %4 : vector<24x32xf32>
    %c0_5 = arith.constant 0 : index
    %c0_6 = arith.constant 0 : index
    %6 = vector.load %arg3[%c0_5, %c0_6] : memref<24x32xf32, #tpu.memory_space<vmem>>, vector<24x32xf32>
    tpu.vector_store %arg3[%c0_5, %c0_6], %5 {strides = array<i32>} : memref<24x32xf32, #tpu.memory_space<vmem>>, vector<24x32xf32>,
    return
  }
}

module attributes {stable_mosaic.version = 11 : i64} {
  func.func @_block_kernel(%arg0: memref<24x64xf32, #tpu.memory_space<vmem>>, %arg1: memref<16x12x12xf32, #tpu.memory_space<vmem>>, %arg2: memref<1x64xf32, #tpu.memory_space<vmem>>, %arg3: memref<1x64xf32, #tpu.memory_space<vmem>>, %arg4: memref<64x192xf32, #tpu.memory_space<vmem>>, %arg5: memref<64x64xf32, #tpu.memory_space<vmem>>, %arg6: memref<1x64xf32, #tpu.memory_space<vmem>>, %arg7: memref<1x64xf32, #tpu.memory_space<vmem>>, %arg8: memref<1x64xf32, #tpu.memory_space<vmem>>, %arg9: memref<64x256xf32, #tpu.memory_space<vmem>>, %arg10: memref<1x256xf32, #tpu.memory_space<vmem>>, %arg11: memref<256x64xf32, #tpu.memory_space<vmem>>, %arg12: memref<1x64xf32, #tpu.memory_space<vmem>>, %arg13: memref<1x64xf32, #tpu.memory_space<vmem>>, %arg14: memref<1x64xf32, #tpu.memory_space<vmem>>, %arg15: memref<24x64xf32, #tpu.memory_space<vmem>>, %arg16: memref<24x192xf32, #tpu.memory_space<vmem>>, %arg17: memref<24x64xf32, #tpu.memory_space<vmem>>) attributes {dimension_semantics = [], scalar_prefetch = 0 : i64, scratch_operands = 2 : i64, tpu.core_type = #tpu.core_type<tc>} {
    %c0 = arith.constant 0 : index
    %c0_0 = arith.constant 0 : index
    %0 = vector.load %arg0[%c0, %c0_0] : memref<24x64xf32, #tpu.memory_space<vmem>>, vector<24x64xf32>
    %c0_1 = arith.constant 0 : index
    %c0_2 = arith.constant 0 : index
    %1 = vector.load %arg2[%c0_1, %c0_2] : memref<1x64xf32, #tpu.memory_space<vmem>>, vector<1x64xf32>
    %c0_3 = arith.constant 0 : index
    %c0_4 = arith.constant 0 : index
    %2 = vector.load %arg3[%c0_3, %c0_4] : memref<1x64xf32, #tpu.memory_space<vmem>>, vector<1x64xf32>
    %cst = arith.constant dense<0.000000e+00> : vector<24xf32>
    %3 = vector.multi_reduction <add>, %0, %cst [1] : vector<24x64xf32> to vector<24xf32>
    %4 = vector.shape_cast %3 : vector<24xf32> to vector<24x1xf32>
    %cst_5 = arith.constant 6.400000e+01 : f32
    %5 = vector.broadcast %cst_5 : f32 to vector<24x1xf32>
    %6 = arith.divf %4, %5 : vector<24x1xf32>
    %7 = vector.broadcast %6 : vector<24x1xf32> to vector<24x64xf32>
    %8 = arith.subf %0, %7 : vector<24x64xf32>
    %9 = arith.mulf %8, %8 : vector<24x64xf32>
    %cst_6 = arith.constant dense<0.000000e+00> : vector<24xf32>
    %10 = vector.multi_reduction <add>, %9, %cst_6 [1] : vector<24x64xf32> to vector<24xf32>
    %11 = vector.shape_cast %10 : vector<24xf32> to vector<24x1xf32>
    %cst_7 = arith.constant 6.400000e+01 : f32
    %12 = vector.broadcast %cst_7 : f32 to vector<24x1xf32>
    %13 = arith.divf %11, %12 : vector<24x1xf32>
    %14 = vector.broadcast %6 : vector<24x1xf32> to vector<24x64xf32>
    %15 = arith.subf %0, %14 : vector<24x64xf32>
    %cst_8 = arith.constant 9.99999974E-6 : f32
    %16 = vector.broadcast %cst_8 : f32 to vector<24x1xf32>
    %17 = arith.addf %13, %16 : vector<24x1xf32>
    %18 = math.sqrt %17 : vector<24x1xf32>
    %19 = vector.broadcast %18 : vector<24x1xf32> to vector<24x64xf32>
    %20 = arith.divf %15, %19 : vector<24x64xf32>
    %21 = vector.broadcast %1 : vector<1x64xf32> to vector<24x64xf32>
    %22 = arith.mulf %20, %21 : vector<24x64xf32>
    %23 = vector.broadcast %2 : vector<1x64xf32> to vector<24x64xf32>
    %24 = arith.addf %22, %23 : vector<24x64xf32>
    %c0_9 = arith.constant 0 : index
    %c0_10 = arith.constant 0 : index
    %25 = vector.load %arg4[%c0_9, %c0_10] : memref<64x192xf32, #tpu.memory_space<vmem>>, vector<64x192xf32>
    %cst_11 = arith.constant dense<0.000000e+00> : vector<24x192xf32>
    %26 = tpu.matmul %24, %25, %cst_11 {dimension_numbers = #tpu.dot_dimension_numbers<[1], [0], [0], [1], [0, 0, 1, 1], [], []>} : vector<24x64xf32>, vector<64x192xf32>, vector<24x192xf32> -> vector<24x192xf32>
    %c0_12 = arith.constant 0 : index
    %c0_13 = arith.constant 0 : index
    %27 = vector.load %arg16[%c0_12, %c0_13] : memref<24x192xf32, #tpu.memory_space<vmem>>, vector<24x192xf32>
    tpu.vector_store %arg16[%c0_12, %c0_13], %26 {strides = array<i32>} : memref<24x192xf32, #tpu.memory_space<vmem>>, vector<24x192xf32>,
    %c0_14 = arith.constant 0 : index
    %c0_15 = arith.constant 0 : index
    %28 = vector.load %arg16[%c0_14, %c0_15] : memref<24x192xf32, #tpu.memory_space<vmem>>, vector<12x8xf32>
    %c0_16 = arith.constant 0 : index
    %c64 = arith.constant 64 : index
    %29 = vector.load %arg16[%c0_16, %c64] : memref<24x192xf32, #tpu.memory_space<vmem>>, vector<12x8xf32>
    %c0_17 = arith.constant 0 : index
    %c128 = arith.constant 128 : index
    %30 = vector.load %arg16[%c0_17, %c128] : memref<24x192xf32, #tpu.memory_space<vmem>>, vector<12x8xf32>
    %cst_18 = arith.constant dense<0.000000e+00> : vector<12x12xf32>
    %31 = tpu.matmul %28, %29, %cst_18 {dimension_numbers = #tpu.dot_dimension_numbers<[1], [1], [0], [0], [0, 0, 1, 0], [], []>} : vector<12x8xf32>, vector<12x8xf32>, vector<12x12xf32> -> vector<12x12xf32>
    %cst_19 = arith.constant 0.353553385 : f32
    %32 = vector.broadcast %cst_19 : f32 to vector<12x12xf32>
    %33 = arith.mulf %31, %32 : vector<12x12xf32>
    %c0_20 = arith.constant 0 : index
    %c0_21 = arith.constant 0 : index
    %c0_22 = arith.constant 0 : index
    %34 = vector.load %arg1[%c0_20, %c0_21, %c0_22] : memref<16x12x12xf32, #tpu.memory_space<vmem>>, vector<1x12x12xf32>
    %35 = vector.shape_cast %34 : vector<1x12x12xf32> to vector<12x12xf32>
    %36 = arith.addf %33, %35 : vector<12x12xf32>
    %cst_23 = arith.constant dense<0xFF800000> : vector<12xf32>
    %37 = vector.multi_reduction <maximumf>, %36, %cst_23 [1] : vector<12x12xf32> to vector<12xf32>
    %38 = vector.shape_cast %37 : vector<12xf32> to vector<12x1xf32>
    %39 = vector.broadcast %38 : vector<12x1xf32> to vector<12x12xf32>
    %40 = arith.subf %36, %39 : vector<12x12xf32>
    %41 = math.exp %40 : vector<12x12xf32>
    %cst_24 = arith.constant dense<0.000000e+00> : vector<12xf32>
    %42 = vector.multi_reduction <add>, %41, %cst_24 [1] : vector<12x12xf32> to vector<12xf32>
    %43 = vector.shape_cast %42 : vector<12xf32> to vector<12x1xf32>
    %44 = vector.broadcast %43 : vector<12x1xf32> to vector<12x12xf32>
    %45 = arith.divf %41, %44 : vector<12x12xf32>
    %cst_25 = arith.constant dense<0.000000e+00> : vector<12x8xf32>
    %46 = tpu.matmul %45, %30, %cst_25 {dimension_numbers = #tpu.dot_dimension_numbers<[1], [0], [0], [1], [0, 0, 1, 1], [], []>} : vector<12x12xf32>, vector<12x8xf32>, vector<12x8xf32> -> vector<12x8xf32>
    %c0_26 = arith.constant 0 : index
    %c0_27 = arith.constant 0 : index
    %47 = vector.load %arg17[%c0_26, %c0_27] : memref<24x64xf32, #tpu.memory_space<vmem>>, vector<12x8xf32>
    tpu.vector_store %arg17[%c0_26, %c0_27], %46 {strides = array<i32>} : memref<24x64xf32, #tpu.memory_space<vmem>>, vector<12x8xf32>,
    %c0_28 = arith.constant 0 : index
    %c8 = arith.constant 8 : index
    %48 = vector.load %arg16[%c0_28, %c8] : memref<24x192xf32, #tpu.memory_space<vmem>>, vector<12x8xf32>
    %c0_29 = arith.constant 0 : index
    %c72 = arith.constant 72 : index
    %49 = vector.load %arg16[%c0_29, %c72] : memref<24x192xf32, #tpu.memory_space<vmem>>, vector<12x8xf32>
    %c0_30 = arith.constant 0 : index
    %c136 = arith.constant 136 : index
    %50 = vector.load %arg16[%c0_30, %c136] : memref<24x192xf32, #tpu.memory_space<vmem>>, vector<12x8xf32>
    %cst_31 = arith.constant dense<0.000000e+00> : vector<12x12xf32>
    %51 = tpu.matmul %48, %49, %cst_31 {dimension_numbers = #tpu.dot_dimension_numbers<[1], [1], [0], [0], [0, 0, 1, 0], [], []>} : vector<12x8xf32>, vector<12x8xf32>, vector<12x12xf32> -> vector<12x12xf32>
    %cst_32 = arith.constant 0.353553385 : f32
    %52 = vector.broadcast %cst_32 : f32 to vector<12x12xf32>
    %53 = arith.mulf %51, %52 : vector<12x12xf32>
    %c1 = arith.constant 1 : index
    %c0_33 = arith.constant 0 : index
    %c0_34 = arith.constant 0 : index
    %54 = vector.load %arg1[%c1, %c0_33, %c0_34] : memref<16x12x12xf32, #tpu.memory_space<vmem>>, vector<1x12x12xf32>
    %55 = vector.shape_cast %54 : vector<1x12x12xf32> to vector<12x12xf32>
    %56 = arith.addf %53, %55 : vector<12x12xf32>
    %cst_35 = arith.constant dense<0xFF800000> : vector<12xf32>
    %57 = vector.multi_reduction <maximumf>, %56, %cst_35 [1] : vector<12x12xf32> to vector<12xf32>
    %58 = vector.shape_cast %57 : vector<12xf32> to vector<12x1xf32>
    %59 = vector.broadcast %58 : vector<12x1xf32> to vector<12x12xf32>
    %60 = arith.subf %56, %59 : vector<12x12xf32>
    %61 = math.exp %60 : vector<12x12xf32>
    %cst_36 = arith.constant dense<0.000000e+00> : vector<12xf32>
    %62 = vector.multi_reduction <add>, %61, %cst_36 [1] : vector<12x12xf32> to vector<12xf32>
    %63 = vector.shape_cast %62 : vector<12xf32> to vector<12x1xf32>
    %64 = vector.broadcast %63 : vector<12x1xf32> to vector<12x12xf32>
    %65 = arith.divf %61, %64 : vector<12x12xf32>
    %cst_37 = arith.constant dense<0.000000e+00> : vector<12x8xf32>
    %66 = tpu.matmul %65, %50, %cst_37 {dimension_numbers = #tpu.dot_dimension_numbers<[1], [0], [0], [1], [0, 0, 1, 1], [], []>} : vector<12x12xf32>, vector<12x8xf32>, vector<12x8xf32> -> vector<12x8xf32>
    %c0_38 = arith.constant 0 : index
    %c8_39 = arith.constant 8 : index
    %67 = vector.load %arg17[%c0_38, %c8_39] : memref<24x64xf32, #tpu.memory_space<vmem>>, vector<12x8xf32>
    tpu.vector_store %arg17[%c0_38, %c8_39], %66 {strides = array<i32>} : memref<24x64xf32, #tpu.memory_space<vmem>>, vector<12x8xf32>,
    %c0_40 = arith.constant 0 : index
    %c16 = arith.constant 16 : index
    %68 = vector.load %arg16[%c0_40, %c16] : memref<24x192xf32, #tpu.memory_space<vmem>>, vector<12x8xf32>
    %c0_41 = arith.constant 0 : index
    %c80 = arith.constant 80 : index
    %69 = vector.load %arg16[%c0_41, %c80] : memref<24x192xf32, #tpu.memory_space<vmem>>, vector<12x8xf32>
    %c0_42 = arith.constant 0 : index
    %c144 = arith.constant 144 : index
    %70 = vector.load %arg16[%c0_42, %c144] : memref<24x192xf32, #tpu.memory_space<vmem>>, vector<12x8xf32>
    %cst_43 = arith.constant dense<0.000000e+00> : vector<12x12xf32>
    %71 = tpu.matmul %68, %69, %cst_43 {dimension_numbers = #tpu.dot_dimension_numbers<[1], [1], [0], [0], [0, 0, 1, 0], [], []>} : vector<12x8xf32>, vector<12x8xf32>, vector<12x12xf32> -> vector<12x12xf32>
    %cst_44 = arith.constant 0.353553385 : f32
    %72 = vector.broadcast %cst_44 : f32 to vector<12x12xf32>
    %73 = arith.mulf %71, %72 : vector<12x12xf32>
    %c2 = arith.constant 2 : index
    %c0_45 = arith.constant 0 : index
    %c0_46 = arith.constant 0 : index
    %74 = vector.load %arg1[%c2, %c0_45, %c0_46] : memref<16x12x12xf32, #tpu.memory_space<vmem>>, vector<1x12x12xf32>
    %75 = vector.shape_cast %74 : vector<1x12x12xf32> to vector<12x12xf32>
    %76 = arith.addf %73, %75 : vector<12x12xf32>
    %cst_47 = arith.constant dense<0xFF800000> : vector<12xf32>
    %77 = vector.multi_reduction <maximumf>, %76, %cst_47 [1] : vector<12x12xf32> to vector<12xf32>
    %78 = vector.shape_cast %77 : vector<12xf32> to vector<12x1xf32>
    %79 = vector.broadcast %78 : vector<12x1xf32> to vector<12x12xf32>
    %80 = arith.subf %76, %79 : vector<12x12xf32>
    %81 = math.exp %80 : vector<12x12xf32>
    %cst_48 = arith.constant dense<0.000000e+00> : vector<12xf32>
    %82 = vector.multi_reduction <add>, %81, %cst_48 [1] : vector<12x12xf32> to vector<12xf32>
    %83 = vector.shape_cast %82 : vector<12xf32> to vector<12x1xf32>
    %84 = vector.broadcast %83 : vector<12x1xf32> to vector<12x12xf32>
    %85 = arith.divf %81, %84 : vector<12x12xf32>
    %cst_49 = arith.constant dense<0.000000e+00> : vector<12x8xf32>
    %86 = tpu.matmul %85, %70, %cst_49 {dimension_numbers = #tpu.dot_dimension_numbers<[1], [0], [0], [1], [0, 0, 1, 1], [], []>} : vector<12x12xf32>, vector<12x8xf32>, vector<12x8xf32> -> vector<12x8xf32>
    %c0_50 = arith.constant 0 : index
    %c16_51 = arith.constant 16 : index
    %87 = vector.load %arg17[%c0_50, %c16_51] : memref<24x64xf32, #tpu.memory_space<vmem>>, vector<12x8xf32>
    tpu.vector_store %arg17[%c0_50, %c16_51], %86 {strides = array<i32>} : memref<24x64xf32, #tpu.memory_space<vmem>>, vector<12x8xf32>,
    %c0_52 = arith.constant 0 : index
    %c24 = arith.constant 24 : index
    %88 = vector.load %arg16[%c0_52, %c24] : memref<24x192xf32, #tpu.memory_space<vmem>>, vector<12x8xf32>
    %c0_53 = arith.constant 0 : index
    %c88 = arith.constant 88 : index
    %89 = vector.load %arg16[%c0_53, %c88] : memref<24x192xf32, #tpu.memory_space<vmem>>, vector<12x8xf32>
    %c0_54 = arith.constant 0 : index
    %c152 = arith.constant 152 : index
    %90 = vector.load %arg16[%c0_54, %c152] : memref<24x192xf32, #tpu.memory_space<vmem>>, vector<12x8xf32>
    %cst_55 = arith.constant dense<0.000000e+00> : vector<12x12xf32>
    %91 = tpu.matmul %88, %89, %cst_55 {dimension_numbers = #tpu.dot_dimension_numbers<[1], [1], [0], [0], [0, 0, 1, 0], [], []>} : vector<12x8xf32>, vector<12x8xf32>, vector<12x12xf32> -> vector<12x12xf32>
    %cst_56 = arith.constant 0.353553385 : f32
    %92 = vector.broadcast %cst_56 : f32 to vector<12x12xf32>
    %93 = arith.mulf %91, %92 : vector<12x12xf32>
    %c3 = arith.constant 3 : index
    %c0_57 = arith.constant 0 : index
    %c0_58 = arith.constant 0 : index
    %94 = vector.load %arg1[%c3, %c0_57, %c0_58] : memref<16x12x12xf32, #tpu.memory_space<vmem>>, vector<1x12x12xf32>
    %95 = vector.shape_cast %94 : vector<1x12x12xf32> to vector<12x12xf32>
    %96 = arith.addf %93, %95 : vector<12x12xf32>
    %cst_59 = arith.constant dense<0xFF800000> : vector<12xf32>
    %97 = vector.multi_reduction <maximumf>, %96, %cst_59 [1] : vector<12x12xf32> to vector<12xf32>
    %98 = vector.shape_cast %97 : vector<12xf32> to vector<12x1xf32>
    %99 = vector.broadcast %98 : vector<12x1xf32> to vector<12x12xf32>
    %100 = arith.subf %96, %99 : vector<12x12xf32>
    %101 = math.exp %100 : vector<12x12xf32>
    %cst_60 = arith.constant dense<0.000000e+00> : vector<12xf32>
    %102 = vector.multi_reduction <add>, %101, %cst_60 [1] : vector<12x12xf32> to vector<12xf32>
    %103 = vector.shape_cast %102 : vector<12xf32> to vector<12x1xf32>
    %104 = vector.broadcast %103 : vector<12x1xf32> to vector<12x12xf32>
    %105 = arith.divf %101, %104 : vector<12x12xf32>
    %cst_61 = arith.constant dense<0.000000e+00> : vector<12x8xf32>
    %106 = tpu.matmul %105, %90, %cst_61 {dimension_numbers = #tpu.dot_dimension_numbers<[1], [0], [0], [1], [0, 0, 1, 1], [], []>} : vector<12x12xf32>, vector<12x8xf32>, vector<12x8xf32> -> vector<12x8xf32>
    %c0_62 = arith.constant 0 : index
    %c24_63 = arith.constant 24 : index
    %107 = vector.load %arg17[%c0_62, %c24_63] : memref<24x64xf32, #tpu.memory_space<vmem>>, vector<12x8xf32>
    tpu.vector_store %arg17[%c0_62, %c24_63], %106 {strides = array<i32>} : memref<24x64xf32, #tpu.memory_space<vmem>>, vector<12x8xf32>,
    %c0_64 = arith.constant 0 : index
    %c32 = arith.constant 32 : index
    %108 = vector.load %arg16[%c0_64, %c32] : memref<24x192xf32, #tpu.memory_space<vmem>>, vector<12x8xf32>
    %c0_65 = arith.constant 0 : index
    %c96 = arith.constant 96 : index
    %109 = vector.load %arg16[%c0_65, %c96] : memref<24x192xf32, #tpu.memory_space<vmem>>, vector<12x8xf32>
    %c0_66 = arith.constant 0 : index
    %c160 = arith.constant 160 : index
    %110 = vector.load %arg16[%c0_66, %c160] : memref<24x192xf32, #tpu.memory_space<vmem>>, vector<12x8xf32>
    %cst_67 = arith.constant dense<0.000000e+00> : vector<12x12xf32>
    %111 = tpu.matmul %108, %109, %cst_67 {dimension_numbers = #tpu.dot_dimension_numbers<[1], [1], [0], [0], [0, 0, 1, 0], [], []>} : vector<12x8xf32>, vector<12x8xf32>, vector<12x12xf32> -> vector<12x12xf32>
    %cst_68 = arith.constant 0.353553385 : f32
    %112 = vector.broadcast %cst_68 : f32 to vector<12x12xf32>
    %113 = arith.mulf %111, %112 : vector<12x12xf32>
    %c4 = arith.constant 4 : index
    %c0_69 = arith.constant 0 : index
    %c0_70 = arith.constant 0 : index
    %114 = vector.load %arg1[%c4, %c0_69, %c0_70] : memref<16x12x12xf32, #tpu.memory_space<vmem>>, vector<1x12x12xf32>
    %115 = vector.shape_cast %114 : vector<1x12x12xf32> to vector<12x12xf32>
    %116 = arith.addf %113, %115 : vector<12x12xf32>
    %cst_71 = arith.constant dense<0xFF800000> : vector<12xf32>
    %117 = vector.multi_reduction <maximumf>, %116, %cst_71 [1] : vector<12x12xf32> to vector<12xf32>
    %118 = vector.shape_cast %117 : vector<12xf32> to vector<12x1xf32>
    %119 = vector.broadcast %118 : vector<12x1xf32> to vector<12x12xf32>
    %120 = arith.subf %116, %119 : vector<12x12xf32>
    %121 = math.exp %120 : vector<12x12xf32>
    %cst_72 = arith.constant dense<0.000000e+00> : vector<12xf32>
    %122 = vector.multi_reduction <add>, %121, %cst_72 [1] : vector<12x12xf32> to vector<12xf32>
    %123 = vector.shape_cast %122 : vector<12xf32> to vector<12x1xf32>
    %124 = vector.broadcast %123 : vector<12x1xf32> to vector<12x12xf32>
    %125 = arith.divf %121, %124 : vector<12x12xf32>
    %cst_73 = arith.constant dense<0.000000e+00> : vector<12x8xf32>
    %126 = tpu.matmul %125, %110, %cst_73 {dimension_numbers = #tpu.dot_dimension_numbers<[1], [0], [0], [1], [0, 0, 1, 1], [], []>} : vector<12x12xf32>, vector<12x8xf32>, vector<12x8xf32> -> vector<12x8xf32>
    %c0_74 = arith.constant 0 : index
    %c32_75 = arith.constant 32 : index
    %127 = vector.load %arg17[%c0_74, %c32_75] : memref<24x64xf32, #tpu.memory_space<vmem>>, vector<12x8xf32>
    tpu.vector_store %arg17[%c0_74, %c32_75], %126 {strides = array<i32>} : memref<24x64xf32, #tpu.memory_space<vmem>>, vector<12x8xf32>,
    %c0_76 = arith.constant 0 : index
    %c40 = arith.constant 40 : index
    %128 = vector.load %arg16[%c0_76, %c40] : memref<24x192xf32, #tpu.memory_space<vmem>>, vector<12x8xf32>
    %c0_77 = arith.constant 0 : index
    %c104 = arith.constant 104 : index
    %129 = vector.load %arg16[%c0_77, %c104] : memref<24x192xf32, #tpu.memory_space<vmem>>, vector<12x8xf32>
    %c0_78 = arith.constant 0 : index
    %c168 = arith.constant 168 : index
    %130 = vector.load %arg16[%c0_78, %c168] : memref<24x192xf32, #tpu.memory_space<vmem>>, vector<12x8xf32>
    %cst_79 = arith.constant dense<0.000000e+00> : vector<12x12xf32>
    %131 = tpu.matmul %128, %129, %cst_79 {dimension_numbers = #tpu.dot_dimension_numbers<[1], [1], [0], [0], [0, 0, 1, 0], [], []>} : vector<12x8xf32>, vector<12x8xf32>, vector<12x12xf32> -> vector<12x12xf32>
    %cst_80 = arith.constant 0.353553385 : f32
    %132 = vector.broadcast %cst_80 : f32 to vector<12x12xf32>
    %133 = arith.mulf %131, %132 : vector<12x12xf32>
    %c5 = arith.constant 5 : index
    %c0_81 = arith.constant 0 : index
    %c0_82 = arith.constant 0 : index
    %134 = vector.load %arg1[%c5, %c0_81, %c0_82] : memref<16x12x12xf32, #tpu.memory_space<vmem>>, vector<1x12x12xf32>
    %135 = vector.shape_cast %134 : vector<1x12x12xf32> to vector<12x12xf32>
    %136 = arith.addf %133, %135 : vector<12x12xf32>
    %cst_83 = arith.constant dense<0xFF800000> : vector<12xf32>
    %137 = vector.multi_reduction <maximumf>, %136, %cst_83 [1] : vector<12x12xf32> to vector<12xf32>
    %138 = vector.shape_cast %137 : vector<12xf32> to vector<12x1xf32>
    %139 = vector.broadcast %138 : vector<12x1xf32> to vector<12x12xf32>
    %140 = arith.subf %136, %139 : vector<12x12xf32>
    %141 = math.exp %140 : vector<12x12xf32>
    %cst_84 = arith.constant dense<0.000000e+00> : vector<12xf32>
    %142 = vector.multi_reduction <add>, %141, %cst_84 [1] : vector<12x12xf32> to vector<12xf32>
    %143 = vector.shape_cast %142 : vector<12xf32> to vector<12x1xf32>
    %144 = vector.broadcast %143 : vector<12x1xf32> to vector<12x12xf32>
    %145 = arith.divf %141, %144 : vector<12x12xf32>
    %cst_85 = arith.constant dense<0.000000e+00> : vector<12x8xf32>
    %146 = tpu.matmul %145, %130, %cst_85 {dimension_numbers = #tpu.dot_dimension_numbers<[1], [0], [0], [1], [0, 0, 1, 1], [], []>} : vector<12x12xf32>, vector<12x8xf32>, vector<12x8xf32> -> vector<12x8xf32>
    %c0_86 = arith.constant 0 : index
    %c40_87 = arith.constant 40 : index
    %147 = vector.load %arg17[%c0_86, %c40_87] : memref<24x64xf32, #tpu.memory_space<vmem>>, vector<12x8xf32>
    tpu.vector_store %arg17[%c0_86, %c40_87], %146 {strides = array<i32>} : memref<24x64xf32, #tpu.memory_space<vmem>>, vector<12x8xf32>,
    %c0_88 = arith.constant 0 : index
    %c48 = arith.constant 48 : index
    %148 = vector.load %arg16[%c0_88, %c48] : memref<24x192xf32, #tpu.memory_space<vmem>>, vector<12x8xf32>
    %c0_89 = arith.constant 0 : index
    %c112 = arith.constant 112 : index
    %149 = vector.load %arg16[%c0_89, %c112] : memref<24x192xf32, #tpu.memory_space<vmem>>, vector<12x8xf32>
    %c0_90 = arith.constant 0 : index
    %c176 = arith.constant 176 : index
    %150 = vector.load %arg16[%c0_90, %c176] : memref<24x192xf32, #tpu.memory_space<vmem>>, vector<12x8xf32>
    %cst_91 = arith.constant dense<0.000000e+00> : vector<12x12xf32>
    %151 = tpu.matmul %148, %149, %cst_91 {dimension_numbers = #tpu.dot_dimension_numbers<[1], [1], [0], [0], [0, 0, 1, 0], [], []>} : vector<12x8xf32>, vector<12x8xf32>, vector<12x12xf32> -> vector<12x12xf32>
    %cst_92 = arith.constant 0.353553385 : f32
    %152 = vector.broadcast %cst_92 : f32 to vector<12x12xf32>
    %153 = arith.mulf %151, %152 : vector<12x12xf32>
    %c6 = arith.constant 6 : index
    %c0_93 = arith.constant 0 : index
    %c0_94 = arith.constant 0 : index
    %154 = vector.load %arg1[%c6, %c0_93, %c0_94] : memref<16x12x12xf32, #tpu.memory_space<vmem>>, vector<1x12x12xf32>
    %155 = vector.shape_cast %154 : vector<1x12x12xf32> to vector<12x12xf32>
    %156 = arith.addf %153, %155 : vector<12x12xf32>
    %cst_95 = arith.constant dense<0xFF800000> : vector<12xf32>
    %157 = vector.multi_reduction <maximumf>, %156, %cst_95 [1] : vector<12x12xf32> to vector<12xf32>
    %158 = vector.shape_cast %157 : vector<12xf32> to vector<12x1xf32>
    %159 = vector.broadcast %158 : vector<12x1xf32> to vector<12x12xf32>
    %160 = arith.subf %156, %159 : vector<12x12xf32>
    %161 = math.exp %160 : vector<12x12xf32>
    %cst_96 = arith.constant dense<0.000000e+00> : vector<12xf32>
    %162 = vector.multi_reduction <add>, %161, %cst_96 [1] : vector<12x12xf32> to vector<12xf32>
    %163 = vector.shape_cast %162 : vector<12xf32> to vector<12x1xf32>
    %164 = vector.broadcast %163 : vector<12x1xf32> to vector<12x12xf32>
    %165 = arith.divf %161, %164 : vector<12x12xf32>
    %cst_97 = arith.constant dense<0.000000e+00> : vector<12x8xf32>
    %166 = tpu.matmul %165, %150, %cst_97 {dimension_numbers = #tpu.dot_dimension_numbers<[1], [0], [0], [1], [0, 0, 1, 1], [], []>} : vector<12x12xf32>, vector<12x8xf32>, vector<12x8xf32> -> vector<12x8xf32>
    %c0_98 = arith.constant 0 : index
    %c48_99 = arith.constant 48 : index
    %167 = vector.load %arg17[%c0_98, %c48_99] : memref<24x64xf32, #tpu.memory_space<vmem>>, vector<12x8xf32>
    tpu.vector_store %arg17[%c0_98, %c48_99], %166 {strides = array<i32>} : memref<24x64xf32, #tpu.memory_space<vmem>>, vector<12x8xf32>,
    %c0_100 = arith.constant 0 : index
    %c56 = arith.constant 56 : index
    %168 = vector.load %arg16[%c0_100, %c56] : memref<24x192xf32, #tpu.memory_space<vmem>>, vector<12x8xf32>
    %c0_101 = arith.constant 0 : index
    %c120 = arith.constant 120 : index
    %169 = vector.load %arg16[%c0_101, %c120] : memref<24x192xf32, #tpu.memory_space<vmem>>, vector<12x8xf32>
    %c0_102 = arith.constant 0 : index
    %c184 = arith.constant 184 : index
    %170 = vector.load %arg16[%c0_102, %c184] : memref<24x192xf32, #tpu.memory_space<vmem>>, vector<12x8xf32>
    %cst_103 = arith.constant dense<0.000000e+00> : vector<12x12xf32>
    %171 = tpu.matmul %168, %169, %cst_103 {dimension_numbers = #tpu.dot_dimension_numbers<[1], [1], [0], [0], [0, 0, 1, 0], [], []>} : vector<12x8xf32>, vector<12x8xf32>, vector<12x12xf32> -> vector<12x12xf32>
    %cst_104 = arith.constant 0.353553385 : f32
    %172 = vector.broadcast %cst_104 : f32 to vector<12x12xf32>
    %173 = arith.mulf %171, %172 : vector<12x12xf32>
    %c7 = arith.constant 7 : index
    %c0_105 = arith.constant 0 : index
    %c0_106 = arith.constant 0 : index
    %174 = vector.load %arg1[%c7, %c0_105, %c0_106] : memref<16x12x12xf32, #tpu.memory_space<vmem>>, vector<1x12x12xf32>
    %175 = vector.shape_cast %174 : vector<1x12x12xf32> to vector<12x12xf32>
    %176 = arith.addf %173, %175 : vector<12x12xf32>
    %cst_107 = arith.constant dense<0xFF800000> : vector<12xf32>
    %177 = vector.multi_reduction <maximumf>, %176, %cst_107 [1] : vector<12x12xf32> to vector<12xf32>
    %178 = vector.shape_cast %177 : vector<12xf32> to vector<12x1xf32>
    %179 = vector.broadcast %178 : vector<12x1xf32> to vector<12x12xf32>
    %180 = arith.subf %176, %179 : vector<12x12xf32>
    %181 = math.exp %180 : vector<12x12xf32>
    %cst_108 = arith.constant dense<0.000000e+00> : vector<12xf32>
    %182 = vector.multi_reduction <add>, %181, %cst_108 [1] : vector<12x12xf32> to vector<12xf32>
    %183 = vector.shape_cast %182 : vector<12xf32> to vector<12x1xf32>
    %184 = vector.broadcast %183 : vector<12x1xf32> to vector<12x12xf32>
    %185 = arith.divf %181, %184 : vector<12x12xf32>
    %cst_109 = arith.constant dense<0.000000e+00> : vector<12x8xf32>
    %186 = tpu.matmul %185, %170, %cst_109 {dimension_numbers = #tpu.dot_dimension_numbers<[1], [0], [0], [1], [0, 0, 1, 1], [], []>} : vector<12x12xf32>, vector<12x8xf32>, vector<12x8xf32> -> vector<12x8xf32>
    %c0_110 = arith.constant 0 : index
    %c56_111 = arith.constant 56 : index
    %187 = vector.load %arg17[%c0_110, %c56_111] : memref<24x64xf32, #tpu.memory_space<vmem>>, vector<12x8xf32>
    tpu.vector_store %arg17[%c0_110, %c56_111], %186 {strides = array<i32>} : memref<24x64xf32, #tpu.memory_space<vmem>>, vector<12x8xf32>,
    %c12 = arith.constant 12 : index
    %c0_112 = arith.constant 0 : index
    %188 = vector.load %arg16[%c12, %c0_112] : memref<24x192xf32, #tpu.memory_space<vmem>>, vector<12x8xf32>
    %c12_113 = arith.constant 12 : index
    %c64_114 = arith.constant 64 : index
    %189 = vector.load %arg16[%c12_113, %c64_114] : memref<24x192xf32, #tpu.memory_space<vmem>>, vector<12x8xf32>
    %c12_115 = arith.constant 12 : index
    %c128_116 = arith.constant 128 : index
    %190 = vector.load %arg16[%c12_115, %c128_116] : memref<24x192xf32, #tpu.memory_space<vmem>>, vector<12x8xf32>
    %cst_117 = arith.constant dense<0.000000e+00> : vector<12x12xf32>
    %191 = tpu.matmul %188, %189, %cst_117 {dimension_numbers = #tpu.dot_dimension_numbers<[1], [1], [0], [0], [0, 0, 1, 0], [], []>} : vector<12x8xf32>, vector<12x8xf32>, vector<12x12xf32> -> vector<12x12xf32>
    %cst_118 = arith.constant 0.353553385 : f32
    %192 = vector.broadcast %cst_118 : f32 to vector<12x12xf32>
    %193 = arith.mulf %191, %192 : vector<12x12xf32>
    %c8_119 = arith.constant 8 : index
    %c0_120 = arith.constant 0 : index
    %c0_121 = arith.constant 0 : index
    %194 = vector.load %arg1[%c8_119, %c0_120, %c0_121] : memref<16x12x12xf32, #tpu.memory_space<vmem>>, vector<1x12x12xf32>
    %195 = vector.shape_cast %194 : vector<1x12x12xf32> to vector<12x12xf32>
    %196 = arith.addf %193, %195 : vector<12x12xf32>
    %cst_122 = arith.constant dense<0xFF800000> : vector<12xf32>
    %197 = vector.multi_reduction <maximumf>, %196, %cst_122 [1] : vector<12x12xf32> to vector<12xf32>
    %198 = vector.shape_cast %197 : vector<12xf32> to vector<12x1xf32>
    %199 = vector.broadcast %198 : vector<12x1xf32> to vector<12x12xf32>
    %200 = arith.subf %196, %199 : vector<12x12xf32>
    %201 = math.exp %200 : vector<12x12xf32>
    %cst_123 = arith.constant dense<0.000000e+00> : vector<12xf32>
    %202 = vector.multi_reduction <add>, %201, %cst_123 [1] : vector<12x12xf32> to vector<12xf32>
    %203 = vector.shape_cast %202 : vector<12xf32> to vector<12x1xf32>
    %204 = vector.broadcast %203 : vector<12x1xf32> to vector<12x12xf32>
    %205 = arith.divf %201, %204 : vector<12x12xf32>
    %cst_124 = arith.constant dense<0.000000e+00> : vector<12x8xf32>
    %206 = tpu.matmul %205, %190, %cst_124 {dimension_numbers = #tpu.dot_dimension_numbers<[1], [0], [0], [1], [0, 0, 1, 1], [], []>} : vector<12x12xf32>, vector<12x8xf32>, vector<12x8xf32> -> vector<12x8xf32>
    %c12_125 = arith.constant 12 : index
    %c0_126 = arith.constant 0 : index
    %207 = vector.load %arg17[%c12_125, %c0_126] : memref<24x64xf32, #tpu.memory_space<vmem>>, vector<12x8xf32>
    tpu.vector_store %arg17[%c12_125, %c0_126], %206 {strides = array<i32>} : memref<24x64xf32, #tpu.memory_space<vmem>>, vector<12x8xf32>,
    %c12_127 = arith.constant 12 : index
    %c8_128 = arith.constant 8 : index
    %208 = vector.load %arg16[%c12_127, %c8_128] : memref<24x192xf32, #tpu.memory_space<vmem>>, vector<12x8xf32>
    %c12_129 = arith.constant 12 : index
    %c72_130 = arith.constant 72 : index
    %209 = vector.load %arg16[%c12_129, %c72_130] : memref<24x192xf32, #tpu.memory_space<vmem>>, vector<12x8xf32>
    %c12_131 = arith.constant 12 : index
    %c136_132 = arith.constant 136 : index
    %210 = vector.load %arg16[%c12_131, %c136_132] : memref<24x192xf32, #tpu.memory_space<vmem>>, vector<12x8xf32>
    %cst_133 = arith.constant dense<0.000000e+00> : vector<12x12xf32>
    %211 = tpu.matmul %208, %209, %cst_133 {dimension_numbers = #tpu.dot_dimension_numbers<[1], [1], [0], [0], [0, 0, 1, 0], [], []>} : vector<12x8xf32>, vector<12x8xf32>, vector<12x12xf32> -> vector<12x12xf32>
    %cst_134 = arith.constant 0.353553385 : f32
    %212 = vector.broadcast %cst_134 : f32 to vector<12x12xf32>
    %213 = arith.mulf %211, %212 : vector<12x12xf32>
    %c9 = arith.constant 9 : index
    %c0_135 = arith.constant 0 : index
    %c0_136 = arith.constant 0 : index
    %214 = vector.load %arg1[%c9, %c0_135, %c0_136] : memref<16x12x12xf32, #tpu.memory_space<vmem>>, vector<1x12x12xf32>
    %215 = vector.shape_cast %214 : vector<1x12x12xf32> to vector<12x12xf32>
    %216 = arith.addf %213, %215 : vector<12x12xf32>
    %cst_137 = arith.constant dense<0xFF800000> : vector<12xf32>
    %217 = vector.multi_reduction <maximumf>, %216, %cst_137 [1] : vector<12x12xf32> to vector<12xf32>
    %218 = vector.shape_cast %217 : vector<12xf32> to vector<12x1xf32>
    %219 = vector.broadcast %218 : vector<12x1xf32> to vector<12x12xf32>
    %220 = arith.subf %216, %219 : vector<12x12xf32>
    %221 = math.exp %220 : vector<12x12xf32>
    %cst_138 = arith.constant dense<0.000000e+00> : vector<12xf32>
    %222 = vector.multi_reduction <add>, %221, %cst_138 [1] : vector<12x12xf32> to vector<12xf32>
    %223 = vector.shape_cast %222 : vector<12xf32> to vector<12x1xf32>
    %224 = vector.broadcast %223 : vector<12x1xf32> to vector<12x12xf32>
    %225 = arith.divf %221, %224 : vector<12x12xf32>
    %cst_139 = arith.constant dense<0.000000e+00> : vector<12x8xf32>
    %226 = tpu.matmul %225, %210, %cst_139 {dimension_numbers = #tpu.dot_dimension_numbers<[1], [0], [0], [1], [0, 0, 1, 1], [], []>} : vector<12x12xf32>, vector<12x8xf32>, vector<12x8xf32> -> vector<12x8xf32>
    %c12_140 = arith.constant 12 : index
    %c8_141 = arith.constant 8 : index
    %227 = vector.load %arg17[%c12_140, %c8_141] : memref<24x64xf32, #tpu.memory_space<vmem>>, vector<12x8xf32>
    tpu.vector_store %arg17[%c12_140, %c8_141], %226 {strides = array<i32>} : memref<24x64xf32, #tpu.memory_space<vmem>>, vector<12x8xf32>,
    %c12_142 = arith.constant 12 : index
    %c16_143 = arith.constant 16 : index
    %228 = vector.load %arg16[%c12_142, %c16_143] : memref<24x192xf32, #tpu.memory_space<vmem>>, vector<12x8xf32>
    %c12_144 = arith.constant 12 : index
    %c80_145 = arith.constant 80 : index
    %229 = vector.load %arg16[%c12_144, %c80_145] : memref<24x192xf32, #tpu.memory_space<vmem>>, vector<12x8xf32>
    %c12_146 = arith.constant 12 : index
    %c144_147 = arith.constant 144 : index
    %230 = vector.load %arg16[%c12_146, %c144_147] : memref<24x192xf32, #tpu.memory_space<vmem>>, vector<12x8xf32>
    %cst_148 = arith.constant dense<0.000000e+00> : vector<12x12xf32>
    %231 = tpu.matmul %228, %229, %cst_148 {dimension_numbers = #tpu.dot_dimension_numbers<[1], [1], [0], [0], [0, 0, 1, 0], [], []>} : vector<12x8xf32>, vector<12x8xf32>, vector<12x12xf32> -> vector<12x12xf32>
    %cst_149 = arith.constant 0.353553385 : f32
    %232 = vector.broadcast %cst_149 : f32 to vector<12x12xf32>
    %233 = arith.mulf %231, %232 : vector<12x12xf32>
    %c10 = arith.constant 10 : index
    %c0_150 = arith.constant 0 : index
    %c0_151 = arith.constant 0 : index
    %234 = vector.load %arg1[%c10, %c0_150, %c0_151] : memref<16x12x12xf32, #tpu.memory_space<vmem>>, vector<1x12x12xf32>
    %235 = vector.shape_cast %234 : vector<1x12x12xf32> to vector<12x12xf32>
    %236 = arith.addf %233, %235 : vector<12x12xf32>
    %cst_152 = arith.constant dense<0xFF800000> : vector<12xf32>
    %237 = vector.multi_reduction <maximumf>, %236, %cst_152 [1] : vector<12x12xf32> to vector<12xf32>
    %238 = vector.shape_cast %237 : vector<12xf32> to vector<12x1xf32>
    %239 = vector.broadcast %238 : vector<12x1xf32> to vector<12x12xf32>
    %240 = arith.subf %236, %239 : vector<12x12xf32>
    %241 = math.exp %240 : vector<12x12xf32>
    %cst_153 = arith.constant dense<0.000000e+00> : vector<12xf32>
    %242 = vector.multi_reduction <add>, %241, %cst_153 [1] : vector<12x12xf32> to vector<12xf32>
    %243 = vector.shape_cast %242 : vector<12xf32> to vector<12x1xf32>
    %244 = vector.broadcast %243 : vector<12x1xf32> to vector<12x12xf32>
    %245 = arith.divf %241, %244 : vector<12x12xf32>
    %cst_154 = arith.constant dense<0.000000e+00> : vector<12x8xf32>
    %246 = tpu.matmul %245, %230, %cst_154 {dimension_numbers = #tpu.dot_dimension_numbers<[1], [0], [0], [1], [0, 0, 1, 1], [], []>} : vector<12x12xf32>, vector<12x8xf32>, vector<12x8xf32> -> vector<12x8xf32>
    %c12_155 = arith.constant 12 : index
    %c16_156 = arith.constant 16 : index
    %247 = vector.load %arg17[%c12_155, %c16_156] : memref<24x64xf32, #tpu.memory_space<vmem>>, vector<12x8xf32>
    tpu.vector_store %arg17[%c12_155, %c16_156], %246 {strides = array<i32>} : memref<24x64xf32, #tpu.memory_space<vmem>>, vector<12x8xf32>,
    %c12_157 = arith.constant 12 : index
    %c24_158 = arith.constant 24 : index
    %248 = vector.load %arg16[%c12_157, %c24_158] : memref<24x192xf32, #tpu.memory_space<vmem>>, vector<12x8xf32>
    %c12_159 = arith.constant 12 : index
    %c88_160 = arith.constant 88 : index
    %249 = vector.load %arg16[%c12_159, %c88_160] : memref<24x192xf32, #tpu.memory_space<vmem>>, vector<12x8xf32>
    %c12_161 = arith.constant 12 : index
    %c152_162 = arith.constant 152 : index
    %250 = vector.load %arg16[%c12_161, %c152_162] : memref<24x192xf32, #tpu.memory_space<vmem>>, vector<12x8xf32>
    %cst_163 = arith.constant dense<0.000000e+00> : vector<12x12xf32>
    %251 = tpu.matmul %248, %249, %cst_163 {dimension_numbers = #tpu.dot_dimension_numbers<[1], [1], [0], [0], [0, 0, 1, 0], [], []>} : vector<12x8xf32>, vector<12x8xf32>, vector<12x12xf32> -> vector<12x12xf32>
    %cst_164 = arith.constant 0.353553385 : f32
    %252 = vector.broadcast %cst_164 : f32 to vector<12x12xf32>
    %253 = arith.mulf %251, %252 : vector<12x12xf32>
    %c11 = arith.constant 11 : index
    %c0_165 = arith.constant 0 : index
    %c0_166 = arith.constant 0 : index
    %254 = vector.load %arg1[%c11, %c0_165, %c0_166] : memref<16x12x12xf32, #tpu.memory_space<vmem>>, vector<1x12x12xf32>
    %255 = vector.shape_cast %254 : vector<1x12x12xf32> to vector<12x12xf32>
    %256 = arith.addf %253, %255 : vector<12x12xf32>
    %cst_167 = arith.constant dense<0xFF800000> : vector<12xf32>
    %257 = vector.multi_reduction <maximumf>, %256, %cst_167 [1] : vector<12x12xf32> to vector<12xf32>
    %258 = vector.shape_cast %257 : vector<12xf32> to vector<12x1xf32>
    %259 = vector.broadcast %258 : vector<12x1xf32> to vector<12x12xf32>
    %260 = arith.subf %256, %259 : vector<12x12xf32>
    %261 = math.exp %260 : vector<12x12xf32>
    %cst_168 = arith.constant dense<0.000000e+00> : vector<12xf32>
    %262 = vector.multi_reduction <add>, %261, %cst_168 [1] : vector<12x12xf32> to vector<12xf32>
    %263 = vector.shape_cast %262 : vector<12xf32> to vector<12x1xf32>
    %264 = vector.broadcast %263 : vector<12x1xf32> to vector<12x12xf32>
    %265 = arith.divf %261, %264 : vector<12x12xf32>
    %cst_169 = arith.constant dense<0.000000e+00> : vector<12x8xf32>
    %266 = tpu.matmul %265, %250, %cst_169 {dimension_numbers = #tpu.dot_dimension_numbers<[1], [0], [0], [1], [0, 0, 1, 1], [], []>} : vector<12x12xf32>, vector<12x8xf32>, vector<12x8xf32> -> vector<12x8xf32>
    %c12_170 = arith.constant 12 : index
    %c24_171 = arith.constant 24 : index
    %267 = vector.load %arg17[%c12_170, %c24_171] : memref<24x64xf32, #tpu.memory_space<vmem>>, vector<12x8xf32>
    tpu.vector_store %arg17[%c12_170, %c24_171], %266 {strides = array<i32>} : memref<24x64xf32, #tpu.memory_space<vmem>>, vector<12x8xf32>,
    %c12_172 = arith.constant 12 : index
    %c32_173 = arith.constant 32 : index
    %268 = vector.load %arg16[%c12_172, %c32_173] : memref<24x192xf32, #tpu.memory_space<vmem>>, vector<12x8xf32>
    %c12_174 = arith.constant 12 : index
    %c96_175 = arith.constant 96 : index
    %269 = vector.load %arg16[%c12_174, %c96_175] : memref<24x192xf32, #tpu.memory_space<vmem>>, vector<12x8xf32>
    %c12_176 = arith.constant 12 : index
    %c160_177 = arith.constant 160 : index
    %270 = vector.load %arg16[%c12_176, %c160_177] : memref<24x192xf32, #tpu.memory_space<vmem>>, vector<12x8xf32>
    %cst_178 = arith.constant dense<0.000000e+00> : vector<12x12xf32>
    %271 = tpu.matmul %268, %269, %cst_178 {dimension_numbers = #tpu.dot_dimension_numbers<[1], [1], [0], [0], [0, 0, 1, 0], [], []>} : vector<12x8xf32>, vector<12x8xf32>, vector<12x12xf32> -> vector<12x12xf32>
    %cst_179 = arith.constant 0.353553385 : f32
    %272 = vector.broadcast %cst_179 : f32 to vector<12x12xf32>
    %273 = arith.mulf %271, %272 : vector<12x12xf32>
    %c12_180 = arith.constant 12 : index
    %c0_181 = arith.constant 0 : index
    %c0_182 = arith.constant 0 : index
    %274 = vector.load %arg1[%c12_180, %c0_181, %c0_182] : memref<16x12x12xf32, #tpu.memory_space<vmem>>, vector<1x12x12xf32>
    %275 = vector.shape_cast %274 : vector<1x12x12xf32> to vector<12x12xf32>
    %276 = arith.addf %273, %275 : vector<12x12xf32>
    %cst_183 = arith.constant dense<0xFF800000> : vector<12xf32>
    %277 = vector.multi_reduction <maximumf>, %276, %cst_183 [1] : vector<12x12xf32> to vector<12xf32>
    %278 = vector.shape_cast %277 : vector<12xf32> to vector<12x1xf32>
    %279 = vector.broadcast %278 : vector<12x1xf32> to vector<12x12xf32>
    %280 = arith.subf %276, %279 : vector<12x12xf32>
    %281 = math.exp %280 : vector<12x12xf32>
    %cst_184 = arith.constant dense<0.000000e+00> : vector<12xf32>
    %282 = vector.multi_reduction <add>, %281, %cst_184 [1] : vector<12x12xf32> to vector<12xf32>
    %283 = vector.shape_cast %282 : vector<12xf32> to vector<12x1xf32>
    %284 = vector.broadcast %283 : vector<12x1xf32> to vector<12x12xf32>
    %285 = arith.divf %281, %284 : vector<12x12xf32>
    %cst_185 = arith.constant dense<0.000000e+00> : vector<12x8xf32>
    %286 = tpu.matmul %285, %270, %cst_185 {dimension_numbers = #tpu.dot_dimension_numbers<[1], [0], [0], [1], [0, 0, 1, 1], [], []>} : vector<12x12xf32>, vector<12x8xf32>, vector<12x8xf32> -> vector<12x8xf32>
    %c12_186 = arith.constant 12 : index
    %c32_187 = arith.constant 32 : index
    %287 = vector.load %arg17[%c12_186, %c32_187] : memref<24x64xf32, #tpu.memory_space<vmem>>, vector<12x8xf32>
    tpu.vector_store %arg17[%c12_186, %c32_187], %286 {strides = array<i32>} : memref<24x64xf32, #tpu.memory_space<vmem>>, vector<12x8xf32>,
    %c12_188 = arith.constant 12 : index
    %c40_189 = arith.constant 40 : index
    %288 = vector.load %arg16[%c12_188, %c40_189] : memref<24x192xf32, #tpu.memory_space<vmem>>, vector<12x8xf32>
    %c12_190 = arith.constant 12 : index
    %c104_191 = arith.constant 104 : index
    %289 = vector.load %arg16[%c12_190, %c104_191] : memref<24x192xf32, #tpu.memory_space<vmem>>, vector<12x8xf32>
    %c12_192 = arith.constant 12 : index
    %c168_193 = arith.constant 168 : index
    %290 = vector.load %arg16[%c12_192, %c168_193] : memref<24x192xf32, #tpu.memory_space<vmem>>, vector<12x8xf32>
    %cst_194 = arith.constant dense<0.000000e+00> : vector<12x12xf32>
    %291 = tpu.matmul %288, %289, %cst_194 {dimension_numbers = #tpu.dot_dimension_numbers<[1], [1], [0], [0], [0, 0, 1, 0], [], []>} : vector<12x8xf32>, vector<12x8xf32>, vector<12x12xf32> -> vector<12x12xf32>
    %cst_195 = arith.constant 0.353553385 : f32
    %292 = vector.broadcast %cst_195 : f32 to vector<12x12xf32>
    %293 = arith.mulf %291, %292 : vector<12x12xf32>
    %c13 = arith.constant 13 : index
    %c0_196 = arith.constant 0 : index
    %c0_197 = arith.constant 0 : index
    %294 = vector.load %arg1[%c13, %c0_196, %c0_197] : memref<16x12x12xf32, #tpu.memory_space<vmem>>, vector<1x12x12xf32>
    %295 = vector.shape_cast %294 : vector<1x12x12xf32> to vector<12x12xf32>
    %296 = arith.addf %293, %295 : vector<12x12xf32>
    %cst_198 = arith.constant dense<0xFF800000> : vector<12xf32>
    %297 = vector.multi_reduction <maximumf>, %296, %cst_198 [1] : vector<12x12xf32> to vector<12xf32>
    %298 = vector.shape_cast %297 : vector<12xf32> to vector<12x1xf32>
    %299 = vector.broadcast %298 : vector<12x1xf32> to vector<12x12xf32>
    %300 = arith.subf %296, %299 : vector<12x12xf32>
    %301 = math.exp %300 : vector<12x12xf32>
    %cst_199 = arith.constant dense<0.000000e+00> : vector<12xf32>
    %302 = vector.multi_reduction <add>, %301, %cst_199 [1] : vector<12x12xf32> to vector<12xf32>
    %303 = vector.shape_cast %302 : vector<12xf32> to vector<12x1xf32>
    %304 = vector.broadcast %303 : vector<12x1xf32> to vector<12x12xf32>
    %305 = arith.divf %301, %304 : vector<12x12xf32>
    %cst_200 = arith.constant dense<0.000000e+00> : vector<12x8xf32>
    %306 = tpu.matmul %305, %290, %cst_200 {dimension_numbers = #tpu.dot_dimension_numbers<[1], [0], [0], [1], [0, 0, 1, 1], [], []>} : vector<12x12xf32>, vector<12x8xf32>, vector<12x8xf32> -> vector<12x8xf32>
    %c12_201 = arith.constant 12 : index
    %c40_202 = arith.constant 40 : index
    %307 = vector.load %arg17[%c12_201, %c40_202] : memref<24x64xf32, #tpu.memory_space<vmem>>, vector<12x8xf32>
    tpu.vector_store %arg17[%c12_201, %c40_202], %306 {strides = array<i32>} : memref<24x64xf32, #tpu.memory_space<vmem>>, vector<12x8xf32>,
    %c12_203 = arith.constant 12 : index
    %c48_204 = arith.constant 48 : index
    %308 = vector.load %arg16[%c12_203, %c48_204] : memref<24x192xf32, #tpu.memory_space<vmem>>, vector<12x8xf32>
    %c12_205 = arith.constant 12 : index
    %c112_206 = arith.constant 112 : index
    %309 = vector.load %arg16[%c12_205, %c112_206] : memref<24x192xf32, #tpu.memory_space<vmem>>, vector<12x8xf32>
    %c12_207 = arith.constant 12 : index
    %c176_208 = arith.constant 176 : index
    %310 = vector.load %arg16[%c12_207, %c176_208] : memref<24x192xf32, #tpu.memory_space<vmem>>, vector<12x8xf32>
    %cst_209 = arith.constant dense<0.000000e+00> : vector<12x12xf32>
    %311 = tpu.matmul %308, %309, %cst_209 {dimension_numbers = #tpu.dot_dimension_numbers<[1], [1], [0], [0], [0, 0, 1, 0], [], []>} : vector<12x8xf32>, vector<12x8xf32>, vector<12x12xf32> -> vector<12x12xf32>
    %cst_210 = arith.constant 0.353553385 : f32
    %312 = vector.broadcast %cst_210 : f32 to vector<12x12xf32>
    %313 = arith.mulf %311, %312 : vector<12x12xf32>
    %c14 = arith.constant 14 : index
    %c0_211 = arith.constant 0 : index
    %c0_212 = arith.constant 0 : index
    %314 = vector.load %arg1[%c14, %c0_211, %c0_212] : memref<16x12x12xf32, #tpu.memory_space<vmem>>, vector<1x12x12xf32>
    %315 = vector.shape_cast %314 : vector<1x12x12xf32> to vector<12x12xf32>
    %316 = arith.addf %313, %315 : vector<12x12xf32>
    %cst_213 = arith.constant dense<0xFF800000> : vector<12xf32>
    %317 = vector.multi_reduction <maximumf>, %316, %cst_213 [1] : vector<12x12xf32> to vector<12xf32>
    %318 = vector.shape_cast %317 : vector<12xf32> to vector<12x1xf32>
    %319 = vector.broadcast %318 : vector<12x1xf32> to vector<12x12xf32>
    %320 = arith.subf %316, %319 : vector<12x12xf32>
    %321 = math.exp %320 : vector<12x12xf32>
    %cst_214 = arith.constant dense<0.000000e+00> : vector<12xf32>
    %322 = vector.multi_reduction <add>, %321, %cst_214 [1] : vector<12x12xf32> to vector<12xf32>
    %323 = vector.shape_cast %322 : vector<12xf32> to vector<12x1xf32>
    %324 = vector.broadcast %323 : vector<12x1xf32> to vector<12x12xf32>
    %325 = arith.divf %321, %324 : vector<12x12xf32>
    %cst_215 = arith.constant dense<0.000000e+00> : vector<12x8xf32>
    %326 = tpu.matmul %325, %310, %cst_215 {dimension_numbers = #tpu.dot_dimension_numbers<[1], [0], [0], [1], [0, 0, 1, 1], [], []>} : vector<12x12xf32>, vector<12x8xf32>, vector<12x8xf32> -> vector<12x8xf32>
    %c12_216 = arith.constant 12 : index
    %c48_217 = arith.constant 48 : index
    %327 = vector.load %arg17[%c12_216, %c48_217] : memref<24x64xf32, #tpu.memory_space<vmem>>, vector<12x8xf32>
    tpu.vector_store %arg17[%c12_216, %c48_217], %326 {strides = array<i32>} : memref<24x64xf32, #tpu.memory_space<vmem>>, vector<12x8xf32>,
    %c12_218 = arith.constant 12 : index
    %c56_219 = arith.constant 56 : index
    %328 = vector.load %arg16[%c12_218, %c56_219] : memref<24x192xf32, #tpu.memory_space<vmem>>, vector<12x8xf32>
    %c12_220 = arith.constant 12 : index
    %c120_221 = arith.constant 120 : index
    %329 = vector.load %arg16[%c12_220, %c120_221] : memref<24x192xf32, #tpu.memory_space<vmem>>, vector<12x8xf32>
    %c12_222 = arith.constant 12 : index
    %c184_223 = arith.constant 184 : index
    %330 = vector.load %arg16[%c12_222, %c184_223] : memref<24x192xf32, #tpu.memory_space<vmem>>, vector<12x8xf32>
    %cst_224 = arith.constant dense<0.000000e+00> : vector<12x12xf32>
    %331 = tpu.matmul %328, %329, %cst_224 {dimension_numbers = #tpu.dot_dimension_numbers<[1], [1], [0], [0], [0, 0, 1, 0], [], []>} : vector<12x8xf32>, vector<12x8xf32>, vector<12x12xf32> -> vector<12x12xf32>
    %cst_225 = arith.constant 0.353553385 : f32
    %332 = vector.broadcast %cst_225 : f32 to vector<12x12xf32>
    %333 = arith.mulf %331, %332 : vector<12x12xf32>
    %c15 = arith.constant 15 : index
    %c0_226 = arith.constant 0 : index
    %c0_227 = arith.constant 0 : index
    %334 = vector.load %arg1[%c15, %c0_226, %c0_227] : memref<16x12x12xf32, #tpu.memory_space<vmem>>, vector<1x12x12xf32>
    %335 = vector.shape_cast %334 : vector<1x12x12xf32> to vector<12x12xf32>
    %336 = arith.addf %333, %335 : vector<12x12xf32>
    %cst_228 = arith.constant dense<0xFF800000> : vector<12xf32>
    %337 = vector.multi_reduction <maximumf>, %336, %cst_228 [1] : vector<12x12xf32> to vector<12xf32>
    %338 = vector.shape_cast %337 : vector<12xf32> to vector<12x1xf32>
    %339 = vector.broadcast %338 : vector<12x1xf32> to vector<12x12xf32>
    %340 = arith.subf %336, %339 : vector<12x12xf32>
    %341 = math.exp %340 : vector<12x12xf32>
    %cst_229 = arith.constant dense<0.000000e+00> : vector<12xf32>
    %342 = vector.multi_reduction <add>, %341, %cst_229 [1] : vector<12x12xf32> to vector<12xf32>
    %343 = vector.shape_cast %342 : vector<12xf32> to vector<12x1xf32>
    %344 = vector.broadcast %343 : vector<12x1xf32> to vector<12x12xf32>
    %345 = arith.divf %341, %344 : vector<12x12xf32>
    %cst_230 = arith.constant dense<0.000000e+00> : vector<12x8xf32>
    %346 = tpu.matmul %345, %330, %cst_230 {dimension_numbers = #tpu.dot_dimension_numbers<[1], [0], [0], [1], [0, 0, 1, 1], [], []>} : vector<12x12xf32>, vector<12x8xf32>, vector<12x8xf32> -> vector<12x8xf32>
    %c12_231 = arith.constant 12 : index
    %c56_232 = arith.constant 56 : index
    %347 = vector.load %arg17[%c12_231, %c56_232] : memref<24x64xf32, #tpu.memory_space<vmem>>, vector<12x8xf32>
    tpu.vector_store %arg17[%c12_231, %c56_232], %346 {strides = array<i32>} : memref<24x64xf32, #tpu.memory_space<vmem>>, vector<12x8xf32>,
    %c0_233 = arith.constant 0 : index
    %c0_234 = arith.constant 0 : index
    %348 = vector.load %arg17[%c0_233, %c0_234] : memref<24x64xf32, #tpu.memory_space<vmem>>, vector<24x64xf32>
    %c0_235 = arith.constant 0 : index
    %c0_236 = arith.constant 0 : index
    %349 = vector.load %arg5[%c0_235, %c0_236] : memref<64x64xf32, #tpu.memory_space<vmem>>, vector<64x64xf32>
    %cst_237 = arith.constant dense<0.000000e+00> : vector<24x64xf32>
    %350 = tpu.matmul %348, %349, %cst_237 {dimension_numbers = #tpu.dot_dimension_numbers<[1], [0], [0], [1], [0, 0, 1, 1], [], []>} : vector<24x64xf32>, vector<64x64xf32>, vector<24x64xf32> -> vector<24x64xf32>
    %351 = arith.addf %0, %350 : vector<24x64xf32>
    %c0_238 = arith.constant 0 : index
    %c0_239 = arith.constant 0 : index
    %352 = vector.load %arg6[%c0_238, %c0_239] : memref<1x64xf32, #tpu.memory_space<vmem>>, vector<1x64xf32>
    %353 = vector.broadcast %352 : vector<1x64xf32> to vector<24x64xf32>
    %354 = arith.addf %351, %353 : vector<24x64xf32>
    %c0_240 = arith.constant 0 : index
    %c0_241 = arith.constant 0 : index
    %355 = vector.load %arg7[%c0_240, %c0_241] : memref<1x64xf32, #tpu.memory_space<vmem>>, vector<1x64xf32>
    %c0_242 = arith.constant 0 : index
    %c0_243 = arith.constant 0 : index
    %356 = vector.load %arg8[%c0_242, %c0_243] : memref<1x64xf32, #tpu.memory_space<vmem>>, vector<1x64xf32>
    %cst_244 = arith.constant dense<0.000000e+00> : vector<24xf32>
    %357 = vector.multi_reduction <add>, %354, %cst_244 [1] : vector<24x64xf32> to vector<24xf32>
    %358 = vector.shape_cast %357 : vector<24xf32> to vector<24x1xf32>
    %cst_245 = arith.constant 6.400000e+01 : f32
    %359 = vector.broadcast %cst_245 : f32 to vector<24x1xf32>
    %360 = arith.divf %358, %359 : vector<24x1xf32>
    %361 = vector.broadcast %360 : vector<24x1xf32> to vector<24x64xf32>
    %362 = arith.subf %354, %361 : vector<24x64xf32>
    %363 = arith.mulf %362, %362 : vector<24x64xf32>
    %cst_246 = arith.constant dense<0.000000e+00> : vector<24xf32>
    %364 = vector.multi_reduction <add>, %363, %cst_246 [1] : vector<24x64xf32> to vector<24xf32>
    %365 = vector.shape_cast %364 : vector<24xf32> to vector<24x1xf32>
    %cst_247 = arith.constant 6.400000e+01 : f32
    %366 = vector.broadcast %cst_247 : f32 to vector<24x1xf32>
    %367 = arith.divf %365, %366 : vector<24x1xf32>
    %368 = vector.broadcast %360 : vector<24x1xf32> to vector<24x64xf32>
    %369 = arith.subf %354, %368 : vector<24x64xf32>
    %cst_248 = arith.constant 9.99999974E-6 : f32
    %370 = vector.broadcast %cst_248 : f32 to vector<24x1xf32>
    %371 = arith.addf %367, %370 : vector<24x1xf32>
    %372 = math.sqrt %371 : vector<24x1xf32>
    %373 = vector.broadcast %372 : vector<24x1xf32> to vector<24x64xf32>
    %374 = arith.divf %369, %373 : vector<24x64xf32>
    %375 = vector.broadcast %355 : vector<1x64xf32> to vector<24x64xf32>
    %376 = arith.mulf %374, %375 : vector<24x64xf32>
    %377 = vector.broadcast %356 : vector<1x64xf32> to vector<24x64xf32>
    %378 = arith.addf %376, %377 : vector<24x64xf32>
    %c0_249 = arith.constant 0 : index
    %c0_250 = arith.constant 0 : index
    %379 = vector.load %arg9[%c0_249, %c0_250] : memref<64x256xf32, #tpu.memory_space<vmem>>, vector<64x256xf32>
    %cst_251 = arith.constant dense<0.000000e+00> : vector<24x256xf32>
    %380 = tpu.matmul %378, %379, %cst_251 {dimension_numbers = #tpu.dot_dimension_numbers<[1], [0], [0], [1], [0, 0, 1, 1], [], []>} : vector<24x64xf32>, vector<64x256xf32>, vector<24x256xf32> -> vector<24x256xf32>
    %c0_252 = arith.constant 0 : index
    %c0_253 = arith.constant 0 : index
    %381 = vector.load %arg10[%c0_252, %c0_253] : memref<1x256xf32, #tpu.memory_space<vmem>>, vector<1x256xf32>
    %382 = vector.broadcast %381 : vector<1x256xf32> to vector<24x256xf32>
    %383 = arith.addf %380, %382 : vector<24x256xf32>
    %cst_254 = arith.constant 5.000000e-01 : f32
    %384 = vector.broadcast %cst_254 : f32 to vector<24x256xf32>
    %385 = arith.mulf %384, %383 : vector<24x256xf32>
    %cst_255 = arith.constant 0.707106769 : f32
    %386 = vector.broadcast %cst_255 : f32 to vector<24x256xf32>
    %387 = arith.mulf %383, %386 : vector<24x256xf32>
    %388 = math.absf %387 : vector<24x256xf32>
    %cst_256 = arith.constant 0.327591091 : f32
    %389 = vector.broadcast %cst_256 : f32 to vector<24x256xf32>
    %390 = arith.mulf %389, %388 : vector<24x256xf32>
    %cst_257 = arith.constant 1.000000e+00 : f32
    %391 = vector.broadcast %cst_257 : f32 to vector<24x256xf32>
    %392 = arith.addf %391, %390 : vector<24x256xf32>
    %cst_258 = arith.constant 1.000000e+00 : f32
    %393 = vector.broadcast %cst_258 : f32 to vector<24x256xf32>
    %394 = arith.divf %393, %392 : vector<24x256xf32>
    %cst_259 = arith.constant 1.06140542 : f32
    %395 = vector.broadcast %cst_259 : f32 to vector<24x256xf32>
    %396 = arith.mulf %395, %394 : vector<24x256xf32>
    %cst_260 = arith.constant -1.45315206 : f32
    %397 = vector.broadcast %cst_260 : f32 to vector<24x256xf32>
    %398 = arith.addf %396, %397 : vector<24x256xf32>
    %399 = arith.mulf %398, %394 : vector<24x256xf32>
    %cst_261 = arith.constant 1.42141378 : f32
    %400 = vector.broadcast %cst_261 : f32 to vector<24x256xf32>
    %401 = arith.addf %399, %400 : vector<24x256xf32>
    %402 = arith.mulf %401, %394 : vector<24x256xf32>
    %cst_262 = arith.constant -0.284496725 : f32
    %403 = vector.broadcast %cst_262 : f32 to vector<24x256xf32>
    %404 = arith.addf %402, %403 : vector<24x256xf32>
    %405 = arith.mulf %404, %394 : vector<24x256xf32>
    %cst_263 = arith.constant 0.254829586 : f32
    %406 = vector.broadcast %cst_263 : f32 to vector<24x256xf32>
    %407 = arith.addf %405, %406 : vector<24x256xf32>
    %408 = arith.mulf %407, %394 : vector<24x256xf32>
    %cst_264 = arith.constant 0.000000e+00 : f32
    %409 = vector.broadcast %cst_264 : f32 to vector<24x256xf32>
    %410 = arith.subf %409, %388 : vector<24x256xf32>
    %411 = arith.mulf %410, %388 : vector<24x256xf32>
    %412 = math.exp %411 : vector<24x256xf32>
    %413 = arith.mulf %408, %412 : vector<24x256xf32>
    %cst_265 = arith.constant 1.000000e+00 : f32
    %414 = vector.broadcast %cst_265 : f32 to vector<24x256xf32>
    %415 = arith.subf %414, %413 : vector<24x256xf32>
    %cst_266 = arith.constant 0.000000e+00 : f32
    %416 = vector.broadcast %cst_266 : f32 to vector<24x256xf32>
    %417 = arith.cmpf olt, %387, %416 : vector<24x256xf32>
    %cst_267 = arith.constant 0.000000e+00 : f32
    %418 = vector.broadcast %cst_267 : f32 to vector<24x256xf32>
    %419 = arith.subf %418, %415 : vector<24x256xf32>
    %420 = arith.select %417, %419, %415 : vector<24x256xi1>, vector<24x256xf32>
    %cst_268 = arith.constant 1.000000e+00 : f32
    %421 = vector.broadcast %cst_268 : f32 to vector<24x256xf32>
    %422 = arith.addf %421, %420 : vector<24x256xf32>
    %423 = arith.mulf %385, %422 : vector<24x256xf32>
    %c0_269 = arith.constant 0 : index
    %c0_270 = arith.constant 0 : index
    %424 = vector.load %arg11[%c0_269, %c0_270] : memref<256x64xf32, #tpu.memory_space<vmem>>, vector<256x64xf32>
    %cst_271 = arith.constant dense<0.000000e+00> : vector<24x64xf32>
    %425 = tpu.matmul %423, %424, %cst_271 {dimension_numbers = #tpu.dot_dimension_numbers<[1], [0], [0], [1], [0, 0, 1, 1], [], []>} : vector<24x256xf32>, vector<256x64xf32>, vector<24x64xf32> -> vector<24x64xf32>
    %426 = arith.addf %354, %425 : vector<24x64xf32>
    %c0_272 = arith.constant 0 : index
    %c0_273 = arith.constant 0 : index
    %427 = vector.load %arg12[%c0_272, %c0_273] : memref<1x64xf32, #tpu.memory_space<vmem>>, vector<1x64xf32>
    %428 = vector.broadcast %427 : vector<1x64xf32> to vector<24x64xf32>
    %429 = arith.addf %426, %428 : vector<24x64xf32>
    %c0_274 = arith.constant 0 : index
    %c0_275 = arith.constant 0 : index
    %430 = vector.load %arg13[%c0_274, %c0_275] : memref<1x64xf32, #tpu.memory_space<vmem>>, vector<1x64xf32>
    %c0_276 = arith.constant 0 : index
    %c0_277 = arith.constant 0 : index
    %431 = vector.load %arg14[%c0_276, %c0_277] : memref<1x64xf32, #tpu.memory_space<vmem>>, vector<1x64xf32>
    %cst_278 = arith.constant dense<0.000000e+00> : vector<24xf32>
    %432 = vector.multi_reduction <add>, %429, %cst_278 [1] : vector<24x64xf32> to vector<24xf32>
    %433 = vector.shape_cast %432 : vector<24xf32> to vector<24x1xf32>
    %cst_279 = arith.constant 6.400000e+01 : f32
    %434 = vector.broadcast %cst_279 : f32 to vector<24x1xf32>
    %435 = arith.divf %433, %434 : vector<24x1xf32>
    %436 = vector.broadcast %435 : vector<24x1xf32> to vector<24x64xf32>
    %437 = arith.subf %429, %436 : vector<24x64xf32>
    %438 = arith.mulf %437, %437 : vector<24x64xf32>
    %cst_280 = arith.constant dense<0.000000e+00> : vector<24xf32>
    %439 = vector.multi_reduction <add>, %438, %cst_280 [1] : vector<24x64xf32> to vector<24xf32>
    %440 = vector.shape_cast %439 : vector<24xf32> to vector<24x1xf32>
    %cst_281 = arith.constant 6.400000e+01 : f32
    %441 = vector.broadcast %cst_281 : f32 to vector<24x1xf32>
    %442 = arith.divf %440, %441 : vector<24x1xf32>
    %443 = vector.broadcast %435 : vector<24x1xf32> to vector<24x64xf32>
    %444 = arith.subf %429, %443 : vector<24x64xf32>
    %cst_282 = arith.constant 9.99999974E-6 : f32
    %445 = vector.broadcast %cst_282 : f32 to vector<24x1xf32>
    %446 = arith.addf %442, %445 : vector<24x1xf32>
    %447 = math.sqrt %446 : vector<24x1xf32>
    %448 = vector.broadcast %447 : vector<24x1xf32> to vector<24x64xf32>
    %449 = arith.divf %444, %448 : vector<24x64xf32>
    %450 = vector.broadcast %430 : vector<1x64xf32> to vector<24x64xf32>
    %451 = arith.mulf %449, %450 : vector<24x64xf32>
    %452 = vector.broadcast %431 : vector<1x64xf32> to vector<24x64xf32>
    %453 = arith.addf %451, %452 : vector<24x64xf32>
    %c0_283 = arith.constant 0 : index
    %c0_284 = arith.constant 0 : index
    %454 = vector.load %arg15[%c0_283, %c0_284] : memref<24x64xf32, #tpu.memory_space<vmem>>, vector<24x64xf32>
    tpu.vector_store %arg15[%c0_283, %c0_284], %453 {strides = array<i32>} : memref<24x64xf32, #tpu.memory_space<vmem>>, vector<24x64xf32>,
    return
  }
}

module attributes {stable_mosaic.version = 11 : i64} {
  func.func @_out_loss_kernel(%arg0: memref<32x32xf32, #tpu.memory_space<vmem>>, %arg1: memref<32x48xf32, #tpu.memory_space<vmem>>, %arg2: memref<1x48xf32, #tpu.memory_space<vmem>>, %arg3: memref<32x48xf32, #tpu.memory_space<vmem>>, %arg4: memref<32x1xf32, #tpu.memory_space<vmem>>, %arg5: memref<32x48xf32, #tpu.memory_space<vmem>>, %arg6: memref<1x1xf32, #tpu.memory_space<vmem>>) attributes {dimension_semantics = [], scalar_prefetch = 0 : i64, scratch_operands = 0 : i64, tpu.core_type = #tpu.core_type<tc>} {
    %c0 = arith.constant 0 : index
    %c0_0 = arith.constant 0 : index
    %0 = vector.load %arg0[%c0, %c0_0] : memref<32x32xf32, #tpu.memory_space<vmem>>, vector<32x32xf32>
    %c0_1 = arith.constant 0 : index
    %c0_2 = arith.constant 0 : index
    %1 = vector.load %arg1[%c0_1, %c0_2] : memref<32x48xf32, #tpu.memory_space<vmem>>, vector<32x48xf32>
    %cst = arith.constant dense<0.000000e+00> : vector<32x48xf32>
    %2 = tpu.matmul %0, %1, %cst {dimension_numbers = #tpu.dot_dimension_numbers<[1], [0], [0], [1], [0, 0, 1, 1], [], []>} : vector<32x32xf32>, vector<32x48xf32>, vector<32x48xf32> -> vector<32x48xf32>
    %c0_3 = arith.constant 0 : index
    %c0_4 = arith.constant 0 : index
    %3 = vector.load %arg2[%c0_3, %c0_4] : memref<1x48xf32, #tpu.memory_space<vmem>>, vector<1x48xf32>
    %4 = vector.broadcast %3 : vector<1x48xf32> to vector<32x48xf32>
    %5 = arith.addf %2, %4 : vector<32x48xf32>
    %c0_5 = arith.constant 0 : index
    %c0_6 = arith.constant 0 : index
    %6 = vector.load %arg5[%c0_5, %c0_6] : memref<32x48xf32, #tpu.memory_space<vmem>>, vector<32x48xf32>
    tpu.vector_store %arg5[%c0_5, %c0_6], %5 {strides = array<i32>} : memref<32x48xf32, #tpu.memory_space<vmem>>, vector<32x48xf32>,
    %c0_7 = arith.constant 0 : index
    %c0_8 = arith.constant 0 : index
    %7 = vector.load %arg3[%c0_7, %c0_8] : memref<32x48xf32, #tpu.memory_space<vmem>>, vector<32x48xf32>
    %cst_9 = arith.constant dense<0.000000e+00> : vector<32xf32>
    %8 = vector.multi_reduction <add>, %7, %cst_9 [1] : vector<32x48xf32> to vector<32xf32>
    %9 = vector.shape_cast %8 : vector<32xf32> to vector<32x1xf32>
    %cst_10 = arith.constant 4.800000e+01 : f32
    %10 = vector.broadcast %cst_10 : f32 to vector<32x1xf32>
    %11 = arith.divf %9, %10 : vector<32x1xf32>
    %12 = vector.broadcast %11 : vector<32x1xf32> to vector<32x48xf32>
    %13 = arith.subf %7, %12 : vector<32x48xf32>
    %14 = arith.mulf %13, %13 : vector<32x48xf32>
    %cst_11 = arith.constant dense<0.000000e+00> : vector<32xf32>
    %15 = vector.multi_reduction <add>, %14, %cst_11 [1] : vector<32x48xf32> to vector<32xf32>
    %16 = vector.shape_cast %15 : vector<32xf32> to vector<32x1xf32>
    %cst_12 = arith.constant 4.700000e+01 : f32
    %17 = vector.broadcast %cst_12 : f32 to vector<32x1xf32>
    %18 = arith.divf %16, %17 : vector<32x1xf32>
    %19 = vector.broadcast %11 : vector<32x1xf32> to vector<32x48xf32>
    %20 = arith.subf %7, %19 : vector<32x48xf32>
    %cst_13 = arith.constant 9.99999997E-7 : f32
    %21 = vector.broadcast %cst_13 : f32 to vector<32x1xf32>
    %22 = arith.addf %18, %21 : vector<32x1xf32>
    %23 = math.sqrt %22 : vector<32x1xf32>
    %24 = vector.broadcast %23 : vector<32x1xf32> to vector<32x48xf32>
    %25 = arith.divf %20, %24 : vector<32x48xf32>
    %26 = arith.subf %5, %25 : vector<32x48xf32>
    %27 = arith.mulf %26, %26 : vector<32x48xf32>
    %cst_14 = arith.constant dense<0.000000e+00> : vector<32xf32>
    %28 = vector.multi_reduction <add>, %27, %cst_14 [1] : vector<32x48xf32> to vector<32xf32>
    %29 = vector.shape_cast %28 : vector<32xf32> to vector<32x1xf32>
    %cst_15 = arith.constant 4.800000e+01 : f32
    %30 = vector.broadcast %cst_15 : f32 to vector<32x1xf32>
    %31 = arith.divf %29, %30 : vector<32x1xf32>
    %c0_16 = arith.constant 0 : index
    %c0_17 = arith.constant 0 : index
    %32 = vector.load %arg4[%c0_16, %c0_17] : memref<32x1xf32, #tpu.memory_space<vmem>>, vector<32x1xf32>
    %33 = arith.mulf %31, %32 : vector<32x1xf32>
    %34 = vector.shape_cast %33 : vector<32x1xf32> to vector<1x32x1xf32>
    %cst_18 = arith.constant dense<0.000000e+00> : vector<1xf32>
    %35 = vector.multi_reduction <add>, %34, %cst_18 [1, 2] : vector<1x32x1xf32> to vector<1xf32>
    %36 = vector.shape_cast %35 : vector<1xf32> to vector<1x1x1xf32>
    %37 = vector.extract %36[0, 0, 0] : f32 from vector<1x1x1xf32>
    %38 = vector.broadcast %37 : f32 to vector<1x1xf32>
    %39 = vector.shape_cast %32 : vector<32x1xf32> to vector<1x32x1xf32>
    %cst_19 = arith.constant dense<0.000000e+00> : vector<1xf32>
    %40 = vector.multi_reduction <add>, %39, %cst_19 [1, 2] : vector<1x32x1xf32> to vector<1xf32>
    %41 = vector.shape_cast %40 : vector<1xf32> to vector<1x1x1xf32>
    %42 = vector.extract %41[0, 0, 0] : f32 from vector<1x1x1xf32>
    %43 = vector.broadcast %42 : f32 to vector<1x1xf32>
    %cst_20 = arith.constant 9.99999993E-9 : f32
    %44 = vector.broadcast %cst_20 : f32 to vector<1x1xf32>
    %45 = arith.addf %43, %44 : vector<1x1xf32>
    %46 = arith.divf %38, %45 : vector<1x1xf32>
    %c0_21 = arith.constant 0 : index
    %c0_22 = arith.constant 0 : index
    %47 = vector.load %arg6[%c0_21, %c0_22] : memref<1x1xf32, #tpu.memory_space<vmem>>, vector<1x1xf32>
    tpu.vector_store %arg6[%c0_21, %c0_22], %46 {strides = array<i32>} : memref<1x1xf32, #tpu.memory_space<vmem>>, vector<1x1xf32>,
    return
  }
}

module attributes {stable_mosaic.version = 11 : i64} {
  func.func @_block_kernel(%arg0: memref<32x32xf32, #tpu.memory_space<vmem>>, %arg1: memref<1x32xf32, #tpu.memory_space<vmem>>, %arg2: memref<1x32xf32, #tpu.memory_space<vmem>>, %arg3: memref<32x96xf32, #tpu.memory_space<vmem>>, %arg4: memref<32x32xf32, #tpu.memory_space<vmem>>, %arg5: memref<1x32xf32, #tpu.memory_space<vmem>>, %arg6: memref<1x32xf32, #tpu.memory_space<vmem>>, %arg7: memref<1x32xf32, #tpu.memory_space<vmem>>, %arg8: memref<32x128xf32, #tpu.memory_space<vmem>>, %arg9: memref<1x128xf32, #tpu.memory_space<vmem>>, %arg10: memref<128x32xf32, #tpu.memory_space<vmem>>, %arg11: memref<1x32xf32, #tpu.memory_space<vmem>>, %arg12: memref<1x32xf32, #tpu.memory_space<vmem>>, %arg13: memref<1x32xf32, #tpu.memory_space<vmem>>, %arg14: memref<32x32xf32, #tpu.memory_space<vmem>>, %arg15: memref<32x96xf32, #tpu.memory_space<vmem>>, %arg16: memref<32x32xf32, #tpu.memory_space<vmem>>) attributes {dimension_semantics = [], scalar_prefetch = 0 : i64, scratch_operands = 2 : i64, tpu.core_type = #tpu.core_type<tc>} {
    %c0 = arith.constant 0 : index
    %c0_0 = arith.constant 0 : index
    %0 = vector.load %arg0[%c0, %c0_0] : memref<32x32xf32, #tpu.memory_space<vmem>>, vector<32x32xf32>
    %c0_1 = arith.constant 0 : index
    %c0_2 = arith.constant 0 : index
    %1 = vector.load %arg1[%c0_1, %c0_2] : memref<1x32xf32, #tpu.memory_space<vmem>>, vector<1x32xf32>
    %c0_3 = arith.constant 0 : index
    %c0_4 = arith.constant 0 : index
    %2 = vector.load %arg2[%c0_3, %c0_4] : memref<1x32xf32, #tpu.memory_space<vmem>>, vector<1x32xf32>
    %cst = arith.constant dense<0.000000e+00> : vector<32xf32>
    %3 = vector.multi_reduction <add>, %0, %cst [1] : vector<32x32xf32> to vector<32xf32>
    %4 = vector.shape_cast %3 : vector<32xf32> to vector<32x1xf32>
    %cst_5 = arith.constant 3.200000e+01 : f32
    %5 = vector.broadcast %cst_5 : f32 to vector<32x1xf32>
    %6 = arith.divf %4, %5 : vector<32x1xf32>
    %7 = vector.broadcast %6 : vector<32x1xf32> to vector<32x32xf32>
    %8 = arith.subf %0, %7 : vector<32x32xf32>
    %9 = arith.mulf %8, %8 : vector<32x32xf32>
    %cst_6 = arith.constant dense<0.000000e+00> : vector<32xf32>
    %10 = vector.multi_reduction <add>, %9, %cst_6 [1] : vector<32x32xf32> to vector<32xf32>
    %11 = vector.shape_cast %10 : vector<32xf32> to vector<32x1xf32>
    %cst_7 = arith.constant 3.200000e+01 : f32
    %12 = vector.broadcast %cst_7 : f32 to vector<32x1xf32>
    %13 = arith.divf %11, %12 : vector<32x1xf32>
    %14 = vector.broadcast %6 : vector<32x1xf32> to vector<32x32xf32>
    %15 = arith.subf %0, %14 : vector<32x32xf32>
    %cst_8 = arith.constant 9.99999974E-6 : f32
    %16 = vector.broadcast %cst_8 : f32 to vector<32x1xf32>
    %17 = arith.addf %13, %16 : vector<32x1xf32>
    %18 = math.sqrt %17 : vector<32x1xf32>
    %19 = vector.broadcast %18 : vector<32x1xf32> to vector<32x32xf32>
    %20 = arith.divf %15, %19 : vector<32x32xf32>
    %21 = vector.broadcast %1 : vector<1x32xf32> to vector<32x32xf32>
    %22 = arith.mulf %20, %21 : vector<32x32xf32>
    %23 = vector.broadcast %2 : vector<1x32xf32> to vector<32x32xf32>
    %24 = arith.addf %22, %23 : vector<32x32xf32>
    %c0_9 = arith.constant 0 : index
    %c0_10 = arith.constant 0 : index
    %25 = vector.load %arg3[%c0_9, %c0_10] : memref<32x96xf32, #tpu.memory_space<vmem>>, vector<32x96xf32>
    %cst_11 = arith.constant dense<0.000000e+00> : vector<32x96xf32>
    %26 = tpu.matmul %24, %25, %cst_11 {dimension_numbers = #tpu.dot_dimension_numbers<[1], [0], [0], [1], [0, 0, 1, 1], [], []>} : vector<32x32xf32>, vector<32x96xf32>, vector<32x96xf32> -> vector<32x96xf32>
    %c0_12 = arith.constant 0 : index
    %c0_13 = arith.constant 0 : index
    %27 = vector.load %arg15[%c0_12, %c0_13] : memref<32x96xf32, #tpu.memory_space<vmem>>, vector<32x96xf32>
    tpu.vector_store %arg15[%c0_12, %c0_13], %26 {strides = array<i32>} : memref<32x96xf32, #tpu.memory_space<vmem>>, vector<32x96xf32>,
    %c0_14 = arith.constant 0 : index
    %c0_15 = arith.constant 0 : index
    %28 = vector.load %arg15[%c0_14, %c0_15] : memref<32x96xf32, #tpu.memory_space<vmem>>, vector<16x4xf32>
    %c0_16 = arith.constant 0 : index
    %c32 = arith.constant 32 : index
    %29 = vector.load %arg15[%c0_16, %c32] : memref<32x96xf32, #tpu.memory_space<vmem>>, vector<16x4xf32>
    %c0_17 = arith.constant 0 : index
    %c64 = arith.constant 64 : index
    %30 = vector.load %arg15[%c0_17, %c64] : memref<32x96xf32, #tpu.memory_space<vmem>>, vector<16x4xf32>
    %cst_18 = arith.constant dense<0.000000e+00> : vector<16x16xf32>
    %31 = tpu.matmul %28, %29, %cst_18 {dimension_numbers = #tpu.dot_dimension_numbers<[1], [1], [0], [0], [0, 0, 1, 0], [], []>} : vector<16x4xf32>, vector<16x4xf32>, vector<16x16xf32> -> vector<16x16xf32>
    %cst_19 = arith.constant 5.000000e-01 : f32
    %32 = vector.broadcast %cst_19 : f32 to vector<16x16xf32>
    %33 = arith.mulf %31, %32 : vector<16x16xf32>
    %cst_20 = arith.constant dense<0xFF800000> : vector<16xf32>
    %34 = vector.multi_reduction <maximumf>, %33, %cst_20 [1] : vector<16x16xf32> to vector<16xf32>
    %35 = vector.shape_cast %34 : vector<16xf32> to vector<16x1xf32>
    %36 = vector.broadcast %35 : vector<16x1xf32> to vector<16x16xf32>
    %37 = arith.subf %33, %36 : vector<16x16xf32>
    %38 = math.exp %37 : vector<16x16xf32>
    %cst_21 = arith.constant dense<0.000000e+00> : vector<16xf32>
    %39 = vector.multi_reduction <add>, %38, %cst_21 [1] : vector<16x16xf32> to vector<16xf32>
    %40 = vector.shape_cast %39 : vector<16xf32> to vector<16x1xf32>
    %41 = vector.broadcast %40 : vector<16x1xf32> to vector<16x16xf32>
    %42 = arith.divf %38, %41 : vector<16x16xf32>
    %cst_22 = arith.constant dense<0.000000e+00> : vector<16x4xf32>
    %43 = tpu.matmul %42, %30, %cst_22 {dimension_numbers = #tpu.dot_dimension_numbers<[1], [0], [0], [1], [0, 0, 1, 1], [], []>} : vector<16x16xf32>, vector<16x4xf32>, vector<16x4xf32> -> vector<16x4xf32>
    %c0_23 = arith.constant 0 : index
    %c0_24 = arith.constant 0 : index
    %44 = vector.load %arg16[%c0_23, %c0_24] : memref<32x32xf32, #tpu.memory_space<vmem>>, vector<16x4xf32>
    tpu.vector_store %arg16[%c0_23, %c0_24], %43 {strides = array<i32>} : memref<32x32xf32, #tpu.memory_space<vmem>>, vector<16x4xf32>,
    %c0_25 = arith.constant 0 : index
    %c4 = arith.constant 4 : index
    %45 = vector.load %arg15[%c0_25, %c4] : memref<32x96xf32, #tpu.memory_space<vmem>>, vector<16x4xf32>
    %c0_26 = arith.constant 0 : index
    %c36 = arith.constant 36 : index
    %46 = vector.load %arg15[%c0_26, %c36] : memref<32x96xf32, #tpu.memory_space<vmem>>, vector<16x4xf32>
    %c0_27 = arith.constant 0 : index
    %c68 = arith.constant 68 : index
    %47 = vector.load %arg15[%c0_27, %c68] : memref<32x96xf32, #tpu.memory_space<vmem>>, vector<16x4xf32>
    %cst_28 = arith.constant dense<0.000000e+00> : vector<16x16xf32>
    %48 = tpu.matmul %45, %46, %cst_28 {dimension_numbers = #tpu.dot_dimension_numbers<[1], [1], [0], [0], [0, 0, 1, 0], [], []>} : vector<16x4xf32>, vector<16x4xf32>, vector<16x16xf32> -> vector<16x16xf32>
    %cst_29 = arith.constant 5.000000e-01 : f32
    %49 = vector.broadcast %cst_29 : f32 to vector<16x16xf32>
    %50 = arith.mulf %48, %49 : vector<16x16xf32>
    %cst_30 = arith.constant dense<0xFF800000> : vector<16xf32>
    %51 = vector.multi_reduction <maximumf>, %50, %cst_30 [1] : vector<16x16xf32> to vector<16xf32>
    %52 = vector.shape_cast %51 : vector<16xf32> to vector<16x1xf32>
    %53 = vector.broadcast %52 : vector<16x1xf32> to vector<16x16xf32>
    %54 = arith.subf %50, %53 : vector<16x16xf32>
    %55 = math.exp %54 : vector<16x16xf32>
    %cst_31 = arith.constant dense<0.000000e+00> : vector<16xf32>
    %56 = vector.multi_reduction <add>, %55, %cst_31 [1] : vector<16x16xf32> to vector<16xf32>
    %57 = vector.shape_cast %56 : vector<16xf32> to vector<16x1xf32>
    %58 = vector.broadcast %57 : vector<16x1xf32> to vector<16x16xf32>
    %59 = arith.divf %55, %58 : vector<16x16xf32>
    %cst_32 = arith.constant dense<0.000000e+00> : vector<16x4xf32>
    %60 = tpu.matmul %59, %47, %cst_32 {dimension_numbers = #tpu.dot_dimension_numbers<[1], [0], [0], [1], [0, 0, 1, 1], [], []>} : vector<16x16xf32>, vector<16x4xf32>, vector<16x4xf32> -> vector<16x4xf32>
    %c0_33 = arith.constant 0 : index
    %c4_34 = arith.constant 4 : index
    %61 = vector.load %arg16[%c0_33, %c4_34] : memref<32x32xf32, #tpu.memory_space<vmem>>, vector<16x4xf32>
    tpu.vector_store %arg16[%c0_33, %c4_34], %60 {strides = array<i32>} : memref<32x32xf32, #tpu.memory_space<vmem>>, vector<16x4xf32>,
    %c0_35 = arith.constant 0 : index
    %c8 = arith.constant 8 : index
    %62 = vector.load %arg15[%c0_35, %c8] : memref<32x96xf32, #tpu.memory_space<vmem>>, vector<16x4xf32>
    %c0_36 = arith.constant 0 : index
    %c40 = arith.constant 40 : index
    %63 = vector.load %arg15[%c0_36, %c40] : memref<32x96xf32, #tpu.memory_space<vmem>>, vector<16x4xf32>
    %c0_37 = arith.constant 0 : index
    %c72 = arith.constant 72 : index
    %64 = vector.load %arg15[%c0_37, %c72] : memref<32x96xf32, #tpu.memory_space<vmem>>, vector<16x4xf32>
    %cst_38 = arith.constant dense<0.000000e+00> : vector<16x16xf32>
    %65 = tpu.matmul %62, %63, %cst_38 {dimension_numbers = #tpu.dot_dimension_numbers<[1], [1], [0], [0], [0, 0, 1, 0], [], []>} : vector<16x4xf32>, vector<16x4xf32>, vector<16x16xf32> -> vector<16x16xf32>
    %cst_39 = arith.constant 5.000000e-01 : f32
    %66 = vector.broadcast %cst_39 : f32 to vector<16x16xf32>
    %67 = arith.mulf %65, %66 : vector<16x16xf32>
    %cst_40 = arith.constant dense<0xFF800000> : vector<16xf32>
    %68 = vector.multi_reduction <maximumf>, %67, %cst_40 [1] : vector<16x16xf32> to vector<16xf32>
    %69 = vector.shape_cast %68 : vector<16xf32> to vector<16x1xf32>
    %70 = vector.broadcast %69 : vector<16x1xf32> to vector<16x16xf32>
    %71 = arith.subf %67, %70 : vector<16x16xf32>
    %72 = math.exp %71 : vector<16x16xf32>
    %cst_41 = arith.constant dense<0.000000e+00> : vector<16xf32>
    %73 = vector.multi_reduction <add>, %72, %cst_41 [1] : vector<16x16xf32> to vector<16xf32>
    %74 = vector.shape_cast %73 : vector<16xf32> to vector<16x1xf32>
    %75 = vector.broadcast %74 : vector<16x1xf32> to vector<16x16xf32>
    %76 = arith.divf %72, %75 : vector<16x16xf32>
    %cst_42 = arith.constant dense<0.000000e+00> : vector<16x4xf32>
    %77 = tpu.matmul %76, %64, %cst_42 {dimension_numbers = #tpu.dot_dimension_numbers<[1], [0], [0], [1], [0, 0, 1, 1], [], []>} : vector<16x16xf32>, vector<16x4xf32>, vector<16x4xf32> -> vector<16x4xf32>
    %c0_43 = arith.constant 0 : index
    %c8_44 = arith.constant 8 : index
    %78 = vector.load %arg16[%c0_43, %c8_44] : memref<32x32xf32, #tpu.memory_space<vmem>>, vector<16x4xf32>
    tpu.vector_store %arg16[%c0_43, %c8_44], %77 {strides = array<i32>} : memref<32x32xf32, #tpu.memory_space<vmem>>, vector<16x4xf32>,
    %c0_45 = arith.constant 0 : index
    %c12 = arith.constant 12 : index
    %79 = vector.load %arg15[%c0_45, %c12] : memref<32x96xf32, #tpu.memory_space<vmem>>, vector<16x4xf32>
    %c0_46 = arith.constant 0 : index
    %c44 = arith.constant 44 : index
    %80 = vector.load %arg15[%c0_46, %c44] : memref<32x96xf32, #tpu.memory_space<vmem>>, vector<16x4xf32>
    %c0_47 = arith.constant 0 : index
    %c76 = arith.constant 76 : index
    %81 = vector.load %arg15[%c0_47, %c76] : memref<32x96xf32, #tpu.memory_space<vmem>>, vector<16x4xf32>
    %cst_48 = arith.constant dense<0.000000e+00> : vector<16x16xf32>
    %82 = tpu.matmul %79, %80, %cst_48 {dimension_numbers = #tpu.dot_dimension_numbers<[1], [1], [0], [0], [0, 0, 1, 0], [], []>} : vector<16x4xf32>, vector<16x4xf32>, vector<16x16xf32> -> vector<16x16xf32>
    %cst_49 = arith.constant 5.000000e-01 : f32
    %83 = vector.broadcast %cst_49 : f32 to vector<16x16xf32>
    %84 = arith.mulf %82, %83 : vector<16x16xf32>
    %cst_50 = arith.constant dense<0xFF800000> : vector<16xf32>
    %85 = vector.multi_reduction <maximumf>, %84, %cst_50 [1] : vector<16x16xf32> to vector<16xf32>
    %86 = vector.shape_cast %85 : vector<16xf32> to vector<16x1xf32>
    %87 = vector.broadcast %86 : vector<16x1xf32> to vector<16x16xf32>
    %88 = arith.subf %84, %87 : vector<16x16xf32>
    %89 = math.exp %88 : vector<16x16xf32>
    %cst_51 = arith.constant dense<0.000000e+00> : vector<16xf32>
    %90 = vector.multi_reduction <add>, %89, %cst_51 [1] : vector<16x16xf32> to vector<16xf32>
    %91 = vector.shape_cast %90 : vector<16xf32> to vector<16x1xf32>
    %92 = vector.broadcast %91 : vector<16x1xf32> to vector<16x16xf32>
    %93 = arith.divf %89, %92 : vector<16x16xf32>
    %cst_52 = arith.constant dense<0.000000e+00> : vector<16x4xf32>
    %94 = tpu.matmul %93, %81, %cst_52 {dimension_numbers = #tpu.dot_dimension_numbers<[1], [0], [0], [1], [0, 0, 1, 1], [], []>} : vector<16x16xf32>, vector<16x4xf32>, vector<16x4xf32> -> vector<16x4xf32>
    %c0_53 = arith.constant 0 : index
    %c12_54 = arith.constant 12 : index
    %95 = vector.load %arg16[%c0_53, %c12_54] : memref<32x32xf32, #tpu.memory_space<vmem>>, vector<16x4xf32>
    tpu.vector_store %arg16[%c0_53, %c12_54], %94 {strides = array<i32>} : memref<32x32xf32, #tpu.memory_space<vmem>>, vector<16x4xf32>,
    %c0_55 = arith.constant 0 : index
    %c16 = arith.constant 16 : index
    %96 = vector.load %arg15[%c0_55, %c16] : memref<32x96xf32, #tpu.memory_space<vmem>>, vector<16x4xf32>
    %c0_56 = arith.constant 0 : index
    %c48 = arith.constant 48 : index
    %97 = vector.load %arg15[%c0_56, %c48] : memref<32x96xf32, #tpu.memory_space<vmem>>, vector<16x4xf32>
    %c0_57 = arith.constant 0 : index
    %c80 = arith.constant 80 : index
    %98 = vector.load %arg15[%c0_57, %c80] : memref<32x96xf32, #tpu.memory_space<vmem>>, vector<16x4xf32>
    %cst_58 = arith.constant dense<0.000000e+00> : vector<16x16xf32>
    %99 = tpu.matmul %96, %97, %cst_58 {dimension_numbers = #tpu.dot_dimension_numbers<[1], [1], [0], [0], [0, 0, 1, 0], [], []>} : vector<16x4xf32>, vector<16x4xf32>, vector<16x16xf32> -> vector<16x16xf32>
    %cst_59 = arith.constant 5.000000e-01 : f32
    %100 = vector.broadcast %cst_59 : f32 to vector<16x16xf32>
    %101 = arith.mulf %99, %100 : vector<16x16xf32>
    %cst_60 = arith.constant dense<0xFF800000> : vector<16xf32>
    %102 = vector.multi_reduction <maximumf>, %101, %cst_60 [1] : vector<16x16xf32> to vector<16xf32>
    %103 = vector.shape_cast %102 : vector<16xf32> to vector<16x1xf32>
    %104 = vector.broadcast %103 : vector<16x1xf32> to vector<16x16xf32>
    %105 = arith.subf %101, %104 : vector<16x16xf32>
    %106 = math.exp %105 : vector<16x16xf32>
    %cst_61 = arith.constant dense<0.000000e+00> : vector<16xf32>
    %107 = vector.multi_reduction <add>, %106, %cst_61 [1] : vector<16x16xf32> to vector<16xf32>
    %108 = vector.shape_cast %107 : vector<16xf32> to vector<16x1xf32>
    %109 = vector.broadcast %108 : vector<16x1xf32> to vector<16x16xf32>
    %110 = arith.divf %106, %109 : vector<16x16xf32>
    %cst_62 = arith.constant dense<0.000000e+00> : vector<16x4xf32>
    %111 = tpu.matmul %110, %98, %cst_62 {dimension_numbers = #tpu.dot_dimension_numbers<[1], [0], [0], [1], [0, 0, 1, 1], [], []>} : vector<16x16xf32>, vector<16x4xf32>, vector<16x4xf32> -> vector<16x4xf32>
    %c0_63 = arith.constant 0 : index
    %c16_64 = arith.constant 16 : index
    %112 = vector.load %arg16[%c0_63, %c16_64] : memref<32x32xf32, #tpu.memory_space<vmem>>, vector<16x4xf32>
    tpu.vector_store %arg16[%c0_63, %c16_64], %111 {strides = array<i32>} : memref<32x32xf32, #tpu.memory_space<vmem>>, vector<16x4xf32>,
    %c0_65 = arith.constant 0 : index
    %c20 = arith.constant 20 : index
    %113 = vector.load %arg15[%c0_65, %c20] : memref<32x96xf32, #tpu.memory_space<vmem>>, vector<16x4xf32>
    %c0_66 = arith.constant 0 : index
    %c52 = arith.constant 52 : index
    %114 = vector.load %arg15[%c0_66, %c52] : memref<32x96xf32, #tpu.memory_space<vmem>>, vector<16x4xf32>
    %c0_67 = arith.constant 0 : index
    %c84 = arith.constant 84 : index
    %115 = vector.load %arg15[%c0_67, %c84] : memref<32x96xf32, #tpu.memory_space<vmem>>, vector<16x4xf32>
    %cst_68 = arith.constant dense<0.000000e+00> : vector<16x16xf32>
    %116 = tpu.matmul %113, %114, %cst_68 {dimension_numbers = #tpu.dot_dimension_numbers<[1], [1], [0], [0], [0, 0, 1, 0], [], []>} : vector<16x4xf32>, vector<16x4xf32>, vector<16x16xf32> -> vector<16x16xf32>
    %cst_69 = arith.constant 5.000000e-01 : f32
    %117 = vector.broadcast %cst_69 : f32 to vector<16x16xf32>
    %118 = arith.mulf %116, %117 : vector<16x16xf32>
    %cst_70 = arith.constant dense<0xFF800000> : vector<16xf32>
    %119 = vector.multi_reduction <maximumf>, %118, %cst_70 [1] : vector<16x16xf32> to vector<16xf32>
    %120 = vector.shape_cast %119 : vector<16xf32> to vector<16x1xf32>
    %121 = vector.broadcast %120 : vector<16x1xf32> to vector<16x16xf32>
    %122 = arith.subf %118, %121 : vector<16x16xf32>
    %123 = math.exp %122 : vector<16x16xf32>
    %cst_71 = arith.constant dense<0.000000e+00> : vector<16xf32>
    %124 = vector.multi_reduction <add>, %123, %cst_71 [1] : vector<16x16xf32> to vector<16xf32>
    %125 = vector.shape_cast %124 : vector<16xf32> to vector<16x1xf32>
    %126 = vector.broadcast %125 : vector<16x1xf32> to vector<16x16xf32>
    %127 = arith.divf %123, %126 : vector<16x16xf32>
    %cst_72 = arith.constant dense<0.000000e+00> : vector<16x4xf32>
    %128 = tpu.matmul %127, %115, %cst_72 {dimension_numbers = #tpu.dot_dimension_numbers<[1], [0], [0], [1], [0, 0, 1, 1], [], []>} : vector<16x16xf32>, vector<16x4xf32>, vector<16x4xf32> -> vector<16x4xf32>
    %c0_73 = arith.constant 0 : index
    %c20_74 = arith.constant 20 : index
    %129 = vector.load %arg16[%c0_73, %c20_74] : memref<32x32xf32, #tpu.memory_space<vmem>>, vector<16x4xf32>
    tpu.vector_store %arg16[%c0_73, %c20_74], %128 {strides = array<i32>} : memref<32x32xf32, #tpu.memory_space<vmem>>, vector<16x4xf32>,
    %c0_75 = arith.constant 0 : index
    %c24 = arith.constant 24 : index
    %130 = vector.load %arg15[%c0_75, %c24] : memref<32x96xf32, #tpu.memory_space<vmem>>, vector<16x4xf32>
    %c0_76 = arith.constant 0 : index
    %c56 = arith.constant 56 : index
    %131 = vector.load %arg15[%c0_76, %c56] : memref<32x96xf32, #tpu.memory_space<vmem>>, vector<16x4xf32>
    %c0_77 = arith.constant 0 : index
    %c88 = arith.constant 88 : index
    %132 = vector.load %arg15[%c0_77, %c88] : memref<32x96xf32, #tpu.memory_space<vmem>>, vector<16x4xf32>
    %cst_78 = arith.constant dense<0.000000e+00> : vector<16x16xf32>
    %133 = tpu.matmul %130, %131, %cst_78 {dimension_numbers = #tpu.dot_dimension_numbers<[1], [1], [0], [0], [0, 0, 1, 0], [], []>} : vector<16x4xf32>, vector<16x4xf32>, vector<16x16xf32> -> vector<16x16xf32>
    %cst_79 = arith.constant 5.000000e-01 : f32
    %134 = vector.broadcast %cst_79 : f32 to vector<16x16xf32>
    %135 = arith.mulf %133, %134 : vector<16x16xf32>
    %cst_80 = arith.constant dense<0xFF800000> : vector<16xf32>
    %136 = vector.multi_reduction <maximumf>, %135, %cst_80 [1] : vector<16x16xf32> to vector<16xf32>
    %137 = vector.shape_cast %136 : vector<16xf32> to vector<16x1xf32>
    %138 = vector.broadcast %137 : vector<16x1xf32> to vector<16x16xf32>
    %139 = arith.subf %135, %138 : vector<16x16xf32>
    %140 = math.exp %139 : vector<16x16xf32>
    %cst_81 = arith.constant dense<0.000000e+00> : vector<16xf32>
    %141 = vector.multi_reduction <add>, %140, %cst_81 [1] : vector<16x16xf32> to vector<16xf32>
    %142 = vector.shape_cast %141 : vector<16xf32> to vector<16x1xf32>
    %143 = vector.broadcast %142 : vector<16x1xf32> to vector<16x16xf32>
    %144 = arith.divf %140, %143 : vector<16x16xf32>
    %cst_82 = arith.constant dense<0.000000e+00> : vector<16x4xf32>
    %145 = tpu.matmul %144, %132, %cst_82 {dimension_numbers = #tpu.dot_dimension_numbers<[1], [0], [0], [1], [0, 0, 1, 1], [], []>} : vector<16x16xf32>, vector<16x4xf32>, vector<16x4xf32> -> vector<16x4xf32>
    %c0_83 = arith.constant 0 : index
    %c24_84 = arith.constant 24 : index
    %146 = vector.load %arg16[%c0_83, %c24_84] : memref<32x32xf32, #tpu.memory_space<vmem>>, vector<16x4xf32>
    tpu.vector_store %arg16[%c0_83, %c24_84], %145 {strides = array<i32>} : memref<32x32xf32, #tpu.memory_space<vmem>>, vector<16x4xf32>,
    %c0_85 = arith.constant 0 : index
    %c28 = arith.constant 28 : index
    %147 = vector.load %arg15[%c0_85, %c28] : memref<32x96xf32, #tpu.memory_space<vmem>>, vector<16x4xf32>
    %c0_86 = arith.constant 0 : index
    %c60 = arith.constant 60 : index
    %148 = vector.load %arg15[%c0_86, %c60] : memref<32x96xf32, #tpu.memory_space<vmem>>, vector<16x4xf32>
    %c0_87 = arith.constant 0 : index
    %c92 = arith.constant 92 : index
    %149 = vector.load %arg15[%c0_87, %c92] : memref<32x96xf32, #tpu.memory_space<vmem>>, vector<16x4xf32>
    %cst_88 = arith.constant dense<0.000000e+00> : vector<16x16xf32>
    %150 = tpu.matmul %147, %148, %cst_88 {dimension_numbers = #tpu.dot_dimension_numbers<[1], [1], [0], [0], [0, 0, 1, 0], [], []>} : vector<16x4xf32>, vector<16x4xf32>, vector<16x16xf32> -> vector<16x16xf32>
    %cst_89 = arith.constant 5.000000e-01 : f32
    %151 = vector.broadcast %cst_89 : f32 to vector<16x16xf32>
    %152 = arith.mulf %150, %151 : vector<16x16xf32>
    %cst_90 = arith.constant dense<0xFF800000> : vector<16xf32>
    %153 = vector.multi_reduction <maximumf>, %152, %cst_90 [1] : vector<16x16xf32> to vector<16xf32>
    %154 = vector.shape_cast %153 : vector<16xf32> to vector<16x1xf32>
    %155 = vector.broadcast %154 : vector<16x1xf32> to vector<16x16xf32>
    %156 = arith.subf %152, %155 : vector<16x16xf32>
    %157 = math.exp %156 : vector<16x16xf32>
    %cst_91 = arith.constant dense<0.000000e+00> : vector<16xf32>
    %158 = vector.multi_reduction <add>, %157, %cst_91 [1] : vector<16x16xf32> to vector<16xf32>
    %159 = vector.shape_cast %158 : vector<16xf32> to vector<16x1xf32>
    %160 = vector.broadcast %159 : vector<16x1xf32> to vector<16x16xf32>
    %161 = arith.divf %157, %160 : vector<16x16xf32>
    %cst_92 = arith.constant dense<0.000000e+00> : vector<16x4xf32>
    %162 = tpu.matmul %161, %149, %cst_92 {dimension_numbers = #tpu.dot_dimension_numbers<[1], [0], [0], [1], [0, 0, 1, 1], [], []>} : vector<16x16xf32>, vector<16x4xf32>, vector<16x4xf32> -> vector<16x4xf32>
    %c0_93 = arith.constant 0 : index
    %c28_94 = arith.constant 28 : index
    %163 = vector.load %arg16[%c0_93, %c28_94] : memref<32x32xf32, #tpu.memory_space<vmem>>, vector<16x4xf32>
    tpu.vector_store %arg16[%c0_93, %c28_94], %162 {strides = array<i32>} : memref<32x32xf32, #tpu.memory_space<vmem>>, vector<16x4xf32>,
    %c16_95 = arith.constant 16 : index
    %c0_96 = arith.constant 0 : index
    %164 = vector.load %arg15[%c16_95, %c0_96] : memref<32x96xf32, #tpu.memory_space<vmem>>, vector<16x4xf32>
    %c16_97 = arith.constant 16 : index
    %c32_98 = arith.constant 32 : index
    %165 = vector.load %arg15[%c16_97, %c32_98] : memref<32x96xf32, #tpu.memory_space<vmem>>, vector<16x4xf32>
    %c16_99 = arith.constant 16 : index
    %c64_100 = arith.constant 64 : index
    %166 = vector.load %arg15[%c16_99, %c64_100] : memref<32x96xf32, #tpu.memory_space<vmem>>, vector<16x4xf32>
    %cst_101 = arith.constant dense<0.000000e+00> : vector<16x16xf32>
    %167 = tpu.matmul %164, %165, %cst_101 {dimension_numbers = #tpu.dot_dimension_numbers<[1], [1], [0], [0], [0, 0, 1, 0], [], []>} : vector<16x4xf32>, vector<16x4xf32>, vector<16x16xf32> -> vector<16x16xf32>
    %cst_102 = arith.constant 5.000000e-01 : f32
    %168 = vector.broadcast %cst_102 : f32 to vector<16x16xf32>
    %169 = arith.mulf %167, %168 : vector<16x16xf32>
    %cst_103 = arith.constant dense<0xFF800000> : vector<16xf32>
    %170 = vector.multi_reduction <maximumf>, %169, %cst_103 [1] : vector<16x16xf32> to vector<16xf32>
    %171 = vector.shape_cast %170 : vector<16xf32> to vector<16x1xf32>
    %172 = vector.broadcast %171 : vector<16x1xf32> to vector<16x16xf32>
    %173 = arith.subf %169, %172 : vector<16x16xf32>
    %174 = math.exp %173 : vector<16x16xf32>
    %cst_104 = arith.constant dense<0.000000e+00> : vector<16xf32>
    %175 = vector.multi_reduction <add>, %174, %cst_104 [1] : vector<16x16xf32> to vector<16xf32>
    %176 = vector.shape_cast %175 : vector<16xf32> to vector<16x1xf32>
    %177 = vector.broadcast %176 : vector<16x1xf32> to vector<16x16xf32>
    %178 = arith.divf %174, %177 : vector<16x16xf32>
    %cst_105 = arith.constant dense<0.000000e+00> : vector<16x4xf32>
    %179 = tpu.matmul %178, %166, %cst_105 {dimension_numbers = #tpu.dot_dimension_numbers<[1], [0], [0], [1], [0, 0, 1, 1], [], []>} : vector<16x16xf32>, vector<16x4xf32>, vector<16x4xf32> -> vector<16x4xf32>
    %c16_106 = arith.constant 16 : index
    %c0_107 = arith.constant 0 : index
    %180 = vector.load %arg16[%c16_106, %c0_107] : memref<32x32xf32, #tpu.memory_space<vmem>>, vector<16x4xf32>
    tpu.vector_store %arg16[%c16_106, %c0_107], %179 {strides = array<i32>} : memref<32x32xf32, #tpu.memory_space<vmem>>, vector<16x4xf32>,
    %c16_108 = arith.constant 16 : index
    %c4_109 = arith.constant 4 : index
    %181 = vector.load %arg15[%c16_108, %c4_109] : memref<32x96xf32, #tpu.memory_space<vmem>>, vector<16x4xf32>
    %c16_110 = arith.constant 16 : index
    %c36_111 = arith.constant 36 : index
    %182 = vector.load %arg15[%c16_110, %c36_111] : memref<32x96xf32, #tpu.memory_space<vmem>>, vector<16x4xf32>
    %c16_112 = arith.constant 16 : index
    %c68_113 = arith.constant 68 : index
    %183 = vector.load %arg15[%c16_112, %c68_113] : memref<32x96xf32, #tpu.memory_space<vmem>>, vector<16x4xf32>
    %cst_114 = arith.constant dense<0.000000e+00> : vector<16x16xf32>
    %184 = tpu.matmul %181, %182, %cst_114 {dimension_numbers = #tpu.dot_dimension_numbers<[1], [1], [0], [0], [0, 0, 1, 0], [], []>} : vector<16x4xf32>, vector<16x4xf32>, vector<16x16xf32> -> vector<16x16xf32>
    %cst_115 = arith.constant 5.000000e-01 : f32
    %185 = vector.broadcast %cst_115 : f32 to vector<16x16xf32>
    %186 = arith.mulf %184, %185 : vector<16x16xf32>
    %cst_116 = arith.constant dense<0xFF800000> : vector<16xf32>
    %187 = vector.multi_reduction <maximumf>, %186, %cst_116 [1] : vector<16x16xf32> to vector<16xf32>
    %188 = vector.shape_cast %187 : vector<16xf32> to vector<16x1xf32>
    %189 = vector.broadcast %188 : vector<16x1xf32> to vector<16x16xf32>
    %190 = arith.subf %186, %189 : vector<16x16xf32>
    %191 = math.exp %190 : vector<16x16xf32>
    %cst_117 = arith.constant dense<0.000000e+00> : vector<16xf32>
    %192 = vector.multi_reduction <add>, %191, %cst_117 [1] : vector<16x16xf32> to vector<16xf32>
    %193 = vector.shape_cast %192 : vector<16xf32> to vector<16x1xf32>
    %194 = vector.broadcast %193 : vector<16x1xf32> to vector<16x16xf32>
    %195 = arith.divf %191, %194 : vector<16x16xf32>
    %cst_118 = arith.constant dense<0.000000e+00> : vector<16x4xf32>
    %196 = tpu.matmul %195, %183, %cst_118 {dimension_numbers = #tpu.dot_dimension_numbers<[1], [0], [0], [1], [0, 0, 1, 1], [], []>} : vector<16x16xf32>, vector<16x4xf32>, vector<16x4xf32> -> vector<16x4xf32>
    %c16_119 = arith.constant 16 : index
    %c4_120 = arith.constant 4 : index
    %197 = vector.load %arg16[%c16_119, %c4_120] : memref<32x32xf32, #tpu.memory_space<vmem>>, vector<16x4xf32>
    tpu.vector_store %arg16[%c16_119, %c4_120], %196 {strides = array<i32>} : memref<32x32xf32, #tpu.memory_space<vmem>>, vector<16x4xf32>,
    %c16_121 = arith.constant 16 : index
    %c8_122 = arith.constant 8 : index
    %198 = vector.load %arg15[%c16_121, %c8_122] : memref<32x96xf32, #tpu.memory_space<vmem>>, vector<16x4xf32>
    %c16_123 = arith.constant 16 : index
    %c40_124 = arith.constant 40 : index
    %199 = vector.load %arg15[%c16_123, %c40_124] : memref<32x96xf32, #tpu.memory_space<vmem>>, vector<16x4xf32>
    %c16_125 = arith.constant 16 : index
    %c72_126 = arith.constant 72 : index
    %200 = vector.load %arg15[%c16_125, %c72_126] : memref<32x96xf32, #tpu.memory_space<vmem>>, vector<16x4xf32>
    %cst_127 = arith.constant dense<0.000000e+00> : vector<16x16xf32>
    %201 = tpu.matmul %198, %199, %cst_127 {dimension_numbers = #tpu.dot_dimension_numbers<[1], [1], [0], [0], [0, 0, 1, 0], [], []>} : vector<16x4xf32>, vector<16x4xf32>, vector<16x16xf32> -> vector<16x16xf32>
    %cst_128 = arith.constant 5.000000e-01 : f32
    %202 = vector.broadcast %cst_128 : f32 to vector<16x16xf32>
    %203 = arith.mulf %201, %202 : vector<16x16xf32>
    %cst_129 = arith.constant dense<0xFF800000> : vector<16xf32>
    %204 = vector.multi_reduction <maximumf>, %203, %cst_129 [1] : vector<16x16xf32> to vector<16xf32>
    %205 = vector.shape_cast %204 : vector<16xf32> to vector<16x1xf32>
    %206 = vector.broadcast %205 : vector<16x1xf32> to vector<16x16xf32>
    %207 = arith.subf %203, %206 : vector<16x16xf32>
    %208 = math.exp %207 : vector<16x16xf32>
    %cst_130 = arith.constant dense<0.000000e+00> : vector<16xf32>
    %209 = vector.multi_reduction <add>, %208, %cst_130 [1] : vector<16x16xf32> to vector<16xf32>
    %210 = vector.shape_cast %209 : vector<16xf32> to vector<16x1xf32>
    %211 = vector.broadcast %210 : vector<16x1xf32> to vector<16x16xf32>
    %212 = arith.divf %208, %211 : vector<16x16xf32>
    %cst_131 = arith.constant dense<0.000000e+00> : vector<16x4xf32>
    %213 = tpu.matmul %212, %200, %cst_131 {dimension_numbers = #tpu.dot_dimension_numbers<[1], [0], [0], [1], [0, 0, 1, 1], [], []>} : vector<16x16xf32>, vector<16x4xf32>, vector<16x4xf32> -> vector<16x4xf32>
    %c16_132 = arith.constant 16 : index
    %c8_133 = arith.constant 8 : index
    %214 = vector.load %arg16[%c16_132, %c8_133] : memref<32x32xf32, #tpu.memory_space<vmem>>, vector<16x4xf32>
    tpu.vector_store %arg16[%c16_132, %c8_133], %213 {strides = array<i32>} : memref<32x32xf32, #tpu.memory_space<vmem>>, vector<16x4xf32>,
    %c16_134 = arith.constant 16 : index
    %c12_135 = arith.constant 12 : index
    %215 = vector.load %arg15[%c16_134, %c12_135] : memref<32x96xf32, #tpu.memory_space<vmem>>, vector<16x4xf32>
    %c16_136 = arith.constant 16 : index
    %c44_137 = arith.constant 44 : index
    %216 = vector.load %arg15[%c16_136, %c44_137] : memref<32x96xf32, #tpu.memory_space<vmem>>, vector<16x4xf32>
    %c16_138 = arith.constant 16 : index
    %c76_139 = arith.constant 76 : index
    %217 = vector.load %arg15[%c16_138, %c76_139] : memref<32x96xf32, #tpu.memory_space<vmem>>, vector<16x4xf32>
    %cst_140 = arith.constant dense<0.000000e+00> : vector<16x16xf32>
    %218 = tpu.matmul %215, %216, %cst_140 {dimension_numbers = #tpu.dot_dimension_numbers<[1], [1], [0], [0], [0, 0, 1, 0], [], []>} : vector<16x4xf32>, vector<16x4xf32>, vector<16x16xf32> -> vector<16x16xf32>
    %cst_141 = arith.constant 5.000000e-01 : f32
    %219 = vector.broadcast %cst_141 : f32 to vector<16x16xf32>
    %220 = arith.mulf %218, %219 : vector<16x16xf32>
    %cst_142 = arith.constant dense<0xFF800000> : vector<16xf32>
    %221 = vector.multi_reduction <maximumf>, %220, %cst_142 [1] : vector<16x16xf32> to vector<16xf32>
    %222 = vector.shape_cast %221 : vector<16xf32> to vector<16x1xf32>
    %223 = vector.broadcast %222 : vector<16x1xf32> to vector<16x16xf32>
    %224 = arith.subf %220, %223 : vector<16x16xf32>
    %225 = math.exp %224 : vector<16x16xf32>
    %cst_143 = arith.constant dense<0.000000e+00> : vector<16xf32>
    %226 = vector.multi_reduction <add>, %225, %cst_143 [1] : vector<16x16xf32> to vector<16xf32>
    %227 = vector.shape_cast %226 : vector<16xf32> to vector<16x1xf32>
    %228 = vector.broadcast %227 : vector<16x1xf32> to vector<16x16xf32>
    %229 = arith.divf %225, %228 : vector<16x16xf32>
    %cst_144 = arith.constant dense<0.000000e+00> : vector<16x4xf32>
    %230 = tpu.matmul %229, %217, %cst_144 {dimension_numbers = #tpu.dot_dimension_numbers<[1], [0], [0], [1], [0, 0, 1, 1], [], []>} : vector<16x16xf32>, vector<16x4xf32>, vector<16x4xf32> -> vector<16x4xf32>
    %c16_145 = arith.constant 16 : index
    %c12_146 = arith.constant 12 : index
    %231 = vector.load %arg16[%c16_145, %c12_146] : memref<32x32xf32, #tpu.memory_space<vmem>>, vector<16x4xf32>
    tpu.vector_store %arg16[%c16_145, %c12_146], %230 {strides = array<i32>} : memref<32x32xf32, #tpu.memory_space<vmem>>, vector<16x4xf32>,
    %c16_147 = arith.constant 16 : index
    %c16_148 = arith.constant 16 : index
    %232 = vector.load %arg15[%c16_147, %c16_148] : memref<32x96xf32, #tpu.memory_space<vmem>>, vector<16x4xf32>
    %c16_149 = arith.constant 16 : index
    %c48_150 = arith.constant 48 : index
    %233 = vector.load %arg15[%c16_149, %c48_150] : memref<32x96xf32, #tpu.memory_space<vmem>>, vector<16x4xf32>
    %c16_151 = arith.constant 16 : index
    %c80_152 = arith.constant 80 : index
    %234 = vector.load %arg15[%c16_151, %c80_152] : memref<32x96xf32, #tpu.memory_space<vmem>>, vector<16x4xf32>
    %cst_153 = arith.constant dense<0.000000e+00> : vector<16x16xf32>
    %235 = tpu.matmul %232, %233, %cst_153 {dimension_numbers = #tpu.dot_dimension_numbers<[1], [1], [0], [0], [0, 0, 1, 0], [], []>} : vector<16x4xf32>, vector<16x4xf32>, vector<16x16xf32> -> vector<16x16xf32>
    %cst_154 = arith.constant 5.000000e-01 : f32
    %236 = vector.broadcast %cst_154 : f32 to vector<16x16xf32>
    %237 = arith.mulf %235, %236 : vector<16x16xf32>
    %cst_155 = arith.constant dense<0xFF800000> : vector<16xf32>
    %238 = vector.multi_reduction <maximumf>, %237, %cst_155 [1] : vector<16x16xf32> to vector<16xf32>
    %239 = vector.shape_cast %238 : vector<16xf32> to vector<16x1xf32>
    %240 = vector.broadcast %239 : vector<16x1xf32> to vector<16x16xf32>
    %241 = arith.subf %237, %240 : vector<16x16xf32>
    %242 = math.exp %241 : vector<16x16xf32>
    %cst_156 = arith.constant dense<0.000000e+00> : vector<16xf32>
    %243 = vector.multi_reduction <add>, %242, %cst_156 [1] : vector<16x16xf32> to vector<16xf32>
    %244 = vector.shape_cast %243 : vector<16xf32> to vector<16x1xf32>
    %245 = vector.broadcast %244 : vector<16x1xf32> to vector<16x16xf32>
    %246 = arith.divf %242, %245 : vector<16x16xf32>
    %cst_157 = arith.constant dense<0.000000e+00> : vector<16x4xf32>
    %247 = tpu.matmul %246, %234, %cst_157 {dimension_numbers = #tpu.dot_dimension_numbers<[1], [0], [0], [1], [0, 0, 1, 1], [], []>} : vector<16x16xf32>, vector<16x4xf32>, vector<16x4xf32> -> vector<16x4xf32>
    %c16_158 = arith.constant 16 : index
    %c16_159 = arith.constant 16 : index
    %248 = vector.load %arg16[%c16_158, %c16_159] : memref<32x32xf32, #tpu.memory_space<vmem>>, vector<16x4xf32>
    tpu.vector_store %arg16[%c16_158, %c16_159], %247 {strides = array<i32>} : memref<32x32xf32, #tpu.memory_space<vmem>>, vector<16x4xf32>,
    %c16_160 = arith.constant 16 : index
    %c20_161 = arith.constant 20 : index
    %249 = vector.load %arg15[%c16_160, %c20_161] : memref<32x96xf32, #tpu.memory_space<vmem>>, vector<16x4xf32>
    %c16_162 = arith.constant 16 : index
    %c52_163 = arith.constant 52 : index
    %250 = vector.load %arg15[%c16_162, %c52_163] : memref<32x96xf32, #tpu.memory_space<vmem>>, vector<16x4xf32>
    %c16_164 = arith.constant 16 : index
    %c84_165 = arith.constant 84 : index
    %251 = vector.load %arg15[%c16_164, %c84_165] : memref<32x96xf32, #tpu.memory_space<vmem>>, vector<16x4xf32>
    %cst_166 = arith.constant dense<0.000000e+00> : vector<16x16xf32>
    %252 = tpu.matmul %249, %250, %cst_166 {dimension_numbers = #tpu.dot_dimension_numbers<[1], [1], [0], [0], [0, 0, 1, 0], [], []>} : vector<16x4xf32>, vector<16x4xf32>, vector<16x16xf32> -> vector<16x16xf32>
    %cst_167 = arith.constant 5.000000e-01 : f32
    %253 = vector.broadcast %cst_167 : f32 to vector<16x16xf32>
    %254 = arith.mulf %252, %253 : vector<16x16xf32>
    %cst_168 = arith.constant dense<0xFF800000> : vector<16xf32>
    %255 = vector.multi_reduction <maximumf>, %254, %cst_168 [1] : vector<16x16xf32> to vector<16xf32>
    %256 = vector.shape_cast %255 : vector<16xf32> to vector<16x1xf32>
    %257 = vector.broadcast %256 : vector<16x1xf32> to vector<16x16xf32>
    %258 = arith.subf %254, %257 : vector<16x16xf32>
    %259 = math.exp %258 : vector<16x16xf32>
    %cst_169 = arith.constant dense<0.000000e+00> : vector<16xf32>
    %260 = vector.multi_reduction <add>, %259, %cst_169 [1] : vector<16x16xf32> to vector<16xf32>
    %261 = vector.shape_cast %260 : vector<16xf32> to vector<16x1xf32>
    %262 = vector.broadcast %261 : vector<16x1xf32> to vector<16x16xf32>
    %263 = arith.divf %259, %262 : vector<16x16xf32>
    %cst_170 = arith.constant dense<0.000000e+00> : vector<16x4xf32>
    %264 = tpu.matmul %263, %251, %cst_170 {dimension_numbers = #tpu.dot_dimension_numbers<[1], [0], [0], [1], [0, 0, 1, 1], [], []>} : vector<16x16xf32>, vector<16x4xf32>, vector<16x4xf32> -> vector<16x4xf32>
    %c16_171 = arith.constant 16 : index
    %c20_172 = arith.constant 20 : index
    %265 = vector.load %arg16[%c16_171, %c20_172] : memref<32x32xf32, #tpu.memory_space<vmem>>, vector<16x4xf32>
    tpu.vector_store %arg16[%c16_171, %c20_172], %264 {strides = array<i32>} : memref<32x32xf32, #tpu.memory_space<vmem>>, vector<16x4xf32>,
    %c16_173 = arith.constant 16 : index
    %c24_174 = arith.constant 24 : index
    %266 = vector.load %arg15[%c16_173, %c24_174] : memref<32x96xf32, #tpu.memory_space<vmem>>, vector<16x4xf32>
    %c16_175 = arith.constant 16 : index
    %c56_176 = arith.constant 56 : index
    %267 = vector.load %arg15[%c16_175, %c56_176] : memref<32x96xf32, #tpu.memory_space<vmem>>, vector<16x4xf32>
    %c16_177 = arith.constant 16 : index
    %c88_178 = arith.constant 88 : index
    %268 = vector.load %arg15[%c16_177, %c88_178] : memref<32x96xf32, #tpu.memory_space<vmem>>, vector<16x4xf32>
    %cst_179 = arith.constant dense<0.000000e+00> : vector<16x16xf32>
    %269 = tpu.matmul %266, %267, %cst_179 {dimension_numbers = #tpu.dot_dimension_numbers<[1], [1], [0], [0], [0, 0, 1, 0], [], []>} : vector<16x4xf32>, vector<16x4xf32>, vector<16x16xf32> -> vector<16x16xf32>
    %cst_180 = arith.constant 5.000000e-01 : f32
    %270 = vector.broadcast %cst_180 : f32 to vector<16x16xf32>
    %271 = arith.mulf %269, %270 : vector<16x16xf32>
    %cst_181 = arith.constant dense<0xFF800000> : vector<16xf32>
    %272 = vector.multi_reduction <maximumf>, %271, %cst_181 [1] : vector<16x16xf32> to vector<16xf32>
    %273 = vector.shape_cast %272 : vector<16xf32> to vector<16x1xf32>
    %274 = vector.broadcast %273 : vector<16x1xf32> to vector<16x16xf32>
    %275 = arith.subf %271, %274 : vector<16x16xf32>
    %276 = math.exp %275 : vector<16x16xf32>
    %cst_182 = arith.constant dense<0.000000e+00> : vector<16xf32>
    %277 = vector.multi_reduction <add>, %276, %cst_182 [1] : vector<16x16xf32> to vector<16xf32>
    %278 = vector.shape_cast %277 : vector<16xf32> to vector<16x1xf32>
    %279 = vector.broadcast %278 : vector<16x1xf32> to vector<16x16xf32>
    %280 = arith.divf %276, %279 : vector<16x16xf32>
    %cst_183 = arith.constant dense<0.000000e+00> : vector<16x4xf32>
    %281 = tpu.matmul %280, %268, %cst_183 {dimension_numbers = #tpu.dot_dimension_numbers<[1], [0], [0], [1], [0, 0, 1, 1], [], []>} : vector<16x16xf32>, vector<16x4xf32>, vector<16x4xf32> -> vector<16x4xf32>
    %c16_184 = arith.constant 16 : index
    %c24_185 = arith.constant 24 : index
    %282 = vector.load %arg16[%c16_184, %c24_185] : memref<32x32xf32, #tpu.memory_space<vmem>>, vector<16x4xf32>
    tpu.vector_store %arg16[%c16_184, %c24_185], %281 {strides = array<i32>} : memref<32x32xf32, #tpu.memory_space<vmem>>, vector<16x4xf32>,
    %c16_186 = arith.constant 16 : index
    %c28_187 = arith.constant 28 : index
    %283 = vector.load %arg15[%c16_186, %c28_187] : memref<32x96xf32, #tpu.memory_space<vmem>>, vector<16x4xf32>
    %c16_188 = arith.constant 16 : index
    %c60_189 = arith.constant 60 : index
    %284 = vector.load %arg15[%c16_188, %c60_189] : memref<32x96xf32, #tpu.memory_space<vmem>>, vector<16x4xf32>
    %c16_190 = arith.constant 16 : index
    %c92_191 = arith.constant 92 : index
    %285 = vector.load %arg15[%c16_190, %c92_191] : memref<32x96xf32, #tpu.memory_space<vmem>>, vector<16x4xf32>
    %cst_192 = arith.constant dense<0.000000e+00> : vector<16x16xf32>
    %286 = tpu.matmul %283, %284, %cst_192 {dimension_numbers = #tpu.dot_dimension_numbers<[1], [1], [0], [0], [0, 0, 1, 0], [], []>} : vector<16x4xf32>, vector<16x4xf32>, vector<16x16xf32> -> vector<16x16xf32>
    %cst_193 = arith.constant 5.000000e-01 : f32
    %287 = vector.broadcast %cst_193 : f32 to vector<16x16xf32>
    %288 = arith.mulf %286, %287 : vector<16x16xf32>
    %cst_194 = arith.constant dense<0xFF800000> : vector<16xf32>
    %289 = vector.multi_reduction <maximumf>, %288, %cst_194 [1] : vector<16x16xf32> to vector<16xf32>
    %290 = vector.shape_cast %289 : vector<16xf32> to vector<16x1xf32>
    %291 = vector.broadcast %290 : vector<16x1xf32> to vector<16x16xf32>
    %292 = arith.subf %288, %291 : vector<16x16xf32>
    %293 = math.exp %292 : vector<16x16xf32>
    %cst_195 = arith.constant dense<0.000000e+00> : vector<16xf32>
    %294 = vector.multi_reduction <add>, %293, %cst_195 [1] : vector<16x16xf32> to vector<16xf32>
    %295 = vector.shape_cast %294 : vector<16xf32> to vector<16x1xf32>
    %296 = vector.broadcast %295 : vector<16x1xf32> to vector<16x16xf32>
    %297 = arith.divf %293, %296 : vector<16x16xf32>
    %cst_196 = arith.constant dense<0.000000e+00> : vector<16x4xf32>
    %298 = tpu.matmul %297, %285, %cst_196 {dimension_numbers = #tpu.dot_dimension_numbers<[1], [0], [0], [1], [0, 0, 1, 1], [], []>} : vector<16x16xf32>, vector<16x4xf32>, vector<16x4xf32> -> vector<16x4xf32>
    %c16_197 = arith.constant 16 : index
    %c28_198 = arith.constant 28 : index
    %299 = vector.load %arg16[%c16_197, %c28_198] : memref<32x32xf32, #tpu.memory_space<vmem>>, vector<16x4xf32>
    tpu.vector_store %arg16[%c16_197, %c28_198], %298 {strides = array<i32>} : memref<32x32xf32, #tpu.memory_space<vmem>>, vector<16x4xf32>,
    %c0_199 = arith.constant 0 : index
    %c0_200 = arith.constant 0 : index
    %300 = vector.load %arg16[%c0_199, %c0_200] : memref<32x32xf32, #tpu.memory_space<vmem>>, vector<32x32xf32>
    %c0_201 = arith.constant 0 : index
    %c0_202 = arith.constant 0 : index
    %301 = vector.load %arg4[%c0_201, %c0_202] : memref<32x32xf32, #tpu.memory_space<vmem>>, vector<32x32xf32>
    %cst_203 = arith.constant dense<0.000000e+00> : vector<32x32xf32>
    %302 = tpu.matmul %300, %301, %cst_203 {dimension_numbers = #tpu.dot_dimension_numbers<[1], [0], [0], [1], [0, 0, 1, 1], [], []>} : vector<32x32xf32>, vector<32x32xf32>, vector<32x32xf32> -> vector<32x32xf32>
    %303 = arith.addf %0, %302 : vector<32x32xf32>
    %c0_204 = arith.constant 0 : index
    %c0_205 = arith.constant 0 : index
    %304 = vector.load %arg5[%c0_204, %c0_205] : memref<1x32xf32, #tpu.memory_space<vmem>>, vector<1x32xf32>
    %305 = vector.broadcast %304 : vector<1x32xf32> to vector<32x32xf32>
    %306 = arith.addf %303, %305 : vector<32x32xf32>
    %c0_206 = arith.constant 0 : index
    %c0_207 = arith.constant 0 : index
    %307 = vector.load %arg6[%c0_206, %c0_207] : memref<1x32xf32, #tpu.memory_space<vmem>>, vector<1x32xf32>
    %c0_208 = arith.constant 0 : index
    %c0_209 = arith.constant 0 : index
    %308 = vector.load %arg7[%c0_208, %c0_209] : memref<1x32xf32, #tpu.memory_space<vmem>>, vector<1x32xf32>
    %cst_210 = arith.constant dense<0.000000e+00> : vector<32xf32>
    %309 = vector.multi_reduction <add>, %306, %cst_210 [1] : vector<32x32xf32> to vector<32xf32>
    %310 = vector.shape_cast %309 : vector<32xf32> to vector<32x1xf32>
    %cst_211 = arith.constant 3.200000e+01 : f32
    %311 = vector.broadcast %cst_211 : f32 to vector<32x1xf32>
    %312 = arith.divf %310, %311 : vector<32x1xf32>
    %313 = vector.broadcast %312 : vector<32x1xf32> to vector<32x32xf32>
    %314 = arith.subf %306, %313 : vector<32x32xf32>
    %315 = arith.mulf %314, %314 : vector<32x32xf32>
    %cst_212 = arith.constant dense<0.000000e+00> : vector<32xf32>
    %316 = vector.multi_reduction <add>, %315, %cst_212 [1] : vector<32x32xf32> to vector<32xf32>
    %317 = vector.shape_cast %316 : vector<32xf32> to vector<32x1xf32>
    %cst_213 = arith.constant 3.200000e+01 : f32
    %318 = vector.broadcast %cst_213 : f32 to vector<32x1xf32>
    %319 = arith.divf %317, %318 : vector<32x1xf32>
    %320 = vector.broadcast %312 : vector<32x1xf32> to vector<32x32xf32>
    %321 = arith.subf %306, %320 : vector<32x32xf32>
    %cst_214 = arith.constant 9.99999974E-6 : f32
    %322 = vector.broadcast %cst_214 : f32 to vector<32x1xf32>
    %323 = arith.addf %319, %322 : vector<32x1xf32>
    %324 = math.sqrt %323 : vector<32x1xf32>
    %325 = vector.broadcast %324 : vector<32x1xf32> to vector<32x32xf32>
    %326 = arith.divf %321, %325 : vector<32x32xf32>
    %327 = vector.broadcast %307 : vector<1x32xf32> to vector<32x32xf32>
    %328 = arith.mulf %326, %327 : vector<32x32xf32>
    %329 = vector.broadcast %308 : vector<1x32xf32> to vector<32x32xf32>
    %330 = arith.addf %328, %329 : vector<32x32xf32>
    %c0_215 = arith.constant 0 : index
    %c0_216 = arith.constant 0 : index
    %331 = vector.load %arg8[%c0_215, %c0_216] : memref<32x128xf32, #tpu.memory_space<vmem>>, vector<32x128xf32>
    %cst_217 = arith.constant dense<0.000000e+00> : vector<32x128xf32>
    %332 = tpu.matmul %330, %331, %cst_217 {dimension_numbers = #tpu.dot_dimension_numbers<[1], [0], [0], [1], [0, 0, 1, 1], [], []>} : vector<32x32xf32>, vector<32x128xf32>, vector<32x128xf32> -> vector<32x128xf32>
    %c0_218 = arith.constant 0 : index
    %c0_219 = arith.constant 0 : index
    %333 = vector.load %arg9[%c0_218, %c0_219] : memref<1x128xf32, #tpu.memory_space<vmem>>, vector<1x128xf32>
    %334 = vector.broadcast %333 : vector<1x128xf32> to vector<32x128xf32>
    %335 = arith.addf %332, %334 : vector<32x128xf32>
    %cst_220 = arith.constant 5.000000e-01 : f32
    %336 = vector.broadcast %cst_220 : f32 to vector<32x128xf32>
    %337 = arith.mulf %336, %335 : vector<32x128xf32>
    %cst_221 = arith.constant 0.707106769 : f32
    %338 = vector.broadcast %cst_221 : f32 to vector<32x128xf32>
    %339 = arith.mulf %335, %338 : vector<32x128xf32>
    %340 = math.absf %339 : vector<32x128xf32>
    %cst_222 = arith.constant 0.327591091 : f32
    %341 = vector.broadcast %cst_222 : f32 to vector<32x128xf32>
    %342 = arith.mulf %341, %340 : vector<32x128xf32>
    %cst_223 = arith.constant 1.000000e+00 : f32
    %343 = vector.broadcast %cst_223 : f32 to vector<32x128xf32>
    %344 = arith.addf %343, %342 : vector<32x128xf32>
    %cst_224 = arith.constant 1.000000e+00 : f32
    %345 = vector.broadcast %cst_224 : f32 to vector<32x128xf32>
    %346 = arith.divf %345, %344 : vector<32x128xf32>
    %cst_225 = arith.constant 1.06140542 : f32
    %347 = vector.broadcast %cst_225 : f32 to vector<32x128xf32>
    %348 = arith.mulf %347, %346 : vector<32x128xf32>
    %cst_226 = arith.constant -1.45315206 : f32
    %349 = vector.broadcast %cst_226 : f32 to vector<32x128xf32>
    %350 = arith.addf %348, %349 : vector<32x128xf32>
    %351 = arith.mulf %350, %346 : vector<32x128xf32>
    %cst_227 = arith.constant 1.42141378 : f32
    %352 = vector.broadcast %cst_227 : f32 to vector<32x128xf32>
    %353 = arith.addf %351, %352 : vector<32x128xf32>
    %354 = arith.mulf %353, %346 : vector<32x128xf32>
    %cst_228 = arith.constant -0.284496725 : f32
    %355 = vector.broadcast %cst_228 : f32 to vector<32x128xf32>
    %356 = arith.addf %354, %355 : vector<32x128xf32>
    %357 = arith.mulf %356, %346 : vector<32x128xf32>
    %cst_229 = arith.constant 0.254829586 : f32
    %358 = vector.broadcast %cst_229 : f32 to vector<32x128xf32>
    %359 = arith.addf %357, %358 : vector<32x128xf32>
    %360 = arith.mulf %359, %346 : vector<32x128xf32>
    %cst_230 = arith.constant 0.000000e+00 : f32
    %361 = vector.broadcast %cst_230 : f32 to vector<32x128xf32>
    %362 = arith.subf %361, %340 : vector<32x128xf32>
    %363 = arith.mulf %362, %340 : vector<32x128xf32>
    %364 = math.exp %363 : vector<32x128xf32>
    %365 = arith.mulf %360, %364 : vector<32x128xf32>
    %cst_231 = arith.constant 1.000000e+00 : f32
    %366 = vector.broadcast %cst_231 : f32 to vector<32x128xf32>
    %367 = arith.subf %366, %365 : vector<32x128xf32>
    %cst_232 = arith.constant 0.000000e+00 : f32
    %368 = vector.broadcast %cst_232 : f32 to vector<32x128xf32>
    %369 = arith.cmpf olt, %339, %368 : vector<32x128xf32>
    %cst_233 = arith.constant 0.000000e+00 : f32
    %370 = vector.broadcast %cst_233 : f32 to vector<32x128xf32>
    %371 = arith.subf %370, %367 : vector<32x128xf32>
    %372 = arith.select %369, %371, %367 : vector<32x128xi1>, vector<32x128xf32>
    %cst_234 = arith.constant 1.000000e+00 : f32
    %373 = vector.broadcast %cst_234 : f32 to vector<32x128xf32>
    %374 = arith.addf %373, %372 : vector<32x128xf32>
    %375 = arith.mulf %337, %374 : vector<32x128xf32>
    %c0_235 = arith.constant 0 : index
    %c0_236 = arith.constant 0 : index
    %376 = vector.load %arg10[%c0_235, %c0_236] : memref<128x32xf32, #tpu.memory_space<vmem>>, vector<128x32xf32>
    %cst_237 = arith.constant dense<0.000000e+00> : vector<32x32xf32>
    %377 = tpu.matmul %375, %376, %cst_237 {dimension_numbers = #tpu.dot_dimension_numbers<[1], [0], [0], [1], [0, 0, 1, 1], [], []>} : vector<32x128xf32>, vector<128x32xf32>, vector<32x32xf32> -> vector<32x32xf32>
    %378 = arith.addf %306, %377 : vector<32x32xf32>
    %c0_238 = arith.constant 0 : index
    %c0_239 = arith.constant 0 : index
    %379 = vector.load %arg11[%c0_238, %c0_239] : memref<1x32xf32, #tpu.memory_space<vmem>>, vector<1x32xf32>
    %380 = vector.broadcast %379 : vector<1x32xf32> to vector<32x32xf32>
    %381 = arith.addf %378, %380 : vector<32x32xf32>
    %c0_240 = arith.constant 0 : index
    %c0_241 = arith.constant 0 : index
    %382 = vector.load %arg12[%c0_240, %c0_241] : memref<1x32xf32, #tpu.memory_space<vmem>>, vector<1x32xf32>
    %c0_242 = arith.constant 0 : index
    %c0_243 = arith.constant 0 : index
    %383 = vector.load %arg13[%c0_242, %c0_243] : memref<1x32xf32, #tpu.memory_space<vmem>>, vector<1x32xf32>
    %cst_244 = arith.constant dense<0.000000e+00> : vector<32xf32>
    %384 = vector.multi_reduction <add>, %381, %cst_244 [1] : vector<32x32xf32> to vector<32xf32>
    %385 = vector.shape_cast %384 : vector<32xf32> to vector<32x1xf32>
    %cst_245 = arith.constant 3.200000e+01 : f32
    %386 = vector.broadcast %cst_245 : f32 to vector<32x1xf32>
    %387 = arith.divf %385, %386 : vector<32x1xf32>
    %388 = vector.broadcast %387 : vector<32x1xf32> to vector<32x32xf32>
    %389 = arith.subf %381, %388 : vector<32x32xf32>
    %390 = arith.mulf %389, %389 : vector<32x32xf32>
    %cst_246 = arith.constant dense<0.000000e+00> : vector<32xf32>
    %391 = vector.multi_reduction <add>, %390, %cst_246 [1] : vector<32x32xf32> to vector<32xf32>
    %392 = vector.shape_cast %391 : vector<32xf32> to vector<32x1xf32>
    %cst_247 = arith.constant 3.200000e+01 : f32
    %393 = vector.broadcast %cst_247 : f32 to vector<32x1xf32>
    %394 = arith.divf %392, %393 : vector<32x1xf32>
    %395 = vector.broadcast %387 : vector<32x1xf32> to vector<32x32xf32>
    %396 = arith.subf %381, %395 : vector<32x32xf32>
    %cst_248 = arith.constant 9.99999974E-6 : f32
    %397 = vector.broadcast %cst_248 : f32 to vector<32x1xf32>
    %398 = arith.addf %394, %397 : vector<32x1xf32>
    %399 = math.sqrt %398 : vector<32x1xf32>
    %400 = vector.broadcast %399 : vector<32x1xf32> to vector<32x32xf32>
    %401 = arith.divf %396, %400 : vector<32x32xf32>
    %402 = vector.broadcast %382 : vector<1x32xf32> to vector<32x32xf32>
    %403 = arith.mulf %401, %402 : vector<32x32xf32>
    %404 = vector.broadcast %383 : vector<1x32xf32> to vector<32x32xf32>
    %405 = arith.addf %403, %404 : vector<32x32xf32>
    %c0_249 = arith.constant 0 : index
    %c0_250 = arith.constant 0 : index
    %406 = vector.load %arg14[%c0_249, %c0_250] : memref<32x32xf32, #tpu.memory_space<vmem>>, vector<32x32xf32>
    tpu.vector_store %arg14[%c0_249, %c0_250], %405 {strides = array<i32>} : memref<32x32xf32, #tpu.memory_space<vmem>>, vector<32x32xf32>,
    return
  }
}

</mosaic_0001>

<llo_original>
// kernel: croma_forward.5
$region0: #{croma_forward.5}
  #allocation0 [shape = 'u32[]', space=smem, size = 0x4, offset = 0x4, fixed_abs, tag = 'smem constant byte address 0x4 - core index']
  #allocation1 [shape = 'u32[72,128]{1,0:T(1,128)}', space=vmem, size = 0x9000, scoped, tag = 'internal scratch']
  %s0 = inlined_call_operand.vmem [shape: f32[32,48], index: 0, kind: input, shape index: {}]
  %s1 = inlined_call_operand.vmem [shape: f32[48,64], index: 1, kind: input, shape index: {}]
  %s2 = inlined_call_operand.vmem [shape: f32[1,64], index: 2, kind: input, shape index: {}]
  %s3 = inlined_call_operand.vmem [shape: f32[32,64], index: 3, kind: output, shape index: {}]
  %s4 = sld [smem:[#allocation0]]
  $region22: #{croma_forward.5} parent=0
    _
  %s6 = ssub.s32 1, %s4
  %s7 = scalar_select 0, %s6, %s4
  // Predicated region
  $region2: #{croma_forward.5} parent=0 // pred_check
    _
  $region3: #{croma_forward.5} parent=0 // pred_check_branch
    %9 = sbr.rel (0) target = $region5
  $region4: #{croma_forward.5} parent=0 // pred_region
    _
  $region5: #{croma_forward.5} parent=0 // pred_fallthru
    _
  // Predicated region
  $region6: #{croma_forward.5} parent=0 // pred_check
    _
  $region7: #{croma_forward.5} parent=0 // pred_check_branch
    %11 = sbr.rel (0) target = $region9
  $region8: #{croma_forward.5} parent=0 // pred_region
    _
  $region9: #{croma_forward.5} parent=0 // pred_fallthru
    _
  // Predicated region
  $region10: #{croma_forward.5} parent=0 // pred_check
    _
  $region11: #{croma_forward.5} parent=0 // pred_check_branch
    %13 = sbr.rel (0) target = $region13
  $region12: #{croma_forward.5} parent=0 // pred_region
    _
  $region13: #{croma_forward.5} parent=0 // pred_fallthru
    _
  %v14 = vld [vmem:[%s0] sm:$0xff]
  %v15 = vld [vmem:[%s0 + $0x8] sm:$0xff]
  %v16 = vld [vmem:[%s0 + $0x10] sm:$0xff]
  %v17 = vld [vmem:[%s0 + $0x18] sm:$0xff]
  %v18 = vld [vmem:[%s1] sm:$0xff]
  %v19 = vld [vmem:[%s1 + $0x8] sm:$0xff]
  %v20 = vld [vmem:[%s1 + $0x10] sm:$0xff]
  %v21 = vld [vmem:[%s1 + $0x18] sm:$0xff]
  %v22 = vld [vmem:[%s1 + $0x20] sm:$0xff]
  %v23 = vld [vmem:[%s1 + $0x28] sm:$0xff]
  %v24 = vld [vmem:[%s2] sm:$0x1]
  %v26 = vperm.slane %v24, 0
  %vm28 = vcmask 392192
  %v30 = vsel %vm28, %v14, 0
  %v33 = vsel %vm28, %v15, 0
  %v36 = vsel %vm28, %v16, 0
  %v39 = vsel %vm28, %v17, 0
  %41 = vmatpush.msra.mxu0 0.0
  %42 = vmatpush.msra.mxu0 0.0
  %43 = vmatpush.msra.mxu0 0.0
  %44 = vmatpush.msra.mxu0 0.0
  %45 = vmatpush.msra.mxu0 0.0
  %46 = vmatpush.msra.mxu0 0.0
  %47 = vmatpush.msra.mxu0 0.0
  %48 = vmatpush.msra.mxu0 0.0
  %49 = vmatpush.msra.mxu0 0.0
  %50 = vmatpush.msra.mxu0 0.0
  %51 = vmatpush.msra.mxu0 %v23
  %52 = vmatpush.msra.mxu0 %v22
  %53 = vmatpush.msra.mxu0 %v21
  %54 = vmatpush.msra.mxu0 %v20
  %55 = vmatpush.msra.mxu0 %v19
  %56 = vmatpush.msra.mxu0 %v18
  %57 = vmatmul.f32.gmra.mxu0 %v30
  %v58 = vpop.f32.mrf.mxu0
  %v59 = vadd.f32 %v26, %v58
  %60 = vmatmul.f32.gmra.mxu0 %v33
  %v61 = vpop.f32.mrf.mxu0
  %v62 = vadd.f32 %v26, %v61
  %63 = vmatmul.f32.gmra.mxu0 %v36
  %v64 = vpop.f32.mrf.mxu0
  %v65 = vadd.f32 %v26, %v64
  %66 = vmatmul.f32.gmra.mxu0 %v39
  %v67 = vpop.f32.mrf.mxu0
  %v68 = vadd.f32 %v26, %v67
  %69 = vdwg.mxu0
  %vm70 = vcmask 523264
  %71 = vst.msk [vmem:[%s3] sm:$0xff] %vm70, %v59
  %72 = vst.msk [vmem:[%s3 + $0x8] sm:$0xff] %vm70, %v62
  %73 = vst.msk [vmem:[%s3 + $0x10] sm:$0xff] %vm70, %v65
  %74 = vst.msk [vmem:[%s3 + $0x18] sm:$0xff] %vm70, %v68
  // Predicated region
  $region14: #{croma_forward.5} parent=0 // pred_check
    _
  $region15: #{croma_forward.5} parent=0 // pred_check_branch
    %76 = sbr.rel (0) target = $region17
  $region16: #{croma_forward.5} parent=0 // pred_region
    _
  $region17: #{croma_forward.5} parent=0 // pred_fallthru
    _
  // Predicated region
  $region18: #{croma_forward.5} parent=0 // pred_check
    _
  $region19: #{croma_forward.5} parent=0 // pred_check_branch
    %78 = sbr.rel (0) target = $region21
  $region20: #{croma_forward.5} parent=0 // pred_region
    _
  $region21: #{croma_forward.5} parent=0 // pred_fallthru
    _

// kernel: croma_forward.7
$region0: #{croma_forward.7}
  #allocation0 [shape = 'u32[]', space=smem, size = 0x4, offset = 0x4, fixed_abs, tag = 'smem constant byte address 0x4 - core index']
  #allocation1 [shape = 'u32[72,128]{1,0:T(1,128)}', space=vmem, size = 0x9000, scoped, tag = 'internal scratch']
  %s0 = inlined_call_operand.vmem [shape: f32[24,64], index: 0, kind: input, shape index: {}]
  %s1 = inlined_call_operand.vmem [shape: f32[64,32], index: 1, kind: input, shape index: {}]
  %s2 = inlined_call_operand.vmem [shape: f32[1,32], index: 2, kind: input, shape index: {}]
  %s3 = inlined_call_operand.vmem [shape: f32[24,32], index: 3, kind: output, shape index: {}]
  %s4 = sld [smem:[#allocation0]]
  $region22: #{croma_forward.7} parent=0
    _
  %s6 = ssub.s32 1, %s4
  %s7 = scalar_select 0, %s6, %s4
  // Predicated region
  $region2: #{croma_forward.7} parent=0 // pred_check
    _
  $region3: #{croma_forward.7} parent=0 // pred_check_branch
    %9 = sbr.rel (0) target = $region5
  $region4: #{croma_forward.7} parent=0 // pred_region
    _
  $region5: #{croma_forward.7} parent=0 // pred_fallthru
    _
  // Predicated region
  $region6: #{croma_forward.7} parent=0 // pred_check
    _
  $region7: #{croma_forward.7} parent=0 // pred_check_branch
    %11 = sbr.rel (0) target = $region9
  $region8: #{croma_forward.7} parent=0 // pred_region
    _
  $region9: #{croma_forward.7} parent=0 // pred_fallthru
    _
  // Predicated region
  $region10: #{croma_forward.7} parent=0 // pred_check
    _
  $region11: #{croma_forward.7} parent=0 // pred_check_branch
    %13 = sbr.rel (0) target = $region13
  $region12: #{croma_forward.7} parent=0 // pred_region
    _
  $region13: #{croma_forward.7} parent=0 // pred_fallthru
    _
  %v14 = vld [vmem:[%s0] sm:$0xff]
  %v15 = vld [vmem:[%s0 + $0x8] sm:$0xff]
  %v16 = vld [vmem:[%s0 + $0x10] sm:$0xff]
  %v17 = vld [vmem:[%s1] sm:$0xff]
  %v18 = vld [vmem:[%s1 + $0x8] sm:$0xff]
  %v19 = vld [vmem:[%s1 + $0x10] sm:$0xff]
  %v20 = vld [vmem:[%s1 + $0x18] sm:$0xff]
  %v21 = vld [vmem:[%s1 + $0x20] sm:$0xff]
  %v22 = vld [vmem:[%s1 + $0x28] sm:$0xff]
  %v23 = vld [vmem:[%s1 + $0x30] sm:$0xff]
  %v24 = vld [vmem:[%s1 + $0x38] sm:$0xff]
  %v25 = vld [vmem:[%s2] sm:$0x1]
  %v27 = vperm.slane %v25, 0
  %vm29 = vcmask 523264
  %v31 = vsel %vm29, %v14, 0
  %v34 = vsel %vm29, %v15, 0
  %v37 = vsel %vm29, %v16, 0
  %39 = vmatpush.msra.mxu0 0.0
  %40 = vmatpush.msra.mxu0 0.0
  %41 = vmatpush.msra.mxu0 0.0
  %42 = vmatpush.msra.mxu0 0.0
  %43 = vmatpush.msra.mxu0 0.0
  %44 = vmatpush.msra.mxu0 0.0
  %45 = vmatpush.msra.mxu0 0.0
  %46 = vmatpush.msra.mxu0 0.0
  %47 = vmatpush.msra.mxu0 %v24
  %48 = vmatpush.msra.mxu0 %v23
  %49 = vmatpush.msra.mxu0 %v22
  %50 = vmatpush.msra.mxu0 %v21
  %51 = vmatpush.msra.mxu0 %v20
  %52 = vmatpush.msra.mxu0 %v19
  %53 = vmatpush.msra.mxu0 %v18
  %54 = vmatpush.msra.mxu0 %v17
  %55 = vmatmul.f32.gmra.mxu0 %v31
  %v56 = vpop.f32.mrf.mxu0
  %v57 = vadd.f32 %v27, %v56
  %58 = vmatmul.f32.gmra.mxu0 %v34
  %v59 = vpop.f32.mrf.mxu0
  %v60 = vadd.f32 %v27, %v59
  %61 = vmatmul.f32.gmra.mxu0 %v37
  %v62 = vpop.f32.mrf.mxu0
  %v63 = vadd.f32 %v27, %v62
  %64 = vdwg.mxu0
  %vm65 = vcmask 261120
  %66 = vst.msk [vmem:[%s3] sm:$0xff] %vm65, %v57
  %67 = vst.msk [vmem:[%s3 + $0x8] sm:$0xff] %vm65, %v60
  %68 = vst.msk [vmem:[%s3 + $0x10] sm:$0xff] %vm65, %v63
  // Predicated region
  $region14: #{croma_forward.7} parent=0 // pred_check
    _
  $region15: #{croma_forward.7} parent=0 // pred_check_branch
    %70 = sbr.rel (0) target = $region17
  $region16: #{croma_forward.7} parent=0 // pred_region
    _
  $region17: #{croma_forward.7} parent=0 // pred_fallthru
    _
  // Predicated region
  $region18: #{croma_forward.7} parent=0 // pred_check
    _
  $region19: #{croma_forward.7} parent=0 // pred_check_branch
    %72 = sbr.rel (0) target = $region21
  $region20: #{croma_forward.7} parent=0 // pred_region
    _
  $region21: #{croma_forward.7} parent=0 // pred_fallthru
    _

// kernel: croma_forward.9
$region0: #{croma_forward.9}
  #allocation0 [shape = 'u32[]', space=smem, size = 0x4, offset = 0x4, fixed_abs, tag = 'smem constant byte address 0x4 - core index']
  #allocation1 [shape = 'u32[72,128]{1,0:T(1,128)}', space=vmem, size = 0x9000, scoped, tag = 'internal scratch']
  %s0 = inlined_call_operand.vmem [shape: f32[32,32], index: 0, kind: input, shape index: {}]
  %s1 = inlined_call_operand.vmem [shape: f32[32,48], index: 1, kind: input, shape index: {}]
  %s2 = inlined_call_operand.vmem [shape: f32[1,48], index: 2, kind: input, shape index: {}]
  %s3 = inlined_call_operand.vmem [shape: f32[32,48], index: 3, kind: input, shape index: {}]
  %s4 = inlined_call_operand.vmem [shape: f32[32,1], index: 4, kind: input, shape index: {}]
  %s5 = inlined_call_operand.vmem [shape: f32[32,48], index: 5, kind: output, shape index: {0}]
  %s6 = inlined_call_operand.hbm [shape: f32[1,1], index: 6, kind: output, shape index: {1}]
  %7 = xla_tuple %s5, %s6
  %s8 = sld [smem:[#allocation0]]
  $region38: #{croma_forward.9} parent=0
    _
  %s10 = ssub.s32 1, %s8
  %s11 = scalar_select 0, %s10, %s8
  $region1: #{croma_forward.9} parent=0
    #allocation2 [shape = 'u8[512]{0}', space=vmem, size = 0x400, scoped, tag = 'output window, operand 1, single buffered']
    #allocation3 [shape = 's32[1]{0}', space=sflag, size = 0x4, scoped, tag = 'scoped memory for croma_forward.9']
    %12 = vsyncpa [#allocation3], 0
    // Predicated region
    $region2: #{croma_forward.9} parent=1 // pred_check
      _
    $region3: #{croma_forward.9} parent=1 // pred_check_branch
      %14 = sbr.rel (0) target = $region5
    $region4: #{croma_forward.9} parent=1 // pred_region
      _
    $region5: #{croma_forward.9} parent=1 // pred_fallthru
      _
    // Predicated region
    $region6: #{croma_forward.9} parent=1 // pred_check
      _
    $region7: #{croma_forward.9} parent=1 // pred_check_branch
      %16 = sbr.rel (0) target = $region9
    $region8: #{croma_forward.9} parent=1 // pred_region
      _
    $region9: #{croma_forward.9} parent=1 // pred_fallthru
      _
    // Predicated region
    $region10: #{croma_forward.9} parent=1 // pred_check
      _
    $region11: #{croma_forward.9} parent=1 // pred_check_branch
      %18 = sbr.rel (0) target = $region13
    $region12: #{croma_forward.9} parent=1 // pred_region
      _
    $region13: #{croma_forward.9} parent=1 // pred_fallthru
      _
    // Predicated region
    $region14: #{croma_forward.9} parent=1 // pred_check
      _
    $region15: #{croma_forward.9} parent=1 // pred_check_branch
      %20 = sbr.rel (0) target = $region17
    $region16: #{croma_forward.9} parent=1 // pred_region
      _
    $region17: #{croma_forward.9} parent=1 // pred_fallthru
      _
    // Predicated region
    $region18: #{croma_forward.9} parent=1 // pred_check
      _
    $region19: #{croma_forward.9} parent=1 // pred_check_branch
      %22 = sbr.rel (0) target = $region21
    $region20: #{croma_forward.9} parent=1 // pred_region
      _
    $region21: #{croma_forward.9} parent=1 // pred_fallthru
      _
    %v23 = vld [vmem:[%s0] sm:$0xff]
    %v24 = vld [vmem:[%s0 + $0x8] sm:$0xff]
    %v25 = vld [vmem:[%s0 + $0x10] sm:$0xff]
    %v26 = vld [vmem:[%s0 + $0x18] sm:$0xff]
    %v27 = vld [vmem:[%s1] sm:$0xff]
    %v28 = vld [vmem:[%s1 + $0x8] sm:$0xff]
    %v29 = vld [vmem:[%s1 + $0x10] sm:$0xff]
    %v30 = vld [vmem:[%s1 + $0x18] sm:$0xff]
    %v31 = vld [vmem:[%s2] sm:$0x1]
    %v33 = vperm.slane %v31, 0
    %vm35 = vcmask 261120
    %v37 = vsel %vm35, %v23, 0
    %v40 = vsel %vm35, %v24, 0
    %v43 = vsel %vm35, %v25, 0
    %v46 = vsel %vm35, %v26, 0
    %48 = vmatpush.msra.mxu0 0.0
    %49 = vmatpush.msra.mxu0 0.0
    %50 = vmatpush.msra.mxu0 0.0
    %51 = vmatpush.msra.mxu0 0.0
    %52 = vmatpush.msra.mxu0 0.0
    %53 = vmatpush.msra.mxu0 0.0
    %54 = vmatpush.msra.mxu0 0.0
    %55 = vmatpush.msra.mxu0 0.0
    %56 = vmatpush.msra.mxu0 0.0
    %57 = vmatpush.msra.mxu0 0.0
    %58 = vmatpush.msra.mxu0 0.0
    %59 = vmatpush.msra.mxu0 0.0
    %60 = vmatpush.msra.mxu0 %v30
    %61 = vmatpush.msra.mxu0 %v29
    %62 = vmatpush.msra.mxu0 %v28
    %63 = vmatpush.msra.mxu0 %v27
    %64 = vmatmul.f32.gmra.mxu0 %v37
    %v65 = vpop.f32.mrf.mxu0
    %v66 = vadd.f32 %v33, %v65
    %67 = vmatmul.f32.gmra.mxu0 %v40
    %v68 = vpop.f32.mrf.mxu0
    %v69 = vadd.f32 %v33, %v68
    %70 = vmatmul.f32.gmra.mxu0 %v43
    %v71 = vpop.f32.mrf.mxu0
    %v72 = vadd.f32 %v33, %v71
    %73 = vmatmul.f32.gmra.mxu0 %v46
    %v74 = vpop.f32.mrf.mxu0
    %v75 = vadd.f32 %v33, %v74
    %76 = vdwg.mxu0
    %vm77 = vcmask 392192
    %78 = vst.msk [vmem:[%s5] sm:$0xff] %vm77, %v66
    %79 = vst.msk [vmem:[%s5 + $0x8] sm:$0xff] %vm77, %v69
    %80 = vst.msk [vmem:[%s5 + $0x10] sm:$0xff] %vm77, %v72
    %81 = vst.msk [vmem:[%s5 + $0x18] sm:$0xff] %vm77, %v75
    %v82 = vld [vmem:[%s3] sm:$0xff]
    %v83 = vld [vmem:[%s3 + $0x8] sm:$0xff]
    %v84 = vld [vmem:[%s3 + $0x10] sm:$0xff]
    %v85 = vld [vmem:[%s3 + $0x18] sm:$0xff]
    %v86 = vsel %vm77, %v82, 0.0
    %87 = vadd.xlane.f32.xlu0 %v86
    %v88 = vpop.xlane.xlu0 %87
    %v89 = vsel %vm77, %v83, 0.0
    %90 = vadd.xlane.f32.xlu0 %v89
    %v91 = vpop.xlane.xlu0 %90
    %v92 = vsel %vm77, %v84, 0.0
    %93 = vadd.xlane.f32.xlu0 %v92
    %v94 = vpop.xlane.xlu0 %93
    %v95 = vsel %vm77, %v85, 0.0
    %96 = vadd.xlane.f32.xlu0 %v95
    %v97 = vpop.xlane.xlu0 %96
    %v98 = vrcp.pop 48.0
    %v99 = vmul.f32 48.0, %v98
    %v100 = vsub.f32 1.0, %v99
    %v101 = vmul.f32 %v98, %v100
    %v102 = vadd.f32 %v98, %v101
    %vm103 = vweird.f32 %v98
    %v104 = vsel %vm103, %v98, %v102
    %v105 = vmul.f32 %v88, %v104
    %v106 = vmul.f32 %v91, %v104
    %v107 = vmul.f32 %v94, %v104
    %v108 = vmul.f32 %v97, %v104
    %v109 = vsub.f32 %v82, %v105
    %v110 = vsub.f32 %v83, %v106
    %v111 = vsub.f32 %v84, %v107
    %v112 = vsub.f32 %v85, %v108
    %v113 = vmul.f32 %v109, %v109
    %v114 = vmul.f32 %v110, %v110
    %v115 = vmul.f32 %v111, %v111
    %v116 = vmul.f32 %v112, %v112
    %v117 = vsel %vm77, %v113, 0.0
    %118 = vadd.xlane.f32.xlu0 %v117
    %v119 = vpop.xlane.xlu0 %118
    %v120 = vsel %vm77, %v114, 0.0
    %121 = vadd.xlane.f32.xlu0 %v120
    %v122 = vpop.xlane.xlu0 %121
    %v123 = vsel %vm77, %v115, 0.0
    %124 = vadd.xlane.f32.xlu0 %v123
    %v125 = vpop.xlane.xlu0 %124
    %v126 = vsel %vm77, %v116, 0.0
    %127 = vadd.xlane.f32.xlu0 %v126
    %v128 = vpop.xlane.xlu0 %127
    %v129 = vrcp.pop 47.0
    %v130 = vmul.f32 47.0, %v129
    %v131 = vsub.f32 1.0, %v130
    %v132 = vmul.f32 %v129, %v131
    %v133 = vadd.f32 %v129, %v132
    %vm134 = vweird.f32 %v129
    %v135 = vsel %vm134, %v129, %v133
    %v136 = vmul.f32 %v119, %v135
    %v137 = vmul.f32 %v122, %v135
    %v138 = vmul.f32 %v125, %v135
    %v139 = vmul.f32 %v128, %v135
    %v140 = vadd.f32 %v136, 1e-06
    %v141 = vadd.f32 %v137, 1e-06
    %v142 = vadd.f32 %v138, 1e-06
    %v143 = vadd.f32 %v139, 1e-06
    %v144 = vrsqrt.pop %v140
    %v145 = vmul.f32 %v144, %v140
    %v146 = vmul.f32 %v145, %v144
    %v147 = vmul.f32 0.5, %v146
    %v148 = vsub.f32 1.5, %v147
    %v149 = vmul.f32 %v144, %v148
    %v150 = vmul.f32 %v140, %v149
    %vm151 = vcmp.eq.f32.partialorder %v140, inf
    %v152 = vsel %vm151, %v140, %v150
    %vm153 = vcmp.eq.f32.partialorder %v140, 0.0
    %v154 = vand.u32 %v140, 2147483648
    %v155 = vsel %vm153, %v154, %v152
    %v156 = vrsqrt.pop %v141
    %v157 = vmul.f32 %v156, %v141
    %v158 = vmul.f32 %v157, %v156
    %v159 = vmul.f32 0.5, %v158
    %v160 = vsub.f32 1.5, %v159
    %v161 = vmul.f32 %v156, %v160
    %v162 = vmul.f32 %v141, %v161
    %vm163 = vcmp.eq.f32.partialorder %v141, inf
    %v164 = vsel %vm163, %v141, %v162
    %vm165 = vcmp.eq.f32.partialorder %v141, 0.0
    %v166 = vand.u32 %v141, 2147483648
    %v167 = vsel %vm165, %v166, %v164
    %v168 = vrsqrt.pop %v142
    %v169 = vmul.f32 %v168, %v142
    %v170 = vmul.f32 %v169, %v168
    %v171 = vmul.f32 0.5, %v170
    %v172 = vsub.f32 1.5, %v171
    %v173 = vmul.f32 %v168, %v172
    %v174 = vmul.f32 %v142, %v173
    %vm175 = vcmp.eq.f32.partialorder %v142, inf
    %v176 = vsel %vm175, %v142, %v174
    %vm177 = vcmp.eq.f32.partialorder %v142, 0.0
    %v178 = vand.u32 %v142, 2147483648
    %v179 = vsel %vm177, %v178, %v176
    %v180 = vrsqrt.pop %v143
    %v181 = vmul.f32 %v180, %v143
    %v182 = vmul.f32 %v181, %v180
    %v183 = vmul.f32 0.5, %v182
    %v184 = vsub.f32 1.5, %v183
    %v185 = vmul.f32 %v180, %v184
    %v186 = vmul.f32 %v143, %v185
    %vm187 = vcmp.eq.f32.partialorder %v143, inf
    %v188 = vsel %vm187, %v143, %v186
    %vm189 = vcmp.eq.f32.partialorder %v143, 0.0
    %v190 = vand.u32 %v143, 2147483648
    %v191 = vsel %vm189, %v190, %v188
    %v192 = vrcp.pop %v155
    %v193 = vmul.f32 %v155, %v192
    %v194 = vsub.f32 1.0, %v193
    %v195 = vmul.f32 %v192, %v194
    %v196 = vadd.f32 %v192, %v195
    %vm197 = vweird.f32 %v155
    %vm198 = vweird.f32 %v192
    %vm199 = vmor %vm197, %vm198
    %v200 = vsel %vm199, %v192, %v196
    %v201 = vand.u32 2147483647, %v155
    %vm202 = vcmp.eq.f32.partialorder %v201, 8.507059e+37
    %v203 = vand.u32 %v155, 2147483648
    %v204 = vor.u32 1.1754944e-38, %v203
    %v205 = vsel %vm202, %v204, %v200
    %v206 = vmul.f32 %v109, %v205
    %v207 = vrcp.pop %v167
    %v208 = vmul.f32 %v167, %v207
    %v209 = vsub.f32 1.0, %v208
    %v210 = vmul.f32 %v207, %v209
    %v211 = vadd.f32 %v207, %v210
    %vm212 = vweird.f32 %v167
    %vm213 = vweird.f32 %v207
    %vm214 = vmor %vm212, %vm213
    %v215 = vsel %vm214, %v207, %v211
    %v216 = vand.u32 2147483647, %v167
    %vm217 = vcmp.eq.f32.partialorder %v216, 8.507059e+37
    %v218 = vand.u32 %v167, 2147483648
    %v219 = vor.u32 1.1754944e-38, %v218
    %v220 = vsel %vm217, %v219, %v215
    %v221 = vmul.f32 %v110, %v220
    %v222 = vrcp.pop %v179
    %v223 = vmul.f32 %v179, %v222
    %v224 = vsub.f32 1.0, %v223
    %v225 = vmul.f32 %v222, %v224
    %v226 = vadd.f32 %v222, %v225
    %vm227 = vweird.f32 %v179
    %vm228 = vweird.f32 %v222
    %vm229 = vmor %vm227, %vm228
    %v230 = vsel %vm229, %v222, %v226
    %v231 = vand.u32 2147483647, %v179
    %vm232 = vcmp.eq.f32.partialorder %v231, 8.507059e+37
    %v233 = vand.u32 %v179, 2147483648
    %v234 = vor.u32 1.1754944e-38, %v233
    %v235 = vsel %vm232, %v234, %v230
    %v236 = vmul.f32 %v111, %v235
    %v237 = vrcp.pop %v191
    %v238 = vmul.f32 %v191, %v237
    %v239 = vsub.f32 1.0, %v238
    %v240 = vmul.f32 %v237, %v239
    %v241 = vadd.f32 %v237, %v240
    %vm242 = vweird.f32 %v191
    %vm243 = vweird.f32 %v237
    %vm244 = vmor %vm242, %vm243
    %v245 = vsel %vm244, %v237, %v241
    %v246 = vand.u32 2147483647, %v191
    %vm247 = vcmp.eq.f32.partialorder %v246, 8.507059e+37
    %v248 = vand.u32 %v191, 2147483648
    %v249 = vor.u32 1.1754944e-38, %v248
    %v250 = vsel %vm247, %v249, %v245
    %v251 = vmul.f32 %v112, %v250
    %v252 = vsub.f32 %v66, %v206
    %v253 = vsub.f32 %v69, %v221
    %v254 = vsub.f32 %v72, %v236
    %v255 = vsub.f32 %v75, %v251
    %v256 = vmul.f32 %v252, %v252
    %v257 = vmul.f32 %v253, %v253
    %v258 = vmul.f32 %v254, %v254
    %v259 = vmul.f32 %v255, %v255
    %v260 = vsel %vm77, %v256, 0.0
    %261 = vadd.xlane.f32.xlu0 %v260
    %v262 = vpop.xlane.xlu0 %261
    %v263 = vsel %vm77, %v257, 0.0
    %264 = vadd.xlane.f32.xlu0 %v263
    %v265 = vpop.xlane.xlu0 %264
    %v266 = vsel %vm77, %v258, 0.0
    %267 = vadd.xlane.f32.xlu0 %v266
    %v268 = vpop.xlane.xlu0 %267
    %v269 = vsel %vm77, %v259, 0.0
    %270 = vadd.xlane.f32.xlu0 %v269
    %v271 = vpop.xlane.xlu0 %270
    %v272 = vmul.f32 %v262, %v104
    %v273 = vmul.f32 %v265, %v104
    %v274 = vmul.f32 %v268, %v104
    %v275 = vmul.f32 %v271, %v104
    %v276 = vld [vmem:[%s4] sm:$0xff]
    %v277 = vld [vmem:[%s4 + $0x8] sm:$0xff]
    %v278 = vld [vmem:[%s4 + $0x10] sm:$0xff]
    %v279 = vld [vmem:[%s4 + $0x18] sm:$0xff]
    %v280 = vmul.f32 %v272, %v276
    %v281 = vmul.f32 %v273, %v277
    %v282 = vmul.f32 %v274, %v278
    %v283 = vmul.f32 %v275, %v279
    %vm284 = vcmask 7168
    %v285 = vsel %vm284, %v280, 0.0
    %v286 = vsel %vm284, %v281, 0.0
    %v287 = vadd.f32 %v285, %v286
    %v288 = vsel %vm284, %v282, 0.0
    %v289 = vadd.f32 %v287, %v288
    %v290 = vsel %vm284, %v283, 0.0
    %v291 = vadd.f32 %v289, %v290
    %292 = vadd.xlane.f32.xlu0 %v291
    %v293 = vpop.xlane.xlu0 %292
    %v294 = vrot.slane %v293, 4
    %v295 = vadd.f32 %v293, %v294
    %v296 = vrot.slane %v295, 2
    %v297 = vadd.f32 %v295, %v296
    %v298 = vrot.slane %v297, 1
    %v299 = vadd.f32 %v297, %v298
    %s300 = vtos %v299
    %v301 = vstv %s300
    %v302 = vsel %vm284, %v276, 0.0
    %v303 = vsel %vm284, %v277, 0.0
    %v304 = vadd.f32 %v302, %v303
    %v305 = vsel %vm284, %v278, 0.0
    %v306 = vadd.f32 %v304, %v305
    %v307 = vsel %vm284, %v279, 0.0
    %v308 = vadd.f32 %v306, %v307
    %309 = vadd.xlane.f32.xlu0 %v308
    %v310 = vpop.xlane.xlu0 %309
    %v311 = vrot.slane %v310, 4
    %v312 = vadd.f32 %v310, %v311
    %v313 = vrot.slane %v312, 2
    %v314 = vadd.f32 %v312, %v313
    %v315 = vrot.slane %v314, 1
    %v316 = vadd.f32 %v314, %v315
    %s317 = vtos %v316
    %v318 = vstv %s317
    %v319 = vadd.f32 %v318, 1e-08
    %v320 = vrcp.pop %v319
    %v321 = vmul.f32 %v319, %v320
    %v322 = vsub.f32 1.0, %v321
    %v323 = vmul.f32 %v320, %v322
    %v324 = vadd.f32 %v320, %v323
    %vm325 = vweird.f32 %v319
    %vm326 = vweird.f32 %v320
    %vm327 = vmor %vm325, %vm326
    %v328 = vsel %vm327, %v320, %v324
    %v329 = vand.u32 2147483647, %v319
    %vm330 = vcmp.eq.f32.partialorder %v329, 8.507059e+37
    %v331 = vand.u32 %v319, 2147483648
    %v332 = vor.u32 1.1754944e-38, %v331
    %v333 = vsel %vm330, %v332, %v328
    %v334 = vmul.f32 %v301, %v333
    %vm335 = vcmask 0
    %336 = vst.msk [vmem:[#allocation2] sm:$0x1] %vm335, %v334
    // Predicated region
    $region22: #{croma_forward.9} parent=1 // pred_check
      _
    $region23: #{croma_forward.9} parent=1 // pred_check_branch
      %338 = sbr.rel (0) target = $region25
    $region24: #{croma_forward.9} parent=1 // pred_region
      _
    $region25: #{croma_forward.9} parent=1 // pred_fallthru
      _
    // Predicated region
    $region26: #{croma_forward.9} parent=1 // pred_check
      _
    $region27: #{croma_forward.9} parent=1 // pred_check_branch
      %340 = sbr.rel (0) target = $region29
    $region28: #{croma_forward.9} parent=1 // pred_region
      %342 = vsyncadd [#allocation3], 0
      %s344 = sshll.u32 [#allocation2], 4
      %s345 = int_to_ptr.vmem [resolvable:$true] %s344
      %s346 = sshll.u32 %s6, 4
      %s347 = int_to_ptr.hbm [resolvable:$true] %s346
      %349 = dma.vmem_to_hbm [thread:$0]  %s345, 16, %s347, [#allocation3]
    $region29: #{croma_forward.9} parent=1 // pred_fallthru
      _
    // Predicated region
    $region30: #{croma_forward.9} parent=1 // pred_check
      _
    $region31: #{croma_forward.9} parent=1 // pred_check_branch
      %351 = sbr.rel (0) target = $region33
    $region32: #{croma_forward.9} parent=1 // pred_region
      _
    $region33: #{croma_forward.9} parent=1 // pred_fallthru
      _
    // Predicated region
    $region34: #{croma_forward.9} parent=1 // pred_check
      _
    $region35: #{croma_forward.9} parent=1 // pred_check_branch
      %353 = sbr.rel (0) target = $region37
    $region36: #{croma_forward.9} parent=1 // pred_region
      %355 = dma.done [#allocation3], 16
    $region37: #{croma_forward.9} parent=1 // pred_fallthru
      _
    %356 = vsyncpa [#allocation3], 1

// kernel: croma_forward.6
$region0: #{croma_forward.6}
  #allocation0 [shape = 'u32[]', space=smem, size = 0x4, offset = 0x4, fixed_abs, tag = 'smem constant byte address 0x4 - core index']
  #allocation1 [shape = 'u32[72,128]{1,0:T(1,128)}', space=vmem, size = 0x9000, scoped, tag = 'internal scratch']
  #allocation2 [shape = 'f32[24,192]{1,0:T(8,128)}', space=vmem, size = 0x6000, scoped, tag = 'scratch operand']
  #allocation3 [shape = 'f32[24,64]{1,0:T(8,128)}', space=vmem, size = 0x3000, scoped, tag = 'scratch operand']
  %s0 = inlined_call_operand.vmem [shape: f32[24,64], index: 0, kind: input, shape index: {}]
  %s1 = inlined_call_operand.vmem [shape: f32[16,12,12], index: 1, kind: input, shape index: {}]
  %s2 = inlined_call_operand.vmem [shape: f32[1,64], index: 2, kind: input, shape index: {}]
  %s3 = inlined_call_operand.vmem [shape: f32[1,64], index: 3, kind: input, shape index: {}]
  %s4 = inlined_call_operand.vmem [shape: f32[64,192], index: 4, kind: input, shape index: {}]
  %s5 = inlined_call_operand.vmem [shape: f32[64,64], index: 5, kind: input, shape index: {}]
  %s6 = inlined_call_operand.vmem [shape: f32[1,64], index: 6, kind: input, shape index: {}]
  %s7 = inlined_call_operand.vmem [shape: f32[1,64], index: 7, kind: input, shape index: {}]
  %s8 = inlined_call_operand.vmem [shape: f32[1,64], index: 8, kind: input, shape index: {}]
  %s9 = inlined_call_operand.vmem [shape: f32[64,256], index: 9, kind: input, shape index: {}]
  %s10 = inlined_call_operand.vmem [shape: f32[1,256], index: 10, kind: input, shape index: {}]
  %s11 = inlined_call_operand.vmem [shape: f32[256,64], index: 11, kind: input, shape index: {}]
  %s12 = inlined_call_operand.vmem [shape: f32[1,64], index: 12, kind: input, shape index: {}]
  %s13 = inlined_call_operand.vmem [shape: f32[1,64], index: 13, kind: input, shape index: {}]
  %s14 = inlined_call_operand.vmem [shape: f32[1,64], index: 14, kind: input, shape index: {}]
  %s15 = inlined_call_operand.vmem [shape: f32[24,64], index: 15, kind: output, shape index: {}]
  %s16 = sld [smem:[#allocation0]]
  $region70: #{croma_forward.6} parent=0
    _
  %s18 = ssub.s32 1, %s16
  %s19 = scalar_select 0, %s18, %s16
  // Predicated region
  $region2: #{croma_forward.6} parent=0 // pred_check
    _
  $region3: #{croma_forward.6} parent=0 // pred_check_branch
    %21 = sbr.rel (0) target = $region5
  $region4: #{croma_forward.6} parent=0 // pred_region
    _
  $region5: #{croma_forward.6} parent=0 // pred_fallthru
    _
  // Predicated region
  $region6: #{croma_forward.6} parent=0 // pred_check
    _
  $region7: #{croma_forward.6} parent=0 // pred_check_branch
    %23 = sbr.rel (0) target = $region9
  $region8: #{croma_forward.6} parent=0 // pred_region
    _
  $region9: #{croma_forward.6} parent=0 // pred_fallthru
    _
  // Predicated region
  $region10: #{croma_forward.6} parent=0 // pred_check
    _
  $region11: #{croma_forward.6} parent=0 // pred_check_branch
    %25 = sbr.rel (0) target = $region13
  $region12: #{croma_forward.6} parent=0 // pred_region
    _
  $region13: #{croma_forward.6} parent=0 // pred_fallthru
    _
  // Predicated region
  $region14: #{croma_forward.6} parent=0 // pred_check
    _
  $region15: #{croma_forward.6} parent=0 // pred_check_branch
    %27 = sbr.rel (0) target = $region17
  $region16: #{croma_forward.6} parent=0 // pred_region
    _
  $region17: #{croma_forward.6} parent=0 // pred_fallthru
    _
  // Predicated region
  $region18: #{croma_forward.6} parent=0 // pred_check
    _
  $region19: #{croma_forward.6} parent=0 // pred_check_branch
    %29 = sbr.rel (0) target = $region21
  $region20: #{croma_forward.6} parent=0 // pred_region
    _
  $region21: #{croma_forward.6} parent=0 // pred_fallthru
    _
  // Predicated region
  $region22: #{croma_forward.6} parent=0 // pred_check
    _
  $region23: #{croma_forward.6} parent=0 // pred_check_branch
    %31 = sbr.rel (0) target = $region25
  $region24: #{croma_forward.6} parent=0 // pred_region
    _
  $region25: #{croma_forward.6} parent=0 // pred_fallthru
    _
  // Predicated region
  $region26: #{croma_forward.6} parent=0 // pred_check
    _
  $region27: #{croma_forward.6} parent=0 // pred_check_branch
    %33 = sbr.rel (0) target = $region29
  $region28: #{croma_forward.6} parent=0 // pred_region
    _
  $region29: #{croma_forward.6} parent=0 // pred_fallthru
    _
  // Predicated region
  $region30: #{croma_forward.6} parent=0 // pred_check
    _
  $region31: #{croma_forward.6} parent=0 // pred_check_branch
    %35 = sbr.rel (0) target = $region33
  $region32: #{croma_forward.6} parent=0 // pred_region
    _
  $region33: #{croma_forward.6} parent=0 // pred_fallthru
    _
  // Predicated region
  $region34: #{croma_forward.6} parent=0 // pred_check
    _
  $region35: #{croma_forward.6} parent=0 // pred_check_branch
    %37 = sbr.rel (0) target = $region37
  $region36: #{croma_forward.6} parent=0 // pred_region
    _
  $region37: #{croma_forward.6} parent=0 // pred_fallthru
    _
  // Predicated region
  $region38: #{croma_forward.6} parent=0 // pred_check
    _
  $region39: #{croma_forward.6} parent=0 // pred_check_branch
    %39 = sbr.rel (0) target = $region41
  $region40: #{croma_forward.6} parent=0 // pred_region
    _
  $region41: #{croma_forward.6} parent=0 // pred_fallthru
    _
  // Predicated region
  $region42: #{croma_forward.6} parent=0 // pred_check
    _
  $region43: #{croma_forward.6} parent=0 // pred_check_branch
    %41 = sbr.rel (0) target = $region45
  $region44: #{croma_forward.6} parent=0 // pred_region
    _
  $region45: #{croma_forward.6} parent=0 // pred_fallthru
    _
  // Predicated region
  $region46: #{croma_forward.6} parent=0 // pred_check
    _
  $region47: #{croma_forward.6} parent=0 // pred_check_branch
    %43 = sbr.rel (0) target = $region49
  $region48: #{croma_forward.6} parent=0 // pred_region
    _
  $region49: #{croma_forward.6} parent=0 // pred_fallthru
    _
  // Predicated region
  $region50: #{croma_forward.6} parent=0 // pred_check
    _
  $region51: #{croma_forward.6} parent=0 // pred_check_branch
    %45 = sbr.rel (0) target = $region53
  $region52: #{croma_forward.6} parent=0 // pred_region
    _
  $region53: #{croma_forward.6} parent=0 // pred_fallthru
    _
  // Predicated region
  $region54: #{croma_forward.6} parent=0 // pred_check
    _
  $region55: #{croma_forward.6} parent=0 // pred_check_branch
    %47 = sbr.rel (0) target = $region57
  $region56: #{croma_forward.6} parent=0 // pred_region
    _
  $region57: #{croma_forward.6} parent=0 // pred_fallthru
    _
  // Predicated region
  $region58: #{croma_forward.6} parent=0 // pred_check
    _
  $region59: #{croma_forward.6} parent=0 // pred_check_branch
    %49 = sbr.rel (0) target = $region61
  $region60: #{croma_forward.6} parent=0 // pred_region
    _
  $region61: #{croma_forward.6} parent=0 // pred_fallthru
    _
  %v50 = vld [vmem:[%s0] sm:$0xff]
  %v51 = vld [vmem:[%s0 + $0x8] sm:$0xff]
  %v52 = vld [vmem:[%s0 + $0x10] sm:$0xff]
  %v53 = vld [vmem:[%s2] sm:$0x1]
  %v54 = vld [vmem:[%s3] sm:$0x1]
  %vm55 = vcmask 523264
  %v56 = vsel %vm55, %v50, 0.0
  %57 = vadd.xlane.f32.xlu0 %v56
  %v58 = vpop.xlane.xlu0 %57
  %v59 = vsel %vm55, %v51, 0.0
  %60 = vadd.xlane.f32.xlu0 %v59
  %v61 = vpop.xlane.xlu0 %60
  %v62 = vsel %vm55, %v52, 0.0
  %63 = vadd.xlane.f32.xlu0 %v62
  %v64 = vpop.xlane.xlu0 %63
  %v65 = vrcp.pop 64.0
  %v66 = vmul.f32 64.0, %v65
  %v67 = vsub.f32 1.0, %v66
  %v68 = vmul.f32 %v65, %v67
  %v69 = vadd.f32 %v65, %v68
  %vm70 = vweird.f32 %v65
  %v71 = vsel %vm70, %v65, %v69
  %v72 = vmul.f32 %v58, %v71
  %v73 = vmul.f32 %v61, %v71
  %v74 = vmul.f32 %v64, %v71
  %v75 = vsub.f32 %v50, %v72
  %v76 = vsub.f32 %v51, %v73
  %v77 = vsub.f32 %v52, %v74
  %v78 = vmul.f32 %v75, %v75
  %v79 = vmul.f32 %v76, %v76
  %v80 = vmul.f32 %v77, %v77
  %v81 = vsel %vm55, %v78, 0.0
  %82 = vadd.xlane.f32.xlu0 %v81
  %v83 = vpop.xlane.xlu0 %82
  %v84 = vsel %vm55, %v79, 0.0
  %85 = vadd.xlane.f32.xlu0 %v84
  %v86 = vpop.xlane.xlu0 %85
  %v87 = vsel %vm55, %v80, 0.0
  %88 = vadd.xlane.f32.xlu0 %v87
  %v89 = vpop.xlane.xlu0 %88
  %v90 = vmul.f32 %v83, %v71
  %v91 = vmul.f32 %v86, %v71
  %v92 = vmul.f32 %v89, %v71
  %v93 = vadd.f32 %v90, 1e-05
  %v94 = vadd.f32 %v91, 1e-05
  %v95 = vadd.f32 %v92, 1e-05
  %v96 = vrsqrt.pop %v93
  %v97 = vmul.f32 %v96, %v93
  %v98 = vmul.f32 %v97, %v96
  %v99 = vmul.f32 0.5, %v98
  %v100 = vsub.f32 1.5, %v99
  %v101 = vmul.f32 %v96, %v100
  %v102 = vmul.f32 %v93, %v101
  %vm103 = vcmp.eq.f32.partialorder %v93, inf
  %v104 = vsel %vm103, %v93, %v102
  %vm105 = vcmp.eq.f32.partialorder %v93, 0.0
  %v106 = vand.u32 %v93, 2147483648
  %v107 = vsel %vm105, %v106, %v104
  %v108 = vrsqrt.pop %v94
  %v109 = vmul.f32 %v108, %v94
  %v110 = vmul.f32 %v109, %v108
  %v111 = vmul.f32 0.5, %v110
  %v112 = vsub.f32 1.5, %v111
  %v113 = vmul.f32 %v108, %v112
  %v114 = vmul.f32 %v94, %v113
  %vm115 = vcmp.eq.f32.partialorder %v94, inf
  %v116 = vsel %vm115, %v94, %v114
  %vm117 = vcmp.eq.f32.partialorder %v94, 0.0
  %v118 = vand.u32 %v94, 2147483648
  %v119 = vsel %vm117, %v118, %v116
  %v120 = vrsqrt.pop %v95
  %v121 = vmul.f32 %v120, %v95
  %v122 = vmul.f32 %v121, %v120
  %v123 = vmul.f32 0.5, %v122
  %v124 = vsub.f32 1.5, %v123
  %v125 = vmul.f32 %v120, %v124
  %v126 = vmul.f32 %v95, %v125
  %vm127 = vcmp.eq.f32.partialorder %v95, inf
  %v128 = vsel %vm127, %v95, %v126
  %vm129 = vcmp.eq.f32.partialorder %v95, 0.0
  %v130 = vand.u32 %v95, 2147483648
  %v131 = vsel %vm129, %v130, %v128
  %v132 = vrcp.pop %v107
  %v133 = vmul.f32 %v107, %v132
  %v134 = vsub.f32 1.0, %v133
  %v135 = vmul.f32 %v132, %v134
  %v136 = vadd.f32 %v132, %v135
  %vm137 = vweird.f32 %v107
  %vm138 = vweird.f32 %v132
  %vm139 = vmor %vm137, %vm138
  %v140 = vsel %vm139, %v132, %v136
  %v141 = vand.u32 2147483647, %v107
  %vm142 = vcmp.eq.f32.partialorder %v141, 8.507059e+37
  %v143 = vand.u32 %v107, 2147483648
  %v144 = vor.u32 1.1754944e-38, %v143
  %v145 = vsel %vm142, %v144, %v140
  %v146 = vmul.f32 %v75, %v145
  %v147 = vrcp.pop %v119
  %v148 = vmul.f32 %v119, %v147
  %v149 = vsub.f32 1.0, %v148
  %v150 = vmul.f32 %v147, %v149
  %v151 = vadd.f32 %v147, %v150
  %vm152 = vweird.f32 %v119
  %vm153 = vweird.f32 %v147
  %vm154 = vmor %vm152, %vm153
  %v155 = vsel %vm154, %v147, %v151
  %v156 = vand.u32 2147483647, %v119
  %vm157 = vcmp.eq.f32.partialorder %v156, 8.507059e+37
  %v158 = vand.u32 %v119, 2147483648
  %v159 = vor.u32 1.1754944e-38, %v158
  %v160 = vsel %vm157, %v159, %v155
  %v161 = vmul.f32 %v76, %v160
  %v162 = vrcp.pop %v131
  %v163 = vmul.f32 %v131, %v162
  %v164 = vsub.f32 1.0, %v163
  %v165 = vmul.f32 %v162, %v164
  %v166 = vadd.f32 %v162, %v165
  %vm167 = vweird.f32 %v131
  %vm168 = vweird.f32 %v162
  %vm169 = vmor %vm167, %vm168
  %v170 = vsel %vm169, %v162, %v166
  %v171 = vand.u32 2147483647, %v131
  %vm172 = vcmp.eq.f32.partialorder %v171, 8.507059e+37
  %v173 = vand.u32 %v131, 2147483648
  %v174 = vor.u32 1.1754944e-38, %v173
  %v175 = vsel %vm172, %v174, %v170
  %v176 = vmul.f32 %v77, %v175
  %v178 = vperm.slane %v53, 0
  %v180 = vmul.f32 %v146, %v178
  %v181 = vmul.f32 %v161, %v178
  %v182 = vmul.f32 %v176, %v178
  %v184 = vperm.slane %v54, 0
  %v186 = vadd.f32 %v180, %v184
  %v187 = vadd.f32 %v181, %v184
  %v188 = vadd.f32 %v182, %v184
  %v189 = vld [vmem:[%s4] sm:$0xff]
  %v190 = vld [vmem:[%s4 + $0x8] sm:$0xff]
  %v191 = vld [vmem:[%s4 + $0x10] sm:$0xff]
  %v192 = vld [vmem:[%s4 + $0x18] sm:$0xff]
  %v193 = vld [vmem:[%s4 + $0x20] sm:$0xff]
  %v194 = vld [vmem:[%s4 + $0x28] sm:$0xff]
  %v195 = vld [vmem:[%s4 + $0x30] sm:$0xff]
  %v196 = vld [vmem:[%s4 + $0x38] sm:$0xff]
  %v197 = vld [vmem:[%s4 + $0x40] sm:$0xff]
  %v198 = vld [vmem:[%s4 + $0x48] sm:$0xff]
  %v199 = vld [vmem:[%s4 + $0x50] sm:$0xff]
  %v200 = vld [vmem:[%s4 + $0x58] sm:$0xff]
  %v201 = vld [vmem:[%s4 + $0x60] sm:$0xff]
  %v202 = vld [vmem:[%s4 + $0x68] sm:$0xff]
  %v203 = vld [vmem:[%s4 + $0x70] sm:$0xff]
  %v204 = vld [vmem:[%s4 + $0x78] sm:$0xff]
  %v206 = vsel %vm55, %v186, 0
  %v209 = vsel %vm55, %v187, 0
  %v212 = vsel %vm55, %v188, 0
  %214 = vmatpush.msra.mxu0 0.0
  %215 = vmatpush.msra.mxu0 0.0
  %216 = vmatpush.msra.mxu0 0.0
  %217 = vmatpush.msra.mxu0 0.0
  %218 = vmatpush.msra.mxu0 0.0
  %219 = vmatpush.msra.mxu0 0.0
  %220 = vmatpush.msra.mxu0 0.0
  %221 = vmatpush.msra.mxu0 0.0
  %222 = vmatpush.msra.mxu0 %v203
  %223 = vmatpush.msra.mxu0 %v201
  %224 = vmatpush.msra.mxu0 %v199
  %225 = vmatpush.msra.mxu0 %v197
  %226 = vmatpush.msra.mxu0 %v195
  %227 = vmatpush.msra.mxu0 %v193
  %228 = vmatpush.msra.mxu0 %v191
  %229 = vmatpush.msra.mxu0 %v189
  %230 = vmatmul.f32.gmra.mxu0 %v206
  %v231 = vpop.f32.mrf.mxu0
  %v232 = vadd.f32 0.0, %v231
  %233 = vmatmul.f32.gmra.mxu0 %v209
  %v234 = vpop.f32.mrf.mxu0
  %v235 = vadd.f32 0.0, %v234
  %236 = vmatmul.f32.gmra.mxu0 %v212
  %v237 = vpop.f32.mrf.mxu0
  %v238 = vadd.f32 0.0, %v237
  %239 = vdwg.mxu0
  %240 = vmatpush.msra.mxu0 0.0
  %241 = vmatpush.msra.mxu0 0.0
  %242 = vmatpush.msra.mxu0 0.0
  %243 = vmatpush.msra.mxu0 0.0
  %244 = vmatpush.msra.mxu0 0.0
  %245 = vmatpush.msra.mxu0 0.0
  %246 = vmatpush.msra.mxu0 0.0
  %247 = vmatpush.msra.mxu0 0.0
  %248 = vmatpush.msra.mxu0 %v204
  %249 = vmatpush.msra.mxu0 %v202
  %250 = vmatpush.msra.mxu0 %v200
  %251 = vmatpush.msra.mxu0 %v198
  %252 = vmatpush.msra.mxu0 %v196
  %253 = vmatpush.msra.mxu0 %v194
  %254 = vmatpush.msra.mxu0 %v192
  %255 = vmatpush.msra.mxu0 %v190
  %256 = vmatmul.f32.gmra.mxu0 %v206
  %v257 = vpop.f32.mrf.mxu0
  %v258 = vadd.f32 0.0, %v257
  %259 = vmatmul.f32.gmra.mxu0 %v209
  %v260 = vpop.f32.mrf.mxu0
  %v261 = vadd.f32 0.0, %v260
  %262 = vmatmul.f32.gmra.mxu0 %v212
  %v263 = vpop.f32.mrf.mxu0
  %v264 = vadd.f32 0.0, %v263
  %265 = vdwg.mxu0
  %266 = vst [vmem:[#allocation2] sm:$0xff] %v232
  %267 = vst.msk [vmem:[#allocation2 + $0x8] sm:$0xff] %vm55, %v258
  %268 = vst [vmem:[#allocation2 + $0x10] sm:$0xff] %v235
  %269 = vst.msk [vmem:[#allocation2 + $0x18] sm:$0xff] %vm55, %v261
  %270 = vst [vmem:[#allocation2 + $0x20] sm:$0xff] %v238
  %271 = vst.msk [vmem:[#allocation2 + $0x28] sm:$0xff] %vm55, %v264
  %v272 = vld [vmem:[#allocation2] sm:$0xff]
  %v273 = vld [vmem:[#allocation2 + $0x10] sm:$0xf]
  %v274 = vld [vmem:[#allocation2 + $0x8] sm:$0xff]
  %v275 = vld [vmem:[#allocation2 + $0x18] sm:$0xf]
  %278 = vrot.lane.b32.xlu0 %v272, 64
  %v279 = vpop.permute.xlu0 %278
  %280 = vrot.lane.b32.xlu0 %v273, 64
  %v281 = vpop.permute.xlu0 %280
  %vm282 = vcmask 64512
  %v283 = vsel %vm282, %v272, 0
  %v285 = vsel %vm282, %v273, 0
  %v287 = vsel %vm282, %v279, 0
  %v289 = vsel %vm282, %v281, 0
  %291 = vmatpush.xpose.msra.mxu0 0.0
  %292 = vmatpush.xpose.msra.mxu0 0.0
  %293 = vmatpush.xpose.msra.mxu0 0.0
  %294 = vmatpush.xpose.msra.mxu0 0.0
  %295 = vmatpush.xpose.msra.mxu0 0.0
  %296 = vmatpush.xpose.msra.mxu0 0.0
  %297 = vmatpush.xpose.msra.mxu0 0.0
  %298 = vmatpush.xpose.msra.mxu0 0.0
  %299 = vmatpush.xpose.msra.mxu0 0.0
  %300 = vmatpush.xpose.msra.mxu0 0.0
  %301 = vmatpush.xpose.msra.mxu0 0.0
  %302 = vmatpush.xpose.msra.mxu0 0.0
  %303 = vmatpush.xpose.msra.mxu0 0.0
  %304 = vmatpush.xpose.msra.mxu0 0.0
  %305 = vmatpush.xpose.msra.mxu0 %v289
  %306 = vmatpush.xpose.msra.mxu0 %v287
  %307 = vmatmul.f32.gmra.mxu0 %v283
  %v308 = vpop.f32.mrf.mxu0
  %v309 = vadd.f32 0.0, %v308
  %310 = vmatmul.f32.gmra.mxu0 %v285
  %v311 = vpop.f32.mrf.mxu0
  %v312 = vadd.f32 0.0, %v311
  %313 = vdwg.mxu0
  %v314 = vmul.f32 %v309, 0.35355338
  %v315 = vmul.f32 %v312, 0.35355338
  %v316 = vld [vmem:[%s1] sm:$0xff]
  %v317 = vld [vmem:[%s1 + $0x8] sm:$0xf]
  %v318 = vadd.f32 %v314, %v316
  %v319 = vadd.f32 %v315, %v317
  %vm320 = vcmask 97280
  %v321 = vsel %vm320, %v318, -inf
  %322 = vmax.xlane.f32.xlu0 %v321
  %v323 = vpop.xlane.xlu0 %322
  %vm324 = vcmask 93184
  %v325 = vsel %vm324, %v319, -inf
  %326 = vmax.xlane.f32.xlu0 %v325
  %v327 = vpop.xlane.xlu0 %326
  %v328 = vsub.f32 %v318, %v323
  %v329 = vsub.f32 %v319, %v327
  %v330 = vmul.f32 %v328, 1.442695
  %v331 = vpow.pop %v330
  %v332 = vmul.f32 %v329, 1.442695
  %v333 = vpow.pop %v332
  %v334 = vsel %vm320, %v331, 0.0
  %335 = vadd.xlane.f32.xlu0 %v334
  %v336 = vpop.xlane.xlu0 %335
  %v337 = vsel %vm324, %v333, 0.0
  %338 = vadd.xlane.f32.xlu0 %v337
  %v339 = vpop.xlane.xlu0 %338
  %v340 = vrcp.pop %v336
  %v341 = vmul.f32 %v336, %v340
  %v342 = vsub.f32 1.0, %v341
  %v343 = vmul.f32 %v340, %v342
  %v344 = vadd.f32 %v340, %v343
  %vm345 = vweird.f32 %v336
  %vm346 = vweird.f32 %v340
  %vm347 = vmor %vm345, %vm346
  %v348 = vsel %vm347, %v340, %v344
  %v349 = vand.u32 2147483647, %v336
  %vm350 = vcmp.eq.f32.partialorder %v349, 8.507059e+37
  %v351 = vand.u32 %v336, 2147483648
  %v352 = vor.u32 1.1754944e-38, %v351
  %v353 = vsel %vm350, %v352, %v348
  %v354 = vmul.f32 %v331, %v353
  %v355 = vrcp.pop %v339
  %v356 = vmul.f32 %v339, %v355
  %v357 = vsub.f32 1.0, %v356
  %v358 = vmul.f32 %v355, %v357
  %v359 = vadd.f32 %v355, %v358
  %vm360 = vweird.f32 %v339
  %vm361 = vweird.f32 %v355
  %vm362 = vmor %vm360, %vm361
  %v363 = vsel %vm362, %v355, %v359
  %v364 = vand.u32 2147483647, %v339
  %vm365 = vcmp.eq.f32.partialorder %v364, 8.507059e+37
  %v366 = vand.u32 %v339, 2147483648
  %v367 = vor.u32 1.1754944e-38, %v366
  %v368 = vsel %vm365, %v367, %v363
  %v369 = vmul.f32 %v333, %v368
  %v371 = vsel %vm320, %v354, 0
  %v374 = vsel %vm320, %v369, 0
  %vm376 = vcmask 1043456
  %v378 = vsel %vm376, %v275, 0
  %380 = vmatpush.msra.mxu0 0.0
  %381 = vmatpush.msra.mxu0 0.0
  %382 = vmatpush.msra.mxu0 0.0
  %383 = vmatpush.msra.mxu0 0.0
  %384 = vmatpush.msra.mxu0 0.0
  %385 = vmatpush.msra.mxu0 0.0
  %386 = vmatpush.msra.mxu0 0.0
  %387 = vmatpush.msra.mxu0 0.0
  %388 = vmatpush.msra.mxu0 0.0
  %389 = vmatpush.msra.mxu0 0.0
  %390 = vmatpush.msra.mxu0 0.0
  %391 = vmatpush.msra.mxu0 0.0
  %392 = vmatpush.msra.mxu0 0.0
  %393 = vmatpush.msra.mxu0 0.0
  %394 = vmatpush.msra.mxu0 %v378
  %395 = vmatpush.msra.mxu0 %v274
  %396 = vmatmul.f32.gmra.mxu0 %v371
  %v397 = vpop.f32.mrf.mxu0
  %v398 = vadd.f32 0.0, %v397
  %399 = vmatmul.f32.gmra.mxu0 %v374
  %v400 = vpop.f32.mrf.mxu0
  %v401 = vadd.f32 0.0, %v400
  %402 = vdwg.mxu0
  %403 = vst.msk [vmem:[#allocation3] sm:$0xff] %vm282, %v398
  %vm404 = vcmask 60416
  %405 = vst.msk [vmem:[#allocation3 + $0x8] sm:$0xf] %vm404, %v401
  %v406 = vld [vmem:[#allocation2] sm:$0xff]
  %v407 = vld [vmem:[#allocation2 + $0x10] sm:$0xf]
  %v408 = vld [vmem:[#allocation2 + $0x8] sm:$0xff]
  %v409 = vld [vmem:[#allocation2 + $0x18] sm:$0xf]
  %412 = vrot.lane.b32.xlu0 %v406, 120
  %v413 = vpop.permute.xlu0 %412
  %414 = vrot.lane.b32.xlu0 %v407, 120
  %v415 = vpop.permute.xlu0 %414
  %416 = vrot.lane.b32.xlu0 %v406, 56
  %v417 = vpop.permute.xlu0 %416
  %418 = vrot.lane.b32.xlu0 %v407, 56
  %v419 = vpop.permute.xlu0 %418
  %v420 = vsel %vm282, %v413, 0
  %v422 = vsel %vm282, %v415, 0
  %v424 = vsel %vm282, %v417, 0
  %v426 = vsel %vm282, %v419, 0
  %428 = vmatpush.xpose.msra.mxu0 0.0
  %429 = vmatpush.xpose.msra.mxu0 0.0
  %430 = vmatpush.xpose.msra.mxu0 0.0
  %431 = vmatpush.xpose.msra.mxu0 0.0
  %432 = vmatpush.xpose.msra.mxu0 0.0
  %433 = vmatpush.xpose.msra.mxu0 0.0
  %434 = vmatpush.xpose.msra.mxu0 0.0
  %435 = vmatpush.xpose.msra.mxu0 0.0
  %436 = vmatpush.xpose.msra.mxu0 0.0
  %437 = vmatpush.xpose.msra.mxu0 0.0
  %438 = vmatpush.xpose.msra.mxu0 0.0
  %439 = vmatpush.xpose.msra.mxu0 0.0
  %440 = vmatpush.xpose.msra.mxu0 0.0
  %441 = vmatpush.xpose.msra.mxu0 0.0
  %442 = vmatpush.xpose.msra.mxu0 %v426
  %443 = vmatpush.xpose.msra.mxu0 %v424
  %444 = vmatmul.f32.gmra.mxu0 %v420
  %v445 = vpop.f32.mrf.mxu0
  %v446 = vadd.f32 0.0, %v445
  %447 = vmatmul.f32.gmra.mxu0 %v422
  %v448 = vpop.f32.mrf.mxu0
  %v449 = vadd.f32 0.0, %v448
  %450 = vdwg.mxu0
  %v451 = vmul.f32 %v446, 0.35355338
  %v452 = vmul.f32 %v449, 0.35355338
  %s453 = scalar_lea.vmem %s1, 16
  %v454 = vld [vmem:[%s453] sm:$0xff]
  %v455 = vld [vmem:[%s453 + $0x8] sm:$0xf]
  %v456 = vadd.f32 %v451, %v454
  %v457 = vadd.f32 %v452, %v455
  %v458 = vsel %vm320, %v456, -inf
  %459 = vmax.xlane.f32.xlu0 %v458
  %v460 = vpop.xlane.xlu0 %459
  %v461 = vsel %vm324, %v457, -inf
  %462 = vmax.xlane.f32.xlu0 %v461
  %v463 = vpop.xlane.xlu0 %462
  %v464 = vsub.f32 %v456, %v460
  %v465 = vsub.f32 %v457, %v463
  %v466 = vmul.f32 %v464, 1.442695
  %v467 = vpow.pop %v466
  %v468 = vmul.f32 %v465, 1.442695
  %v469 = vpow.pop %v468
  %v470 = vsel %vm320, %v467, 0.0
  %471 = vadd.xlane.f32.xlu0 %v470
  %v472 = vpop.xlane.xlu0 %471
  %v473 = vsel %vm324, %v469, 0.0
  %474 = vadd.xlane.f32.xlu0 %v473
  %v475 = vpop.xlane.xlu0 %474
  %v476 = vrcp.pop %v472
  %v477 = vmul.f32 %v472, %v476
  %v478 = vsub.f32 1.0, %v477
  %v479 = vmul.f32 %v476, %v478
  %v480 = vadd.f32 %v476, %v479
  %vm481 = vweird.f32 %v472
  %vm482 = vweird.f32 %v476
  %vm483 = vmor %vm481, %vm482
  %v484 = vsel %vm483, %v476, %v480
  %v485 = vand.u32 2147483647, %v472
  %vm486 = vcmp.eq.f32.partialorder %v485, 8.507059e+37
  %v487 = vand.u32 %v472, 2147483648
  %v488 = vor.u32 1.1754944e-38, %v487
  %v489 = vsel %vm486, %v488, %v484
  %v490 = vmul.f32 %v467, %v489
  %v491 = vrcp.pop %v475
  %v492 = vmul.f32 %v475, %v491
  %v493 = vsub.f32 1.0, %v492
  %v494 = vmul.f32 %v491, %v493
  %v495 = vadd.f32 %v491, %v494
  %vm496 = vweird.f32 %v475
  %vm497 = vweird.f32 %v491
  %vm498 = vmor %vm496, %vm497
  %v499 = vsel %vm498, %v491, %v495
  %v500 = vand.u32 2147483647, %v475
  %vm501 = vcmp.eq.f32.partialorder %v500, 8.507059e+37
  %v502 = vand.u32 %v475, 2147483648
  %v503 = vor.u32 1.1754944e-38, %v502
  %v504 = vsel %vm501, %v503, %v499
  %v505 = vmul.f32 %v469, %v504
  %508 = vrot.lane.b32.xlu0 %v408, 120
  %v509 = vpop.permute.xlu0 %508
  %510 = vrot.lane.b32.xlu0 %v409, 120
  %v511 = vpop.permute.xlu0 %510
  %v514 = vsel %vm320, %v490, 0
  %v517 = vsel %vm320, %v505, 0
  %v519 = vsel %vm376, %v511, 0
  %521 = vmatpush.msra.mxu0 0.0
  %522 = vmatpush.msra.mxu0 0.0
  %523 = vmatpush.msra.mxu0 0.0
  %524 = vmatpush.msra.mxu0 0.0
  %525 = vmatpush.msra.mxu0 0.0
  %526 = vmatpush.msra.mxu0 0.0
  %527 = vmatpush.msra.mxu0 0.0
  %528 = vmatpush.msra.mxu0 0.0
  %529 = vmatpush.msra.mxu0 0.0
  %530 = vmatpush.msra.mxu0 0.0
  %531 = vmatpush.msra.mxu0 0.0
  %532 = vmatpush.msra.mxu0 0.0
  %533 = vmatpush.msra.mxu0 0.0
  %534 = vmatpush.msra.mxu0 0.0
  %535 = vmatpush.msra.mxu0 %v519
  %536 = vmatpush.msra.mxu0 %v509
  %537 = vmatmul.f32.gmra.mxu0 %v514
  %v538 = vpop.f32.mrf.mxu0
  %v539 = vadd.f32 0.0, %v538
  %540 = vmatmul.f32.gmra.mxu0 %v517
  %v541 = vpop.f32.mrf.mxu0
  %v542 = vadd.f32 0.0, %v541
  %543 = vdwg.mxu0
  %546 = vrot.lane.b32.xlu0 %v539, 8
  %v547 = vpop.permute.xlu0 %546
  %548 = vrot.lane.b32.xlu0 %v542, 8
  %v549 = vpop.permute.xlu0 %548
  %vm552 = vcmask 130112
  %553 = vst.msk [vmem:[#allocation3] sm:$0xff] %vm552, %v547
  %vm554 = vcmask 126016
  %555 = vst.msk [vmem:[#allocation3 + $0x8] sm:$0xf] %vm554, %v549
  %v556 = vld [vmem:[#allocation2] sm:$0xff]
  %v557 = vld [vmem:[#allocation2 + $0x10] sm:$0xf]
  %v558 = vld [vmem:[#allocation2 + $0x8] sm:$0xff]
  %v559 = vld [vmem:[#allocation2 + $0x18] sm:$0xf]
  %562 = vrot.lane.b32.xlu0 %v556, 112
  %v563 = vpop.permute.xlu0 %562
  %564 = vrot.lane.b32.xlu0 %v557, 112
  %v565 = vpop.permute.xlu0 %564
  %566 = vrot.lane.b32.xlu0 %v556, 48
  %v567 = vpop.permute.xlu0 %566
  %568 = vrot.lane.b32.xlu0 %v557, 48
  %v569 = vpop.permute.xlu0 %568
  %v570 = vsel %vm282, %v563, 0
  %v572 = vsel %vm282, %v565, 0
  %v574 = vsel %vm282, %v567, 0
  %v576 = vsel %vm282, %v569, 0
  %578 = vmatpush.xpose.msra.mxu0 0.0
  %579 = vmatpush.xpose.msra.mxu0 0.0
  %580 = vmatpush.xpose.msra.mxu0 0.0
  %581 = vmatpush.xpose.msra.mxu0 0.0
  %582 = vmatpush.xpose.msra.mxu0 0.0
  %583 = vmatpush.xpose.msra.mxu0 0.0
  %584 = vmatpush.xpose.msra.mxu0 0.0
  %585 = vmatpush.xpose.msra.mxu0 0.0
  %586 = vmatpush.xpose.msra.mxu0 0.0
  %587 = vmatpush.xpose.msra.mxu0 0.0
  %588 = vmatpush.xpose.msra.mxu0 0.0
  %589 = vmatpush.xpose.msra.mxu0 0.0
  %590 = vmatpush.xpose.msra.mxu0 0.0
  %591 = vmatpush.xpose.msra.mxu0 0.0
  %592 = vmatpush.xpose.msra.mxu0 %v576
  %593 = vmatpush.xpose.msra.mxu0 %v574
  %594 = vmatmul.f32.gmra.mxu0 %v570
  %v595 = vpop.f32.mrf.mxu0
  %v596 = vadd.f32 0.0, %v595
  %597 = vmatmul.f32.gmra.mxu0 %v572
  %v598 = vpop.f32.mrf.mxu0
  %v599 = vadd.f32 0.0, %v598
  %600 = vdwg.mxu0
  %v601 = vmul.f32 %v596, 0.35355338
  %v602 = vmul.f32 %v599, 0.35355338
  %s603 = scalar_lea.vmem %s1, 32
  %v604 = vld [vmem:[%s603] sm:$0xff]
  %v605 = vld [vmem:[%s603 + $0x8] sm:$0xf]
  %v606 = vadd.f32 %v601, %v604
  %v607 = vadd.f32 %v602, %v605
  %v608 = vsel %vm320, %v606, -inf
  %609 = vmax.xlane.f32.xlu0 %v608
  %v610 = vpop.xlane.xlu0 %609
  %v611 = vsel %vm324, %v607, -inf
  %612 = vmax.xlane.f32.xlu0 %v611
  %v613 = vpop.xlane.xlu0 %612
  %v614 = vsub.f32 %v606, %v610
  %v615 = vsub.f32 %v607, %v613
  %v616 = vmul.f32 %v614, 1.442695
  %v617 = vpow.pop %v616
  %v618 = vmul.f32 %v615, 1.442695
  %v619 = vpow.pop %v618
  %v620 = vsel %vm320, %v617, 0.0
  %621 = vadd.xlane.f32.xlu0 %v620
  %v622 = vpop.xlane.xlu0 %621
  %v623 = vsel %vm324, %v619, 0.0
  %624 = vadd.xlane.f32.xlu0 %v623
  %v625 = vpop.xlane.xlu0 %624
  %v626 = vrcp.pop %v622
  %v627 = vmul.f32 %v622, %v626
  %v628 = vsub.f32 1.0, %v627
  %v629 = vmul.f32 %v626, %v628
  %v630 = vadd.f32 %v626, %v629
  %vm631 = vweird.f32 %v622
  %vm632 = vweird.f32 %v626
  %vm633 = vmor %vm631, %vm632
  %v634 = vsel %vm633, %v626, %v630
  %v635 = vand.u32 2147483647, %v622
  %vm636 = vcmp.eq.f32.partialorder %v635, 8.507059e+37
  %v637 = vand.u32 %v622, 2147483648
  %v638 = vor.u32 1.1754944e-38, %v637
  %v639 = vsel %vm636, %v638, %v634
  %v640 = vmul.f32 %v617, %v639
  %v641 = vrcp.pop %v625
  %v642 = vmul.f32 %v625, %v641
  %v643 = vsub.f32 1.0, %v642
  %v644 = vmul.f32 %v641, %v643
  %v645 = vadd.f32 %v641, %v644
  %vm646 = vweird.f32 %v625
  %vm647 = vweird.f32 %v641
  %vm648 = vmor %vm646, %vm647
  %v649 = vsel %vm648, %v641, %v645
  %v650 = vand.u32 2147483647, %v625
  %vm651 = vcmp.eq.f32.partialorder %v650, 8.507059e+37
  %v652 = vand.u32 %v625, 2147483648
  %v653 = vor.u32 1.1754944e-38, %v652
  %v654 = vsel %vm651, %v653, %v649
  %v655 = vmul.f32 %v619, %v654
  %658 = vrot.lane.b32.xlu0 %v558, 112
  %v659 = vpop.permute.xlu0 %658
  %660 = vrot.lane.b32.xlu0 %v559, 112
  %v661 = vpop.permute.xlu0 %660
  %v664 = vsel %vm320, %v640, 0
  %v667 = vsel %vm320, %v655, 0
  %v669 = vsel %vm376, %v661, 0
  %671 = vmatpush.msra.mxu0 0.0
  %672 = vmatpush.msra.mxu0 0.0
  %673 = vmatpush.msra.mxu0 0.0
  %674 = vmatpush.msra.mxu0 0.0
  %675 = vmatpush.msra.mxu0 0.0
  %676 = vmatpush.msra.mxu0 0.0
  %677 = vmatpush.msra.mxu0 0.0
  %678 = vmatpush.msra.mxu0 0.0
  %679 = vmatpush.msra.mxu0 0.0
  %680 = vmatpush.msra.mxu0 0.0
  %681 = vmatpush.msra.mxu0 0.0
  %682 = vmatpush.msra.mxu0 0.0
  %683 = vmatpush.msra.mxu0 0.0
  %684 = vmatpush.msra.mxu0 0.0
  %685 = vmatpush.msra.mxu0 %v669
  %686 = vmatpush.msra.mxu0 %v659
  %687 = vmatmul.f32.gmra.mxu0 %v664
  %v688 = vpop.f32.mrf.mxu0
  %v689 = vadd.f32 0.0, %v688
  %690 = vmatmul.f32.gmra.mxu0 %v667
  %v691 = vpop.f32.mrf.mxu0
  %v692 = vadd.f32 0.0, %v691
  %693 = vdwg.mxu0
  %696 = vrot.lane.b32.xlu0 %v689, 16
  %v697 = vpop.permute.xlu0 %696
  %698 = vrot.lane.b32.xlu0 %v692, 16
  %v699 = vpop.permute.xlu0 %698
  %vm702 = vcmask 195712
  %703 = vst.msk [vmem:[#allocation3] sm:$0xff] %vm702, %v697
  %vm704 = vcmask 191616
  %705 = vst.msk [vmem:[#allocation3 + $0x8] sm:$0xf] %vm704, %v699
  %v706 = vld [vmem:[#allocation2] sm:$0xff]
  %v707 = vld [vmem:[#allocation2 + $0x10] sm:$0xf]
  %v708 = vld [vmem:[#allocation2 + $0x8] sm:$0xff]
  %v709 = vld [vmem:[#allocation2 + $0x18] sm:$0xf]
  %712 = vrot.lane.b32.xlu0 %v706, 104
  %v713 = vpop.permute.xlu0 %712
  %714 = vrot.lane.b32.xlu0 %v707, 104
  %v715 = vpop.permute.xlu0 %714
  %716 = vrot.lane.b32.xlu0 %v706, 40
  %v717 = vpop.permute.xlu0 %716
  %718 = vrot.lane.b32.xlu0 %v707, 40
  %v719 = vpop.permute.xlu0 %718
  %v720 = vsel %vm282, %v713, 0
  %v722 = vsel %vm282, %v715, 0
  %v724 = vsel %vm282, %v717, 0
  %v726 = vsel %vm282, %v719, 0
  %728 = vmatpush.xpose.msra.mxu0 0.0
  %729 = vmatpush.xpose.msra.mxu0 0.0
  %730 = vmatpush.xpose.msra.mxu0 0.0
  %731 = vmatpush.xpose.msra.mxu0 0.0
  %732 = vmatpush.xpose.msra.mxu0 0.0
  %733 = vmatpush.xpose.msra.mxu0 0.0
  %734 = vmatpush.xpose.msra.mxu0 0.0
  %735 = vmatpush.xpose.msra.mxu0 0.0
  %736 = vmatpush.xpose.msra.mxu0 0.0
  %737 = vmatpush.xpose.msra.mxu0 0.0
  %738 = vmatpush.xpose.msra.mxu0 0.0
  %739 = vmatpush.xpose.msra.mxu0 0.0
  %740 = vmatpush.xpose.msra.mxu0 0.0
  %741 = vmatpush.xpose.msra.mxu0 0.0
  %742 = vmatpush.xpose.msra.mxu0 %v726
  %743 = vmatpush.xpose.msra.mxu0 %v724
  %744 = vmatmul.f32.gmra.mxu0 %v720
  %v745 = vpop.f32.mrf.mxu0
  %v746 = vadd.f32 0.0, %v745
  %747 = vmatmul.f32.gmra.mxu0 %v722
  %v748 = vpop.f32.mrf.mxu0
  %v749 = vadd.f32 0.0, %v748
  %750 = vdwg.mxu0
  %v751 = vmul.f32 %v746, 0.35355338
  %v752 = vmul.f32 %v749, 0.35355338
  %s753 = scalar_lea.vmem %s1, 48
  %v754 = vld [vmem:[%s753] sm:$0xff]
  %v755 = vld [vmem:[%s753 + $0x8] sm:$0xf]
  %v756 = vadd.f32 %v751, %v754
  %v757 = vadd.f32 %v752, %v755
  %v758 = vsel %vm320, %v756, -inf
  %759 = vmax.xlane.f32.xlu0 %v758
  %v760 = vpop.xlane.xlu0 %759
  %v761 = vsel %vm324, %v757, -inf
  %762 = vmax.xlane.f32.xlu0 %v761
  %v763 = vpop.xlane.xlu0 %762
  %v764 = vsub.f32 %v756, %v760
  %v765 = vsub.f32 %v757, %v763
  %v766 = vmul.f32 %v764, 1.442695
  %v767 = vpow.pop %v766
  %v768 = vmul.f32 %v765, 1.442695
  %v769 = vpow.pop %v768
  %v770 = vsel %vm320, %v767, 0.0
  %771 = vadd.xlane.f32.xlu0 %v770
  %v772 = vpop.xlane.xlu0 %771
  %v773 = vsel %vm324, %v769, 0.0
  %774 = vadd.xlane.f32.xlu0 %v773
  %v775 = vpop.xlane.xlu0 %774
  %v776 = vrcp.pop %v772
  %v777 = vmul.f32 %v772, %v776
  %v778 = vsub.f32 1.0, %v777
  %v779 = vmul.f32 %v776, %v778
  %v780 = vadd.f32 %v776, %v779
  %vm781 = vweird.f32 %v772
  %vm782 = vweird.f32 %v776
  %vm783 = vmor %vm781, %vm782
  %v784 = vsel %vm783, %v776, %v780
  %v785 = vand.u32 2147483647, %v772
  %vm786 = vcmp.eq.f32.partialorder %v785, 8.507059e+37
  %v787 = vand.u32 %v772, 2147483648
  %v788 = vor.u32 1.1754944e-38, %v787
  %v789 = vsel %vm786, %v788, %v784
  %v790 = vmul.f32 %v767, %v789
  %v791 = vrcp.pop %v775
  %v792 = vmul.f32 %v775, %v791
  %v793 = vsub.f32 1.0, %v792
  %v794 = vmul.f32 %v791, %v793
  %v795 = vadd.f32 %v791, %v794
  %vm796 = vweird.f32 %v775
  %vm797 = vweird.f32 %v791
  %vm798 = vmor %vm796, %vm797
  %v799 = vsel %vm798, %v791, %v795
  %v800 = vand.u32 2147483647, %v775
  %vm801 = vcmp.eq.f32.partialorder %v800, 8.507059e+37
  %v802 = vand.u32 %v775, 2147483648
  %v803 = vor.u32 1.1754944e-38, %v802
  %v804 = vsel %vm801, %v803, %v799
  %v805 = vmul.f32 %v769, %v804
  %808 = vrot.lane.b32.xlu0 %v708, 104
  %v809 = vpop.permute.xlu0 %808
  %810 = vrot.lane.b32.xlu0 %v709, 104
  %v811 = vpop.permute.xlu0 %810
  %v814 = vsel %vm320, %v790, 0
  %v817 = vsel %vm320, %v805, 0
  %v819 = vsel %vm376, %v811, 0
  %821 = vmatpush.msra.mxu0 0.0
  %822 = vmatpush.msra.mxu0 0.0
  %823 = vmatpush.msra.mxu0 0.0
  %824 = vmatpush.msra.mxu0 0.0
  %825 = vmatpush.msra.mxu0 0.0
  %826 = vmatpush.msra.mxu0 0.0
  %827 = vmatpush.msra.mxu0 0.0
  %828 = vmatpush.msra.mxu0 0.0
  %829 = vmatpush.msra.mxu0 0.0
  %830 = vmatpush.msra.mxu0 0.0
  %831 = vmatpush.msra.mxu0 0.0
  %832 = vmatpush.msra.mxu0 0.0
  %833 = vmatpush.msra.mxu0 0.0
  %834 = vmatpush.msra.mxu0 0.0
  %835 = vmatpush.msra.mxu0 %v819
  %836 = vmatpush.msra.mxu0 %v809
  %837 = vmatmul.f32.gmra.mxu0 %v814
  %v838 = vpop.f32.mrf.mxu0
  %v839 = vadd.f32 0.0, %v838
  %840 = vmatmul.f32.gmra.mxu0 %v817
  %v841 = vpop.f32.mrf.mxu0
  %v842 = vadd.f32 0.0, %v841
  %843 = vdwg.mxu0
  %846 = vrot.lane.b32.xlu0 %v839, 24
  %v847 = vpop.permute.xlu0 %846
  %848 = vrot.lane.b32.xlu0 %v842, 24
  %v849 = vpop.permute.xlu0 %848
  %vm852 = vcmask 261312
  %853 = vst.msk [vmem:[#allocation3] sm:$0xff] %vm852, %v847
  %vm854 = vcmask 257216
  %855 = vst.msk [vmem:[#allocation3 + $0x8] sm:$0xf] %vm854, %v849
  %v856 = vld [vmem:[#allocation2] sm:$0xff]
  %v857 = vld [vmem:[#allocation2 + $0x10] sm:$0xf]
  %v858 = vld [vmem:[#allocation2 + $0x8] sm:$0xff]
  %v859 = vld [vmem:[#allocation2 + $0x18] sm:$0xf]
  %862 = vrot.lane.b32.xlu0 %v856, 96
  %v863 = vpop.permute.xlu0 %862
  %864 = vrot.lane.b32.xlu0 %v857, 96
  %v865 = vpop.permute.xlu0 %864
  %866 = vrot.lane.b32.xlu0 %v856, 32
  %v867 = vpop.permute.xlu0 %866
  %868 = vrot.lane.b32.xlu0 %v857, 32
  %v869 = vpop.permute.xlu0 %868
  %v870 = vsel %vm282, %v863, 0
  %v872 = vsel %vm282, %v865, 0
  %v874 = vsel %vm282, %v867, 0
  %v876 = vsel %vm282, %v869, 0
  %878 = vmatpush.xpose.msra.mxu0 0.0
  %879 = vmatpush.xpose.msra.mxu0 0.0
  %880 = vmatpush.xpose.msra.mxu0 0.0
  %881 = vmatpush.xpose.msra.mxu0 0.0
  %882 = vmatpush.xpose.msra.mxu0 0.0
  %883 = vmatpush.xpose.msra.mxu0 0.0
  %884 = vmatpush.xpose.msra.mxu0 0.0
  %885 = vmatpush.xpose.msra.mxu0 0.0
  %886 = vmatpush.xpose.msra.mxu0 0.0
  %887 = vmatpush.xpose.msra.mxu0 0.0
  %888 = vmatpush.xpose.msra.mxu0 0.0
  %889 = vmatpush.xpose.msra.mxu0 0.0
  %890 = vmatpush.xpose.msra.mxu0 0.0
  %891 = vmatpush.xpose.msra.mxu0 0.0
  %892 = vmatpush.xpose.msra.mxu0 %v876
  %893 = vmatpush.xpose.msra.mxu0 %v874
  %894 = vmatmul.f32.gmra.mxu0 %v870
  %v895 = vpop.f32.mrf.mxu0
  %v896 = vadd.f32 0.0, %v895
  %897 = vmatmul.f32.gmra.mxu0 %v872
  %v898 = vpop.f32.mrf.mxu0
  %v899 = vadd.f32 0.0, %v898
  %900 = vdwg.mxu0
  %v901 = vmul.f32 %v896, 0.35355338
  %v902 = vmul.f32 %v899, 0.35355338
  %s903 = scalar_lea.vmem %s1, 64
  %v904 = vld [vmem:[%s903] sm:$0xff]
  %v905 = vld [vmem:[%s903 + $0x8] sm:$0xf]
  %v906 = vadd.f32 %v901, %v904
  %v907 = vadd.f32 %v902, %v905
  %v908 = vsel %vm320, %v906, -inf
  %909 = vmax.xlane.f32.xlu0 %v908
  %v910 = vpop.xlane.xlu0 %909
  %v911 = vsel %vm324, %v907, -inf
  %912 = vmax.xlane.f32.xlu0 %v911
  %v913 = vpop.xlane.xlu0 %912
  %v914 = vsub.f32 %v906, %v910
  %v915 = vsub.f32 %v907, %v913
  %v916 = vmul.f32 %v914, 1.442695
  %v917 = vpow.pop %v916
  %v918 = vmul.f32 %v915, 1.442695
  %v919 = vpow.pop %v918
  %v920 = vsel %vm320, %v917, 0.0
  %921 = vadd.xlane.f32.xlu0 %v920
  %v922 = vpop.xlane.xlu0 %921
  %v923 = vsel %vm324, %v919, 0.0
  %924 = vadd.xlane.f32.xlu0 %v923
  %v925 = vpop.xlane.xlu0 %924
  %v926 = vrcp.pop %v922
  %v927 = vmul.f32 %v922, %v926
  %v928 = vsub.f32 1.0, %v927
  %v929 = vmul.f32 %v926, %v928
  %v930 = vadd.f32 %v926, %v929
  %vm931 = vweird.f32 %v922
  %vm932 = vweird.f32 %v926
  %vm933 = vmor %vm931, %vm932
  %v934 = vsel %vm933, %v926, %v930
  %v935 = vand.u32 2147483647, %v922
  %vm936 = vcmp.eq.f32.partialorder %v935, 8.507059e+37
  %v937 = vand.u32 %v922, 2147483648
  %v938 = vor.u32 1.1754944e-38, %v937
  %v939 = vsel %vm936, %v938, %v934
  %v940 = vmul.f32 %v917, %v939
  %v941 = vrcp.pop %v925
  %v942 = vmul.f32 %v925, %v941
  %v943 = vsub.f32 1.0, %v942
  %v944 = vmul.f32 %v941, %v943
  %v945 = vadd.f32 %v941, %v944
  %vm946 = vweird.f32 %v925
  %vm947 = vweird.f32 %v941
  %vm948 = vmor %vm946, %vm947
  %v949 = vsel %vm948, %v941, %v945
  %v950 = vand.u32 2147483647, %v925
  %vm951 = vcmp.eq.f32.partialorder %v950, 8.507059e+37
  %v952 = vand.u32 %v925, 2147483648
  %v953 = vor.u32 1.1754944e-38, %v952
  %v954 = vsel %vm951, %v953, %v949
  %v955 = vmul.f32 %v919, %v954
  %958 = vrot.lane.b32.xlu0 %v858, 96
  %v959 = vpop.permute.xlu0 %958
  %960 = vrot.lane.b32.xlu0 %v859, 96
  %v961 = vpop.permute.xlu0 %960
  %v964 = vsel %vm320, %v940, 0
  %v967 = vsel %vm320, %v955, 0
  %v969 = vsel %vm376, %v961, 0
  %971 = vmatpush.msra.mxu0 0.0
  %972 = vmatpush.msra.mxu0 0.0
  %973 = vmatpush.msra.mxu0 0.0
  %974 = vmatpush.msra.mxu0 0.0
  %975 = vmatpush.msra.mxu0 0.0
  %976 = vmatpush.msra.mxu0 0.0
  %977 = vmatpush.msra.mxu0 0.0
  %978 = vmatpush.msra.mxu0 0.0
  %979 = vmatpush.msra.mxu0 0.0
  %980 = vmatpush.msra.mxu0 0.0
  %981 = vmatpush.msra.mxu0 0.0
  %982 = vmatpush.msra.mxu0 0.0
  %983 = vmatpush.msra.mxu0 0.0
  %984 = vmatpush.msra.mxu0 0.0
  %985 = vmatpush.msra.mxu0 %v969
  %986 = vmatpush.msra.mxu0 %v959
  %987 = vmatmul.f32.gmra.mxu0 %v964
  %v988 = vpop.f32.mrf.mxu0
  %v989 = vadd.f32 0.0, %v988
  %990 = vmatmul.f32.gmra.mxu0 %v967
  %v991 = vpop.f32.mrf.mxu0
  %v992 = vadd.f32 0.0, %v991
  %993 = vdwg.mxu0
  %996 = vrot.lane.b32.xlu0 %v989, 32
  %v997 = vpop.permute.xlu0 %996
  %998 = vrot.lane.b32.xlu0 %v992, 32
  %v999 = vpop.permute.xlu0 %998
  %vm1002 = vcmask 326912
  %1003 = vst.msk [vmem:[#allocation3] sm:$0xff] %vm1002, %v997
  %vm1004 = vcmask 322816
  %1005 = vst.msk [vmem:[#allocation3 + $0x8] sm:$0xf] %vm1004, %v999
  %v1006 = vld [vmem:[#allocation2] sm:$0xff]
  %v1007 = vld [vmem:[#allocation2 + $0x10] sm:$0xf]
  %v1008 = vld [vmem:[#allocation2 + $0x8] sm:$0xff]
  %v1009 = vld [vmem:[#allocation2 + $0x18] sm:$0xf]
  %1012 = vrot.lane.b32.xlu0 %v1006, 88
  %v1013 = vpop.permute.xlu0 %1012
  %1014 = vrot.lane.b32.xlu0 %v1007, 88
  %v1015 = vpop.permute.xlu0 %1014
  %1016 = vrot.lane.b32.xlu0 %v1006, 24
  %v1017 = vpop.permute.xlu0 %1016
  %1018 = vrot.lane.b32.xlu0 %v1007, 24
  %v1019 = vpop.permute.xlu0 %1018
  %v1020 = vsel %vm282, %v1013, 0
  %v1022 = vsel %vm282, %v1015, 0
  %v1024 = vsel %vm282, %v1017, 0
  %v1026 = vsel %vm282, %v1019, 0
  %1028 = vmatpush.xpose.msra.mxu0 0.0
  %1029 = vmatpush.xpose.msra.mxu0 0.0
  %1030 = vmatpush.xpose.msra.mxu0 0.0
  %1031 = vmatpush.xpose.msra.mxu0 0.0
  %1032 = vmatpush.xpose.msra.mxu0 0.0
  %1033 = vmatpush.xpose.msra.mxu0 0.0
  %1034 = vmatpush.xpose.msra.mxu0 0.0
  %1035 = vmatpush.xpose.msra.mxu0 0.0
  %1036 = vmatpush.xpose.msra.mxu0 0.0
  %1037 = vmatpush.xpose.msra.mxu0 0.0
  %1038 = vmatpush.xpose.msra.mxu0 0.0
  %1039 = vmatpush.xpose.msra.mxu0 0.0
  %1040 = vmatpush.xpose.msra.mxu0 0.0
  %1041 = vmatpush.xpose.msra.mxu0 0.0
  %1042 = vmatpush.xpose.msra.mxu0 %v1026
  %1043 = vmatpush.xpose.msra.mxu0 %v1024
  %1044 = vmatmul.f32.gmra.mxu0 %v1020
  %v1045 = vpop.f32.mrf.mxu0
  %v1046 = vadd.f32 0.0, %v1045
  %1047 = vmatmul.f32.gmra.mxu0 %v1022
  %v1048 = vpop.f32.mrf.mxu0
  %v1049 = vadd.f32 0.0, %v1048
  %1050 = vdwg.mxu0
  %v1051 = vmul.f32 %v1046, 0.35355338
  %v1052 = vmul.f32 %v1049, 0.35355338
  %s1053 = scalar_lea.vmem %s1, 80
  %v1054 = vld [vmem:[%s1053] sm:$0xff]
  %v1055 = vld [vmem:[%s1053 + $0x8] sm:$0xf]
  %v1056 = vadd.f32 %v1051, %v1054
  %v1057 = vadd.f32 %v1052, %v1055
  %v1058 = vsel %vm320, %v1056, -inf
  %1059 = vmax.xlane.f32.xlu0 %v1058
  %v1060 = vpop.xlane.xlu0 %1059
  %v1061 = vsel %vm324, %v1057, -inf
  %1062 = vmax.xlane.f32.xlu0 %v1061
  %v1063 = vpop.xlane.xlu0 %1062
  %v1064 = vsub.f32 %v1056, %v1060
  %v1065 = vsub.f32 %v1057, %v1063
  %v1066 = vmul.f32 %v1064, 1.442695
  %v1067 = vpow.pop %v1066
  %v1068 = vmul.f32 %v1065, 1.442695
  %v1069 = vpow.pop %v1068
  %v1070 = vsel %vm320, %v1067, 0.0
  %1071 = vadd.xlane.f32.xlu0 %v1070
  %v1072 = vpop.xlane.xlu0 %1071
  %v1073 = vsel %vm324, %v1069, 0.0
  %1074 = vadd.xlane.f32.xlu0 %v1073
  %v1075 = vpop.xlane.xlu0 %1074
  %v1076 = vrcp.pop %v1072
  %v1077 = vmul.f32 %v1072, %v1076
  %v1078 = vsub.f32 1.0, %v1077
  %v1079 = vmul.f32 %v1076, %v1078
  %v1080 = vadd.f32 %v1076, %v1079
  %vm1081 = vweird.f32 %v1072
  %vm1082 = vweird.f32 %v1076
  %vm1083 = vmor %vm1081, %vm1082
  %v1084 = vsel %vm1083, %v1076, %v1080
  %v1085 = vand.u32 2147483647, %v1072
  %vm1086 = vcmp.eq.f32.partialorder %v1085, 8.507059e+37
  %v1087 = vand.u32 %v1072, 2147483648
  %v1088 = vor.u32 1.1754944e-38, %v1087
  %v1089 = vsel %vm1086, %v1088, %v1084
  %v1090 = vmul.f32 %v1067, %v1089
  %v1091 = vrcp.pop %v1075
  %v1092 = vmul.f32 %v1075, %v1091
  %v1093 = vsub.f32 1.0, %v1092
  %v1094 = vmul.f32 %v1091, %v1093
  %v1095 = vadd.f32 %v1091, %v1094
  %vm1096 = vweird.f32 %v1075
  %vm1097 = vweird.f32 %v1091
  %vm1098 = vmor %vm1096, %vm1097
  %v1099 = vsel %vm1098, %v1091, %v1095
  %v1100 = vand.u32 2147483647, %v1075
  %vm1101 = vcmp.eq.f32.partialorder %v1100, 8.507059e+37
  %v1102 = vand.u32 %v1075, 2147483648
  %v1103 = vor.u32 1.1754944e-38, %v1102
  %v1104 = vsel %vm1101, %v1103, %v1099
  %v1105 = vmul.f32 %v1069, %v1104
  %1108 = vrot.lane.b32.xlu0 %v1008, 88
  %v1109 = vpop.permute.xlu0 %1108
  %1110 = vrot.lane.b32.xlu0 %v1009, 88
  %v1111 = vpop.permute.xlu0 %1110
  %v1114 = vsel %vm320, %v1090, 0
  %v1117 = vsel %vm320, %v1105, 0
  %v1119 = vsel %vm376, %v1111, 0
  %1121 = vmatpush.msra.mxu0 0.0
  %1122 = vmatpush.msra.mxu0 0.0
  %1123 = vmatpush.msra.mxu0 0.0
  %1124 = vmatpush.msra.mxu0 0.0
  %1125 = vmatpush.msra.mxu0 0.0
  %1126 = vmatpush.msra.mxu0 0.0
  %1127 = vmatpush.msra.mxu0 0.0
  %1128 = vmatpush.msra.mxu0 0.0
  %1129 = vmatpush.msra.mxu0 0.0
  %1130 = vmatpush.msra.mxu0 0.0
  %1131 = vmatpush.msra.mxu0 0.0
  %1132 = vmatpush.msra.mxu0 0.0
  %1133 = vmatpush.msra.mxu0 0.0
  %1134 = vmatpush.msra.mxu0 0.0
  %1135 = vmatpush.msra.mxu0 %v1119
  %1136 = vmatpush.msra.mxu0 %v1109
  %1137 = vmatmul.f32.gmra.mxu0 %v1114
  %v1138 = vpop.f32.mrf.mxu0
  %v1139 = vadd.f32 0.0, %v1138
  %1140 = vmatmul.f32.gmra.mxu0 %v1117
  %v1141 = vpop.f32.mrf.mxu0
  %v1142 = vadd.f32 0.0, %v1141
  %1143 = vdwg.mxu0
  %1146 = vrot.lane.b32.xlu0 %v1139, 40
  %v1147 = vpop.permute.xlu0 %1146
  %1148 = vrot.lane.b32.xlu0 %v1142, 40
  %v1149 = vpop.permute.xlu0 %1148
  %vm1152 = vcmask 392512
  %1153 = vst.msk [vmem:[#allocation3] sm:$0xff] %vm1152, %v1147
  %vm1154 = vcmask 388416
  %1155 = vst.msk [vmem:[#allocation3 + $0x8] sm:$0xf] %vm1154, %v1149
  %v1156 = vld [vmem:[#allocation2] sm:$0xff]
  %v1157 = vld [vmem:[#allocation2 + $0x10] sm:$0xf]
  %v1158 = vld [vmem:[#allocation2 + $0x8] sm:$0xff]
  %v1159 = vld [vmem:[#allocation2 + $0x18] sm:$0xf]
  %1162 = vrot.lane.b32.xlu0 %v1156, 80
  %v1163 = vpop.permute.xlu0 %1162
  %1164 = vrot.lane.b32.xlu0 %v1157, 80
  %v1165 = vpop.permute.xlu0 %1164
  %1166 = vrot.lane.b32.xlu0 %v1156, 16
  %v1167 = vpop.permute.xlu0 %1166
  %1168 = vrot.lane.b32.xlu0 %v1157, 16
  %v1169 = vpop.permute.xlu0 %1168
  %v1170 = vsel %vm282, %v1163, 0
  %v1172 = vsel %vm282, %v1165, 0
  %v1174 = vsel %vm282, %v1167, 0
  %v1176 = vsel %vm282, %v1169, 0
  %1178 = vmatpush.xpose.msra.mxu0 0.0
  %1179 = vmatpush.xpose.msra.mxu0 0.0
  %1180 = vmatpush.xpose.msra.mxu0 0.0
  %1181 = vmatpush.xpose.msra.mxu0 0.0
  %1182 = vmatpush.xpose.msra.mxu0 0.0
  %1183 = vmatpush.xpose.msra.mxu0 0.0
  %1184 = vmatpush.xpose.msra.mxu0 0.0
  %1185 = vmatpush.xpose.msra.mxu0 0.0
  %1186 = vmatpush.xpose.msra.mxu0 0.0
  %1187 = vmatpush.xpose.msra.mxu0 0.0
  %1188 = vmatpush.xpose.msra.mxu0 0.0
  %1189 = vmatpush.xpose.msra.mxu0 0.0
  %1190 = vmatpush.xpose.msra.mxu0 0.0
  %1191 = vmatpush.xpose.msra.mxu0 0.0
  %1192 = vmatpush.xpose.msra.mxu0 %v1176
  %1193 = vmatpush.xpose.msra.mxu0 %v1174
  %1194 = vmatmul.f32.gmra.mxu0 %v1170
  %v1195 = vpop.f32.mrf.mxu0
  %v1196 = vadd.f32 0.0, %v1195
  %1197 = vmatmul.f32.gmra.mxu0 %v1172
  %v1198 = vpop.f32.mrf.mxu0
  %v1199 = vadd.f32 0.0, %v1198
  %1200 = vdwg.mxu0
  %v1201 = vmul.f32 %v1196, 0.35355338
  %v1202 = vmul.f32 %v1199, 0.35355338
  %s1203 = scalar_lea.vmem %s1, 96
  %v1204 = vld [vmem:[%s1203] sm:$0xff]
  %v1205 = vld [vmem:[%s1203 + $0x8] sm:$0xf]
  %v1206 = vadd.f32 %v1201, %v1204
  %v1207 = vadd.f32 %v1202, %v1205
  %v1208 = vsel %vm320, %v1206, -inf
  %1209 = vmax.xlane.f32.xlu0 %v1208
  %v1210 = vpop.xlane.xlu0 %1209
  %v1211 = vsel %vm324, %v1207, -inf
  %1212 = vmax.xlane.f32.xlu0 %v1211
  %v1213 = vpop.xlane.xlu0 %1212
  %v1214 = vsub.f32 %v1206, %v1210
  %v1215 = vsub.f32 %v1207, %v1213
  %v1216 = vmul.f32 %v1214, 1.442695
  %v1217 = vpow.pop %v1216
  %v1218 = vmul.f32 %v1215, 1.442695
  %v1219 = vpow.pop %v1218
  %v1220 = vsel %vm320, %v1217, 0.0
  %1221 = vadd.xlane.f32.xlu0 %v1220
  %v1222 = vpop.xlane.xlu0 %1221
  %v1223 = vsel %vm324, %v1219, 0.0
  %1224 = vadd.xlane.f32.xlu0 %v1223
  %v1225 = vpop.xlane.xlu0 %1224
  %v1226 = vrcp.pop %v1222
  %v1227 = vmul.f32 %v1222, %v1226
  %v1228 = vsub.f32 1.0, %v1227
  %v1229 = vmul.f32 %v1226, %v1228
  %v1230 = vadd.f32 %v1226, %v1229
  %vm1231 = vweird.f32 %v1222
  %vm1232 = vweird.f32 %v1226
  %vm1233 = vmor %vm1231, %vm1232
  %v1234 = vsel %vm1233, %v1226, %v1230
  %v1235 = vand.u32 2147483647, %v1222
  %vm1236 = vcmp.eq.f32.partialorder %v1235, 8.507059e+37
  %v1237 = vand.u32 %v1222, 2147483648
  %v1238 = vor.u32 1.1754944e-38, %v1237
  %v1239 = vsel %vm1236, %v1238, %v1234
  %v1240 = vmul.f32 %v1217, %v1239
  %v1241 = vrcp.pop %v1225
  %v1242 = vmul.f32 %v1225, %v1241
  %v1243 = vsub.f32 1.0, %v1242
  %v1244 = vmul.f32 %v1241, %v1243
  %v1245 = vadd.f32 %v1241, %v1244
  %vm1246 = vweird.f32 %v1225
  %vm1247 = vweird.f32 %v1241
  %vm1248 = vmor %vm1246, %vm1247
  %v1249 = vsel %vm1248, %v1241, %v1245
  %v1250 = vand.u32 2147483647, %v1225
  %vm1251 = vcmp.eq.f32.partialorder %v1250, 8.507059e+37
  %v1252 = vand.u32 %v1225, 2147483648
  %v1253 = vor.u32 1.1754944e-38, %v1252
  %v1254 = vsel %vm1251, %v1253, %v1249
  %v1255 = vmul.f32 %v1219, %v1254
  %1258 = vrot.lane.b32.xlu0 %v1158, 80
  %v1259 = vpop.permute.xlu0 %1258
  %1260 = vrot.lane.b32.xlu0 %v1159, 80
  %v1261 = vpop.permute.xlu0 %1260
  %v1264 = vsel %vm320, %v1240, 0
  %v1267 = vsel %vm320, %v1255, 0
  %v1269 = vsel %vm376, %v1261, 0
  %1271 = vmatpush.msra.mxu0 0.0
  %1272 = vmatpush.msra.mxu0 0.0
  %1273 = vmatpush.msra.mxu0 0.0
  %1274 = vmatpush.msra.mxu0 0.0
  %1275 = vmatpush.msra.mxu0 0.0
  %1276 = vmatpush.msra.mxu0 0.0
  %1277 = vmatpush.msra.mxu0 0.0
  %1278 = vmatpush.msra.mxu0 0.0
  %1279 = vmatpush.msra.mxu0 0.0
  %1280 = vmatpush.msra.mxu0 0.0
  %1281 = vmatpush.msra.mxu0 0.0
  %1282 = vmatpush.msra.mxu0 0.0
  %1283 = vmatpush.msra.mxu0 0.0
  %1284 = vmatpush.msra.mxu0 0.0
  %1285 = vmatpush.msra.mxu0 %v1269
  %1286 = vmatpush.msra.mxu0 %v1259
  %1287 = vmatmul.f32.gmra.mxu0 %v1264
  %v1288 = vpop.f32.mrf.mxu0
  %v1289 = vadd.f32 0.0, %v1288
  %1290 = vmatmul.f32.gmra.mxu0 %v1267
  %v1291 = vpop.f32.mrf.mxu0
  %v1292 = vadd.f32 0.0, %v1291
  %1293 = vdwg.mxu0
  %1296 = vrot.lane.b32.xlu0 %v1289, 48
  %v1297 = vpop.permute.xlu0 %1296
  %1298 = vrot.lane.b32.xlu0 %v1292, 48
  %v1299 = vpop.permute.xlu0 %1298
  %vm1302 = vcmask 458112
  %1303 = vst.msk [vmem:[#allocation3] sm:$0xff] %vm1302, %v1297
  %vm1304 = vcmask 454016
  %1305 = vst.msk [vmem:[#allocation3 + $0x8] sm:$0xf] %vm1304, %v1299
  %v1306 = vld [vmem:[#allocation2] sm:$0xff]
  %v1307 = vld [vmem:[#allocation2 + $0x10] sm:$0xf]
  %v1308 = vld [vmem:[#allocation2 + $0x8] sm:$0xff]
  %v1309 = vld [vmem:[#allocation2 + $0x18] sm:$0xf]
  %1312 = vrot.lane.b32.xlu0 %v1306, 72
  %v1313 = vpop.permute.xlu0 %1312
  %1314 = vrot.lane.b32.xlu0 %v1307, 72
  %v1315 = vpop.permute.xlu0 %1314
  %1316 = vrot.lane.b32.xlu0 %v1306, 8
  %v1317 = vpop.permute.xlu0 %1316
  %1318 = vrot.lane.b32.xlu0 %v1307, 8
  %v1319 = vpop.permute.xlu0 %1318
  %v1320 = vsel %vm282, %v1313, 0
  %v1322 = vsel %vm282, %v1315, 0
  %v1324 = vsel %vm282, %v1317, 0
  %v1326 = vsel %vm282, %v1319, 0
  %1328 = vmatpush.xpose.msra.mxu0 0.0
  %1329 = vmatpush.xpose.msra.mxu0 0.0
  %1330 = vmatpush.xpose.msra.mxu0 0.0
  %1331 = vmatpush.xpose.msra.mxu0 0.0
  %1332 = vmatpush.xpose.msra.mxu0 0.0
  %1333 = vmatpush.xpose.msra.mxu0 0.0
  %1334 = vmatpush.xpose.msra.mxu0 0.0
  %1335 = vmatpush.xpose.msra.mxu0 0.0
  %1336 = vmatpush.xpose.msra.mxu0 0.0
  %1337 = vmatpush.xpose.msra.mxu0 0.0
  %1338 = vmatpush.xpose.msra.mxu0 0.0
  %1339 = vmatpush.xpose.msra.mxu0 0.0
  %1340 = vmatpush.xpose.msra.mxu0 0.0
  %1341 = vmatpush.xpose.msra.mxu0 0.0
  %1342 = vmatpush.xpose.msra.mxu0 %v1326
  %1343 = vmatpush.xpose.msra.mxu0 %v1324
  %1344 = vmatmul.f32.gmra.mxu0 %v1320
  %v1345 = vpop.f32.mrf.mxu0
  %v1346 = vadd.f32 0.0, %v1345
  %1347 = vmatmul.f32.gmra.mxu0 %v1322
  %v1348 = vpop.f32.mrf.mxu0
  %v1349 = vadd.f32 0.0, %v1348
  %1350 = vdwg.mxu0
  %v1351 = vmul.f32 %v1346, 0.35355338
  %v1352 = vmul.f32 %v1349, 0.35355338
  %s1353 = scalar_lea.vmem %s1, 112
  %v1354 = vld [vmem:[%s1353] sm:$0xff]
  %v1355 = vld [vmem:[%s1353 + $0x8] sm:$0xf]
  %v1356 = vadd.f32 %v1351, %v1354
  %v1357 = vadd.f32 %v1352, %v1355
  %v1358 = vsel %vm320, %v1356, -inf
  %1359 = vmax.xlane.f32.xlu0 %v1358
  %v1360 = vpop.xlane.xlu0 %1359
  %v1361 = vsel %vm324, %v1357, -inf
  %1362 = vmax.xlane.f32.xlu0 %v1361
  %v1363 = vpop.xlane.xlu0 %1362
  %v1364 = vsub.f32 %v1356, %v1360
  %v1365 = vsub.f32 %v1357, %v1363
  %v1366 = vmul.f32 %v1364, 1.442695
  %v1367 = vpow.pop %v1366
  %v1368 = vmul.f32 %v1365, 1.442695
  %v1369 = vpow.pop %v1368
  %v1370 = vsel %vm320, %v1367, 0.0
  %1371 = vadd.xlane.f32.xlu0 %v1370
  %v1372 = vpop.xlane.xlu0 %1371
  %v1373 = vsel %vm324, %v1369, 0.0
  %1374 = vadd.xlane.f32.xlu0 %v1373
  %v1375 = vpop.xlane.xlu0 %1374
  %v1376 = vrcp.pop %v1372
  %v1377 = vmul.f32 %v1372, %v1376
  %v1378 = vsub.f32 1.0, %v1377
  %v1379 = vmul.f32 %v1376, %v1378
  %v1380 = vadd.f32 %v1376, %v1379
  %vm1381 = vweird.f32 %v1372
  %vm1382 = vweird.f32 %v1376
  %vm1383 = vmor %vm1381, %vm1382
  %v1384 = vsel %vm1383, %v1376, %v1380
  %v1385 = vand.u32 2147483647, %v1372
  %vm1386 = vcmp.eq.f32.partialorder %v1385, 8.507059e+37
  %v1387 = vand.u32 %v1372, 2147483648
  %v1388 = vor.u32 1.1754944e-38, %v1387
  %v1389 = vsel %vm1386, %v1388, %v1384
  %v1390 = vmul.f32 %v1367, %v1389
  %v1391 = vrcp.pop %v1375
  %v1392 = vmul.f32 %v1375, %v1391
  %v1393 = vsub.f32 1.0, %v1392
  %v1394 = vmul.f32 %v1391, %v1393
  %v1395 = vadd.f32 %v1391, %v1394
  %vm1396 = vweird.f32 %v1375
  %vm1397 = vweird.f32 %v1391
  %vm1398 = vmor %vm1396, %vm1397
  %v1399 = vsel %vm1398, %v1391, %v1395
  %v1400 = vand.u32 2147483647, %v1375
  %vm1401 = vcmp.eq.f32.partialorder %v1400, 8.507059e+37
  %v1402 = vand.u32 %v1375, 2147483648
  %v1403 = vor.u32 1.1754944e-38, %v1402
  %v1404 = vsel %vm1401, %v1403, %v1399
  %v1405 = vmul.f32 %v1369, %v1404
  %1408 = vrot.lane.b32.xlu0 %v1308, 72
  %v1409 = vpop.permute.xlu0 %1408
  %1410 = vrot.lane.b32.xlu0 %v1309, 72
  %v1411 = vpop.permute.xlu0 %1410
  %v1414 = vsel %vm320, %v1390, 0
  %v1417 = vsel %vm320, %v1405, 0
  %v1419 = vsel %vm376, %v1411, 0
  %1421 = vmatpush.msra.mxu0 0.0
  %1422 = vmatpush.msra.mxu0 0.0
  %1423 = vmatpush.msra.mxu0 0.0
  %1424 = vmatpush.msra.mxu0 0.0
  %1425 = vmatpush.msra.mxu0 0.0
  %1426 = vmatpush.msra.mxu0 0.0
  %1427 = vmatpush.msra.mxu0 0.0
  %1428 = vmatpush.msra.mxu0 0.0
  %1429 = vmatpush.msra.mxu0 0.0
  %1430 = vmatpush.msra.mxu0 0.0
  %1431 = vmatpush.msra.mxu0 0.0
  %1432 = vmatpush.msra.mxu0 0.0
  %1433 = vmatpush.msra.mxu0 0.0
  %1434 = vmatpush.msra.mxu0 0.0
  %1435 = vmatpush.msra.mxu0 %v1419
  %1436 = vmatpush.msra.mxu0 %v1409
  %1437 = vmatmul.f32.gmra.mxu0 %v1414
  %v1438 = vpop.f32.mrf.mxu0
  %v1439 = vadd.f32 0.0, %v1438
  %1440 = vmatmul.f32.gmra.mxu0 %v1417
  %v1441 = vpop.f32.mrf.mxu0
  %v1442 = vadd.f32 0.0, %v1441
  %1443 = vdwg.mxu0
  %1446 = vrot.lane.b32.xlu0 %v1439, 56
  %v1447 = vpop.permute.xlu0 %1446
  %1448 = vrot.lane.b32.xlu0 %v1442, 56
  %v1449 = vpop.permute.xlu0 %1448
  %vm1452 = vcmask 523712
  %1453 = vst.msk [vmem:[#allocation3] sm:$0xff] %vm1452, %v1447
  %vm1454 = vcmask 519616
  %1455 = vst.msk [vmem:[#allocation3 + $0x8] sm:$0xf] %vm1454, %v1449
  %v1456 = vld [vmem:[#allocation2 + $0x10] sm:$0xf0]
  %v1457 = vld [vmem:[#allocation2 + $0x20] sm:$0xff]
  %v1458 = vld [vmem:[#allocation2 + $0x18] sm:$0xf0]
  %v1459 = vld [vmem:[#allocation2 + $0x28] sm:$0xff]
  %v1462 = vrot.slane %v1456, 4
  %v1463 = vrot.slane %v1457, 4
  %v1464 = vsel %vm376, %v1462, %v1463
  %1465 = vrot.lane.b32.xlu0 %v1464, 64
  %v1466 = vpop.permute.xlu0 %1465
  %1467 = vrot.lane.b32.xlu0 %v1463, 64
  %v1468 = vpop.permute.xlu0 %1467
  %v1469 = vsel %vm282, %v1464, 0
  %v1471 = vsel %vm282, %v1463, 0
  %v1473 = vsel %vm282, %v1466, 0
  %v1475 = vsel %vm282, %v1468, 0
  %1477 = vmatpush.xpose.msra.mxu0 0.0
  %1478 = vmatpush.xpose.msra.mxu0 0.0
  %1479 = vmatpush.xpose.msra.mxu0 0.0
  %1480 = vmatpush.xpose.msra.mxu0 0.0
  %1481 = vmatpush.xpose.msra.mxu0 0.0
  %1482 = vmatpush.xpose.msra.mxu0 0.0
  %1483 = vmatpush.xpose.msra.mxu0 0.0
  %1484 = vmatpush.xpose.msra.mxu0 0.0
  %1485 = vmatpush.xpose.msra.mxu0 0.0
  %1486 = vmatpush.xpose.msra.mxu0 0.0
  %1487 = vmatpush.xpose.msra.mxu0 0.0
  %1488 = vmatpush.xpose.msra.mxu0 0.0
  %1489 = vmatpush.xpose.msra.mxu0 0.0
  %1490 = vmatpush.xpose.msra.mxu0 0.0
  %1491 = vmatpush.xpose.msra.mxu0 %v1475
  %1492 = vmatpush.xpose.msra.mxu0 %v1473
  %1493 = vmatmul.f32.gmra.mxu0 %v1469
  %v1494 = vpop.f32.mrf.mxu0
  %v1495 = vadd.f32 0.0, %v1494
  %1496 = vmatmul.f32.gmra.mxu0 %v1471
  %v1497 = vpop.f32.mrf.mxu0
  %v1498 = vadd.f32 0.0, %v1497
  %1499 = vdwg.mxu0
  %v1500 = vmul.f32 %v1495, 0.35355338
  %v1501 = vmul.f32 %v1498, 0.35355338
  %s1502 = scalar_lea.vmem %s1, 128
  %v1503 = vld [vmem:[%s1502] sm:$0xff]
  %v1504 = vld [vmem:[%s1502 + $0x8] sm:$0xf]
  %v1505 = vadd.f32 %v1500, %v1503
  %v1506 = vadd.f32 %v1501, %v1504
  %v1507 = vsel %vm320, %v1505, -inf
  %1508 = vmax.xlane.f32.xlu0 %v1507
  %v1509 = vpop.xlane.xlu0 %1508
  %v1510 = vsel %vm324, %v1506, -inf
  %1511 = vmax.xlane.f32.xlu0 %v1510
  %v1512 = vpop.xlane.xlu0 %1511
  %v1513 = vsub.f32 %v1505, %v1509
  %v1514 = vsub.f32 %v1506, %v1512
  %v1515 = vmul.f32 %v1513, 1.442695
  %v1516 = vpow.pop %v1515
  %v1517 = vmul.f32 %v1514, 1.442695
  %v1518 = vpow.pop %v1517
  %v1519 = vsel %vm320, %v1516, 0.0
  %1520 = vadd.xlane.f32.xlu0 %v1519
  %v1521 = vpop.xlane.xlu0 %1520
  %v1522 = vsel %vm324, %v1518, 0.0
  %1523 = vadd.xlane.f32.xlu0 %v1522
  %v1524 = vpop.xlane.xlu0 %1523
  %v1525 = vrcp.pop %v1521
  %v1526 = vmul.f32 %v1521, %v1525
  %v1527 = vsub.f32 1.0, %v1526
  %v1528 = vmul.f32 %v1525, %v1527
  %v1529 = vadd.f32 %v1525, %v1528
  %vm1530 = vweird.f32 %v1521
  %vm1531 = vweird.f32 %v1525
  %vm1532 = vmor %vm1530, %vm1531
  %v1533 = vsel %vm1532, %v1525, %v1529
  %v1534 = vand.u32 2147483647, %v1521
  %vm1535 = vcmp.eq.f32.partialorder %v1534, 8.507059e+37
  %v1536 = vand.u32 %v1521, 2147483648
  %v1537 = vor.u32 1.1754944e-38, %v1536
  %v1538 = vsel %vm1535, %v1537, %v1533
  %v1539 = vmul.f32 %v1516, %v1538
  %v1540 = vrcp.pop %v1524
  %v1541 = vmul.f32 %v1524, %v1540
  %v1542 = vsub.f32 1.0, %v1541
  %v1543 = vmul.f32 %v1540, %v1542
  %v1544 = vadd.f32 %v1540, %v1543
  %vm1545 = vweird.f32 %v1524
  %vm1546 = vweird.f32 %v1540
  %vm1547 = vmor %vm1545, %vm1546
  %v1548 = vsel %vm1547, %v1540, %v1544
  %v1549 = vand.u32 2147483647, %v1524
  %vm1550 = vcmp.eq.f32.partialorder %v1549, 8.507059e+37
  %v1551 = vand.u32 %v1524, 2147483648
  %v1552 = vor.u32 1.1754944e-38, %v1551
  %v1553 = vsel %vm1550, %v1552, %v1548
  %v1554 = vmul.f32 %v1518, %v1553
  %v1557 = vrot.slane %v1458, 4
  %v1558 = vrot.slane %v1459, 4
  %v1559 = vsel %vm376, %v1557, %v1558
  %v1562 = vsel %vm320, %v1539, 0
  %v1565 = vsel %vm320, %v1554, 0
  %v1567 = vsel %vm376, %v1558, 0
  %1569 = vmatpush.msra.mxu0 0.0
  %1570 = vmatpush.msra.mxu0 0.0
  %1571 = vmatpush.msra.mxu0 0.0
  %1572 = vmatpush.msra.mxu0 0.0
  %1573 = vmatpush.msra.mxu0 0.0
  %1574 = vmatpush.msra.mxu0 0.0
  %1575 = vmatpush.msra.mxu0 0.0
  %1576 = vmatpush.msra.mxu0 0.0
  %1577 = vmatpush.msra.mxu0 0.0
  %1578 = vmatpush.msra.mxu0 0.0
  %1579 = vmatpush.msra.mxu0 0.0
  %1580 = vmatpush.msra.mxu0 0.0
  %1581 = vmatpush.msra.mxu0 0.0
  %1582 = vmatpush.msra.mxu0 0.0
  %1583 = vmatpush.msra.mxu0 %v1567
  %1584 = vmatpush.msra.mxu0 %v1559
  %1585 = vmatmul.f32.gmra.mxu0 %v1562
  %v1586 = vpop.f32.mrf.mxu0
  %v1587 = vadd.f32 0.0, %v1586
  %1588 = vmatmul.f32.gmra.mxu0 %v1565
  %v1589 = vpop.f32.mrf.mxu0
  %v1590 = vadd.f32 0.0, %v1589
  %1591 = vdwg.mxu0
  %1592 = vst.msk [vmem:[#allocation3 + $0xc] sm:$0xff] %vm282, %v1587
  %1593 = vst.msk [vmem:[#allocation3 + $0x14] sm:$0xf] %vm404, %v1590
  %v1594 = vld [vmem:[#allocation2 + $0x10] sm:$0xf0]
  %v1595 = vld [vmem:[#allocation2 + $0x20] sm:$0xff]
  %v1596 = vld [vmem:[#allocation2 + $0x18] sm:$0xf0]
  %v1597 = vld [vmem:[#allocation2 + $0x28] sm:$0xff]
  %v1600 = vrot.slane %v1594, 4
  %v1601 = vrot.slane %v1595, 4
  %v1602 = vsel %vm376, %v1600, %v1601
  %1603 = vrot.lane.b32.xlu0 %v1602, 120
  %v1604 = vpop.permute.xlu0 %1603
  %1605 = vrot.lane.b32.xlu0 %v1601, 120
  %v1606 = vpop.permute.xlu0 %1605
  %1607 = vrot.lane.b32.xlu0 %v1602, 56
  %v1608 = vpop.permute.xlu0 %1607
  %1609 = vrot.lane.b32.xlu0 %v1601, 56
  %v1610 = vpop.permute.xlu0 %1609
  %v1611 = vsel %vm282, %v1604, 0
  %v1613 = vsel %vm282, %v1606, 0
  %v1615 = vsel %vm282, %v1608, 0
  %v1617 = vsel %vm282, %v1610, 0
  %1619 = vmatpush.xpose.msra.mxu0 0.0
  %1620 = vmatpush.xpose.msra.mxu0 0.0
  %1621 = vmatpush.xpose.msra.mxu0 0.0
  %1622 = vmatpush.xpose.msra.mxu0 0.0
  %1623 = vmatpush.xpose.msra.mxu0 0.0
  %1624 = vmatpush.xpose.msra.mxu0 0.0
  %1625 = vmatpush.xpose.msra.mxu0 0.0
  %1626 = vmatpush.xpose.msra.mxu0 0.0
  %1627 = vmatpush.xpose.msra.mxu0 0.0
  %1628 = vmatpush.xpose.msra.mxu0 0.0
  %1629 = vmatpush.xpose.msra.mxu0 0.0
  %1630 = vmatpush.xpose.msra.mxu0 0.0
  %1631 = vmatpush.xpose.msra.mxu0 0.0
  %1632 = vmatpush.xpose.msra.mxu0 0.0
  %1633 = vmatpush.xpose.msra.mxu0 %v1617
  %1634 = vmatpush.xpose.msra.mxu0 %v1615
  %1635 = vmatmul.f32.gmra.mxu0 %v1611
  %v1636 = vpop.f32.mrf.mxu0
  %v1637 = vadd.f32 0.0, %v1636
  %1638 = vmatmul.f32.gmra.mxu0 %v1613
  %v1639 = vpop.f32.mrf.mxu0
  %v1640 = vadd.f32 0.0, %v1639
  %1641 = vdwg.mxu0
  %v1642 = vmul.f32 %v1637, 0.35355338
  %v1643 = vmul.f32 %v1640, 0.35355338
  %s1644 = scalar_lea.vmem %s1, 144
  %v1645 = vld [vmem:[%s1644] sm:$0xff]
  %v1646 = vld [vmem:[%s1644 + $0x8] sm:$0xf]
  %v1647 = vadd.f32 %v1642, %v1645
  %v1648 = vadd.f32 %v1643, %v1646
  %v1649 = vsel %vm320, %v1647, -inf
  %1650 = vmax.xlane.f32.xlu0 %v1649
  %v1651 = vpop.xlane.xlu0 %1650
  %v1652 = vsel %vm324, %v1648, -inf
  %1653 = vmax.xlane.f32.xlu0 %v1652
  %v1654 = vpop.xlane.xlu0 %1653
  %v1655 = vsub.f32 %v1647, %v1651
  %v1656 = vsub.f32 %v1648, %v1654
  %v1657 = vmul.f32 %v1655, 1.442695
  %v1658 = vpow.pop %v1657
  %v1659 = vmul.f32 %v1656, 1.442695
  %v1660 = vpow.pop %v1659
  %v1661 = vsel %vm320, %v1658, 0.0
  %1662 = vadd.xlane.f32.xlu0 %v1661
  %v1663 = vpop.xlane.xlu0 %1662
  %v1664 = vsel %vm324, %v1660, 0.0
  %1665 = vadd.xlane.f32.xlu0 %v1664
  %v1666 = vpop.xlane.xlu0 %1665
  %v1667 = vrcp.pop %v1663
  %v1668 = vmul.f32 %v1663, %v1667
  %v1669 = vsub.f32 1.0, %v1668
  %v1670 = vmul.f32 %v1667, %v1669
  %v1671 = vadd.f32 %v1667, %v1670
  %vm1672 = vweird.f32 %v1663
  %vm1673 = vweird.f32 %v1667
  %vm1674 = vmor %vm1672, %vm1673
  %v1675 = vsel %vm1674, %v1667, %v1671
  %v1676 = vand.u32 2147483647, %v1663
  %vm1677 = vcmp.eq.f32.partialorder %v1676, 8.507059e+37
  %v1678 = vand.u32 %v1663, 2147483648
  %v1679 = vor.u32 1.1754944e-38, %v1678
  %v1680 = vsel %vm1677, %v1679, %v1675
  %v1681 = vmul.f32 %v1658, %v1680
  %v1682 = vrcp.pop %v1666
  %v1683 = vmul.f32 %v1666, %v1682
  %v1684 = vsub.f32 1.0, %v1683
  %v1685 = vmul.f32 %v1682, %v1684
  %v1686 = vadd.f32 %v1682, %v1685
  %vm1687 = vweird.f32 %v1666
  %vm1688 = vweird.f32 %v1682
  %vm1689 = vmor %vm1687, %vm1688
  %v1690 = vsel %vm1689, %v1682, %v1686
  %v1691 = vand.u32 2147483647, %v1666
  %vm1692 = vcmp.eq.f32.partialorder %v1691, 8.507059e+37
  %v1693 = vand.u32 %v1666, 2147483648
  %v1694 = vor.u32 1.1754944e-38, %v1693
  %v1695 = vsel %vm1692, %v1694, %v1690
  %v1696 = vmul.f32 %v1660, %v1695
  %v1699 = vrot.slane %v1596, 4
  %v1700 = vrot.slane %v1597, 4
  %v1701 = vsel %vm376, %v1699, %v1700
  %1702 = vrot.lane.b32.xlu0 %v1701, 120
  %v1703 = vpop.permute.xlu0 %1702
  %1704 = vrot.lane.b32.xlu0 %v1700, 120
  %v1705 = vpop.permute.xlu0 %1704
  %v1708 = vsel %vm320, %v1681, 0
  %v1711 = vsel %vm320, %v1696, 0
  %v1713 = vsel %vm376, %v1705, 0
  %1715 = vmatpush.msra.mxu0 0.0
  %1716 = vmatpush.msra.mxu0 0.0
  %1717 = vmatpush.msra.mxu0 0.0
  %1718 = vmatpush.msra.mxu0 0.0
  %1719 = vmatpush.msra.mxu0 0.0
  %1720 = vmatpush.msra.mxu0 0.0
  %1721 = vmatpush.msra.mxu0 0.0
  %1722 = vmatpush.msra.mxu0 0.0
  %1723 = vmatpush.msra.mxu0 0.0
  %1724 = vmatpush.msra.mxu0 0.0
  %1725 = vmatpush.msra.mxu0 0.0
  %1726 = vmatpush.msra.mxu0 0.0
  %1727 = vmatpush.msra.mxu0 0.0
  %1728 = vmatpush.msra.mxu0 0.0
  %1729 = vmatpush.msra.mxu0 %v1713
  %1730 = vmatpush.msra.mxu0 %v1703
  %1731 = vmatmul.f32.gmra.mxu0 %v1708
  %v1732 = vpop.f32.mrf.mxu0
  %v1733 = vadd.f32 0.0, %v1732
  %1734 = vmatmul.f32.gmra.mxu0 %v1711
  %v1735 = vpop.f32.mrf.mxu0
  %v1736 = vadd.f32 0.0, %v1735
  %1737 = vdwg.mxu0
  %1740 = vrot.lane.b32.xlu0 %v1733, 8
  %v1741 = vpop.permute.xlu0 %1740
  %1742 = vrot.lane.b32.xlu0 %v1736, 8
  %v1743 = vpop.permute.xlu0 %1742
  %1746 = vst.msk [vmem:[#allocation3 + $0xc] sm:$0xff] %vm552, %v1741
  %1747 = vst.msk [vmem:[#allocation3 + $0x14] sm:$0xf] %vm554, %v1743
  %v1748 = vld [vmem:[#allocation2 + $0x10] sm:$0xf0]
  %v1749 = vld [vmem:[#allocation2 + $0x20] sm:$0xff]
  %v1750 = vld [vmem:[#allocation2 + $0x18] sm:$0xf0]
  %v1751 = vld [vmem:[#allocation2 + $0x28] sm:$0xff]
  %v1754 = vrot.slane %v1748, 4
  %v1755 = vrot.slane %v1749, 4
  %v1756 = vsel %vm376, %v1754, %v1755
  %1757 = vrot.lane.b32.xlu0 %v1756, 112
  %v1758 = vpop.permute.xlu0 %1757
  %1759 = vrot.lane.b32.xlu0 %v1755, 112
  %v1760 = vpop.permute.xlu0 %1759
  %1761 = vrot.lane.b32.xlu0 %v1756, 48
  %v1762 = vpop.permute.xlu0 %1761
  %1763 = vrot.lane.b32.xlu0 %v1755, 48
  %v1764 = vpop.permute.xlu0 %1763
  %v1765 = vsel %vm282, %v1758, 0
  %v1767 = vsel %vm282, %v1760, 0
  %v1769 = vsel %vm282, %v1762, 0
  %v1771 = vsel %vm282, %v1764, 0
  %1773 = vmatpush.xpose.msra.mxu0 0.0
  %1774 = vmatpush.xpose.msra.mxu0 0.0
  %1775 = vmatpush.xpose.msra.mxu0 0.0
  %1776 = vmatpush.xpose.msra.mxu0 0.0
  %1777 = vmatpush.xpose.msra.mxu0 0.0
  %1778 = vmatpush.xpose.msra.mxu0 0.0
  %1779 = vmatpush.xpose.msra.mxu0 0.0
  %1780 = vmatpush.xpose.msra.mxu0 0.0
  %1781 = vmatpush.xpose.msra.mxu0 0.0
  %1782 = vmatpush.xpose.msra.mxu0 0.0
  %1783 = vmatpush.xpose.msra.mxu0 0.0
  %1784 = vmatpush.xpose.msra.mxu0 0.0
  %1785 = vmatpush.xpose.msra.mxu0 0.0
  %1786 = vmatpush.xpose.msra.mxu0 0.0
  %1787 = vmatpush.xpose.msra.mxu0 %v1771
  %1788 = vmatpush.xpose.msra.mxu0 %v1769
  %1789 = vmatmul.f32.gmra.mxu0 %v1765
  %v1790 = vpop.f32.mrf.mxu0
  %v1791 = vadd.f32 0.0, %v1790
  %1792 = vmatmul.f32.gmra.mxu0 %v1767
  %v1793 = vpop.f32.mrf.mxu0
  %v1794 = vadd.f32 0.0, %v1793
  %1795 = vdwg.mxu0
  %v1796 = vmul.f32 %v1791, 0.35355338
  %v1797 = vmul.f32 %v1794, 0.35355338
  %s1798 = scalar_lea.vmem %s1, 160
  %v1799 = vld [vmem:[%s1798] sm:$0xff]
  %v1800 = vld [vmem:[%s1798 + $0x8] sm:$0xf]
  %v1801 = vadd.f32 %v1796, %v1799
  %v1802 = vadd.f32 %v1797, %v1800
  %v1803 = vsel %vm320, %v1801, -inf
  %1804 = vmax.xlane.f32.xlu0 %v1803
  %v1805 = vpop.xlane.xlu0 %1804
  %v1806 = vsel %vm324, %v1802, -inf
  %1807 = vmax.xlane.f32.xlu0 %v1806
  %v1808 = vpop.xlane.xlu0 %1807
  %v1809 = vsub.f32 %v1801, %v1805
  %v1810 = vsub.f32 %v1802, %v1808
  %v1811 = vmul.f32 %v1809, 1.442695
  %v1812 = vpow.pop %v1811
  %v1813 = vmul.f32 %v1810, 1.442695
  %v1814 = vpow.pop %v1813
  %v1815 = vsel %vm320, %v1812, 0.0
  %1816 = vadd.xlane.f32.xlu0 %v1815
  %v1817 = vpop.xlane.xlu0 %1816
  %v1818 = vsel %vm324, %v1814, 0.0
  %1819 = vadd.xlane.f32.xlu0 %v1818
  %v1820 = vpop.xlane.xlu0 %1819
  %v1821 = vrcp.pop %v1817
  %v1822 = vmul.f32 %v1817, %v1821
  %v1823 = vsub.f32 1.0, %v1822
  %v1824 = vmul.f32 %v1821, %v1823
  %v1825 = vadd.f32 %v1821, %v1824
  %vm1826 = vweird.f32 %v1817
  %vm1827 = vweird.f32 %v1821
  %vm1828 = vmor %vm1826, %vm1827
  %v1829 = vsel %vm1828, %v1821, %v1825
  %v1830 = vand.u32 2147483647, %v1817
  %vm1831 = vcmp.eq.f32.partialorder %v1830, 8.507059e+37
  %v1832 = vand.u32 %v1817, 2147483648
  %v1833 = vor.u32 1.1754944e-38, %v1832
  %v1834 = vsel %vm1831, %v1833, %v1829
  %v1835 = vmul.f32 %v1812, %v1834
  %v1836 = vrcp.pop %v1820
  %v1837 = vmul.f32 %v1820, %v1836
  %v1838 = vsub.f32 1.0, %v1837
  %v1839 = vmul.f32 %v1836, %v1838
  %v1840 = vadd.f32 %v1836, %v1839
  %vm1841 = vweird.f32 %v1820
  %vm1842 = vweird.f32 %v1836
  %vm1843 = vmor %vm1841, %vm1842
  %v1844 = vsel %vm1843, %v1836, %v1840
  %v1845 = vand.u32 2147483647, %v1820
  %vm1846 = vcmp.eq.f32.partialorder %v1845, 8.507059e+37
  %v1847 = vand.u32 %v1820, 2147483648
  %v1848 = vor.u32 1.1754944e-38, %v1847
  %v1849 = vsel %vm1846, %v1848, %v1844
  %v1850 = vmul.f32 %v1814, %v1849
  %v1853 = vrot.slane %v1750, 4
  %v1854 = vrot.slane %v1751, 4
  %v1855 = vsel %vm376, %v1853, %v1854
  %1856 = vrot.lane.b32.xlu0 %v1855, 112
  %v1857 = vpop.permute.xlu0 %1856
  %1858 = vrot.lane.b32.xlu0 %v1854, 112
  %v1859 = vpop.permute.xlu0 %1858
  %v1862 = vsel %vm320, %v1835, 0
  %v1865 = vsel %vm320, %v1850, 0
  %v1867 = vsel %vm376, %v1859, 0
  %1869 = vmatpush.msra.mxu0 0.0
  %1870 = vmatpush.msra.mxu0 0.0
  %1871 = vmatpush.msra.mxu0 0.0
  %1872 = vmatpush.msra.mxu0 0.0
  %1873 = vmatpush.msra.mxu0 0.0
  %1874 = vmatpush.msra.mxu0 0.0
  %1875 = vmatpush.msra.mxu0 0.0
  %1876 = vmatpush.msra.mxu0 0.0
  %1877 = vmatpush.msra.mxu0 0.0
  %1878 = vmatpush.msra.mxu0 0.0
  %1879 = vmatpush.msra.mxu0 0.0
  %1880 = vmatpush.msra.mxu0 0.0
  %1881 = vmatpush.msra.mxu0 0.0
  %1882 = vmatpush.msra.mxu0 0.0
  %1883 = vmatpush.msra.mxu0 %v1867
  %1884 = vmatpush.msra.mxu0 %v1857
  %1885 = vmatmul.f32.gmra.mxu0 %v1862
  %v1886 = vpop.f32.mrf.mxu0
  %v1887 = vadd.f32 0.0, %v1886
  %1888 = vmatmul.f32.gmra.mxu0 %v1865
  %v1889 = vpop.f32.mrf.mxu0
  %v1890 = vadd.f32 0.0, %v1889
  %1891 = vdwg.mxu0
  %1894 = vrot.lane.b32.xlu0 %v1887, 16
  %v1895 = vpop.permute.xlu0 %1894
  %1896 = vrot.lane.b32.xlu0 %v1890, 16
  %v1897 = vpop.permute.xlu0 %1896
  %1900 = vst.msk [vmem:[#allocation3 + $0xc] sm:$0xff] %vm702, %v1895
  %1901 = vst.msk [vmem:[#allocation3 + $0x14] sm:$0xf] %vm704, %v1897
  %v1902 = vld [vmem:[#allocation2 + $0x10] sm:$0xf0]
  %v1903 = vld [vmem:[#allocation2 + $0x20] sm:$0xff]
  %v1904 = vld [vmem:[#allocation2 + $0x18] sm:$0xf0]
  %v1905 = vld [vmem:[#allocation2 + $0x28] sm:$0xff]
  %v1908 = vrot.slane %v1902, 4
  %v1909 = vrot.slane %v1903, 4
  %v1910 = vsel %vm376, %v1908, %v1909
  %1911 = vrot.lane.b32.xlu0 %v1910, 104
  %v1912 = vpop.permute.xlu0 %1911
  %1913 = vrot.lane.b32.xlu0 %v1909, 104
  %v1914 = vpop.permute.xlu0 %1913
  %1915 = vrot.lane.b32.xlu0 %v1910, 40
  %v1916 = vpop.permute.xlu0 %1915
  %1917 = vrot.lane.b32.xlu0 %v1909, 40
  %v1918 = vpop.permute.xlu0 %1917
  %v1919 = vsel %vm282, %v1912, 0
  %v1921 = vsel %vm282, %v1914, 0
  %v1923 = vsel %vm282, %v1916, 0
  %v1925 = vsel %vm282, %v1918, 0
  %1927 = vmatpush.xpose.msra.mxu0 0.0
  %1928 = vmatpush.xpose.msra.mxu0 0.0
  %1929 = vmatpush.xpose.msra.mxu0 0.0
  %1930 = vmatpush.xpose.msra.mxu0 0.0
  %1931 = vmatpush.xpose.msra.mxu0 0.0
  %1932 = vmatpush.xpose.msra.mxu0 0.0
  %1933 = vmatpush.xpose.msra.mxu0 0.0
  %1934 = vmatpush.xpose.msra.mxu0 0.0
  %1935 = vmatpush.xpose.msra.mxu0 0.0
  %1936 = vmatpush.xpose.msra.mxu0 0.0
  %1937 = vmatpush.xpose.msra.mxu0 0.0
  %1938 = vmatpush.xpose.msra.mxu0 0.0
  %1939 = vmatpush.xpose.msra.mxu0 0.0
  %1940 = vmatpush.xpose.msra.mxu0 0.0
  %1941 = vmatpush.xpose.msra.mxu0 %v1925
  %1942 = vmatpush.xpose.msra.mxu0 %v1923
  %1943 = vmatmul.f32.gmra.mxu0 %v1919
  %v1944 = vpop.f32.mrf.mxu0
  %v1945 = vadd.f32 0.0, %v1944
  %1946 = vmatmul.f32.gmra.mxu0 %v1921
  %v1947 = vpop.f32.mrf.mxu0
  %v1948 = vadd.f32 0.0, %v1947
  %1949 = vdwg.mxu0
  %v1950 = vmul.f32 %v1945, 0.35355338
  %v1951 = vmul.f32 %v1948, 0.35355338
  %s1952 = scalar_lea.vmem %s1, 176
  %v1953 = vld [vmem:[%s1952] sm:$0xff]
  %v1954 = vld [vmem:[%s1952 + $0x8] sm:$0xf]
  %v1955 = vadd.f32 %v1950, %v1953
  %v1956 = vadd.f32 %v1951, %v1954
  %v1957 = vsel %vm320, %v1955, -inf
  %1958 = vmax.xlane.f32.xlu0 %v1957
  %v1959 = vpop.xlane.xlu0 %1958
  %v1960 = vsel %vm324, %v1956, -inf
  %1961 = vmax.xlane.f32.xlu0 %v1960
  %v1962 = vpop.xlane.xlu0 %1961
  %v1963 = vsub.f32 %v1955, %v1959
  %v1964 = vsub.f32 %v1956, %v1962
  %v1965 = vmul.f32 %v1963, 1.442695
  %v1966 = vpow.pop %v1965
  %v1967 = vmul.f32 %v1964, 1.442695
  %v1968 = vpow.pop %v1967
  %v1969 = vsel %vm320, %v1966, 0.0
  %1970 = vadd.xlane.f32.xlu0 %v1969
  %v1971 = vpop.xlane.xlu0 %1970
  %v1972 = vsel %vm324, %v1968, 0.0
  %1973 = vadd.xlane.f32.xlu0 %v1972
  %v1974 = vpop.xlane.xlu0 %1973
  %v1975 = vrcp.pop %v1971
  %v1976 = vmul.f32 %v1971, %v1975
  %v1977 = vsub.f32 1.0, %v1976
  %v1978 = vmul.f32 %v1975, %v1977
  %v1979 = vadd.f32 %v1975, %v1978
  %vm1980 = vweird.f32 %v1971
  %vm1981 = vweird.f32 %v1975
  %vm1982 = vmor %vm1980, %vm1981
  %v1983 = vsel %vm1982, %v1975, %v1979
  %v1984 = vand.u32 2147483647, %v1971
  %vm1985 = vcmp.eq.f32.partialorder %v1984, 8.507059e+37
  %v1986 = vand.u32 %v1971, 2147483648
  %v1987 = vor.u32 1.1754944e-38, %v1986
  %v1988 = vsel %vm1985, %v1987, %v1983
  %v1989 = vmul.f32 %v1966, %v1988
  %v1990 = vrcp.pop %v1974
  %v1991 = vmul.f32 %v1974, %v1990
  %v1992 = vsub.f32 1.0, %v1991
  %v1993 = vmul.f32 %v1990, %v1992
  %v1994 = vadd.f32 %v1990, %v1993
  %vm1995 = vweird.f32 %v1974
  %vm1996 = vweird.f32 %v1990
  %vm1997 = vmor %vm1995, %vm1996
  %v1998 = vsel %vm1997, %v1990, %v1994
  %v1999 = vand.u32 2147483647, %v1974
  %vm2000 = vcmp.eq.f32.partialorder %v1999, 8.507059e+37
  %v2001 = vand.u32 %v1974, 2147483648
  %v2002 = vor.u32 1.1754944e-38, %v2001
  %v2003 = vsel %vm2000, %v2002, %v1998
  %v2004 = vmul.f32 %v1968, %v2003
  %v2007 = vrot.slane %v1904, 4
  %v2008 = vrot.slane %v1905, 4
  %v2009 = vsel %vm376, %v2007, %v2008
  %2010 = vrot.lane.b32.xlu0 %v2009, 104
  %v2011 = vpop.permute.xlu0 %2010
  %2012 = vrot.lane.b32.xlu0 %v2008, 104
  %v2013 = vpop.permute.xlu0 %2012
  %v2016 = vsel %vm320, %v1989, 0
  %v2019 = vsel %vm320, %v2004, 0
  %v2021 = vsel %vm376, %v2013, 0
  %2023 = vmatpush.msra.mxu0 0.0
  %2024 = vmatpush.msra.mxu0 0.0
  %2025 = vmatpush.msra.mxu0 0.0
  %2026 = vmatpush.msra.mxu0 0.0
  %2027 = vmatpush.msra.mxu0 0.0
  %2028 = vmatpush.msra.mxu0 0.0
  %2029 = vmatpush.msra.mxu0 0.0
  %2030 = vmatpush.msra.mxu0 0.0
  %2031 = vmatpush.msra.mxu0 0.0
  %2032 = vmatpush.msra.mxu0 0.0
  %2033 = vmatpush.msra.mxu0 0.0
  %2034 = vmatpush.msra.mxu0 0.0
  %2035 = vmatpush.msra.mxu0 0.0
  %2036 = vmatpush.msra.mxu0 0.0
  %2037 = vmatpush.msra.mxu0 %v2021
  %2038 = vmatpush.msra.mxu0 %v2011
  %2039 = vmatmul.f32.gmra.mxu0 %v2016
  %v2040 = vpop.f32.mrf.mxu0
  %v2041 = vadd.f32 0.0, %v2040
  %2042 = vmatmul.f32.gmra.mxu0 %v2019
  %v2043 = vpop.f32.mrf.mxu0
  %v2044 = vadd.f32 0.0, %v2043
  %2045 = vdwg.mxu0
  %2048 = vrot.lane.b32.xlu0 %v2041, 24
  %v2049 = vpop.permute.xlu0 %2048
  %2050 = vrot.lane.b32.xlu0 %v2044, 24
  %v2051 = vpop.permute.xlu0 %2050
  %2054 = vst.msk [vmem:[#allocation3 + $0xc] sm:$0xff] %vm852, %v2049
  %2055 = vst.msk [vmem:[#allocation3 + $0x14] sm:$0xf] %vm854, %v2051
  %v2056 = vld [vmem:[#allocation2 + $0x10] sm:$0xf0]
  %v2057 = vld [vmem:[#allocation2 + $0x20] sm:$0xff]
  %v2058 = vld [vmem:[#allocation2 + $0x18] sm:$0xf0]
  %v2059 = vld [vmem:[#allocation2 + $0x28] sm:$0xff]
  %v2062 = vrot.slane %v2056, 4
  %v2063 = vrot.slane %v2057, 4
  %v2064 = vsel %vm376, %v2062, %v2063
  %2065 = vrot.lane.b32.xlu0 %v2064, 96
  %v2066 = vpop.permute.xlu0 %2065
  %2067 = vrot.lane.b32.xlu0 %v2063, 96
  %v2068 = vpop.permute.xlu0 %2067
  %2069 = vrot.lane.b32.xlu0 %v2064, 32
  %v2070 = vpop.permute.xlu0 %2069
  %2071 = vrot.lane.b32.xlu0 %v2063, 32
  %v2072 = vpop.permute.xlu0 %2071
  %v2073 = vsel %vm282, %v2066, 0
  %v2075 = vsel %vm282, %v2068, 0
  %v2077 = vsel %vm282, %v2070, 0
  %v2079 = vsel %vm282, %v2072, 0
  %2081 = vmatpush.xpose.msra.mxu0 0.0
  %2082 = vmatpush.xpose.msra.mxu0 0.0
  %2083 = vmatpush.xpose.msra.mxu0 0.0
  %2084 = vmatpush.xpose.msra.mxu0 0.0
  %2085 = vmatpush.xpose.msra.mxu0 0.0
  %2086 = vmatpush.xpose.msra.mxu0 0.0
  %2087 = vmatpush.xpose.msra.mxu0 0.0
  %2088 = vmatpush.xpose.msra.mxu0 0.0
  %2089 = vmatpush.xpose.msra.mxu0 0.0
  %2090 = vmatpush.xpose.msra.mxu0 0.0
  %2091 = vmatpush.xpose.msra.mxu0 0.0
  %2092 = vmatpush.xpose.msra.mxu0 0.0
  %2093 = vmatpush.xpose.msra.mxu0 0.0
  %2094 = vmatpush.xpose.msra.mxu0 0.0
  %2095 = vmatpush.xpose.msra.mxu0 %v2079
  %2096 = vmatpush.xpose.msra.mxu0 %v2077
  %2097 = vmatmul.f32.gmra.mxu0 %v2073
  %v2098 = vpop.f32.mrf.mxu0
  %v2099 = vadd.f32 0.0, %v2098
  %2100 = vmatmul.f32.gmra.mxu0 %v2075
  %v2101 = vpop.f32.mrf.mxu0
  %v2102 = vadd.f32 0.0, %v2101
  %2103 = vdwg.mxu0
  %v2104 = vmul.f32 %v2099, 0.35355338
  %v2105 = vmul.f32 %v2102, 0.35355338
  %s2106 = scalar_lea.vmem %s1, 192
  %v2107 = vld [vmem:[%s2106] sm:$0xff]
  %v2108 = vld [vmem:[%s2106 + $0x8] sm:$0xf]
  %v2109 = vadd.f32 %v2104, %v2107
  %v2110 = vadd.f32 %v2105, %v2108
  %v2111 = vsel %vm320, %v2109, -inf
  %2112 = vmax.xlane.f32.xlu0 %v2111
  %v2113 = vpop.xlane.xlu0 %2112
  %v2114 = vsel %vm324, %v2110, -inf
  %2115 = vmax.xlane.f32.xlu0 %v2114
  %v2116 = vpop.xlane.xlu0 %2115
  %v2117 = vsub.f32 %v2109, %v2113
  %v2118 = vsub.f32 %v2110, %v2116
  %v2119 = vmul.f32 %v2117, 1.442695
  %v2120 = vpow.pop %v2119
  %v2121 = vmul.f32 %v2118, 1.442695
  %v2122 = vpow.pop %v2121
  %v2123 = vsel %vm320, %v2120, 0.0
  %2124 = vadd.xlane.f32.xlu0 %v2123
  %v2125 = vpop.xlane.xlu0 %2124
  %v2126 = vsel %vm324, %v2122, 0.0
  %2127 = vadd.xlane.f32.xlu0 %v2126
  %v2128 = vpop.xlane.xlu0 %2127
  %v2129 = vrcp.pop %v2125
  %v2130 = vmul.f32 %v2125, %v2129
  %v2131 = vsub.f32 1.0, %v2130
  %v2132 = vmul.f32 %v2129, %v2131
  %v2133 = vadd.f32 %v2129, %v2132
  %vm2134 = vweird.f32 %v2125
  %vm2135 = vweird.f32 %v2129
  %vm2136 = vmor %vm2134, %vm2135
  %v2137 = vsel %vm2136, %v2129, %v2133
  %v2138 = vand.u32 2147483647, %v2125
  %vm2139 = vcmp.eq.f32.partialorder %v2138, 8.507059e+37
  %v2140 = vand.u32 %v2125, 2147483648
  %v2141 = vor.u32 1.1754944e-38, %v2140
  %v2142 = vsel %vm2139, %v2141, %v2137
  %v2143 = vmul.f32 %v2120, %v2142
  %v2144 = vrcp.pop %v2128
  %v2145 = vmul.f32 %v2128, %v2144
  %v2146 = vsub.f32 1.0, %v2145
  %v2147 = vmul.f32 %v2144, %v2146
  %v2148 = vadd.f32 %v2144, %v2147
  %vm2149 = vweird.f32 %v2128
  %vm2150 = vweird.f32 %v2144
  %vm2151 = vmor %vm2149, %vm2150
  %v2152 = vsel %vm2151, %v2144, %v2148
  %v2153 = vand.u32 2147483647, %v2128
  %vm2154 = vcmp.eq.f32.partialorder %v2153, 8.507059e+37
  %v2155 = vand.u32 %v2128, 2147483648
  %v2156 = vor.u32 1.1754944e-38, %v2155
  %v2157 = vsel %vm2154, %v2156, %v2152
  %v2158 = vmul.f32 %v2122, %v2157
  %v2161 = vrot.slane %v2058, 4
  %v2162 = vrot.slane %v2059, 4
  %v2163 = vsel %vm376, %v2161, %v2162
  %2164 = vrot.lane.b32.xlu0 %v2163, 96
  %v2165 = vpop.permute.xlu0 %2164
  %2166 = vrot.lane.b32.xlu0 %v2162, 96
  %v2167 = vpop.permute.xlu0 %2166
  %v2170 = vsel %vm320, %v2143, 0
  %v2173 = vsel %vm320, %v2158, 0
  %v2175 = vsel %vm376, %v2167, 0
  %2177 = vmatpush.msra.mxu0 0.0
  %2178 = vmatpush.msra.mxu0 0.0
  %2179 = vmatpush.msra.mxu0 0.0
  %2180 = vmatpush.msra.mxu0 0.0
  %2181 = vmatpush.msra.mxu0 0.0
  %2182 = vmatpush.msra.mxu0 0.0
  %2183 = vmatpush.msra.mxu0 0.0
  %2184 = vmatpush.msra.mxu0 0.0
  %2185 = vmatpush.msra.mxu0 0.0
  %2186 = vmatpush.msra.mxu0 0.0
  %2187 = vmatpush.msra.mxu0 0.0
  %2188 = vmatpush.msra.mxu0 0.0
  %2189 = vmatpush.msra.mxu0 0.0
  %2190 = vmatpush.msra.mxu0 0.0
  %2191 = vmatpush.msra.mxu0 %v2175
  %2192 = vmatpush.msra.mxu0 %v2165
  %2193 = vmatmul.f32.gmra.mxu0 %v2170
  %v2194 = vpop.f32.mrf.mxu0
  %v2195 = vadd.f32 0.0, %v2194
  %2196 = vmatmul.f32.gmra.mxu0 %v2173
  %v2197 = vpop.f32.mrf.mxu0
  %v2198 = vadd.f32 0.0, %v2197
  %2199 = vdwg.mxu0
  %2202 = vrot.lane.b32.xlu0 %v2195, 32
  %v2203 = vpop.permute.xlu0 %2202
  %2204 = vrot.lane.b32.xlu0 %v2198, 32
  %v2205 = vpop.permute.xlu0 %2204
  %2208 = vst.msk [vmem:[#allocation3 + $0xc] sm:$0xff] %vm1002, %v2203
  %2209 = vst.msk [vmem:[#allocation3 + $0x14] sm:$0xf] %vm1004, %v2205
  %v2210 = vld [vmem:[#allocation2 + $0x10] sm:$0xf0]
  %v2211 = vld [vmem:[#allocation2 + $0x20] sm:$0xff]
  %v2212 = vld [vmem:[#allocation2 + $0x18] sm:$0xf0]
  %v2213 = vld [vmem:[#allocation2 + $0x28] sm:$0xff]
  %v2216 = vrot.slane %v2210, 4
  %v2217 = vrot.slane %v2211, 4
  %v2218 = vsel %vm376, %v2216, %v2217
  %2219 = vrot.lane.b32.xlu0 %v2218, 88
  %v2220 = vpop.permute.xlu0 %2219
  %2221 = vrot.lane.b32.xlu0 %v2217, 88
  %v2222 = vpop.permute.xlu0 %2221
  %2223 = vrot.lane.b32.xlu0 %v2218, 24
  %v2224 = vpop.permute.xlu0 %2223
  %2225 = vrot.lane.b32.xlu0 %v2217, 24
  %v2226 = vpop.permute.xlu0 %2225
  %v2227 = vsel %vm282, %v2220, 0
  %v2229 = vsel %vm282, %v2222, 0
  %v2231 = vsel %vm282, %v2224, 0
  %v2233 = vsel %vm282, %v2226, 0
  %2235 = vmatpush.xpose.msra.mxu0 0.0
  %2236 = vmatpush.xpose.msra.mxu0 0.0
  %2237 = vmatpush.xpose.msra.mxu0 0.0
  %2238 = vmatpush.xpose.msra.mxu0 0.0
  %2239 = vmatpush.xpose.msra.mxu0 0.0
  %2240 = vmatpush.xpose.msra.mxu0 0.0
  %2241 = vmatpush.xpose.msra.mxu0 0.0
  %2242 = vmatpush.xpose.msra.mxu0 0.0
  %2243 = vmatpush.xpose.msra.mxu0 0.0
  %2244 = vmatpush.xpose.msra.mxu0 0.0
  %2245 = vmatpush.xpose.msra.mxu0 0.0
  %2246 = vmatpush.xpose.msra.mxu0 0.0
  %2247 = vmatpush.xpose.msra.mxu0 0.0
  %2248 = vmatpush.xpose.msra.mxu0 0.0
  %2249 = vmatpush.xpose.msra.mxu0 %v2233
  %2250 = vmatpush.xpose.msra.mxu0 %v2231
  %2251 = vmatmul.f32.gmra.mxu0 %v2227
  %v2252 = vpop.f32.mrf.mxu0
  %v2253 = vadd.f32 0.0, %v2252
  %2254 = vmatmul.f32.gmra.mxu0 %v2229
  %v2255 = vpop.f32.mrf.mxu0
  %v2256 = vadd.f32 0.0, %v2255
  %2257 = vdwg.mxu0
  %v2258 = vmul.f32 %v2253, 0.35355338
  %v2259 = vmul.f32 %v2256, 0.35355338
  %s2260 = scalar_lea.vmem %s1, 208
  %v2261 = vld [vmem:[%s2260] sm:$0xff]
  %v2262 = vld [vmem:[%s2260 + $0x8] sm:$0xf]
  %v2263 = vadd.f32 %v2258, %v2261
  %v2264 = vadd.f32 %v2259, %v2262
  %v2265 = vsel %vm320, %v2263, -inf
  %2266 = vmax.xlane.f32.xlu0 %v2265
  %v2267 = vpop.xlane.xlu0 %2266
  %v2268 = vsel %vm324, %v2264, -inf
  %2269 = vmax.xlane.f32.xlu0 %v2268
  %v2270 = vpop.xlane.xlu0 %2269
  %v2271 = vsub.f32 %v2263, %v2267
  %v2272 = vsub.f32 %v2264, %v2270
  %v2273 = vmul.f32 %v2271, 1.442695
  %v2274 = vpow.pop %v2273
  %v2275 = vmul.f32 %v2272, 1.442695
  %v2276 = vpow.pop %v2275
  %v2277 = vsel %vm320, %v2274, 0.0
  %2278 = vadd.xlane.f32.xlu0 %v2277
  %v2279 = vpop.xlane.xlu0 %2278
  %v2280 = vsel %vm324, %v2276, 0.0
  %2281 = vadd.xlane.f32.xlu0 %v2280
  %v2282 = vpop.xlane.xlu0 %2281
  %v2283 = vrcp.pop %v2279
  %v2284 = vmul.f32 %v2279, %v2283
  %v2285 = vsub.f32 1.0, %v2284
  %v2286 = vmul.f32 %v2283, %v2285
  %v2287 = vadd.f32 %v2283, %v2286
  %vm2288 = vweird.f32 %v2279
  %vm2289 = vweird.f32 %v2283
  %vm2290 = vmor %vm2288, %vm2289
  %v2291 = vsel %vm2290, %v2283, %v2287
  %v2292 = vand.u32 2147483647, %v2279
  %vm2293 = vcmp.eq.f32.partialorder %v2292, 8.507059e+37
  %v2294 = vand.u32 %v2279, 2147483648
  %v2295 = vor.u32 1.1754944e-38, %v2294
  %v2296 = vsel %vm2293, %v2295, %v2291
  %v2297 = vmul.f32 %v2274, %v2296
  %v2298 = vrcp.pop %v2282
  %v2299 = vmul.f32 %v2282, %v2298
  %v2300 = vsub.f32 1.0, %v2299
  %v2301 = vmul.f32 %v2298, %v2300
  %v2302 = vadd.f32 %v2298, %v2301
  %vm2303 = vweird.f32 %v2282
  %vm2304 = vweird.f32 %v2298
  %vm2305 = vmor %vm2303, %vm2304
  %v2306 = vsel %vm2305, %v2298, %v2302
  %v2307 = vand.u32 2147483647, %v2282
  %vm2308 = vcmp.eq.f32.partialorder %v2307, 8.507059e+37
  %v2309 = vand.u32 %v2282, 2147483648
  %v2310 = vor.u32 1.1754944e-38, %v2309
  %v2311 = vsel %vm2308, %v2310, %v2306
  %v2312 = vmul.f32 %v2276, %v2311
  %v2315 = vrot.slane %v2212, 4
  %v2316 = vrot.slane %v2213, 4
  %v2317 = vsel %vm376, %v2315, %v2316
  %2318 = vrot.lane.b32.xlu0 %v2317, 88
  %v2319 = vpop.permute.xlu0 %2318
  %2320 = vrot.lane.b32.xlu0 %v2316, 88
  %v2321 = vpop.permute.xlu0 %2320
  %v2324 = vsel %vm320, %v2297, 0
  %v2327 = vsel %vm320, %v2312, 0
  %v2329 = vsel %vm376, %v2321, 0
  %2331 = vmatpush.msra.mxu0 0.0
  %2332 = vmatpush.msra.mxu0 0.0
  %2333 = vmatpush.msra.mxu0 0.0
  %2334 = vmatpush.msra.mxu0 0.0
  %2335 = vmatpush.msra.mxu0 0.0
  %2336 = vmatpush.msra.mxu0 0.0
  %2337 = vmatpush.msra.mxu0 0.0
  %2338 = vmatpush.msra.mxu0 0.0
  %2339 = vmatpush.msra.mxu0 0.0
  %2340 = vmatpush.msra.mxu0 0.0
  %2341 = vmatpush.msra.mxu0 0.0
  %2342 = vmatpush.msra.mxu0 0.0
  %2343 = vmatpush.msra.mxu0 0.0
  %2344 = vmatpush.msra.mxu0 0.0
  %2345 = vmatpush.msra.mxu0 %v2329
  %2346 = vmatpush.msra.mxu0 %v2319
  %2347 = vmatmul.f32.gmra.mxu0 %v2324
  %v2348 = vpop.f32.mrf.mxu0
  %v2349 = vadd.f32 0.0, %v2348
  %2350 = vmatmul.f32.gmra.mxu0 %v2327
  %v2351 = vpop.f32.mrf.mxu0
  %v2352 = vadd.f32 0.0, %v2351
  %2353 = vdwg.mxu0
  %2356 = vrot.lane.b32.xlu0 %v2349, 40
  %v2357 = vpop.permute.xlu0 %2356
  %2358 = vrot.lane.b32.xlu0 %v2352, 40
  %v2359 = vpop.permute.xlu0 %2358
  %2362 = vst.msk [vmem:[#allocation3 + $0xc] sm:$0xff] %vm1152, %v2357
  %2363 = vst.msk [vmem:[#allocation3 + $0x14] sm:$0xf] %vm1154, %v2359
  %v2364 = vld [vmem:[#allocation2 + $0x10] sm:$0xf0]
  %v2365 = vld [vmem:[#allocation2 + $0x20] sm:$0xff]
  %v2366 = vld [vmem:[#allocation2 + $0x18] sm:$0xf0]
  %v2367 = vld [vmem:[#allocation2 + $0x28] sm:$0xff]
  %v2370 = vrot.slane %v2364, 4
  %v2371 = vrot.slane %v2365, 4
  %v2372 = vsel %vm376, %v2370, %v2371
  %2373 = vrot.lane.b32.xlu0 %v2372, 80
  %v2374 = vpop.permute.xlu0 %2373
  %2375 = vrot.lane.b32.xlu0 %v2371, 80
  %v2376 = vpop.permute.xlu0 %2375
  %2377 = vrot.lane.b32.xlu0 %v2372, 16
  %v2378 = vpop.permute.xlu0 %2377
  %2379 = vrot.lane.b32.xlu0 %v2371, 16
  %v2380 = vpop.permute.xlu0 %2379
  %v2381 = vsel %vm282, %v2374, 0
  %v2383 = vsel %vm282, %v2376, 0
  %v2385 = vsel %vm282, %v2378, 0
  %v2387 = vsel %vm282, %v2380, 0
  %2389 = vmatpush.xpose.msra.mxu0 0.0
  %2390 = vmatpush.xpose.msra.mxu0 0.0
  %2391 = vmatpush.xpose.msra.mxu0 0.0
  %2392 = vmatpush.xpose.msra.mxu0 0.0
  %2393 = vmatpush.xpose.msra.mxu0 0.0
  %2394 = vmatpush.xpose.msra.mxu0 0.0
  %2395 = vmatpush.xpose.msra.mxu0 0.0
  %2396 = vmatpush.xpose.msra.mxu0 0.0
  %2397 = vmatpush.xpose.msra.mxu0 0.0
  %2398 = vmatpush.xpose.msra.mxu0 0.0
  %2399 = vmatpush.xpose.msra.mxu0 0.0
  %2400 = vmatpush.xpose.msra.mxu0 0.0
  %2401 = vmatpush.xpose.msra.mxu0 0.0
  %2402 = vmatpush.xpose.msra.mxu0 0.0
  %2403 = vmatpush.xpose.msra.mxu0 %v2387
  %2404 = vmatpush.xpose.msra.mxu0 %v2385
  %2405 = vmatmul.f32.gmra.mxu0 %v2381
  %v2406 = vpop.f32.mrf.mxu0
  %v2407 = vadd.f32 0.0, %v2406
  %2408 = vmatmul.f32.gmra.mxu0 %v2383
  %v2409 = vpop.f32.mrf.mxu0
  %v2410 = vadd.f32 0.0, %v2409
  %2411 = vdwg.mxu0
  %v2412 = vmul.f32 %v2407, 0.35355338
  %v2413 = vmul.f32 %v2410, 0.35355338
  %s2414 = scalar_lea.vmem %s1, 224
  %v2415 = vld [vmem:[%s2414] sm:$0xff]
  %v2416 = vld [vmem:[%s2414 + $0x8] sm:$0xf]
  %v2417 = vadd.f32 %v2412, %v2415
  %v2418 = vadd.f32 %v2413, %v2416
  %v2419 = vsel %vm320, %v2417, -inf
  %2420 = vmax.xlane.f32.xlu0 %v2419
  %v2421 = vpop.xlane.xlu0 %2420
  %v2422 = vsel %vm324, %v2418, -inf
  %2423 = vmax.xlane.f32.xlu0 %v2422
  %v2424 = vpop.xlane.xlu0 %2423
  %v2425 = vsub.f32 %v2417, %v2421
  %v2426 = vsub.f32 %v2418, %v2424
  %v2427 = vmul.f32 %v2425, 1.442695
  %v2428 = vpow.pop %v2427
  %v2429 = vmul.f32 %v2426, 1.442695
  %v2430 = vpow.pop %v2429
  %v2431 = vsel %vm320, %v2428, 0.0
  %2432 = vadd.xlane.f32.xlu0 %v2431
  %v2433 = vpop.xlane.xlu0 %2432
  %v2434 = vsel %vm324, %v2430, 0.0
  %2435 = vadd.xlane.f32.xlu0 %v2434
  %v2436 = vpop.xlane.xlu0 %2435
  %v2437 = vrcp.pop %v2433
  %v2438 = vmul.f32 %v2433, %v2437
  %v2439 = vsub.f32 1.0, %v2438
  %v2440 = vmul.f32 %v2437, %v2439
  %v2441 = vadd.f32 %v2437, %v2440
  %vm2442 = vweird.f32 %v2433
  %vm2443 = vweird.f32 %v2437
  %vm2444 = vmor %vm2442, %vm2443
  %v2445 = vsel %vm2444, %v2437, %v2441
  %v2446 = vand.u32 2147483647, %v2433
  %vm2447 = vcmp.eq.f32.partialorder %v2446, 8.507059e+37
  %v2448 = vand.u32 %v2433, 2147483648
  %v2449 = vor.u32 1.1754944e-38, %v2448
  %v2450 = vsel %vm2447, %v2449, %v2445
  %v2451 = vmul.f32 %v2428, %v2450
  %v2452 = vrcp.pop %v2436
  %v2453 = vmul.f32 %v2436, %v2452
  %v2454 = vsub.f32 1.0, %v2453
  %v2455 = vmul.f32 %v2452, %v2454
  %v2456 = vadd.f32 %v2452, %v2455
  %vm2457 = vweird.f32 %v2436
  %vm2458 = vweird.f32 %v2452
  %vm2459 = vmor %vm2457, %vm2458
  %v2460 = vsel %vm2459, %v2452, %v2456
  %v2461 = vand.u32 2147483647, %v2436
  %vm2462 = vcmp.eq.f32.partialorder %v2461, 8.507059e+37
  %v2463 = vand.u32 %v2436, 2147483648
  %v2464 = vor.u32 1.1754944e-38, %v2463
  %v2465 = vsel %vm2462, %v2464, %v2460
  %v2466 = vmul.f32 %v2430, %v2465
  %v2469 = vrot.slane %v2366, 4
  %v2470 = vrot.slane %v2367, 4
  %v2471 = vsel %vm376, %v2469, %v2470
  %2472 = vrot.lane.b32.xlu0 %v2471, 80
  %v2473 = vpop.permute.xlu0 %2472
  %2474 = vrot.lane.b32.xlu0 %v2470, 80
  %v2475 = vpop.permute.xlu0 %2474
  %v2478 = vsel %vm320, %v2451, 0
  %v2481 = vsel %vm320, %v2466, 0
  %v2483 = vsel %vm376, %v2475, 0
  %2485 = vmatpush.msra.mxu0 0.0
  %2486 = vmatpush.msra.mxu0 0.0
  %2487 = vmatpush.msra.mxu0 0.0
  %2488 = vmatpush.msra.mxu0 0.0
  %2489 = vmatpush.msra.mxu0 0.0
  %2490 = vmatpush.msra.mxu0 0.0
  %2491 = vmatpush.msra.mxu0 0.0
  %2492 = vmatpush.msra.mxu0 0.0
  %2493 = vmatpush.msra.mxu0 0.0
  %2494 = vmatpush.msra.mxu0 0.0
  %2495 = vmatpush.msra.mxu0 0.0
  %2496 = vmatpush.msra.mxu0 0.0
  %2497 = vmatpush.msra.mxu0 0.0
  %2498 = vmatpush.msra.mxu0 0.0
  %2499 = vmatpush.msra.mxu0 %v2483
  %2500 = vmatpush.msra.mxu0 %v2473
  %2501 = vmatmul.f32.gmra.mxu0 %v2478
  %v2502 = vpop.f32.mrf.mxu0
  %v2503 = vadd.f32 0.0, %v2502
  %2504 = vmatmul.f32.gmra.mxu0 %v2481
  %v2505 = vpop.f32.mrf.mxu0
  %v2506 = vadd.f32 0.0, %v2505
  %2507 = vdwg.mxu0
  %2510 = vrot.lane.b32.xlu0 %v2503, 48
  %v2511 = vpop.permute.xlu0 %2510
  %2512 = vrot.lane.b32.xlu0 %v2506, 48
  %v2513 = vpop.permute.xlu0 %2512
  %2516 = vst.msk [vmem:[#allocation3 + $0xc] sm:$0xff] %vm1302, %v2511
  %2517 = vst.msk [vmem:[#allocation3 + $0x14] sm:$0xf] %vm1304, %v2513
  %v2518 = vld [vmem:[#allocation2 + $0x10] sm:$0xf0]
  %v2519 = vld [vmem:[#allocation2 + $0x20] sm:$0xff]
  %v2520 = vld [vmem:[#allocation2 + $0x18] sm:$0xf0]
  %v2521 = vld [vmem:[#allocation2 + $0x28] sm:$0xff]
  %v2524 = vrot.slane %v2518, 4
  %v2525 = vrot.slane %v2519, 4
  %v2526 = vsel %vm376, %v2524, %v2525
  %2527 = vrot.lane.b32.xlu0 %v2526, 72
  %v2528 = vpop.permute.xlu0 %2527
  %2529 = vrot.lane.b32.xlu0 %v2525, 72
  %v2530 = vpop.permute.xlu0 %2529
  %2531 = vrot.lane.b32.xlu0 %v2526, 8
  %v2532 = vpop.permute.xlu0 %2531
  %2533 = vrot.lane.b32.xlu0 %v2525, 8
  %v2534 = vpop.permute.xlu0 %2533
  %v2535 = vsel %vm282, %v2528, 0
  %v2537 = vsel %vm282, %v2530, 0
  %v2539 = vsel %vm282, %v2532, 0
  %v2541 = vsel %vm282, %v2534, 0
  %2543 = vmatpush.xpose.msra.mxu0 0.0
  %2544 = vmatpush.xpose.msra.mxu0 0.0
  %2545 = vmatpush.xpose.msra.mxu0 0.0
  %2546 = vmatpush.xpose.msra.mxu0 0.0
  %2547 = vmatpush.xpose.msra.mxu0 0.0
  %2548 = vmatpush.xpose.msra.mxu0 0.0
  %2549 = vmatpush.xpose.msra.mxu0 0.0
  %2550 = vmatpush.xpose.msra.mxu0 0.0
  %2551 = vmatpush.xpose.msra.mxu0 0.0
  %2552 = vmatpush.xpose.msra.mxu0 0.0
  %2553 = vmatpush.xpose.msra.mxu0 0.0
  %2554 = vmatpush.xpose.msra.mxu0 0.0
  %2555 = vmatpush.xpose.msra.mxu0 0.0
  %2556 = vmatpush.xpose.msra.mxu0 0.0
  %2557 = vmatpush.xpose.msra.mxu0 %v2541
  %2558 = vmatpush.xpose.msra.mxu0 %v2539
  %2559 = vmatmul.f32.gmra.mxu0 %v2535
  %v2560 = vpop.f32.mrf.mxu0
  %v2561 = vadd.f32 0.0, %v2560
  %2562 = vmatmul.f32.gmra.mxu0 %v2537
  %v2563 = vpop.f32.mrf.mxu0
  %v2564 = vadd.f32 0.0, %v2563
  %2565 = vdwg.mxu0
  %v2566 = vmul.f32 %v2561, 0.35355338
  %v2567 = vmul.f32 %v2564, 0.35355338
  %s2568 = scalar_lea.vmem %s1, 240
  %v2569 = vld [vmem:[%s2568] sm:$0xff]
  %v2570 = vld [vmem:[%s2568 + $0x8] sm:$0xf]
  %v2571 = vadd.f32 %v2566, %v2569
  %v2572 = vadd.f32 %v2567, %v2570
  %v2573 = vsel %vm320, %v2571, -inf
  %2574 = vmax.xlane.f32.xlu0 %v2573
  %v2575 = vpop.xlane.xlu0 %2574
  %v2576 = vsel %vm324, %v2572, -inf
  %2577 = vmax.xlane.f32.xlu0 %v2576
  %v2578 = vpop.xlane.xlu0 %2577
  %v2579 = vsub.f32 %v2571, %v2575
  %v2580 = vsub.f32 %v2572, %v2578
  %v2581 = vmul.f32 %v2579, 1.442695
  %v2582 = vpow.pop %v2581
  %v2583 = vmul.f32 %v2580, 1.442695
  %v2584 = vpow.pop %v2583
  %v2585 = vsel %vm320, %v2582, 0.0
  %2586 = vadd.xlane.f32.xlu0 %v2585
  %v2587 = vpop.xlane.xlu0 %2586
  %v2588 = vsel %vm324, %v2584, 0.0
  %2589 = vadd.xlane.f32.xlu0 %v2588
  %v2590 = vpop.xlane.xlu0 %2589
  %v2591 = vrcp.pop %v2587
  %v2592 = vmul.f32 %v2587, %v2591
  %v2593 = vsub.f32 1.0, %v2592
  %v2594 = vmul.f32 %v2591, %v2593
  %v2595 = vadd.f32 %v2591, %v2594
  %vm2596 = vweird.f32 %v2587
  %vm2597 = vweird.f32 %v2591
  %vm2598 = vmor %vm2596, %vm2597
  %v2599 = vsel %vm2598, %v2591, %v2595
  %v2600 = vand.u32 2147483647, %v2587
  %vm2601 = vcmp.eq.f32.partialorder %v2600, 8.507059e+37
  %v2602 = vand.u32 %v2587, 2147483648
  %v2603 = vor.u32 1.1754944e-38, %v2602
  %v2604 = vsel %vm2601, %v2603, %v2599
  %v2605 = vmul.f32 %v2582, %v2604
  %v2606 = vrcp.pop %v2590
  %v2607 = vmul.f32 %v2590, %v2606
  %v2608 = vsub.f32 1.0, %v2607
  %v2609 = vmul.f32 %v2606, %v2608
  %v2610 = vadd.f32 %v2606, %v2609
  %vm2611 = vweird.f32 %v2590
  %vm2612 = vweird.f32 %v2606
  %vm2613 = vmor %vm2611, %vm2612
  %v2614 = vsel %vm2613, %v2606, %v2610
  %v2615 = vand.u32 2147483647, %v2590
  %vm2616 = vcmp.eq.f32.partialorder %v2615, 8.507059e+37
  %v2617 = vand.u32 %v2590, 2147483648
  %v2618 = vor.u32 1.1754944e-38, %v2617
  %v2619 = vsel %vm2616, %v2618, %v2614
  %v2620 = vmul.f32 %v2584, %v2619
  %v2623 = vrot.slane %v2520, 4
  %v2624 = vrot.slane %v2521, 4
  %v2625 = vsel %vm376, %v2623, %v2624
  %2626 = vrot.lane.b32.xlu0 %v2625, 72
  %v2627 = vpop.permute.xlu0 %2626
  %2628 = vrot.lane.b32.xlu0 %v2624, 72
  %v2629 = vpop.permute.xlu0 %2628
  %v2632 = vsel %vm320, %v2605, 0
  %v2635 = vsel %vm320, %v2620, 0
  %v2637 = vsel %vm376, %v2629, 0
  %2639 = vmatpush.msra.mxu0 0.0
  %2640 = vmatpush.msra.mxu0 0.0
  %2641 = vmatpush.msra.mxu0 0.0
  %2642 = vmatpush.msra.mxu0 0.0
  %2643 = vmatpush.msra.mxu0 0.0
  %2644 = vmatpush.msra.mxu0 0.0
  %2645 = vmatpush.msra.mxu0 0.0
  %2646 = vmatpush.msra.mxu0 0.0
  %2647 = vmatpush.msra.mxu0 0.0
  %2648 = vmatpush.msra.mxu0 0.0
  %2649 = vmatpush.msra.mxu0 0.0
  %2650 = vmatpush.msra.mxu0 0.0
  %2651 = vmatpush.msra.mxu0 0.0
  %2652 = vmatpush.msra.mxu0 0.0
  %2653 = vmatpush.msra.mxu0 %v2637
  %2654 = vmatpush.msra.mxu0 %v2627
  %2655 = vmatmul.f32.gmra.mxu0 %v2632
  %v2656 = vpop.f32.mrf.mxu0
  %v2657 = vadd.f32 0.0, %v2656
  %2658 = vmatmul.f32.gmra.mxu0 %v2635
  %v2659 = vpop.f32.mrf.mxu0
  %v2660 = vadd.f32 0.0, %v2659
  %2661 = vdwg.mxu0
  %2664 = vrot.lane.b32.xlu0 %v2657, 56
  %v2665 = vpop.permute.xlu0 %2664
  %2666 = vrot.lane.b32.xlu0 %v2660, 56
  %v2667 = vpop.permute.xlu0 %2666
  %2670 = vst.msk [vmem:[#allocation3 + $0xc] sm:$0xff] %vm1452, %v2665
  %2671 = vst.msk [vmem:[#allocation3 + $0x14] sm:$0xf] %vm1454, %v2667
  %v2672 = vld [vmem:[#allocation3] sm:$0xff]
  %v2673 = vld [vmem:[#allocation3 + $0x8] sm:$0xff]
  %v2674 = vld [vmem:[#allocation3 + $0x10] sm:$0xff]
  %v2675 = vld [vmem:[%s5] sm:$0xff]
  %v2676 = vld [vmem:[%s5 + $0x8] sm:$0xff]
  %v2677 = vld [vmem:[%s5 + $0x10] sm:$0xff]
  %v2678 = vld [vmem:[%s5 + $0x18] sm:$0xff]
  %v2679 = vld [vmem:[%s5 + $0x20] sm:$0xff]
  %v2680 = vld [vmem:[%s5 + $0x28] sm:$0xff]
  %v2681 = vld [vmem:[%s5 + $0x30] sm:$0xff]
  %v2682 = vld [vmem:[%s5 + $0x38] sm:$0xff]
  %v2684 = vsel %vm55, %v2672, 0
  %v2687 = vsel %vm55, %v2673, 0
  %v2690 = vsel %vm55, %v2674, 0
  %2692 = vmatpush.msra.mxu0 0.0
  %2693 = vmatpush.msra.mxu0 0.0
  %2694 = vmatpush.msra.mxu0 0.0
  %2695 = vmatpush.msra.mxu0 0.0
  %2696 = vmatpush.msra.mxu0 0.0
  %2697 = vmatpush.msra.mxu0 0.0
  %2698 = vmatpush.msra.mxu0 0.0
  %2699 = vmatpush.msra.mxu0 0.0
  %2700 = vmatpush.msra.mxu0 %v2682
  %2701 = vmatpush.msra.mxu0 %v2681
  %2702 = vmatpush.msra.mxu0 %v2680
  %2703 = vmatpush.msra.mxu0 %v2679
  %2704 = vmatpush.msra.mxu0 %v2678
  %2705 = vmatpush.msra.mxu0 %v2677
  %2706 = vmatpush.msra.mxu0 %v2676
  %2707 = vmatpush.msra.mxu0 %v2675
  %2708 = vmatmul.f32.gmra.mxu0 %v2684
  %v2709 = vpop.f32.mrf.mxu0
  %v2710 = vadd.f32 0.0, %v2709
  %2711 = vmatmul.f32.gmra.mxu0 %v2687
  %v2712 = vpop.f32.mrf.mxu0
  %v2713 = vadd.f32 0.0, %v2712
  %2714 = vmatmul.f32.gmra.mxu0 %v2690
  %v2715 = vpop.f32.mrf.mxu0
  %v2716 = vadd.f32 0.0, %v2715
  %2717 = vdwg.mxu0
  %v2718 = vadd.f32 %v50, %v2710
  %v2719 = vadd.f32 %v51, %v2713
  %v2720 = vadd.f32 %v52, %v2716
  %v2721 = vld [vmem:[%s6] sm:$0x1]
  %v2723 = vperm.slane %v2721, 0
  %v2725 = vadd.f32 %v2718, %v2723
  %v2726 = vadd.f32 %v2719, %v2723
  %v2727 = vadd.f32 %v2720, %v2723
  %v2728 = vld [vmem:[%s7] sm:$0x1]
  %v2729 = vld [vmem:[%s8] sm:$0x1]
  %v2730 = vsel %vm55, %v2725, 0.0
  %2731 = vadd.xlane.f32.xlu0 %v2730
  %v2732 = vpop.xlane.xlu0 %2731
  %v2733 = vsel %vm55, %v2726, 0.0
  %2734 = vadd.xlane.f32.xlu0 %v2733
  %v2735 = vpop.xlane.xlu0 %2734
  %v2736 = vsel %vm55, %v2727, 0.0
  %2737 = vadd.xlane.f32.xlu0 %v2736
  %v2738 = vpop.xlane.xlu0 %2737
  %v2739 = vmul.f32 %v2732, %v71
  %v2740 = vmul.f32 %v2735, %v71
  %v2741 = vmul.f32 %v2738, %v71
  %v2742 = vsub.f32 %v2725, %v2739
  %v2743 = vsub.f32 %v2726, %v2740
  %v2744 = vsub.f32 %v2727, %v2741
  %v2745 = vmul.f32 %v2742, %v2742
  %v2746 = vmul.f32 %v2743, %v2743
  %v2747 = vmul.f32 %v2744, %v2744
  %v2748 = vsel %vm55, %v2745, 0.0
  %2749 = vadd.xlane.f32.xlu0 %v2748
  %v2750 = vpop.xlane.xlu0 %2749
  %v2751 = vsel %vm55, %v2746, 0.0
  %2752 = vadd.xlane.f32.xlu0 %v2751
  %v2753 = vpop.xlane.xlu0 %2752
  %v2754 = vsel %vm55, %v2747, 0.0
  %2755 = vadd.xlane.f32.xlu0 %v2754
  %v2756 = vpop.xlane.xlu0 %2755
  %v2757 = vmul.f32 %v2750, %v71
  %v2758 = vmul.f32 %v2753, %v71
  %v2759 = vmul.f32 %v2756, %v71
  %v2760 = vadd.f32 %v2757, 1e-05
  %v2761 = vadd.f32 %v2758, 1e-05
  %v2762 = vadd.f32 %v2759, 1e-05
  %v2763 = vrsqrt.pop %v2760
  %v2764 = vmul.f32 %v2763, %v2760
  %v2765 = vmul.f32 %v2764, %v2763
  %v2766 = vmul.f32 0.5, %v2765
  %v2767 = vsub.f32 1.5, %v2766
  %v2768 = vmul.f32 %v2763, %v2767
  %v2769 = vmul.f32 %v2760, %v2768
  %vm2770 = vcmp.eq.f32.partialorder %v2760, inf
  %v2771 = vsel %vm2770, %v2760, %v2769
  %vm2772 = vcmp.eq.f32.partialorder %v2760, 0.0
  %v2773 = vand.u32 %v2760, 2147483648
  %v2774 = vsel %vm2772, %v2773, %v2771
  %v2775 = vrsqrt.pop %v2761
  %v2776 = vmul.f32 %v2775, %v2761
  %v2777 = vmul.f32 %v2776, %v2775
  %v2778 = vmul.f32 0.5, %v2777
  %v2779 = vsub.f32 1.5, %v2778
  %v2780 = vmul.f32 %v2775, %v2779
  %v2781 = vmul.f32 %v2761, %v2780
  %vm2782 = vcmp.eq.f32.partialorder %v2761, inf
  %v2783 = vsel %vm2782, %v2761, %v2781
  %vm2784 = vcmp.eq.f32.partialorder %v2761, 0.0
  %v2785 = vand.u32 %v2761, 2147483648
  %v2786 = vsel %vm2784, %v2785, %v2783
  %v2787 = vrsqrt.pop %v2762
  %v2788 = vmul.f32 %v2787, %v2762
  %v2789 = vmul.f32 %v2788, %v2787
  %v2790 = vmul.f32 0.5, %v2789
  %v2791 = vsub.f32 1.5, %v2790
  %v2792 = vmul.f32 %v2787, %v2791
  %v2793 = vmul.f32 %v2762, %v2792
  %vm2794 = vcmp.eq.f32.partialorder %v2762, inf
  %v2795 = vsel %vm2794, %v2762, %v2793
  %vm2796 = vcmp.eq.f32.partialorder %v2762, 0.0
  %v2797 = vand.u32 %v2762, 2147483648
  %v2798 = vsel %vm2796, %v2797, %v2795
  %v2799 = vrcp.pop %v2774
  %v2800 = vmul.f32 %v2774, %v2799
  %v2801 = vsub.f32 1.0, %v2800
  %v2802 = vmul.f32 %v2799, %v2801
  %v2803 = vadd.f32 %v2799, %v2802
  %vm2804 = vweird.f32 %v2774
  %vm2805 = vweird.f32 %v2799
  %vm2806 = vmor %vm2804, %vm2805
  %v2807 = vsel %vm2806, %v2799, %v2803
  %v2808 = vand.u32 2147483647, %v2774
  %vm2809 = vcmp.eq.f32.partialorder %v2808, 8.507059e+37
  %v2810 = vand.u32 %v2774, 2147483648
  %v2811 = vor.u32 1.1754944e-38, %v2810
  %v2812 = vsel %vm2809, %v2811, %v2807
  %v2813 = vmul.f32 %v2742, %v2812
  %v2814 = vrcp.pop %v2786
  %v2815 = vmul.f32 %v2786, %v2814
  %v2816 = vsub.f32 1.0, %v2815
  %v2817 = vmul.f32 %v2814, %v2816
  %v2818 = vadd.f32 %v2814, %v2817
  %vm2819 = vweird.f32 %v2786
  %vm2820 = vweird.f32 %v2814
  %vm2821 = vmor %vm2819, %vm2820
  %v2822 = vsel %vm2821, %v2814, %v2818
  %v2823 = vand.u32 2147483647, %v2786
  %vm2824 = vcmp.eq.f32.partialorder %v2823, 8.507059e+37
  %v2825 = vand.u32 %v2786, 2147483648
  %v2826 = vor.u32 1.1754944e-38, %v2825
  %v2827 = vsel %vm2824, %v2826, %v2822
  %v2828 = vmul.f32 %v2743, %v2827
  %v2829 = vrcp.pop %v2798
  %v2830 = vmul.f32 %v2798, %v2829
  %v2831 = vsub.f32 1.0, %v2830
  %v2832 = vmul.f32 %v2829, %v2831
  %v2833 = vadd.f32 %v2829, %v2832
  %vm2834 = vweird.f32 %v2798
  %vm2835 = vweird.f32 %v2829
  %vm2836 = vmor %vm2834, %vm2835
  %v2837 = vsel %vm2836, %v2829, %v2833
  %v2838 = vand.u32 2147483647, %v2798
  %vm2839 = vcmp.eq.f32.partialorder %v2838, 8.507059e+37
  %v2840 = vand.u32 %v2798, 2147483648
  %v2841 = vor.u32 1.1754944e-38, %v2840
  %v2842 = vsel %vm2839, %v2841, %v2837
  %v2843 = vmul.f32 %v2744, %v2842
  %v2845 = vperm.slane %v2728, 0
  %v2847 = vmul.f32 %v2813, %v2845
  %v2848 = vmul.f32 %v2828, %v2845
  %v2849 = vmul.f32 %v2843, %v2845
  %v2851 = vperm.slane %v2729, 0
  %v2853 = vadd.f32 %v2847, %v2851
  %v2854 = vadd.f32 %v2848, %v2851
  %v2855 = vadd.f32 %v2849, %v2851
  %v2856 = vld [vmem:[%s9] sm:$0xff]
  %v2857 = vld [vmem:[%s9 + $0x8] sm:$0xff]
  %v2858 = vld [vmem:[%s9 + $0x10] sm:$0xff]
  %v2859 = vld [vmem:[%s9 + $0x18] sm:$0xff]
  %v2860 = vld [vmem:[%s9 + $0x20] sm:$0xff]
  %v2861 = vld [vmem:[%s9 + $0x28] sm:$0xff]
  %v2862 = vld [vmem:[%s9 + $0x30] sm:$0xff]
  %v2863 = vld [vmem:[%s9 + $0x38] sm:$0xff]
  %v2864 = vld [vmem:[%s9 + $0x40] sm:$0xff]
  %v2865 = vld [vmem:[%s9 + $0x48] sm:$0xff]
  %v2866 = vld [vmem:[%s9 + $0x50] sm:$0xff]
  %v2867 = vld [vmem:[%s9 + $0x58] sm:$0xff]
  %v2868 = vld [vmem:[%s9 + $0x60] sm:$0xff]
  %v2869 = vld [vmem:[%s9 + $0x68] sm:$0xff]
  %v2870 = vld [vmem:[%s9 + $0x70] sm:$0xff]
  %v2871 = vld [vmem:[%s9 + $0x78] sm:$0xff]
  %v2872 = vld [vmem:[%s10] sm:$0x3]
  %v2874 = vperm.slane %v2872, 0
  %v2875 = vperm.slane %v2872, 1
  %v2879 = vsel %vm55, %v2853, 0
  %v2882 = vsel %vm55, %v2854, 0
  %v2885 = vsel %vm55, %v2855, 0
  %2887 = vmatpush.msra.mxu0 0.0
  %2888 = vmatpush.msra.mxu0 0.0
  %2889 = vmatpush.msra.mxu0 0.0
  %2890 = vmatpush.msra.mxu0 0.0
  %2891 = vmatpush.msra.mxu0 0.0
  %2892 = vmatpush.msra.mxu0 0.0
  %2893 = vmatpush.msra.mxu0 0.0
  %2894 = vmatpush.msra.mxu0 0.0
  %2895 = vmatpush.msra.mxu0 %v2870
  %2896 = vmatpush.msra.mxu0 %v2868
  %2897 = vmatpush.msra.mxu0 %v2866
  %2898 = vmatpush.msra.mxu0 %v2864
  %2899 = vmatpush.msra.mxu0 %v2862
  %2900 = vmatpush.msra.mxu0 %v2860
  %2901 = vmatpush.msra.mxu0 %v2858
  %2902 = vmatpush.msra.mxu0 %v2856
  %2903 = vmatmul.f32.gmra.mxu0 %v2879
  %v2904 = vpop.f32.mrf.mxu0
  %v2905 = vadd.f32 %v2874, %v2904
  %2906 = vmatmul.f32.gmra.mxu0 %v2882
  %v2907 = vpop.f32.mrf.mxu0
  %v2908 = vadd.f32 %v2874, %v2907
  %2909 = vmatmul.f32.gmra.mxu0 %v2885
  %v2910 = vpop.f32.mrf.mxu0
  %v2911 = vadd.f32 %v2874, %v2910
  %2912 = vdwg.mxu0
  %2913 = vmatpush.msra.mxu0 0.0
  %2914 = vmatpush.msra.mxu0 0.0
  %2915 = vmatpush.msra.mxu0 0.0
  %2916 = vmatpush.msra.mxu0 0.0
  %2917 = vmatpush.msra.mxu0 0.0
  %2918 = vmatpush.msra.mxu0 0.0
  %2919 = vmatpush.msra.mxu0 0.0
  %2920 = vmatpush.msra.mxu0 0.0
  %2921 = vmatpush.msra.mxu0 %v2871
  %2922 = vmatpush.msra.mxu0 %v2869
  %2923 = vmatpush.msra.mxu0 %v2867
  %2924 = vmatpush.msra.mxu0 %v2865
  %2925 = vmatpush.msra.mxu0 %v2863
  %2926 = vmatpush.msra.mxu0 %v2861
  %2927 = vmatpush.msra.mxu0 %v2859
  %2928 = vmatpush.msra.mxu0 %v2857
  %2929 = vmatmul.f32.gmra.mxu0 %v2879
  %v2930 = vpop.f32.mrf.mxu0
  %v2931 = vadd.f32 %v2875, %v2930
  %2932 = vmatmul.f32.gmra.mxu0 %v2882
  %v2933 = vpop.f32.mrf.mxu0
  %v2934 = vadd.f32 %v2875, %v2933
  %2935 = vmatmul.f32.gmra.mxu0 %v2885
  %v2936 = vpop.f32.mrf.mxu0
  %v2937 = vadd.f32 %v2875, %v2936
  %2938 = vdwg.mxu0
  %v2939 = vmul.f32 %v2905, 0.5
  %v2940 = vmul.f32 %v2931, 0.5
  %v2941 = vmul.f32 %v2908, 0.5
  %v2942 = vmul.f32 %v2934, 0.5
  %v2943 = vmul.f32 %v2911, 0.5
  %v2944 = vmul.f32 %v2937, 0.5
  %v2945 = vmul.f32 %v2905, 0.70710677
  %v2946 = vmul.f32 %v2931, 0.70710677
  %v2947 = vmul.f32 %v2908, 0.70710677
  %v2948 = vmul.f32 %v2934, 0.70710677
  %v2949 = vmul.f32 %v2911, 0.70710677
  %v2950 = vmul.f32 %v2937, 0.70710677
  %v2951 = vand.u32 2147483647, %v2945
  %v2952 = vand.u32 2147483647, %v2946
  %v2953 = vand.u32 2147483647, %v2947
  %v2954 = vand.u32 2147483647, %v2948
  %v2955 = vand.u32 2147483647, %v2949
  %v2956 = vand.u32 2147483647, %v2950
  %v2957 = vmul.f32 %v2951, 0.3275911
  %v2958 = vmul.f32 %v2952, 0.3275911
  %v2959 = vmul.f32 %v2953, 0.3275911
  %v2960 = vmul.f32 %v2954, 0.3275911
  %v2961 = vmul.f32 %v2955, 0.3275911
  %v2962 = vmul.f32 %v2956, 0.3275911
  %v2963 = vadd.f32 %v2957, 1.0
  %v2964 = vadd.f32 %v2958, 1.0
  %v2965 = vadd.f32 %v2959, 1.0
  %v2966 = vadd.f32 %v2960, 1.0
  %v2967 = vadd.f32 %v2961, 1.0
  %v2968 = vadd.f32 %v2962, 1.0
  %v2969 = vrcp.pop %v2963
  %v2970 = vmul.f32 %v2963, %v2969
  %v2971 = vsub.f32 1.0, %v2970
  %v2972 = vmul.f32 %v2969, %v2971
  %v2973 = vadd.f32 %v2969, %v2972
  %vm2974 = vweird.f32 %v2963
  %vm2975 = vweird.f32 %v2969
  %vm2976 = vmor %vm2974, %vm2975
  %v2977 = vsel %vm2976, %v2969, %v2973
  %v2978 = vand.u32 2147483647, %v2963
  %vm2979 = vcmp.eq.f32.partialorder %v2978, 8.507059e+37
  %v2980 = vand.u32 %v2963, 2147483648
  %v2981 = vor.u32 1.1754944e-38, %v2980
  %v2982 = vsel %vm2979, %v2981, %v2977
  %v2983 = vmul.f32 1.0, %v2982
  %v2984 = vrcp.pop %v2964
  %v2985 = vmul.f32 %v2964, %v2984
  %v2986 = vsub.f32 1.0, %v2985
  %v2987 = vmul.f32 %v2984, %v2986
  %v2988 = vadd.f32 %v2984, %v2987
  %vm2989 = vweird.f32 %v2964
  %vm2990 = vweird.f32 %v2984
  %vm2991 = vmor %vm2989, %vm2990
  %v2992 = vsel %vm2991, %v2984, %v2988
  %v2993 = vand.u32 2147483647, %v2964
  %vm2994 = vcmp.eq.f32.partialorder %v2993, 8.507059e+37
  %v2995 = vand.u32 %v2964, 2147483648
  %v2996 = vor.u32 1.1754944e-38, %v2995
  %v2997 = vsel %vm2994, %v2996, %v2992
  %v2998 = vmul.f32 1.0, %v2997
  %v2999 = vrcp.pop %v2965
  %v3000 = vmul.f32 %v2965, %v2999
  %v3001 = vsub.f32 1.0, %v3000
  %v3002 = vmul.f32 %v2999, %v3001
  %v3003 = vadd.f32 %v2999, %v3002
  %vm3004 = vweird.f32 %v2965
  %vm3005 = vweird.f32 %v2999
  %vm3006 = vmor %vm3004, %vm3005
  %v3007 = vsel %vm3006, %v2999, %v3003
  %v3008 = vand.u32 2147483647, %v2965
  %vm3009 = vcmp.eq.f32.partialorder %v3008, 8.507059e+37
  %v3010 = vand.u32 %v2965, 2147483648
  %v3011 = vor.u32 1.1754944e-38, %v3010
  %v3012 = vsel %vm3009, %v3011, %v3007
  %v3013 = vmul.f32 1.0, %v3012
  %v3014 = vrcp.pop %v2966
  %v3015 = vmul.f32 %v2966, %v3014
  %v3016 = vsub.f32 1.0, %v3015
  %v3017 = vmul.f32 %v3014, %v3016
  %v3018 = vadd.f32 %v3014, %v3017
  %vm3019 = vweird.f32 %v2966
  %vm3020 = vweird.f32 %v3014
  %vm3021 = vmor %vm3019, %vm3020
  %v3022 = vsel %vm3021, %v3014, %v3018
  %v3023 = vand.u32 2147483647, %v2966
  %vm3024 = vcmp.eq.f32.partialorder %v3023, 8.507059e+37
  %v3025 = vand.u32 %v2966, 2147483648
  %v3026 = vor.u32 1.1754944e-38, %v3025
  %v3027 = vsel %vm3024, %v3026, %v3022
  %v3028 = vmul.f32 1.0, %v3027
  %v3029 = vrcp.pop %v2967
  %v3030 = vmul.f32 %v2967, %v3029
  %v3031 = vsub.f32 1.0, %v3030
  %v3032 = vmul.f32 %v3029, %v3031
  %v3033 = vadd.f32 %v3029, %v3032
  %vm3034 = vweird.f32 %v2967
  %vm3035 = vweird.f32 %v3029
  %vm3036 = vmor %vm3034, %vm3035
  %v3037 = vsel %vm3036, %v3029, %v3033
  %v3038 = vand.u32 2147483647, %v2967
  %vm3039 = vcmp.eq.f32.partialorder %v3038, 8.507059e+37
  %v3040 = vand.u32 %v2967, 2147483648
  %v3041 = vor.u32 1.1754944e-38, %v3040
  %v3042 = vsel %vm3039, %v3041, %v3037
  %v3043 = vmul.f32 1.0, %v3042
  %v3044 = vrcp.pop %v2968
  %v3045 = vmul.f32 %v2968, %v3044
  %v3046 = vsub.f32 1.0, %v3045
  %v3047 = vmul.f32 %v3044, %v3046
  %v3048 = vadd.f32 %v3044, %v3047
  %vm3049 = vweird.f32 %v2968
  %vm3050 = vweird.f32 %v3044
  %vm3051 = vmor %vm3049, %vm3050
  %v3052 = vsel %vm3051, %v3044, %v3048
  %v3053 = vand.u32 2147483647, %v2968
  %vm3054 = vcmp.eq.f32.partialorder %v3053, 8.507059e+37
  %v3055 = vand.u32 %v2968, 2147483648
  %v3056 = vor.u32 1.1754944e-38, %v3055
  %v3057 = vsel %vm3054, %v3056, %v3052
  %v3058 = vmul.f32 1.0, %v3057
  %v3059 = vmul.f32 %v2983, 1.0614054
  %v3060 = vmul.f32 %v2998, 1.0614054
  %v3061 = vmul.f32 %v3013, 1.0614054
  %v3062 = vmul.f32 %v3028, 1.0614054
  %v3063 = vmul.f32 %v3043, 1.0614054
  %v3064 = vmul.f32 %v3058, 1.0614054
  %v3065 = vadd.f32 %v3059, -1.4531521
  %v3066 = vadd.f32 %v3060, -1.4531521
  %v3067 = vadd.f32 %v3061, -1.4531521
  %v3068 = vadd.f32 %v3062, -1.4531521
  %v3069 = vadd.f32 %v3063, -1.4531521
  %v3070 = vadd.f32 %v3064, -1.4531521
  %v3071 = vmul.f32 %v3065, %v2983
  %v3072 = vmul.f32 %v3066, %v2998
  %v3073 = vmul.f32 %v3067, %v3013
  %v3074 = vmul.f32 %v3068, %v3028
  %v3075 = vmul.f32 %v3069, %v3043
  %v3076 = vmul.f32 %v3070, %v3058
  %v3077 = vadd.f32 %v3071, 1.4214138
  %v3078 = vadd.f32 %v3072, 1.4214138
  %v3079 = vadd.f32 %v3073, 1.4214138
  %v3080 = vadd.f32 %v3074, 1.4214138
  %v3081 = vadd.f32 %v3075, 1.4214138
  %v3082 = vadd.f32 %v3076, 1.4214138
  %v3083 = vmul.f32 %v3077, %v2983
  %v3084 = vmul.f32 %v3078, %v2998
  %v3085 = vmul.f32 %v3079, %v3013
  %v3086 = vmul.f32 %v3080, %v3028
  %v3087 = vmul.f32 %v3081, %v3043
  %v3088 = vmul.f32 %v3082, %v3058
  %v3089 = vadd.f32 %v3083, -0.28449672
  %v3090 = vadd.f32 %v3084, -0.28449672
  %v3091 = vadd.f32 %v3085, -0.28449672
  %v3092 = vadd.f32 %v3086, -0.28449672
  %v3093 = vadd.f32 %v3087, -0.28449672
  %v3094 = vadd.f32 %v3088, -0.28449672
  %v3095 = vmul.f32 %v3089, %v2983
  %v3096 = vmul.f32 %v3090, %v2998
  %v3097 = vmul.f32 %v3091, %v3013
  %v3098 = vmul.f32 %v3092, %v3028
  %v3099 = vmul.f32 %v3093, %v3043
  %v3100 = vmul.f32 %v3094, %v3058
  %v3101 = vadd.f32 %v3095, 0.2548296
  %v3102 = vadd.f32 %v3096, 0.2548296
  %v3103 = vadd.f32 %v3097, 0.2548296
  %v3104 = vadd.f32 %v3098, 0.2548296
  %v3105 = vadd.f32 %v3099, 0.2548296
  %v3106 = vadd.f32 %v3100, 0.2548296
  %v3107 = vmul.f32 %v3101, %v2983
  %v3108 = vmul.f32 %v3102, %v2998
  %v3109 = vmul.f32 %v3103, %v3013
  %v3110 = vmul.f32 %v3104, %v3028
  %v3111 = vmul.f32 %v3105, %v3043
  %v3112 = vmul.f32 %v3106, %v3058
  %v3113 = vsub.f32 0.0, %v2951
  %v3114 = vsub.f32 0.0, %v2952
  %v3115 = vsub.f32 0.0, %v2953
  %v3116 = vsub.f32 0.0, %v2954
  %v3117 = vsub.f32 0.0, %v2955
  %v3118 = vsub.f32 0.0, %v2956
  %v3119 = vmul.f32 %v3113, %v2951
  %v3120 = vmul.f32 %v3114, %v2952
  %v3121 = vmul.f32 %v3115, %v2953
  %v3122 = vmul.f32 %v3116, %v2954
  %v3123 = vmul.f32 %v3117, %v2955
  %v3124 = vmul.f32 %v3118, %v2956
  %v3125 = vmul.f32 %v3119, 1.442695
  %v3126 = vpow.pop %v3125
  %v3127 = vmul.f32 %v3120, 1.442695
  %v3128 = vpow.pop %v3127
  %v3129 = vmul.f32 %v3121, 1.442695
  %v3130 = vpow.pop %v3129
  %v3131 = vmul.f32 %v3122, 1.442695
  %v3132 = vpow.pop %v3131
  %v3133 = vmul.f32 %v3123, 1.442695
  %v3134 = vpow.pop %v3133
  %v3135 = vmul.f32 %v3124, 1.442695
  %v3136 = vpow.pop %v3135
  %v3137 = vmul.f32 %v3107, %v3126
  %v3138 = vmul.f32 %v3108, %v3128
  %v3139 = vmul.f32 %v3109, %v3130
  %v3140 = vmul.f32 %v3110, %v3132
  %v3141 = vmul.f32 %v3111, %v3134
  %v3142 = vmul.f32 %v3112, %v3136
  %v3143 = vsub.f32 1.0, %v3137
  %v3144 = vsub.f32 1.0, %v3138
  %v3145 = vsub.f32 1.0, %v3139
  %v3146 = vsub.f32 1.0, %v3140
  %v3147 = vsub.f32 1.0, %v3141
  %v3148 = vsub.f32 1.0, %v3142
  %vm3149 = vcmp.lt.f32.partialorder %v2945, 0.0
  %vm3150 = vcmp.lt.f32.partialorder %v2946, 0.0
  %vm3151 = vcmp.lt.f32.partialorder %v2947, 0.0
  %vm3152 = vcmp.lt.f32.partialorder %v2948, 0.0
  %vm3153 = vcmp.lt.f32.partialorder %v2949, 0.0
  %vm3154 = vcmp.lt.f32.partialorder %v2950, 0.0
  %v3155 = vsub.f32 0.0, %v3143
  %v3156 = vsub.f32 0.0, %v3144
  %v3157 = vsub.f32 0.0, %v3145
  %v3158 = vsub.f32 0.0, %v3146
  %v3159 = vsub.f32 0.0, %v3147
  %v3160 = vsub.f32 0.0, %v3148
  %v3161 = vsel %vm3149, %v3155, %v3143
  %v3162 = vsel %vm3150, %v3156, %v3144
  %v3163 = vsel %vm3151, %v3157, %v3145
  %v3164 = vsel %vm3152, %v3158, %v3146
  %v3165 = vsel %vm3153, %v3159, %v3147
  %v3166 = vsel %vm3154, %v3160, %v3148
  %v3167 = vadd.f32 %v3161, 1.0
  %v3168 = vadd.f32 %v3162, 1.0
  %v3169 = vadd.f32 %v3163, 1.0
  %v3170 = vadd.f32 %v3164, 1.0
  %v3171 = vadd.f32 %v3165, 1.0
  %v3172 = vadd.f32 %v3166, 1.0
  %v3173 = vmul.f32 %v2939, %v3167
  %v3174 = vmul.f32 %v2940, %v3168
  %v3175 = vmul.f32 %v2941, %v3169
  %v3176 = vmul.f32 %v2942, %v3170
  %v3177 = vmul.f32 %v2943, %v3171
  %v3178 = vmul.f32 %v2944, %v3172
  %v3179 = vld [vmem:[%s11] sm:$0xff]
  %v3180 = vld [vmem:[%s11 + $0x8] sm:$0xff]
  %v3181 = vld [vmem:[%s11 + $0x10] sm:$0xff]
  %v3182 = vld [vmem:[%s11 + $0x18] sm:$0xff]
  %v3183 = vld [vmem:[%s11 + $0x20] sm:$0xff]
  %v3184 = vld [vmem:[%s11 + $0x28] sm:$0xff]
  %v3185 = vld [vmem:[%s11 + $0x30] sm:$0xff]
  %v3186 = vld [vmem:[%s11 + $0x38] sm:$0xff]
  %v3187 = vld [vmem:[%s11 + $0x40] sm:$0xff]
  %v3188 = vld [vmem:[%s11 + $0x48] sm:$0xff]
  %v3189 = vld [vmem:[%s11 + $0x50] sm:$0xff]
  %v3190 = vld [vmem:[%s11 + $0x58] sm:$0xff]
  %v3191 = vld [vmem:[%s11 + $0x60] sm:$0xff]
  %v3192 = vld [vmem:[%s11 + $0x68] sm:$0xff]
  %v3193 = vld [vmem:[%s11 + $0x70] sm:$0xff]
  %v3194 = vld [vmem:[%s11 + $0x78] sm:$0xff]
  %v3195 = vld [vmem:[%s11 + $0x80] sm:$0xff]
  %v3196 = vld [vmem:[%s11 + $0x88] sm:$0xff]
  %v3197 = vld [vmem:[%s11 + $0x90] sm:$0xff]
  %v3198 = vld [vmem:[%s11 + $0x98] sm:$0xff]
  %v3199 = vld [vmem:[%s11 + $0xa0] sm:$0xff]
  %v3200 = vld [vmem:[%s11 + $0xa8] sm:$0xff]
  %v3201 = vld [vmem:[%s11 + $0xb0] sm:$0xff]
  %v3202 = vld [vmem:[%s11 + $0xb8] sm:$0xff]
  %v3203 = vld [vmem:[%s11 + $0xc0] sm:$0xff]
  %v3204 = vld [vmem:[%s11 + $0xc8] sm:$0xff]
  %v3205 = vld [vmem:[%s11 + $0xd0] sm:$0xff]
  %v3206 = vld [vmem:[%s11 + $0xd8] sm:$0xff]
  %v3207 = vld [vmem:[%s11 + $0xe0] sm:$0xff]
  %v3208 = vld [vmem:[%s11 + $0xe8] sm:$0xff]
  %v3209 = vld [vmem:[%s11 + $0xf0] sm:$0xff]
  %v3210 = vld [vmem:[%s11 + $0xf8] sm:$0xff]
  %3211 = vmatpush.msra.mxu0 %v3194
  %3212 = vmatpush.msra.mxu0 %v3193
  %3213 = vmatpush.msra.mxu0 %v3192
  %3214 = vmatpush.msra.mxu0 %v3191
  %3215 = vmatpush.msra.mxu0 %v3190
  %3216 = vmatpush.msra.mxu0 %v3189
  %3217 = vmatpush.msra.mxu0 %v3188
  %3218 = vmatpush.msra.mxu0 %v3187
  %3219 = vmatpush.msra.mxu0 %v3186
  %3220 = vmatpush.msra.mxu0 %v3185
  %3221 = vmatpush.msra.mxu0 %v3184
  %3222 = vmatpush.msra.mxu0 %v3183
  %3223 = vmatpush.msra.mxu0 %v3182
  %3224 = vmatpush.msra.mxu0 %v3181
  %3225 = vmatpush.msra.mxu0 %v3180
  %3226 = vmatpush.msra.mxu0 %v3179
  %3227 = vmatmul.f32.gmra.mxu0 %v3173
  %v3228 = vpop.f32.mrf.mxu0
  %v3229 = vadd.f32 0.0, %v3228
  %3230 = vmatmul.f32.gmra.mxu0 %v3175
  %v3231 = vpop.f32.mrf.mxu0
  %v3232 = vadd.f32 0.0, %v3231
  %3233 = vmatmul.f32.gmra.mxu0 %v3177
  %v3234 = vpop.f32.mrf.mxu0
  %v3235 = vadd.f32 0.0, %v3234
  %3236 = vdwg.mxu0
  %3237 = vmatpush.msra.mxu0 %v3210
  %3238 = vmatpush.msra.mxu0 %v3209
  %3239 = vmatpush.msra.mxu0 %v3208
  %3240 = vmatpush.msra.mxu0 %v3207
  %3241 = vmatpush.msra.mxu0 %v3206
  %3242 = vmatpush.msra.mxu0 %v3205
  %3243 = vmatpush.msra.mxu0 %v3204
  %3244 = vmatpush.msra.mxu0 %v3203
  %3245 = vmatpush.msra.mxu0 %v3202
  %3246 = vmatpush.msra.mxu0 %v3201
  %3247 = vmatpush.msra.mxu0 %v3200
  %3248 = vmatpush.msra.mxu0 %v3199
  %3249 = vmatpush.msra.mxu0 %v3198
  %3250 = vmatpush.msra.mxu0 %v3197
  %3251 = vmatpush.msra.mxu0 %v3196
  %3252 = vmatpush.msra.mxu0 %v3195
  %3253 = vmatmul.f32.gmra.mxu0 %v3174
  %v3254 = vpop.f32.mrf.mxu0
  %v3255 = vadd.f32 %v3229, %v3254
  %3256 = vmatmul.f32.gmra.mxu0 %v3176
  %v3257 = vpop.f32.mrf.mxu0
  %v3258 = vadd.f32 %v3232, %v3257
  %3259 = vmatmul.f32.gmra.mxu0 %v3178
  %v3260 = vpop.f32.mrf.mxu0
  %v3261 = vadd.f32 %v3235, %v3260
  %3262 = vdwg.mxu0
  %v3263 = vadd.f32 %v2725, %v3255
  %v3264 = vadd.f32 %v2726, %v3258
  %v3265 = vadd.f32 %v2727, %v3261
  %v3266 = vld [vmem:[%s12] sm:$0x1]
  %v3268 = vperm.slane %v3266, 0
  %v3270 = vadd.f32 %v3263, %v3268
  %v3271 = vadd.f32 %v3264, %v3268
  %v3272 = vadd.f32 %v3265, %v3268
  %v3273 = vld [vmem:[%s13] sm:$0x1]
  %v3274 = vld [vmem:[%s14] sm:$0x1]
  %v3275 = vsel %vm55, %v3270, 0.0
  %3276 = vadd.xlane.f32.xlu0 %v3275
  %v3277 = vpop.xlane.xlu0 %3276
  %v3278 = vsel %vm55, %v3271, 0.0
  %3279 = vadd.xlane.f32.xlu0 %v3278
  %v3280 = vpop.xlane.xlu0 %3279
  %v3281 = vsel %vm55, %v3272, 0.0
  %3282 = vadd.xlane.f32.xlu0 %v3281
  %v3283 = vpop.xlane.xlu0 %3282
  %v3284 = vmul.f32 %v3277, %v71
  %v3285 = vmul.f32 %v3280, %v71
  %v3286 = vmul.f32 %v3283, %v71
  %v3287 = vsub.f32 %v3270, %v3284
  %v3288 = vsub.f32 %v3271, %v3285
  %v3289 = vsub.f32 %v3272, %v3286
  %v3290 = vmul.f32 %v3287, %v3287
  %v3291 = vmul.f32 %v3288, %v3288
  %v3292 = vmul.f32 %v3289, %v3289
  %v3293 = vsel %vm55, %v3290, 0.0
  %3294 = vadd.xlane.f32.xlu0 %v3293
  %v3295 = vpop.xlane.xlu0 %3294
  %v3296 = vsel %vm55, %v3291, 0.0
  %3297 = vadd.xlane.f32.xlu0 %v3296
  %v3298 = vpop.xlane.xlu0 %3297
  %v3299 = vsel %vm55, %v3292, 0.0
  %3300 = vadd.xlane.f32.xlu0 %v3299
  %v3301 = vpop.xlane.xlu0 %3300
  %v3302 = vmul.f32 %v3295, %v71
  %v3303 = vmul.f32 %v3298, %v71
  %v3304 = vmul.f32 %v3301, %v71
  %v3305 = vadd.f32 %v3302, 1e-05
  %v3306 = vadd.f32 %v3303, 1e-05
  %v3307 = vadd.f32 %v3304, 1e-05
  %v3308 = vrsqrt.pop %v3305
  %v3309 = vmul.f32 %v3308, %v3305
  %v3310 = vmul.f32 %v3309, %v3308
  %v3311 = vmul.f32 0.5, %v3310
  %v3312 = vsub.f32 1.5, %v3311
  %v3313 = vmul.f32 %v3308, %v3312
  %v3314 = vmul.f32 %v3305, %v3313
  %vm3315 = vcmp.eq.f32.partialorder %v3305, inf
  %v3316 = vsel %vm3315, %v3305, %v3314
  %vm3317 = vcmp.eq.f32.partialorder %v3305, 0.0
  %v3318 = vand.u32 %v3305, 2147483648
  %v3319 = vsel %vm3317, %v3318, %v3316
  %v3320 = vrsqrt.pop %v3306
  %v3321 = vmul.f32 %v3320, %v3306
  %v3322 = vmul.f32 %v3321, %v3320
  %v3323 = vmul.f32 0.5, %v3322
  %v3324 = vsub.f32 1.5, %v3323
  %v3325 = vmul.f32 %v3320, %v3324
  %v3326 = vmul.f32 %v3306, %v3325
  %vm3327 = vcmp.eq.f32.partialorder %v3306, inf
  %v3328 = vsel %vm3327, %v3306, %v3326
  %vm3329 = vcmp.eq.f32.partialorder %v3306, 0.0
  %v3330 = vand.u32 %v3306, 2147483648
  %v3331 = vsel %vm3329, %v3330, %v3328
  %v3332 = vrsqrt.pop %v3307
  %v3333 = vmul.f32 %v3332, %v3307
  %v3334 = vmul.f32 %v3333, %v3332
  %v3335 = vmul.f32 0.5, %v3334
  %v3336 = vsub.f32 1.5, %v3335
  %v3337 = vmul.f32 %v3332, %v3336
  %v3338 = vmul.f32 %v3307, %v3337
  %vm3339 = vcmp.eq.f32.partialorder %v3307, inf
  %v3340 = vsel %vm3339, %v3307, %v3338
  %vm3341 = vcmp.eq.f32.partialorder %v3307, 0.0
  %v3342 = vand.u32 %v3307, 2147483648
  %v3343 = vsel %vm3341, %v3342, %v3340
  %v3344 = vrcp.pop %v3319
  %v3345 = vmul.f32 %v3319, %v3344
  %v3346 = vsub.f32 1.0, %v3345
  %v3347 = vmul.f32 %v3344, %v3346
  %v3348 = vadd.f32 %v3344, %v3347
  %vm3349 = vweird.f32 %v3319
  %vm3350 = vweird.f32 %v3344
  %vm3351 = vmor %vm3349, %vm3350
  %v3352 = vsel %vm3351, %v3344, %v3348
  %v3353 = vand.u32 2147483647, %v3319
  %vm3354 = vcmp.eq.f32.partialorder %v3353, 8.507059e+37
  %v3355 = vand.u32 %v3319, 2147483648
  %v3356 = vor.u32 1.1754944e-38, %v3355
  %v3357 = vsel %vm3354, %v3356, %v3352
  %v3358 = vmul.f32 %v3287, %v3357
  %v3359 = vrcp.pop %v3331
  %v3360 = vmul.f32 %v3331, %v3359
  %v3361 = vsub.f32 1.0, %v3360
  %v3362 = vmul.f32 %v3359, %v3361
  %v3363 = vadd.f32 %v3359, %v3362
  %vm3364 = vweird.f32 %v3331
  %vm3365 = vweird.f32 %v3359
  %vm3366 = vmor %vm3364, %vm3365
  %v3367 = vsel %vm3366, %v3359, %v3363
  %v3368 = vand.u32 2147483647, %v3331
  %vm3369 = vcmp.eq.f32.partialorder %v3368, 8.507059e+37
  %v3370 = vand.u32 %v3331, 2147483648
  %v3371 = vor.u32 1.1754944e-38, %v3370
  %v3372 = vsel %vm3369, %v3371, %v3367
  %v3373 = vmul.f32 %v3288, %v3372
  %v3374 = vrcp.pop %v3343
  %v3375 = vmul.f32 %v3343, %v3374
  %v3376 = vsub.f32 1.0, %v3375
  %v3377 = vmul.f32 %v3374, %v3376
  %v3378 = vadd.f32 %v3374, %v3377
  %vm3379 = vweird.f32 %v3343
  %vm3380 = vweird.f32 %v3374
  %vm3381 = vmor %vm3379, %vm3380
  %v3382 = vsel %vm3381, %v3374, %v3378
  %v3383 = vand.u32 2147483647, %v3343
  %vm3384 = vcmp.eq.f32.partialorder %v3383, 8.507059e+37
  %v3385 = vand.u32 %v3343, 2147483648
  %v3386 = vor.u32 1.1754944e-38, %v3385
  %v3387 = vsel %vm3384, %v3386, %v3382
  %v3388 = vmul.f32 %v3289, %v3387
  %v3390 = vperm.slane %v3273, 0
  %v3392 = vmul.f32 %v3358, %v3390
  %v3393 = vmul.f32 %v3373, %v3390
  %v3394 = vmul.f32 %v3388, %v3390
  %v3396 = vperm.slane %v3274, 0
  %v3398 = vadd.f32 %v3392, %v3396
  %v3399 = vadd.f32 %v3393, %v3396
  %v3400 = vadd.f32 %v3394, %v3396
  %3401 = vst.msk [vmem:[%s15] sm:$0xff] %vm55, %v3398
  %3402 = vst.msk [vmem:[%s15 + $0x8] sm:$0xff] %vm55, %v3399
  %3403 = vst.msk [vmem:[%s15 + $0x10] sm:$0xff] %vm55, %v3400
  // Predicated region
  $region62: #{croma_forward.6} parent=0 // pred_check
    _
  $region63: #{croma_forward.6} parent=0 // pred_check_branch
    %3405 = sbr.rel (0) target = $region65
  $region64: #{croma_forward.6} parent=0 // pred_region
    _
  $region65: #{croma_forward.6} parent=0 // pred_fallthru
    _
  // Predicated region
  $region66: #{croma_forward.6} parent=0 // pred_check
    _
  $region67: #{croma_forward.6} parent=0 // pred_check_branch
    %3407 = sbr.rel (0) target = $region69
  $region68: #{croma_forward.6} parent=0 // pred_region
    _
  $region69: #{croma_forward.6} parent=0 // pred_fallthru
    _

// kernel: croma_forward.8
$region0: #{croma_forward.8}
  #allocation0 [shape = 'u32[]', space=smem, size = 0x4, offset = 0x4, fixed_abs, tag = 'smem constant byte address 0x4 - core index']
  #allocation1 [shape = 'u32[72,128]{1,0:T(1,128)}', space=vmem, size = 0x9000, scoped, tag = 'internal scratch']
  #allocation2 [shape = 'f32[32,96]{1,0:T(8,128)}', space=vmem, size = 0x4000, scoped, tag = 'scratch operand']
  #allocation3 [shape = 'f32[32,32]{1,0:T(8,128)}', space=vmem, size = 0x4000, scoped, tag = 'scratch operand']
  %s0 = inlined_call_operand.vmem [shape: f32[32,32], index: 0, kind: input, shape index: {}]
  %s1 = inlined_call_operand.vmem [shape: f32[1,32], index: 1, kind: input, shape index: {}]
  %s2 = inlined_call_operand.vmem [shape: f32[1,32], index: 2, kind: input, shape index: {}]
  %s3 = inlined_call_operand.vmem [shape: f32[32,96], index: 3, kind: input, shape index: {}]
  %s4 = inlined_call_operand.vmem [shape: f32[32,32], index: 4, kind: input, shape index: {}]
  %s5 = inlined_call_operand.vmem [shape: f32[1,32], index: 5, kind: input, shape index: {}]
  %s6 = inlined_call_operand.vmem [shape: f32[1,32], index: 6, kind: input, shape index: {}]
  %s7 = inlined_call_operand.vmem [shape: f32[1,32], index: 7, kind: input, shape index: {}]
  %s8 = inlined_call_operand.vmem [shape: f32[32,128], index: 8, kind: input, shape index: {}]
  %s9 = inlined_call_operand.vmem [shape: f32[1,128], index: 9, kind: input, shape index: {}]
  %s10 = inlined_call_operand.vmem [shape: f32[128,32], index: 10, kind: input, shape index: {}]
  %s11 = inlined_call_operand.vmem [shape: f32[1,32], index: 11, kind: input, shape index: {}]
  %s12 = inlined_call_operand.vmem [shape: f32[1,32], index: 12, kind: input, shape index: {}]
  %s13 = inlined_call_operand.vmem [shape: f32[1,32], index: 13, kind: input, shape index: {}]
  %s14 = inlined_call_operand.vmem [shape: f32[32,32], index: 14, kind: output, shape index: {}]
  %s15 = sld [smem:[#allocation0]]
  $region66: #{croma_forward.8} parent=0
    _
  %s17 = ssub.s32 1, %s15
  %s18 = scalar_select 0, %s17, %s15
  // Predicated region
  $region2: #{croma_forward.8} parent=0 // pred_check
    _
  $region3: #{croma_forward.8} parent=0 // pred_check_branch
    %20 = sbr.rel (0) target = $region5
  $region4: #{croma_forward.8} parent=0 // pred_region
    _
  $region5: #{croma_forward.8} parent=0 // pred_fallthru
    _
  // Predicated region
  $region6: #{croma_forward.8} parent=0 // pred_check
    _
  $region7: #{croma_forward.8} parent=0 // pred_check_branch
    %22 = sbr.rel (0) target = $region9
  $region8: #{croma_forward.8} parent=0 // pred_region
    _
  $region9: #{croma_forward.8} parent=0 // pred_fallthru
    _
  // Predicated region
  $region10: #{croma_forward.8} parent=0 // pred_check
    _
  $region11: #{croma_forward.8} parent=0 // pred_check_branch
    %24 = sbr.rel (0) target = $region13
  $region12: #{croma_forward.8} parent=0 // pred_region
    _
  $region13: #{croma_forward.8} parent=0 // pred_fallthru
    _
  // Predicated region
  $region14: #{croma_forward.8} parent=0 // pred_check
    _
  $region15: #{croma_forward.8} parent=0 // pred_check_branch
    %26 = sbr.rel (0) target = $region17
  $region16: #{croma_forward.8} parent=0 // pred_region
    _
  $region17: #{croma_forward.8} parent=0 // pred_fallthru
    _
  // Predicated region
  $region18: #{croma_forward.8} parent=0 // pred_check
    _
  $region19: #{croma_forward.8} parent=0 // pred_check_branch
    %28 = sbr.rel (0) target = $region21
  $region20: #{croma_forward.8} parent=0 // pred_region
    _
  $region21: #{croma_forward.8} parent=0 // pred_fallthru
    _
  // Predicated region
  $region22: #{croma_forward.8} parent=0 // pred_check
    _
  $region23: #{croma_forward.8} parent=0 // pred_check_branch
    %30 = sbr.rel (0) target = $region25
  $region24: #{croma_forward.8} parent=0 // pred_region
    _
  $region25: #{croma_forward.8} parent=0 // pred_fallthru
    _
  // Predicated region
  $region26: #{croma_forward.8} parent=0 // pred_check
    _
  $region27: #{croma_forward.8} parent=0 // pred_check_branch
    %32 = sbr.rel (0) target = $region29
  $region28: #{croma_forward.8} parent=0 // pred_region
    _
  $region29: #{croma_forward.8} parent=0 // pred_fallthru
    _
  // Predicated region
  $region30: #{croma_forward.8} parent=0 // pred_check
    _
  $region31: #{croma_forward.8} parent=0 // pred_check_branch
    %34 = sbr.rel (0) target = $region33
  $region32: #{croma_forward.8} parent=0 // pred_region
    _
  $region33: #{croma_forward.8} parent=0 // pred_fallthru
    _
  // Predicated region
  $region34: #{croma_forward.8} parent=0 // pred_check
    _
  $region35: #{croma_forward.8} parent=0 // pred_check_branch
    %36 = sbr.rel (0) target = $region37
  $region36: #{croma_forward.8} parent=0 // pred_region
    _
  $region37: #{croma_forward.8} parent=0 // pred_fallthru
    _
  // Predicated region
  $region38: #{croma_forward.8} parent=0 // pred_check
    _
  $region39: #{croma_forward.8} parent=0 // pred_check_branch
    %38 = sbr.rel (0) target = $region41
  $region40: #{croma_forward.8} parent=0 // pred_region
    _
  $region41: #{croma_forward.8} parent=0 // pred_fallthru
    _
  // Predicated region
  $region42: #{croma_forward.8} parent=0 // pred_check
    _
  $region43: #{croma_forward.8} parent=0 // pred_check_branch
    %40 = sbr.rel (0) target = $region45
  $region44: #{croma_forward.8} parent=0 // pred_region
    _
  $region45: #{croma_forward.8} parent=0 // pred_fallthru
    _
  // Predicated region
  $region46: #{croma_forward.8} parent=0 // pred_check
    _
  $region47: #{croma_forward.8} parent=0 // pred_check_branch
    %42 = sbr.rel (0) target = $region49
  $region48: #{croma_forward.8} parent=0 // pred_region
    _
  $region49: #{croma_forward.8} parent=0 // pred_fallthru
    _
  // Predicated region
  $region50: #{croma_forward.8} parent=0 // pred_check
    _
  $region51: #{croma_forward.8} parent=0 // pred_check_branch
    %44 = sbr.rel (0) target = $region53
  $region52: #{croma_forward.8} parent=0 // pred_region
    _
  $region53: #{croma_forward.8} parent=0 // pred_fallthru
    _
  // Predicated region
  $region54: #{croma_forward.8} parent=0 // pred_check
    _
  $region55: #{croma_forward.8} parent=0 // pred_check_branch
    %46 = sbr.rel (0) target = $region57
  $region56: #{croma_forward.8} parent=0 // pred_region
    _
  $region57: #{croma_forward.8} parent=0 // pred_fallthru
    _
  %v47 = vld [vmem:[%s0] sm:$0xff]
  %v48 = vld [vmem:[%s0 + $0x8] sm:$0xff]
  %v49 = vld [vmem:[%s0 + $0x10] sm:$0xff]
  %v50 = vld [vmem:[%s0 + $0x18] sm:$0xff]
  %v51 = vld [vmem:[%s1] sm:$0x1]
  %v52 = vld [vmem:[%s2] sm:$0x1]
  %vm53 = vcmask 261120
  %v54 = vsel %vm53, %v47, 0.0
  %55 = vadd.xlane.f32.xlu0 %v54
  %v56 = vpop.xlane.xlu0 %55
  %v57 = vsel %vm53, %v48, 0.0
  %58 = vadd.xlane.f32.xlu0 %v57
  %v59 = vpop.xlane.xlu0 %58
  %v60 = vsel %vm53, %v49, 0.0
  %61 = vadd.xlane.f32.xlu0 %v60
  %v62 = vpop.xlane.xlu0 %61
  %v63 = vsel %vm53, %v50, 0.0
  %64 = vadd.xlane.f32.xlu0 %v63
  %v65 = vpop.xlane.xlu0 %64
  %v66 = vrcp.pop 32.0
  %v67 = vmul.f32 32.0, %v66
  %v68 = vsub.f32 1.0, %v67
  %v69 = vmul.f32 %v66, %v68
  %v70 = vadd.f32 %v66, %v69
  %vm71 = vweird.f32 %v66
  %v72 = vsel %vm71, %v66, %v70
  %v73 = vmul.f32 %v56, %v72
  %v74 = vmul.f32 %v59, %v72
  %v75 = vmul.f32 %v62, %v72
  %v76 = vmul.f32 %v65, %v72
  %v77 = vsub.f32 %v47, %v73
  %v78 = vsub.f32 %v48, %v74
  %v79 = vsub.f32 %v49, %v75
  %v80 = vsub.f32 %v50, %v76
  %v81 = vmul.f32 %v77, %v77
  %v82 = vmul.f32 %v78, %v78
  %v83 = vmul.f32 %v79, %v79
  %v84 = vmul.f32 %v80, %v80
  %v85 = vsel %vm53, %v81, 0.0
  %86 = vadd.xlane.f32.xlu0 %v85
  %v87 = vpop.xlane.xlu0 %86
  %v88 = vsel %vm53, %v82, 0.0
  %89 = vadd.xlane.f32.xlu0 %v88
  %v90 = vpop.xlane.xlu0 %89
  %v91 = vsel %vm53, %v83, 0.0
  %92 = vadd.xlane.f32.xlu0 %v91
  %v93 = vpop.xlane.xlu0 %92
  %v94 = vsel %vm53, %v84, 0.0
  %95 = vadd.xlane.f32.xlu0 %v94
  %v96 = vpop.xlane.xlu0 %95
  %v97 = vmul.f32 %v87, %v72
  %v98 = vmul.f32 %v90, %v72
  %v99 = vmul.f32 %v93, %v72
  %v100 = vmul.f32 %v96, %v72
  %v101 = vadd.f32 %v97, 1e-05
  %v102 = vadd.f32 %v98, 1e-05
  %v103 = vadd.f32 %v99, 1e-05
  %v104 = vadd.f32 %v100, 1e-05
  %v105 = vrsqrt.pop %v101
  %v106 = vmul.f32 %v105, %v101
  %v107 = vmul.f32 %v106, %v105
  %v108 = vmul.f32 0.5, %v107
  %v109 = vsub.f32 1.5, %v108
  %v110 = vmul.f32 %v105, %v109
  %v111 = vmul.f32 %v101, %v110
  %vm112 = vcmp.eq.f32.partialorder %v101, inf
  %v113 = vsel %vm112, %v101, %v111
  %vm114 = vcmp.eq.f32.partialorder %v101, 0.0
  %v115 = vand.u32 %v101, 2147483648
  %v116 = vsel %vm114, %v115, %v113
  %v117 = vrsqrt.pop %v102
  %v118 = vmul.f32 %v117, %v102
  %v119 = vmul.f32 %v118, %v117
  %v120 = vmul.f32 0.5, %v119
  %v121 = vsub.f32 1.5, %v120
  %v122 = vmul.f32 %v117, %v121
  %v123 = vmul.f32 %v102, %v122
  %vm124 = vcmp.eq.f32.partialorder %v102, inf
  %v125 = vsel %vm124, %v102, %v123
  %vm126 = vcmp.eq.f32.partialorder %v102, 0.0
  %v127 = vand.u32 %v102, 2147483648
  %v128 = vsel %vm126, %v127, %v125
  %v129 = vrsqrt.pop %v103
  %v130 = vmul.f32 %v129, %v103
  %v131 = vmul.f32 %v130, %v129
  %v132 = vmul.f32 0.5, %v131
  %v133 = vsub.f32 1.5, %v132
  %v134 = vmul.f32 %v129, %v133
  %v135 = vmul.f32 %v103, %v134
  %vm136 = vcmp.eq.f32.partialorder %v103, inf
  %v137 = vsel %vm136, %v103, %v135
  %vm138 = vcmp.eq.f32.partialorder %v103, 0.0
  %v139 = vand.u32 %v103, 2147483648
  %v140 = vsel %vm138, %v139, %v137
  %v141 = vrsqrt.pop %v104
  %v142 = vmul.f32 %v141, %v104
  %v143 = vmul.f32 %v142, %v141
  %v144 = vmul.f32 0.5, %v143
  %v145 = vsub.f32 1.5, %v144
  %v146 = vmul.f32 %v141, %v145
  %v147 = vmul.f32 %v104, %v146
  %vm148 = vcmp.eq.f32.partialorder %v104, inf
  %v149 = vsel %vm148, %v104, %v147
  %vm150 = vcmp.eq.f32.partialorder %v104, 0.0
  %v151 = vand.u32 %v104, 2147483648
  %v152 = vsel %vm150, %v151, %v149
  %v153 = vrcp.pop %v116
  %v154 = vmul.f32 %v116, %v153
  %v155 = vsub.f32 1.0, %v154
  %v156 = vmul.f32 %v153, %v155
  %v157 = vadd.f32 %v153, %v156
  %vm158 = vweird.f32 %v116
  %vm159 = vweird.f32 %v153
  %vm160 = vmor %vm158, %vm159
  %v161 = vsel %vm160, %v153, %v157
  %v162 = vand.u32 2147483647, %v116
  %vm163 = vcmp.eq.f32.partialorder %v162, 8.507059e+37
  %v164 = vand.u32 %v116, 2147483648
  %v165 = vor.u32 1.1754944e-38, %v164
  %v166 = vsel %vm163, %v165, %v161
  %v167 = vmul.f32 %v77, %v166
  %v168 = vrcp.pop %v128
  %v169 = vmul.f32 %v128, %v168
  %v170 = vsub.f32 1.0, %v169
  %v171 = vmul.f32 %v168, %v170
  %v172 = vadd.f32 %v168, %v171
  %vm173 = vweird.f32 %v128
  %vm174 = vweird.f32 %v168
  %vm175 = vmor %vm173, %vm174
  %v176 = vsel %vm175, %v168, %v172
  %v177 = vand.u32 2147483647, %v128
  %vm178 = vcmp.eq.f32.partialorder %v177, 8.507059e+37
  %v179 = vand.u32 %v128, 2147483648
  %v180 = vor.u32 1.1754944e-38, %v179
  %v181 = vsel %vm178, %v180, %v176
  %v182 = vmul.f32 %v78, %v181
  %v183 = vrcp.pop %v140
  %v184 = vmul.f32 %v140, %v183
  %v185 = vsub.f32 1.0, %v184
  %v186 = vmul.f32 %v183, %v185
  %v187 = vadd.f32 %v183, %v186
  %vm188 = vweird.f32 %v140
  %vm189 = vweird.f32 %v183
  %vm190 = vmor %vm188, %vm189
  %v191 = vsel %vm190, %v183, %v187
  %v192 = vand.u32 2147483647, %v140
  %vm193 = vcmp.eq.f32.partialorder %v192, 8.507059e+37
  %v194 = vand.u32 %v140, 2147483648
  %v195 = vor.u32 1.1754944e-38, %v194
  %v196 = vsel %vm193, %v195, %v191
  %v197 = vmul.f32 %v79, %v196
  %v198 = vrcp.pop %v152
  %v199 = vmul.f32 %v152, %v198
  %v200 = vsub.f32 1.0, %v199
  %v201 = vmul.f32 %v198, %v200
  %v202 = vadd.f32 %v198, %v201
  %vm203 = vweird.f32 %v152
  %vm204 = vweird.f32 %v198
  %vm205 = vmor %vm203, %vm204
  %v206 = vsel %vm205, %v198, %v202
  %v207 = vand.u32 2147483647, %v152
  %vm208 = vcmp.eq.f32.partialorder %v207, 8.507059e+37
  %v209 = vand.u32 %v152, 2147483648
  %v210 = vor.u32 1.1754944e-38, %v209
  %v211 = vsel %vm208, %v210, %v206
  %v212 = vmul.f32 %v80, %v211
  %v214 = vperm.slane %v51, 0
  %v216 = vmul.f32 %v167, %v214
  %v217 = vmul.f32 %v182, %v214
  %v218 = vmul.f32 %v197, %v214
  %v219 = vmul.f32 %v212, %v214
  %v221 = vperm.slane %v52, 0
  %v223 = vadd.f32 %v216, %v221
  %v224 = vadd.f32 %v217, %v221
  %v225 = vadd.f32 %v218, %v221
  %v226 = vadd.f32 %v219, %v221
  %v227 = vld [vmem:[%s3] sm:$0xff]
  %v228 = vld [vmem:[%s3 + $0x8] sm:$0xff]
  %v229 = vld [vmem:[%s3 + $0x10] sm:$0xff]
  %v230 = vld [vmem:[%s3 + $0x18] sm:$0xff]
  %v232 = vsel %vm53, %v223, 0
  %v235 = vsel %vm53, %v224, 0
  %v238 = vsel %vm53, %v225, 0
  %v241 = vsel %vm53, %v226, 0
  %243 = vmatpush.msra.mxu0 0.0
  %244 = vmatpush.msra.mxu0 0.0
  %245 = vmatpush.msra.mxu0 0.0
  %246 = vmatpush.msra.mxu0 0.0
  %247 = vmatpush.msra.mxu0 0.0
  %248 = vmatpush.msra.mxu0 0.0
  %249 = vmatpush.msra.mxu0 0.0
  %250 = vmatpush.msra.mxu0 0.0
  %251 = vmatpush.msra.mxu0 0.0
  %252 = vmatpush.msra.mxu0 0.0
  %253 = vmatpush.msra.mxu0 0.0
  %254 = vmatpush.msra.mxu0 0.0
  %255 = vmatpush.msra.mxu0 %v230
  %256 = vmatpush.msra.mxu0 %v229
  %257 = vmatpush.msra.mxu0 %v228
  %258 = vmatpush.msra.mxu0 %v227
  %259 = vmatmul.f32.gmra.mxu0 %v232
  %v260 = vpop.f32.mrf.mxu0
  %v261 = vadd.f32 0.0, %v260
  %262 = vmatmul.f32.gmra.mxu0 %v235
  %v263 = vpop.f32.mrf.mxu0
  %v264 = vadd.f32 0.0, %v263
  %265 = vmatmul.f32.gmra.mxu0 %v238
  %v266 = vpop.f32.mrf.mxu0
  %v267 = vadd.f32 0.0, %v266
  %268 = vmatmul.f32.gmra.mxu0 %v241
  %v269 = vpop.f32.mrf.mxu0
  %v270 = vadd.f32 0.0, %v269
  %271 = vdwg.mxu0
  %vm272 = vcmask 785408
  %273 = vst.msk [vmem:[#allocation2] sm:$0xff] %vm272, %v261
  %274 = vst.msk [vmem:[#allocation2 + $0x8] sm:$0xff] %vm272, %v264
  %275 = vst.msk [vmem:[#allocation2 + $0x10] sm:$0xff] %vm272, %v267
  %276 = vst.msk [vmem:[#allocation2 + $0x18] sm:$0xff] %vm272, %v270
  %v277 = vld [vmem:[#allocation2] sm:$0xff]
  %v278 = vld [vmem:[#allocation2 + $0x8] sm:$0xff]
  %281 = vrot.lane.b32.xlu0 %v277, 96
  %v282 = vpop.permute.xlu0 %281
  %283 = vrot.lane.b32.xlu0 %v278, 96
  %v284 = vpop.permute.xlu0 %283
  %vm285 = vcmask 31744
  %v286 = vsel %vm285, %v277, 0
  %v288 = vsel %vm285, %v278, 0
  %v290 = vsel %vm285, %v282, 0
  %v292 = vsel %vm285, %v284, 0
  %294 = vmatpush.xpose.msra.mxu0 0.0
  %295 = vmatpush.xpose.msra.mxu0 0.0
  %296 = vmatpush.xpose.msra.mxu0 0.0
  %297 = vmatpush.xpose.msra.mxu0 0.0
  %298 = vmatpush.xpose.msra.mxu0 0.0
  %299 = vmatpush.xpose.msra.mxu0 0.0
  %300 = vmatpush.xpose.msra.mxu0 0.0
  %301 = vmatpush.xpose.msra.mxu0 0.0
  %302 = vmatpush.xpose.msra.mxu0 0.0
  %303 = vmatpush.xpose.msra.mxu0 0.0
  %304 = vmatpush.xpose.msra.mxu0 0.0
  %305 = vmatpush.xpose.msra.mxu0 0.0
  %306 = vmatpush.xpose.msra.mxu0 0.0
  %307 = vmatpush.xpose.msra.mxu0 0.0
  %308 = vmatpush.xpose.msra.mxu0 %v292
  %309 = vmatpush.xpose.msra.mxu0 %v290
  %310 = vmatmul.f32.gmra.mxu0 %v286
  %v311 = vpop.f32.mrf.mxu0
  %v312 = vadd.f32 0.0, %v311
  %313 = vmatmul.f32.gmra.mxu0 %v288
  %v314 = vpop.f32.mrf.mxu0
  %v315 = vadd.f32 0.0, %v314
  %316 = vdwg.mxu0
  %v317 = vmul.f32 %v312, 0.5
  %v318 = vmul.f32 %v315, 0.5
  %vm319 = vcmask 130048
  %v320 = vsel %vm319, %v317, -inf
  %321 = vmax.xlane.f32.xlu0 %v320
  %v322 = vpop.xlane.xlu0 %321
  %v323 = vsel %vm319, %v318, -inf
  %324 = vmax.xlane.f32.xlu0 %v323
  %v325 = vpop.xlane.xlu0 %324
  %v326 = vsub.f32 %v317, %v322
  %v327 = vsub.f32 %v318, %v325
  %v328 = vmul.f32 %v326, 1.442695
  %v329 = vpow.pop %v328
  %v330 = vmul.f32 %v327, 1.442695
  %v331 = vpow.pop %v330
  %v332 = vsel %vm319, %v329, 0.0
  %333 = vadd.xlane.f32.xlu0 %v332
  %v334 = vpop.xlane.xlu0 %333
  %v335 = vsel %vm319, %v331, 0.0
  %336 = vadd.xlane.f32.xlu0 %v335
  %v337 = vpop.xlane.xlu0 %336
  %v338 = vrcp.pop %v334
  %v339 = vmul.f32 %v334, %v338
  %v340 = vsub.f32 1.0, %v339
  %v341 = vmul.f32 %v338, %v340
  %v342 = vadd.f32 %v338, %v341
  %vm343 = vweird.f32 %v334
  %vm344 = vweird.f32 %v338
  %vm345 = vmor %vm343, %vm344
  %v346 = vsel %vm345, %v338, %v342
  %v347 = vand.u32 2147483647, %v334
  %vm348 = vcmp.eq.f32.partialorder %v347, 8.507059e+37
  %v349 = vand.u32 %v334, 2147483648
  %v350 = vor.u32 1.1754944e-38, %v349
  %v351 = vsel %vm348, %v350, %v346
  %v352 = vmul.f32 %v329, %v351
  %v353 = vrcp.pop %v337
  %v354 = vmul.f32 %v337, %v353
  %v355 = vsub.f32 1.0, %v354
  %v356 = vmul.f32 %v353, %v355
  %v357 = vadd.f32 %v353, %v356
  %vm358 = vweird.f32 %v337
  %vm359 = vweird.f32 %v353
  %vm360 = vmor %vm358, %vm359
  %v361 = vsel %vm360, %v353, %v357
  %v362 = vand.u32 2147483647, %v337
  %vm363 = vcmp.eq.f32.partialorder %v362, 8.507059e+37
  %v364 = vand.u32 %v337, 2147483648
  %v365 = vor.u32 1.1754944e-38, %v364
  %v366 = vsel %vm363, %v365, %v361
  %v367 = vmul.f32 %v331, %v366
  %368 = vrot.lane.b32.xlu0 %v277, 64
  %v369 = vpop.permute.xlu0 %368
  %370 = vrot.lane.b32.xlu0 %v278, 64
  %v371 = vpop.permute.xlu0 %370
  %v375 = vsel %vm319, %v352, 0
  %v378 = vsel %vm319, %v367, 0
  %380 = vmatpush.msra.mxu0 0.0
  %381 = vmatpush.msra.mxu0 0.0
  %382 = vmatpush.msra.mxu0 0.0
  %383 = vmatpush.msra.mxu0 0.0
  %384 = vmatpush.msra.mxu0 0.0
  %385 = vmatpush.msra.mxu0 0.0
  %386 = vmatpush.msra.mxu0 0.0
  %387 = vmatpush.msra.mxu0 0.0
  %388 = vmatpush.msra.mxu0 0.0
  %389 = vmatpush.msra.mxu0 0.0
  %390 = vmatpush.msra.mxu0 0.0
  %391 = vmatpush.msra.mxu0 0.0
  %392 = vmatpush.msra.mxu0 0.0
  %393 = vmatpush.msra.mxu0 0.0
  %394 = vmatpush.msra.mxu0 %v371
  %395 = vmatpush.msra.mxu0 %v369
  %396 = vmatmul.f32.gmra.mxu0 %v375
  %v397 = vpop.f32.mrf.mxu0
  %v398 = vadd.f32 0.0, %v397
  %399 = vmatmul.f32.gmra.mxu0 %v378
  %v400 = vpop.f32.mrf.mxu0
  %v401 = vadd.f32 0.0, %v400
  %402 = vdwg.mxu0
  %403 = vst.msk [vmem:[#allocation3] sm:$0xff] %vm285, %v398
  %404 = vst.msk [vmem:[#allocation3 + $0x8] sm:$0xff] %vm285, %v401
  %v405 = vld [vmem:[#allocation2] sm:$0xff]
  %v406 = vld [vmem:[#allocation2 + $0x8] sm:$0xff]
  %409 = vrot.lane.b32.xlu0 %v405, 124
  %v410 = vpop.permute.xlu0 %409
  %411 = vrot.lane.b32.xlu0 %v406, 124
  %v412 = vpop.permute.xlu0 %411
  %413 = vrot.lane.b32.xlu0 %v405, 92
  %v414 = vpop.permute.xlu0 %413
  %415 = vrot.lane.b32.xlu0 %v406, 92
  %v416 = vpop.permute.xlu0 %415
  %v417 = vsel %vm285, %v410, 0
  %v419 = vsel %vm285, %v412, 0
  %v421 = vsel %vm285, %v414, 0
  %v423 = vsel %vm285, %v416, 0
  %425 = vmatpush.xpose.msra.mxu0 0.0
  %426 = vmatpush.xpose.msra.mxu0 0.0
  %427 = vmatpush.xpose.msra.mxu0 0.0
  %428 = vmatpush.xpose.msra.mxu0 0.0
  %429 = vmatpush.xpose.msra.mxu0 0.0
  %430 = vmatpush.xpose.msra.mxu0 0.0
  %431 = vmatpush.xpose.msra.mxu0 0.0
  %432 = vmatpush.xpose.msra.mxu0 0.0
  %433 = vmatpush.xpose.msra.mxu0 0.0
  %434 = vmatpush.xpose.msra.mxu0 0.0
  %435 = vmatpush.xpose.msra.mxu0 0.0
  %436 = vmatpush.xpose.msra.mxu0 0.0
  %437 = vmatpush.xpose.msra.mxu0 0.0
  %438 = vmatpush.xpose.msra.mxu0 0.0
  %439 = vmatpush.xpose.msra.mxu0 %v423
  %440 = vmatpush.xpose.msra.mxu0 %v421
  %441 = vmatmul.f32.gmra.mxu0 %v417
  %v442 = vpop.f32.mrf.mxu0
  %v443 = vadd.f32 0.0, %v442
  %444 = vmatmul.f32.gmra.mxu0 %v419
  %v445 = vpop.f32.mrf.mxu0
  %v446 = vadd.f32 0.0, %v445
  %447 = vdwg.mxu0
  %v448 = vmul.f32 %v443, 0.5
  %v449 = vmul.f32 %v446, 0.5
  %v450 = vsel %vm319, %v448, -inf
  %451 = vmax.xlane.f32.xlu0 %v450
  %v452 = vpop.xlane.xlu0 %451
  %v453 = vsel %vm319, %v449, -inf
  %454 = vmax.xlane.f32.xlu0 %v453
  %v455 = vpop.xlane.xlu0 %454
  %v456 = vsub.f32 %v448, %v452
  %v457 = vsub.f32 %v449, %v455
  %v458 = vmul.f32 %v456, 1.442695
  %v459 = vpow.pop %v458
  %v460 = vmul.f32 %v457, 1.442695
  %v461 = vpow.pop %v460
  %v462 = vsel %vm319, %v459, 0.0
  %463 = vadd.xlane.f32.xlu0 %v462
  %v464 = vpop.xlane.xlu0 %463
  %v465 = vsel %vm319, %v461, 0.0
  %466 = vadd.xlane.f32.xlu0 %v465
  %v467 = vpop.xlane.xlu0 %466
  %v468 = vrcp.pop %v464
  %v469 = vmul.f32 %v464, %v468
  %v470 = vsub.f32 1.0, %v469
  %v471 = vmul.f32 %v468, %v470
  %v472 = vadd.f32 %v468, %v471
  %vm473 = vweird.f32 %v464
  %vm474 = vweird.f32 %v468
  %vm475 = vmor %vm473, %vm474
  %v476 = vsel %vm475, %v468, %v472
  %v477 = vand.u32 2147483647, %v464
  %vm478 = vcmp.eq.f32.partialorder %v477, 8.507059e+37
  %v479 = vand.u32 %v464, 2147483648
  %v480 = vor.u32 1.1754944e-38, %v479
  %v481 = vsel %vm478, %v480, %v476
  %v482 = vmul.f32 %v459, %v481
  %v483 = vrcp.pop %v467
  %v484 = vmul.f32 %v467, %v483
  %v485 = vsub.f32 1.0, %v484
  %v486 = vmul.f32 %v483, %v485
  %v487 = vadd.f32 %v483, %v486
  %vm488 = vweird.f32 %v467
  %vm489 = vweird.f32 %v483
  %vm490 = vmor %vm488, %vm489
  %v491 = vsel %vm490, %v483, %v487
  %v492 = vand.u32 2147483647, %v467
  %vm493 = vcmp.eq.f32.partialorder %v492, 8.507059e+37
  %v494 = vand.u32 %v467, 2147483648
  %v495 = vor.u32 1.1754944e-38, %v494
  %v496 = vsel %vm493, %v495, %v491
  %v497 = vmul.f32 %v461, %v496
  %498 = vrot.lane.b32.xlu0 %v405, 60
  %v499 = vpop.permute.xlu0 %498
  %500 = vrot.lane.b32.xlu0 %v406, 60
  %v501 = vpop.permute.xlu0 %500
  %v505 = vsel %vm319, %v482, 0
  %v508 = vsel %vm319, %v497, 0
  %510 = vmatpush.msra.mxu0 0.0
  %511 = vmatpush.msra.mxu0 0.0
  %512 = vmatpush.msra.mxu0 0.0
  %513 = vmatpush.msra.mxu0 0.0
  %514 = vmatpush.msra.mxu0 0.0
  %515 = vmatpush.msra.mxu0 0.0
  %516 = vmatpush.msra.mxu0 0.0
  %517 = vmatpush.msra.mxu0 0.0
  %518 = vmatpush.msra.mxu0 0.0
  %519 = vmatpush.msra.mxu0 0.0
  %520 = vmatpush.msra.mxu0 0.0
  %521 = vmatpush.msra.mxu0 0.0
  %522 = vmatpush.msra.mxu0 0.0
  %523 = vmatpush.msra.mxu0 0.0
  %524 = vmatpush.msra.mxu0 %v501
  %525 = vmatpush.msra.mxu0 %v499
  %526 = vmatmul.f32.gmra.mxu0 %v505
  %v527 = vpop.f32.mrf.mxu0
  %v528 = vadd.f32 0.0, %v527
  %529 = vmatmul.f32.gmra.mxu0 %v508
  %v530 = vpop.f32.mrf.mxu0
  %v531 = vadd.f32 0.0, %v530
  %532 = vdwg.mxu0
  %535 = vrot.lane.b32.xlu0 %v528, 4
  %v536 = vpop.permute.xlu0 %535
  %537 = vrot.lane.b32.xlu0 %v531, 4
  %v538 = vpop.permute.xlu0 %537
  %vm541 = vcmask 64544
  %542 = vst.msk [vmem:[#allocation3] sm:$0xff] %vm541, %v536
  %543 = vst.msk [vmem:[#allocation3 + $0x8] sm:$0xff] %vm541, %v538
  %v544 = vld [vmem:[#allocation2] sm:$0xff]
  %v545 = vld [vmem:[#allocation2 + $0x8] sm:$0xff]
  %548 = vrot.lane.b32.xlu0 %v544, 120
  %v549 = vpop.permute.xlu0 %548
  %550 = vrot.lane.b32.xlu0 %v545, 120
  %v551 = vpop.permute.xlu0 %550
  %552 = vrot.lane.b32.xlu0 %v544, 88
  %v553 = vpop.permute.xlu0 %552
  %554 = vrot.lane.b32.xlu0 %v545, 88
  %v555 = vpop.permute.xlu0 %554
  %v556 = vsel %vm285, %v549, 0
  %v558 = vsel %vm285, %v551, 0
  %v560 = vsel %vm285, %v553, 0
  %v562 = vsel %vm285, %v555, 0
  %564 = vmatpush.xpose.msra.mxu0 0.0
  %565 = vmatpush.xpose.msra.mxu0 0.0
  %566 = vmatpush.xpose.msra.mxu0 0.0
  %567 = vmatpush.xpose.msra.mxu0 0.0
  %568 = vmatpush.xpose.msra.mxu0 0.0
  %569 = vmatpush.xpose.msra.mxu0 0.0
  %570 = vmatpush.xpose.msra.mxu0 0.0
  %571 = vmatpush.xpose.msra.mxu0 0.0
  %572 = vmatpush.xpose.msra.mxu0 0.0
  %573 = vmatpush.xpose.msra.mxu0 0.0
  %574 = vmatpush.xpose.msra.mxu0 0.0
  %575 = vmatpush.xpose.msra.mxu0 0.0
  %576 = vmatpush.xpose.msra.mxu0 0.0
  %577 = vmatpush.xpose.msra.mxu0 0.0
  %578 = vmatpush.xpose.msra.mxu0 %v562
  %579 = vmatpush.xpose.msra.mxu0 %v560
  %580 = vmatmul.f32.gmra.mxu0 %v556
  %v581 = vpop.f32.mrf.mxu0
  %v582 = vadd.f32 0.0, %v581
  %583 = vmatmul.f32.gmra.mxu0 %v558
  %v584 = vpop.f32.mrf.mxu0
  %v585 = vadd.f32 0.0, %v584
  %586 = vdwg.mxu0
  %v587 = vmul.f32 %v582, 0.5
  %v588 = vmul.f32 %v585, 0.5
  %v589 = vsel %vm319, %v587, -inf
  %590 = vmax.xlane.f32.xlu0 %v589
  %v591 = vpop.xlane.xlu0 %590
  %v592 = vsel %vm319, %v588, -inf
  %593 = vmax.xlane.f32.xlu0 %v592
  %v594 = vpop.xlane.xlu0 %593
  %v595 = vsub.f32 %v587, %v591
  %v596 = vsub.f32 %v588, %v594
  %v597 = vmul.f32 %v595, 1.442695
  %v598 = vpow.pop %v597
  %v599 = vmul.f32 %v596, 1.442695
  %v600 = vpow.pop %v599
  %v601 = vsel %vm319, %v598, 0.0
  %602 = vadd.xlane.f32.xlu0 %v601
  %v603 = vpop.xlane.xlu0 %602
  %v604 = vsel %vm319, %v600, 0.0
  %605 = vadd.xlane.f32.xlu0 %v604
  %v606 = vpop.xlane.xlu0 %605
  %v607 = vrcp.pop %v603
  %v608 = vmul.f32 %v603, %v607
  %v609 = vsub.f32 1.0, %v608
  %v610 = vmul.f32 %v607, %v609
  %v611 = vadd.f32 %v607, %v610
  %vm612 = vweird.f32 %v603
  %vm613 = vweird.f32 %v607
  %vm614 = vmor %vm612, %vm613
  %v615 = vsel %vm614, %v607, %v611
  %v616 = vand.u32 2147483647, %v603
  %vm617 = vcmp.eq.f32.partialorder %v616, 8.507059e+37
  %v618 = vand.u32 %v603, 2147483648
  %v619 = vor.u32 1.1754944e-38, %v618
  %v620 = vsel %vm617, %v619, %v615
  %v621 = vmul.f32 %v598, %v620
  %v622 = vrcp.pop %v606
  %v623 = vmul.f32 %v606, %v622
  %v624 = vsub.f32 1.0, %v623
  %v625 = vmul.f32 %v622, %v624
  %v626 = vadd.f32 %v622, %v625
  %vm627 = vweird.f32 %v606
  %vm628 = vweird.f32 %v622
  %vm629 = vmor %vm627, %vm628
  %v630 = vsel %vm629, %v622, %v626
  %v631 = vand.u32 2147483647, %v606
  %vm632 = vcmp.eq.f32.partialorder %v631, 8.507059e+37
  %v633 = vand.u32 %v606, 2147483648
  %v634 = vor.u32 1.1754944e-38, %v633
  %v635 = vsel %vm632, %v634, %v630
  %v636 = vmul.f32 %v600, %v635
  %637 = vrot.lane.b32.xlu0 %v544, 56
  %v638 = vpop.permute.xlu0 %637
  %639 = vrot.lane.b32.xlu0 %v545, 56
  %v640 = vpop.permute.xlu0 %639
  %v644 = vsel %vm319, %v621, 0
  %v647 = vsel %vm319, %v636, 0
  %649 = vmatpush.msra.mxu0 0.0
  %650 = vmatpush.msra.mxu0 0.0
  %651 = vmatpush.msra.mxu0 0.0
  %652 = vmatpush.msra.mxu0 0.0
  %653 = vmatpush.msra.mxu0 0.0
  %654 = vmatpush.msra.mxu0 0.0
  %655 = vmatpush.msra.mxu0 0.0
  %656 = vmatpush.msra.mxu0 0.0
  %657 = vmatpush.msra.mxu0 0.0
  %658 = vmatpush.msra.mxu0 0.0
  %659 = vmatpush.msra.mxu0 0.0
  %660 = vmatpush.msra.mxu0 0.0
  %661 = vmatpush.msra.mxu0 0.0
  %662 = vmatpush.msra.mxu0 0.0
  %663 = vmatpush.msra.mxu0 %v640
  %664 = vmatpush.msra.mxu0 %v638
  %665 = vmatmul.f32.gmra.mxu0 %v644
  %v666 = vpop.f32.mrf.mxu0
  %v667 = vadd.f32 0.0, %v666
  %668 = vmatmul.f32.gmra.mxu0 %v647
  %v669 = vpop.f32.mrf.mxu0
  %v670 = vadd.f32 0.0, %v669
  %671 = vdwg.mxu0
  %674 = vrot.lane.b32.xlu0 %v667, 8
  %v675 = vpop.permute.xlu0 %674
  %676 = vrot.lane.b32.xlu0 %v670, 8
  %v677 = vpop.permute.xlu0 %676
  %vm680 = vcmask 97344
  %681 = vst.msk [vmem:[#allocation3] sm:$0xff] %vm680, %v675
  %682 = vst.msk [vmem:[#allocation3 + $0x8] sm:$0xff] %vm680, %v677
  %v683 = vld [vmem:[#allocation2] sm:$0xff]
  %v684 = vld [vmem:[#allocation2 + $0x8] sm:$0xff]
  %687 = vrot.lane.b32.xlu0 %v683, 116
  %v688 = vpop.permute.xlu0 %687
  %689 = vrot.lane.b32.xlu0 %v684, 116
  %v690 = vpop.permute.xlu0 %689
  %691 = vrot.lane.b32.xlu0 %v683, 84
  %v692 = vpop.permute.xlu0 %691
  %693 = vrot.lane.b32.xlu0 %v684, 84
  %v694 = vpop.permute.xlu0 %693
  %v695 = vsel %vm285, %v688, 0
  %v697 = vsel %vm285, %v690, 0
  %v699 = vsel %vm285, %v692, 0
  %v701 = vsel %vm285, %v694, 0
  %703 = vmatpush.xpose.msra.mxu0 0.0
  %704 = vmatpush.xpose.msra.mxu0 0.0
  %705 = vmatpush.xpose.msra.mxu0 0.0
  %706 = vmatpush.xpose.msra.mxu0 0.0
  %707 = vmatpush.xpose.msra.mxu0 0.0
  %708 = vmatpush.xpose.msra.mxu0 0.0
  %709 = vmatpush.xpose.msra.mxu0 0.0
  %710 = vmatpush.xpose.msra.mxu0 0.0
  %711 = vmatpush.xpose.msra.mxu0 0.0
  %712 = vmatpush.xpose.msra.mxu0 0.0
  %713 = vmatpush.xpose.msra.mxu0 0.0
  %714 = vmatpush.xpose.msra.mxu0 0.0
  %715 = vmatpush.xpose.msra.mxu0 0.0
  %716 = vmatpush.xpose.msra.mxu0 0.0
  %717 = vmatpush.xpose.msra.mxu0 %v701
  %718 = vmatpush.xpose.msra.mxu0 %v699
  %719 = vmatmul.f32.gmra.mxu0 %v695
  %v720 = vpop.f32.mrf.mxu0
  %v721 = vadd.f32 0.0, %v720
  %722 = vmatmul.f32.gmra.mxu0 %v697
  %v723 = vpop.f32.mrf.mxu0
  %v724 = vadd.f32 0.0, %v723
  %725 = vdwg.mxu0
  %v726 = vmul.f32 %v721, 0.5
  %v727 = vmul.f32 %v724, 0.5
  %v728 = vsel %vm319, %v726, -inf
  %729 = vmax.xlane.f32.xlu0 %v728
  %v730 = vpop.xlane.xlu0 %729
  %v731 = vsel %vm319, %v727, -inf
  %732 = vmax.xlane.f32.xlu0 %v731
  %v733 = vpop.xlane.xlu0 %732
  %v734 = vsub.f32 %v726, %v730
  %v735 = vsub.f32 %v727, %v733
  %v736 = vmul.f32 %v734, 1.442695
  %v737 = vpow.pop %v736
  %v738 = vmul.f32 %v735, 1.442695
  %v739 = vpow.pop %v738
  %v740 = vsel %vm319, %v737, 0.0
  %741 = vadd.xlane.f32.xlu0 %v740
  %v742 = vpop.xlane.xlu0 %741
  %v743 = vsel %vm319, %v739, 0.0
  %744 = vadd.xlane.f32.xlu0 %v743
  %v745 = vpop.xlane.xlu0 %744
  %v746 = vrcp.pop %v742
  %v747 = vmul.f32 %v742, %v746
  %v748 = vsub.f32 1.0, %v747
  %v749 = vmul.f32 %v746, %v748
  %v750 = vadd.f32 %v746, %v749
  %vm751 = vweird.f32 %v742
  %vm752 = vweird.f32 %v746
  %vm753 = vmor %vm751, %vm752
  %v754 = vsel %vm753, %v746, %v750
  %v755 = vand.u32 2147483647, %v742
  %vm756 = vcmp.eq.f32.partialorder %v755, 8.507059e+37
  %v757 = vand.u32 %v742, 2147483648
  %v758 = vor.u32 1.1754944e-38, %v757
  %v759 = vsel %vm756, %v758, %v754
  %v760 = vmul.f32 %v737, %v759
  %v761 = vrcp.pop %v745
  %v762 = vmul.f32 %v745, %v761
  %v763 = vsub.f32 1.0, %v762
  %v764 = vmul.f32 %v761, %v763
  %v765 = vadd.f32 %v761, %v764
  %vm766 = vweird.f32 %v745
  %vm767 = vweird.f32 %v761
  %vm768 = vmor %vm766, %vm767
  %v769 = vsel %vm768, %v761, %v765
  %v770 = vand.u32 2147483647, %v745
  %vm771 = vcmp.eq.f32.partialorder %v770, 8.507059e+37
  %v772 = vand.u32 %v745, 2147483648
  %v773 = vor.u32 1.1754944e-38, %v772
  %v774 = vsel %vm771, %v773, %v769
  %v775 = vmul.f32 %v739, %v774
  %776 = vrot.lane.b32.xlu0 %v683, 52
  %v777 = vpop.permute.xlu0 %776
  %778 = vrot.lane.b32.xlu0 %v684, 52
  %v779 = vpop.permute.xlu0 %778
  %v783 = vsel %vm319, %v760, 0
  %v786 = vsel %vm319, %v775, 0
  %788 = vmatpush.msra.mxu0 0.0
  %789 = vmatpush.msra.mxu0 0.0
  %790 = vmatpush.msra.mxu0 0.0
  %791 = vmatpush.msra.mxu0 0.0
  %792 = vmatpush.msra.mxu0 0.0
  %793 = vmatpush.msra.mxu0 0.0
  %794 = vmatpush.msra.mxu0 0.0
  %795 = vmatpush.msra.mxu0 0.0
  %796 = vmatpush.msra.mxu0 0.0
  %797 = vmatpush.msra.mxu0 0.0
  %798 = vmatpush.msra.mxu0 0.0
  %799 = vmatpush.msra.mxu0 0.0
  %800 = vmatpush.msra.mxu0 0.0
  %801 = vmatpush.msra.mxu0 0.0
  %802 = vmatpush.msra.mxu0 %v779
  %803 = vmatpush.msra.mxu0 %v777
  %804 = vmatmul.f32.gmra.mxu0 %v783
  %v805 = vpop.f32.mrf.mxu0
  %v806 = vadd.f32 0.0, %v805
  %807 = vmatmul.f32.gmra.mxu0 %v786
  %v808 = vpop.f32.mrf.mxu0
  %v809 = vadd.f32 0.0, %v808
  %810 = vdwg.mxu0
  %813 = vrot.lane.b32.xlu0 %v806, 12
  %v814 = vpop.permute.xlu0 %813
  %815 = vrot.lane.b32.xlu0 %v809, 12
  %v816 = vpop.permute.xlu0 %815
  %vm819 = vcmask 130144
  %820 = vst.msk [vmem:[#allocation3] sm:$0xff] %vm819, %v814
  %821 = vst.msk [vmem:[#allocation3 + $0x8] sm:$0xff] %vm819, %v816
  %v822 = vld [vmem:[#allocation2] sm:$0xff]
  %v823 = vld [vmem:[#allocation2 + $0x8] sm:$0xff]
  %826 = vrot.lane.b32.xlu0 %v822, 112
  %v827 = vpop.permute.xlu0 %826
  %828 = vrot.lane.b32.xlu0 %v823, 112
  %v829 = vpop.permute.xlu0 %828
  %830 = vrot.lane.b32.xlu0 %v822, 80
  %v831 = vpop.permute.xlu0 %830
  %832 = vrot.lane.b32.xlu0 %v823, 80
  %v833 = vpop.permute.xlu0 %832
  %v834 = vsel %vm285, %v827, 0
  %v836 = vsel %vm285, %v829, 0
  %v838 = vsel %vm285, %v831, 0
  %v840 = vsel %vm285, %v833, 0
  %842 = vmatpush.xpose.msra.mxu0 0.0
  %843 = vmatpush.xpose.msra.mxu0 0.0
  %844 = vmatpush.xpose.msra.mxu0 0.0
  %845 = vmatpush.xpose.msra.mxu0 0.0
  %846 = vmatpush.xpose.msra.mxu0 0.0
  %847 = vmatpush.xpose.msra.mxu0 0.0
  %848 = vmatpush.xpose.msra.mxu0 0.0
  %849 = vmatpush.xpose.msra.mxu0 0.0
  %850 = vmatpush.xpose.msra.mxu0 0.0
  %851 = vmatpush.xpose.msra.mxu0 0.0
  %852 = vmatpush.xpose.msra.mxu0 0.0
  %853 = vmatpush.xpose.msra.mxu0 0.0
  %854 = vmatpush.xpose.msra.mxu0 0.0
  %855 = vmatpush.xpose.msra.mxu0 0.0
  %856 = vmatpush.xpose.msra.mxu0 %v840
  %857 = vmatpush.xpose.msra.mxu0 %v838
  %858 = vmatmul.f32.gmra.mxu0 %v834
  %v859 = vpop.f32.mrf.mxu0
  %v860 = vadd.f32 0.0, %v859
  %861 = vmatmul.f32.gmra.mxu0 %v836
  %v862 = vpop.f32.mrf.mxu0
  %v863 = vadd.f32 0.0, %v862
  %864 = vdwg.mxu0
  %v865 = vmul.f32 %v860, 0.5
  %v866 = vmul.f32 %v863, 0.5
  %v867 = vsel %vm319, %v865, -inf
  %868 = vmax.xlane.f32.xlu0 %v867
  %v869 = vpop.xlane.xlu0 %868
  %v870 = vsel %vm319, %v866, -inf
  %871 = vmax.xlane.f32.xlu0 %v870
  %v872 = vpop.xlane.xlu0 %871
  %v873 = vsub.f32 %v865, %v869
  %v874 = vsub.f32 %v866, %v872
  %v875 = vmul.f32 %v873, 1.442695
  %v876 = vpow.pop %v875
  %v877 = vmul.f32 %v874, 1.442695
  %v878 = vpow.pop %v877
  %v879 = vsel %vm319, %v876, 0.0
  %880 = vadd.xlane.f32.xlu0 %v879
  %v881 = vpop.xlane.xlu0 %880
  %v882 = vsel %vm319, %v878, 0.0
  %883 = vadd.xlane.f32.xlu0 %v882
  %v884 = vpop.xlane.xlu0 %883
  %v885 = vrcp.pop %v881
  %v886 = vmul.f32 %v881, %v885
  %v887 = vsub.f32 1.0, %v886
  %v888 = vmul.f32 %v885, %v887
  %v889 = vadd.f32 %v885, %v888
  %vm890 = vweird.f32 %v881
  %vm891 = vweird.f32 %v885
  %vm892 = vmor %vm890, %vm891
  %v893 = vsel %vm892, %v885, %v889
  %v894 = vand.u32 2147483647, %v881
  %vm895 = vcmp.eq.f32.partialorder %v894, 8.507059e+37
  %v896 = vand.u32 %v881, 2147483648
  %v897 = vor.u32 1.1754944e-38, %v896
  %v898 = vsel %vm895, %v897, %v893
  %v899 = vmul.f32 %v876, %v898
  %v900 = vrcp.pop %v884
  %v901 = vmul.f32 %v884, %v900
  %v902 = vsub.f32 1.0, %v901
  %v903 = vmul.f32 %v900, %v902
  %v904 = vadd.f32 %v900, %v903
  %vm905 = vweird.f32 %v884
  %vm906 = vweird.f32 %v900
  %vm907 = vmor %vm905, %vm906
  %v908 = vsel %vm907, %v900, %v904
  %v909 = vand.u32 2147483647, %v884
  %vm910 = vcmp.eq.f32.partialorder %v909, 8.507059e+37
  %v911 = vand.u32 %v884, 2147483648
  %v912 = vor.u32 1.1754944e-38, %v911
  %v913 = vsel %vm910, %v912, %v908
  %v914 = vmul.f32 %v878, %v913
  %915 = vrot.lane.b32.xlu0 %v822, 48
  %v916 = vpop.permute.xlu0 %915
  %917 = vrot.lane.b32.xlu0 %v823, 48
  %v918 = vpop.permute.xlu0 %917
  %v922 = vsel %vm319, %v899, 0
  %v925 = vsel %vm319, %v914, 0
  %927 = vmatpush.msra.mxu0 0.0
  %928 = vmatpush.msra.mxu0 0.0
  %929 = vmatpush.msra.mxu0 0.0
  %930 = vmatpush.msra.mxu0 0.0
  %931 = vmatpush.msra.mxu0 0.0
  %932 = vmatpush.msra.mxu0 0.0
  %933 = vmatpush.msra.mxu0 0.0
  %934 = vmatpush.msra.mxu0 0.0
  %935 = vmatpush.msra.mxu0 0.0
  %936 = vmatpush.msra.mxu0 0.0
  %937 = vmatpush.msra.mxu0 0.0
  %938 = vmatpush.msra.mxu0 0.0
  %939 = vmatpush.msra.mxu0 0.0
  %940 = vmatpush.msra.mxu0 0.0
  %941 = vmatpush.msra.mxu0 %v918
  %942 = vmatpush.msra.mxu0 %v916
  %943 = vmatmul.f32.gmra.mxu0 %v922
  %v944 = vpop.f32.mrf.mxu0
  %v945 = vadd.f32 0.0, %v944
  %946 = vmatmul.f32.gmra.mxu0 %v925
  %v947 = vpop.f32.mrf.mxu0
  %v948 = vadd.f32 0.0, %v947
  %949 = vdwg.mxu0
  %952 = vrot.lane.b32.xlu0 %v945, 16
  %v953 = vpop.permute.xlu0 %952
  %954 = vrot.lane.b32.xlu0 %v948, 16
  %v955 = vpop.permute.xlu0 %954
  %vm958 = vcmask 162944
  %959 = vst.msk [vmem:[#allocation3] sm:$0xff] %vm958, %v953
  %960 = vst.msk [vmem:[#allocation3 + $0x8] sm:$0xff] %vm958, %v955
  %v961 = vld [vmem:[#allocation2] sm:$0xff]
  %v962 = vld [vmem:[#allocation2 + $0x8] sm:$0xff]
  %965 = vrot.lane.b32.xlu0 %v961, 108
  %v966 = vpop.permute.xlu0 %965
  %967 = vrot.lane.b32.xlu0 %v962, 108
  %v968 = vpop.permute.xlu0 %967
  %969 = vrot.lane.b32.xlu0 %v961, 76
  %v970 = vpop.permute.xlu0 %969
  %971 = vrot.lane.b32.xlu0 %v962, 76
  %v972 = vpop.permute.xlu0 %971
  %v973 = vsel %vm285, %v966, 0
  %v975 = vsel %vm285, %v968, 0
  %v977 = vsel %vm285, %v970, 0
  %v979 = vsel %vm285, %v972, 0
  %981 = vmatpush.xpose.msra.mxu0 0.0
  %982 = vmatpush.xpose.msra.mxu0 0.0
  %983 = vmatpush.xpose.msra.mxu0 0.0
  %984 = vmatpush.xpose.msra.mxu0 0.0
  %985 = vmatpush.xpose.msra.mxu0 0.0
  %986 = vmatpush.xpose.msra.mxu0 0.0
  %987 = vmatpush.xpose.msra.mxu0 0.0
  %988 = vmatpush.xpose.msra.mxu0 0.0
  %989 = vmatpush.xpose.msra.mxu0 0.0
  %990 = vmatpush.xpose.msra.mxu0 0.0
  %991 = vmatpush.xpose.msra.mxu0 0.0
  %992 = vmatpush.xpose.msra.mxu0 0.0
  %993 = vmatpush.xpose.msra.mxu0 0.0
  %994 = vmatpush.xpose.msra.mxu0 0.0
  %995 = vmatpush.xpose.msra.mxu0 %v979
  %996 = vmatpush.xpose.msra.mxu0 %v977
  %997 = vmatmul.f32.gmra.mxu0 %v973
  %v998 = vpop.f32.mrf.mxu0
  %v999 = vadd.f32 0.0, %v998
  %1000 = vmatmul.f32.gmra.mxu0 %v975
  %v1001 = vpop.f32.mrf.mxu0
  %v1002 = vadd.f32 0.0, %v1001
  %1003 = vdwg.mxu0
  %v1004 = vmul.f32 %v999, 0.5
  %v1005 = vmul.f32 %v1002, 0.5
  %v1006 = vsel %vm319, %v1004, -inf
  %1007 = vmax.xlane.f32.xlu0 %v1006
  %v1008 = vpop.xlane.xlu0 %1007
  %v1009 = vsel %vm319, %v1005, -inf
  %1010 = vmax.xlane.f32.xlu0 %v1009
  %v1011 = vpop.xlane.xlu0 %1010
  %v1012 = vsub.f32 %v1004, %v1008
  %v1013 = vsub.f32 %v1005, %v1011
  %v1014 = vmul.f32 %v1012, 1.442695
  %v1015 = vpow.pop %v1014
  %v1016 = vmul.f32 %v1013, 1.442695
  %v1017 = vpow.pop %v1016
  %v1018 = vsel %vm319, %v1015, 0.0
  %1019 = vadd.xlane.f32.xlu0 %v1018
  %v1020 = vpop.xlane.xlu0 %1019
  %v1021 = vsel %vm319, %v1017, 0.0
  %1022 = vadd.xlane.f32.xlu0 %v1021
  %v1023 = vpop.xlane.xlu0 %1022
  %v1024 = vrcp.pop %v1020
  %v1025 = vmul.f32 %v1020, %v1024
  %v1026 = vsub.f32 1.0, %v1025
  %v1027 = vmul.f32 %v1024, %v1026
  %v1028 = vadd.f32 %v1024, %v1027
  %vm1029 = vweird.f32 %v1020
  %vm1030 = vweird.f32 %v1024
  %vm1031 = vmor %vm1029, %vm1030
  %v1032 = vsel %vm1031, %v1024, %v1028
  %v1033 = vand.u32 2147483647, %v1020
  %vm1034 = vcmp.eq.f32.partialorder %v1033, 8.507059e+37
  %v1035 = vand.u32 %v1020, 2147483648
  %v1036 = vor.u32 1.1754944e-38, %v1035
  %v1037 = vsel %vm1034, %v1036, %v1032
  %v1038 = vmul.f32 %v1015, %v1037
  %v1039 = vrcp.pop %v1023
  %v1040 = vmul.f32 %v1023, %v1039
  %v1041 = vsub.f32 1.0, %v1040
  %v1042 = vmul.f32 %v1039, %v1041
  %v1043 = vadd.f32 %v1039, %v1042
  %vm1044 = vweird.f32 %v1023
  %vm1045 = vweird.f32 %v1039
  %vm1046 = vmor %vm1044, %vm1045
  %v1047 = vsel %vm1046, %v1039, %v1043
  %v1048 = vand.u32 2147483647, %v1023
  %vm1049 = vcmp.eq.f32.partialorder %v1048, 8.507059e+37
  %v1050 = vand.u32 %v1023, 2147483648
  %v1051 = vor.u32 1.1754944e-38, %v1050
  %v1052 = vsel %vm1049, %v1051, %v1047
  %v1053 = vmul.f32 %v1017, %v1052
  %1054 = vrot.lane.b32.xlu0 %v961, 44
  %v1055 = vpop.permute.xlu0 %1054
  %1056 = vrot.lane.b32.xlu0 %v962, 44
  %v1057 = vpop.permute.xlu0 %1056
  %v1061 = vsel %vm319, %v1038, 0
  %v1064 = vsel %vm319, %v1053, 0
  %1066 = vmatpush.msra.mxu0 0.0
  %1067 = vmatpush.msra.mxu0 0.0
  %1068 = vmatpush.msra.mxu0 0.0
  %1069 = vmatpush.msra.mxu0 0.0
  %1070 = vmatpush.msra.mxu0 0.0
  %1071 = vmatpush.msra.mxu0 0.0
  %1072 = vmatpush.msra.mxu0 0.0
  %1073 = vmatpush.msra.mxu0 0.0
  %1074 = vmatpush.msra.mxu0 0.0
  %1075 = vmatpush.msra.mxu0 0.0
  %1076 = vmatpush.msra.mxu0 0.0
  %1077 = vmatpush.msra.mxu0 0.0
  %1078 = vmatpush.msra.mxu0 0.0
  %1079 = vmatpush.msra.mxu0 0.0
  %1080 = vmatpush.msra.mxu0 %v1057
  %1081 = vmatpush.msra.mxu0 %v1055
  %1082 = vmatmul.f32.gmra.mxu0 %v1061
  %v1083 = vpop.f32.mrf.mxu0
  %v1084 = vadd.f32 0.0, %v1083
  %1085 = vmatmul.f32.gmra.mxu0 %v1064
  %v1086 = vpop.f32.mrf.mxu0
  %v1087 = vadd.f32 0.0, %v1086
  %1088 = vdwg.mxu0
  %1091 = vrot.lane.b32.xlu0 %v1084, 20
  %v1092 = vpop.permute.xlu0 %1091
  %1093 = vrot.lane.b32.xlu0 %v1087, 20
  %v1094 = vpop.permute.xlu0 %1093
  %vm1097 = vcmask 195744
  %1098 = vst.msk [vmem:[#allocation3] sm:$0xff] %vm1097, %v1092
  %1099 = vst.msk [vmem:[#allocation3 + $0x8] sm:$0xff] %vm1097, %v1094
  %v1100 = vld [vmem:[#allocation2] sm:$0xff]
  %v1101 = vld [vmem:[#allocation2 + $0x8] sm:$0xff]
  %1104 = vrot.lane.b32.xlu0 %v1100, 104
  %v1105 = vpop.permute.xlu0 %1104
  %1106 = vrot.lane.b32.xlu0 %v1101, 104
  %v1107 = vpop.permute.xlu0 %1106
  %1108 = vrot.lane.b32.xlu0 %v1100, 72
  %v1109 = vpop.permute.xlu0 %1108
  %1110 = vrot.lane.b32.xlu0 %v1101, 72
  %v1111 = vpop.permute.xlu0 %1110
  %v1112 = vsel %vm285, %v1105, 0
  %v1114 = vsel %vm285, %v1107, 0
  %v1116 = vsel %vm285, %v1109, 0
  %v1118 = vsel %vm285, %v1111, 0
  %1120 = vmatpush.xpose.msra.mxu0 0.0
  %1121 = vmatpush.xpose.msra.mxu0 0.0
  %1122 = vmatpush.xpose.msra.mxu0 0.0
  %1123 = vmatpush.xpose.msra.mxu0 0.0
  %1124 = vmatpush.xpose.msra.mxu0 0.0
  %1125 = vmatpush.xpose.msra.mxu0 0.0
  %1126 = vmatpush.xpose.msra.mxu0 0.0
  %1127 = vmatpush.xpose.msra.mxu0 0.0
  %1128 = vmatpush.xpose.msra.mxu0 0.0
  %1129 = vmatpush.xpose.msra.mxu0 0.0
  %1130 = vmatpush.xpose.msra.mxu0 0.0
  %1131 = vmatpush.xpose.msra.mxu0 0.0
  %1132 = vmatpush.xpose.msra.mxu0 0.0
  %1133 = vmatpush.xpose.msra.mxu0 0.0
  %1134 = vmatpush.xpose.msra.mxu0 %v1118
  %1135 = vmatpush.xpose.msra.mxu0 %v1116
  %1136 = vmatmul.f32.gmra.mxu0 %v1112
  %v1137 = vpop.f32.mrf.mxu0
  %v1138 = vadd.f32 0.0, %v1137
  %1139 = vmatmul.f32.gmra.mxu0 %v1114
  %v1140 = vpop.f32.mrf.mxu0
  %v1141 = vadd.f32 0.0, %v1140
  %1142 = vdwg.mxu0
  %v1143 = vmul.f32 %v1138, 0.5
  %v1144 = vmul.f32 %v1141, 0.5
  %v1145 = vsel %vm319, %v1143, -inf
  %1146 = vmax.xlane.f32.xlu0 %v1145
  %v1147 = vpop.xlane.xlu0 %1146
  %v1148 = vsel %vm319, %v1144, -inf
  %1149 = vmax.xlane.f32.xlu0 %v1148
  %v1150 = vpop.xlane.xlu0 %1149
  %v1151 = vsub.f32 %v1143, %v1147
  %v1152 = vsub.f32 %v1144, %v1150
  %v1153 = vmul.f32 %v1151, 1.442695
  %v1154 = vpow.pop %v1153
  %v1155 = vmul.f32 %v1152, 1.442695
  %v1156 = vpow.pop %v1155
  %v1157 = vsel %vm319, %v1154, 0.0
  %1158 = vadd.xlane.f32.xlu0 %v1157
  %v1159 = vpop.xlane.xlu0 %1158
  %v1160 = vsel %vm319, %v1156, 0.0
  %1161 = vadd.xlane.f32.xlu0 %v1160
  %v1162 = vpop.xlane.xlu0 %1161
  %v1163 = vrcp.pop %v1159
  %v1164 = vmul.f32 %v1159, %v1163
  %v1165 = vsub.f32 1.0, %v1164
  %v1166 = vmul.f32 %v1163, %v1165
  %v1167 = vadd.f32 %v1163, %v1166
  %vm1168 = vweird.f32 %v1159
  %vm1169 = vweird.f32 %v1163
  %vm1170 = vmor %vm1168, %vm1169
  %v1171 = vsel %vm1170, %v1163, %v1167
  %v1172 = vand.u32 2147483647, %v1159
  %vm1173 = vcmp.eq.f32.partialorder %v1172, 8.507059e+37
  %v1174 = vand.u32 %v1159, 2147483648
  %v1175 = vor.u32 1.1754944e-38, %v1174
  %v1176 = vsel %vm1173, %v1175, %v1171
  %v1177 = vmul.f32 %v1154, %v1176
  %v1178 = vrcp.pop %v1162
  %v1179 = vmul.f32 %v1162, %v1178
  %v1180 = vsub.f32 1.0, %v1179
  %v1181 = vmul.f32 %v1178, %v1180
  %v1182 = vadd.f32 %v1178, %v1181
  %vm1183 = vweird.f32 %v1162
  %vm1184 = vweird.f32 %v1178
  %vm1185 = vmor %vm1183, %vm1184
  %v1186 = vsel %vm1185, %v1178, %v1182
  %v1187 = vand.u32 2147483647, %v1162
  %vm1188 = vcmp.eq.f32.partialorder %v1187, 8.507059e+37
  %v1189 = vand.u32 %v1162, 2147483648
  %v1190 = vor.u32 1.1754944e-38, %v1189
  %v1191 = vsel %vm1188, %v1190, %v1186
  %v1192 = vmul.f32 %v1156, %v1191
  %1193 = vrot.lane.b32.xlu0 %v1100, 40
  %v1194 = vpop.permute.xlu0 %1193
  %1195 = vrot.lane.b32.xlu0 %v1101, 40
  %v1196 = vpop.permute.xlu0 %1195
  %v1200 = vsel %vm319, %v1177, 0
  %v1203 = vsel %vm319, %v1192, 0
  %1205 = vmatpush.msra.mxu0 0.0
  %1206 = vmatpush.msra.mxu0 0.0
  %1207 = vmatpush.msra.mxu0 0.0
  %1208 = vmatpush.msra.mxu0 0.0
  %1209 = vmatpush.msra.mxu0 0.0
  %1210 = vmatpush.msra.mxu0 0.0
  %1211 = vmatpush.msra.mxu0 0.0
  %1212 = vmatpush.msra.mxu0 0.0
  %1213 = vmatpush.msra.mxu0 0.0
  %1214 = vmatpush.msra.mxu0 0.0
  %1215 = vmatpush.msra.mxu0 0.0
  %1216 = vmatpush.msra.mxu0 0.0
  %1217 = vmatpush.msra.mxu0 0.0
  %1218 = vmatpush.msra.mxu0 0.0
  %1219 = vmatpush.msra.mxu0 %v1196
  %1220 = vmatpush.msra.mxu0 %v1194
  %1221 = vmatmul.f32.gmra.mxu0 %v1200
  %v1222 = vpop.f32.mrf.mxu0
  %v1223 = vadd.f32 0.0, %v1222
  %1224 = vmatmul.f32.gmra.mxu0 %v1203
  %v1225 = vpop.f32.mrf.mxu0
  %v1226 = vadd.f32 0.0, %v1225
  %1227 = vdwg.mxu0
  %1230 = vrot.lane.b32.xlu0 %v1223, 24
  %v1231 = vpop.permute.xlu0 %1230
  %1232 = vrot.lane.b32.xlu0 %v1226, 24
  %v1233 = vpop.permute.xlu0 %1232
  %vm1236 = vcmask 228544
  %1237 = vst.msk [vmem:[#allocation3] sm:$0xff] %vm1236, %v1231
  %1238 = vst.msk [vmem:[#allocation3 + $0x8] sm:$0xff] %vm1236, %v1233
  %v1239 = vld [vmem:[#allocation2] sm:$0xff]
  %v1240 = vld [vmem:[#allocation2 + $0x8] sm:$0xff]
  %1243 = vrot.lane.b32.xlu0 %v1239, 100
  %v1244 = vpop.permute.xlu0 %1243
  %1245 = vrot.lane.b32.xlu0 %v1240, 100
  %v1246 = vpop.permute.xlu0 %1245
  %1247 = vrot.lane.b32.xlu0 %v1239, 68
  %v1248 = vpop.permute.xlu0 %1247
  %1249 = vrot.lane.b32.xlu0 %v1240, 68
  %v1250 = vpop.permute.xlu0 %1249
  %v1251 = vsel %vm285, %v1244, 0
  %v1253 = vsel %vm285, %v1246, 0
  %v1255 = vsel %vm285, %v1248, 0
  %v1257 = vsel %vm285, %v1250, 0
  %1259 = vmatpush.xpose.msra.mxu0 0.0
  %1260 = vmatpush.xpose.msra.mxu0 0.0
  %1261 = vmatpush.xpose.msra.mxu0 0.0
  %1262 = vmatpush.xpose.msra.mxu0 0.0
  %1263 = vmatpush.xpose.msra.mxu0 0.0
  %1264 = vmatpush.xpose.msra.mxu0 0.0
  %1265 = vmatpush.xpose.msra.mxu0 0.0
  %1266 = vmatpush.xpose.msra.mxu0 0.0
  %1267 = vmatpush.xpose.msra.mxu0 0.0
  %1268 = vmatpush.xpose.msra.mxu0 0.0
  %1269 = vmatpush.xpose.msra.mxu0 0.0
  %1270 = vmatpush.xpose.msra.mxu0 0.0
  %1271 = vmatpush.xpose.msra.mxu0 0.0
  %1272 = vmatpush.xpose.msra.mxu0 0.0
  %1273 = vmatpush.xpose.msra.mxu0 %v1257
  %1274 = vmatpush.xpose.msra.mxu0 %v1255
  %1275 = vmatmul.f32.gmra.mxu0 %v1251
  %v1276 = vpop.f32.mrf.mxu0
  %v1277 = vadd.f32 0.0, %v1276
  %1278 = vmatmul.f32.gmra.mxu0 %v1253
  %v1279 = vpop.f32.mrf.mxu0
  %v1280 = vadd.f32 0.0, %v1279
  %1281 = vdwg.mxu0
  %v1282 = vmul.f32 %v1277, 0.5
  %v1283 = vmul.f32 %v1280, 0.5
  %v1284 = vsel %vm319, %v1282, -inf
  %1285 = vmax.xlane.f32.xlu0 %v1284
  %v1286 = vpop.xlane.xlu0 %1285
  %v1287 = vsel %vm319, %v1283, -inf
  %1288 = vmax.xlane.f32.xlu0 %v1287
  %v1289 = vpop.xlane.xlu0 %1288
  %v1290 = vsub.f32 %v1282, %v1286
  %v1291 = vsub.f32 %v1283, %v1289
  %v1292 = vmul.f32 %v1290, 1.442695
  %v1293 = vpow.pop %v1292
  %v1294 = vmul.f32 %v1291, 1.442695
  %v1295 = vpow.pop %v1294
  %v1296 = vsel %vm319, %v1293, 0.0
  %1297 = vadd.xlane.f32.xlu0 %v1296
  %v1298 = vpop.xlane.xlu0 %1297
  %v1299 = vsel %vm319, %v1295, 0.0
  %1300 = vadd.xlane.f32.xlu0 %v1299
  %v1301 = vpop.xlane.xlu0 %1300
  %v1302 = vrcp.pop %v1298
  %v1303 = vmul.f32 %v1298, %v1302
  %v1304 = vsub.f32 1.0, %v1303
  %v1305 = vmul.f32 %v1302, %v1304
  %v1306 = vadd.f32 %v1302, %v1305
  %vm1307 = vweird.f32 %v1298
  %vm1308 = vweird.f32 %v1302
  %vm1309 = vmor %vm1307, %vm1308
  %v1310 = vsel %vm1309, %v1302, %v1306
  %v1311 = vand.u32 2147483647, %v1298
  %vm1312 = vcmp.eq.f32.partialorder %v1311, 8.507059e+37
  %v1313 = vand.u32 %v1298, 2147483648
  %v1314 = vor.u32 1.1754944e-38, %v1313
  %v1315 = vsel %vm1312, %v1314, %v1310
  %v1316 = vmul.f32 %v1293, %v1315
  %v1317 = vrcp.pop %v1301
  %v1318 = vmul.f32 %v1301, %v1317
  %v1319 = vsub.f32 1.0, %v1318
  %v1320 = vmul.f32 %v1317, %v1319
  %v1321 = vadd.f32 %v1317, %v1320
  %vm1322 = vweird.f32 %v1301
  %vm1323 = vweird.f32 %v1317
  %vm1324 = vmor %vm1322, %vm1323
  %v1325 = vsel %vm1324, %v1317, %v1321
  %v1326 = vand.u32 2147483647, %v1301
  %vm1327 = vcmp.eq.f32.partialorder %v1326, 8.507059e+37
  %v1328 = vand.u32 %v1301, 2147483648
  %v1329 = vor.u32 1.1754944e-38, %v1328
  %v1330 = vsel %vm1327, %v1329, %v1325
  %v1331 = vmul.f32 %v1295, %v1330
  %1332 = vrot.lane.b32.xlu0 %v1239, 36
  %v1333 = vpop.permute.xlu0 %1332
  %1334 = vrot.lane.b32.xlu0 %v1240, 36
  %v1335 = vpop.permute.xlu0 %1334
  %v1339 = vsel %vm319, %v1316, 0
  %v1342 = vsel %vm319, %v1331, 0
  %1344 = vmatpush.msra.mxu0 0.0
  %1345 = vmatpush.msra.mxu0 0.0
  %1346 = vmatpush.msra.mxu0 0.0
  %1347 = vmatpush.msra.mxu0 0.0
  %1348 = vmatpush.msra.mxu0 0.0
  %1349 = vmatpush.msra.mxu0 0.0
  %1350 = vmatpush.msra.mxu0 0.0
  %1351 = vmatpush.msra.mxu0 0.0
  %1352 = vmatpush.msra.mxu0 0.0
  %1353 = vmatpush.msra.mxu0 0.0
  %1354 = vmatpush.msra.mxu0 0.0
  %1355 = vmatpush.msra.mxu0 0.0
  %1356 = vmatpush.msra.mxu0 0.0
  %1357 = vmatpush.msra.mxu0 0.0
  %1358 = vmatpush.msra.mxu0 %v1335
  %1359 = vmatpush.msra.mxu0 %v1333
  %1360 = vmatmul.f32.gmra.mxu0 %v1339
  %v1361 = vpop.f32.mrf.mxu0
  %v1362 = vadd.f32 0.0, %v1361
  %1363 = vmatmul.f32.gmra.mxu0 %v1342
  %v1364 = vpop.f32.mrf.mxu0
  %v1365 = vadd.f32 0.0, %v1364
  %1366 = vdwg.mxu0
  %1369 = vrot.lane.b32.xlu0 %v1362, 28
  %v1370 = vpop.permute.xlu0 %1369
  %1371 = vrot.lane.b32.xlu0 %v1365, 28
  %v1372 = vpop.permute.xlu0 %1371
  %vm1375 = vcmask 261344
  %1376 = vst.msk [vmem:[#allocation3] sm:$0xff] %vm1375, %v1370
  %1377 = vst.msk [vmem:[#allocation3 + $0x8] sm:$0xff] %vm1375, %v1372
  %v1378 = vld [vmem:[#allocation2 + $0x10] sm:$0xff]
  %v1379 = vld [vmem:[#allocation2 + $0x18] sm:$0xff]
  %1382 = vrot.lane.b32.xlu0 %v1378, 96
  %v1383 = vpop.permute.xlu0 %1382
  %1384 = vrot.lane.b32.xlu0 %v1379, 96
  %v1385 = vpop.permute.xlu0 %1384
  %v1386 = vsel %vm285, %v1378, 0
  %v1388 = vsel %vm285, %v1379, 0
  %v1390 = vsel %vm285, %v1383, 0
  %v1392 = vsel %vm285, %v1385, 0
  %1394 = vmatpush.xpose.msra.mxu0 0.0
  %1395 = vmatpush.xpose.msra.mxu0 0.0
  %1396 = vmatpush.xpose.msra.mxu0 0.0
  %1397 = vmatpush.xpose.msra.mxu0 0.0
  %1398 = vmatpush.xpose.msra.mxu0 0.0
  %1399 = vmatpush.xpose.msra.mxu0 0.0
  %1400 = vmatpush.xpose.msra.mxu0 0.0
  %1401 = vmatpush.xpose.msra.mxu0 0.0
  %1402 = vmatpush.xpose.msra.mxu0 0.0
  %1403 = vmatpush.xpose.msra.mxu0 0.0
  %1404 = vmatpush.xpose.msra.mxu0 0.0
  %1405 = vmatpush.xpose.msra.mxu0 0.0
  %1406 = vmatpush.xpose.msra.mxu0 0.0
  %1407 = vmatpush.xpose.msra.mxu0 0.0
  %1408 = vmatpush.xpose.msra.mxu0 %v1392
  %1409 = vmatpush.xpose.msra.mxu0 %v1390
  %1410 = vmatmul.f32.gmra.mxu0 %v1386
  %v1411 = vpop.f32.mrf.mxu0
  %v1412 = vadd.f32 0.0, %v1411
  %1413 = vmatmul.f32.gmra.mxu0 %v1388
  %v1414 = vpop.f32.mrf.mxu0
  %v1415 = vadd.f32 0.0, %v1414
  %1416 = vdwg.mxu0
  %v1417 = vmul.f32 %v1412, 0.5
  %v1418 = vmul.f32 %v1415, 0.5
  %v1419 = vsel %vm319, %v1417, -inf
  %1420 = vmax.xlane.f32.xlu0 %v1419
  %v1421 = vpop.xlane.xlu0 %1420
  %v1422 = vsel %vm319, %v1418, -inf
  %1423 = vmax.xlane.f32.xlu0 %v1422
  %v1424 = vpop.xlane.xlu0 %1423
  %v1425 = vsub.f32 %v1417, %v1421
  %v1426 = vsub.f32 %v1418, %v1424
  %v1427 = vmul.f32 %v1425, 1.442695
  %v1428 = vpow.pop %v1427
  %v1429 = vmul.f32 %v1426, 1.442695
  %v1430 = vpow.pop %v1429
  %v1431 = vsel %vm319, %v1428, 0.0
  %1432 = vadd.xlane.f32.xlu0 %v1431
  %v1433 = vpop.xlane.xlu0 %1432
  %v1434 = vsel %vm319, %v1430, 0.0
  %1435 = vadd.xlane.f32.xlu0 %v1434
  %v1436 = vpop.xlane.xlu0 %1435
  %v1437 = vrcp.pop %v1433
  %v1438 = vmul.f32 %v1433, %v1437
  %v1439 = vsub.f32 1.0, %v1438
  %v1440 = vmul.f32 %v1437, %v1439
  %v1441 = vadd.f32 %v1437, %v1440
  %vm1442 = vweird.f32 %v1433
  %vm1443 = vweird.f32 %v1437
  %vm1444 = vmor %vm1442, %vm1443
  %v1445 = vsel %vm1444, %v1437, %v1441
  %v1446 = vand.u32 2147483647, %v1433
  %vm1447 = vcmp.eq.f32.partialorder %v1446, 8.507059e+37
  %v1448 = vand.u32 %v1433, 2147483648
  %v1449 = vor.u32 1.1754944e-38, %v1448
  %v1450 = vsel %vm1447, %v1449, %v1445
  %v1451 = vmul.f32 %v1428, %v1450
  %v1452 = vrcp.pop %v1436
  %v1453 = vmul.f32 %v1436, %v1452
  %v1454 = vsub.f32 1.0, %v1453
  %v1455 = vmul.f32 %v1452, %v1454
  %v1456 = vadd.f32 %v1452, %v1455
  %vm1457 = vweird.f32 %v1436
  %vm1458 = vweird.f32 %v1452
  %vm1459 = vmor %vm1457, %vm1458
  %v1460 = vsel %vm1459, %v1452, %v1456
  %v1461 = vand.u32 2147483647, %v1436
  %vm1462 = vcmp.eq.f32.partialorder %v1461, 8.507059e+37
  %v1463 = vand.u32 %v1436, 2147483648
  %v1464 = vor.u32 1.1754944e-38, %v1463
  %v1465 = vsel %vm1462, %v1464, %v1460
  %v1466 = vmul.f32 %v1430, %v1465
  %1467 = vrot.lane.b32.xlu0 %v1378, 64
  %v1468 = vpop.permute.xlu0 %1467
  %1469 = vrot.lane.b32.xlu0 %v1379, 64
  %v1470 = vpop.permute.xlu0 %1469
  %v1474 = vsel %vm319, %v1451, 0
  %v1477 = vsel %vm319, %v1466, 0
  %1479 = vmatpush.msra.mxu0 0.0
  %1480 = vmatpush.msra.mxu0 0.0
  %1481 = vmatpush.msra.mxu0 0.0
  %1482 = vmatpush.msra.mxu0 0.0
  %1483 = vmatpush.msra.mxu0 0.0
  %1484 = vmatpush.msra.mxu0 0.0
  %1485 = vmatpush.msra.mxu0 0.0
  %1486 = vmatpush.msra.mxu0 0.0
  %1487 = vmatpush.msra.mxu0 0.0
  %1488 = vmatpush.msra.mxu0 0.0
  %1489 = vmatpush.msra.mxu0 0.0
  %1490 = vmatpush.msra.mxu0 0.0
  %1491 = vmatpush.msra.mxu0 0.0
  %1492 = vmatpush.msra.mxu0 0.0
  %1493 = vmatpush.msra.mxu0 %v1470
  %1494 = vmatpush.msra.mxu0 %v1468
  %1495 = vmatmul.f32.gmra.mxu0 %v1474
  %v1496 = vpop.f32.mrf.mxu0
  %v1497 = vadd.f32 0.0, %v1496
  %1498 = vmatmul.f32.gmra.mxu0 %v1477
  %v1499 = vpop.f32.mrf.mxu0
  %v1500 = vadd.f32 0.0, %v1499
  %1501 = vdwg.mxu0
  %1502 = vst.msk [vmem:[#allocation3 + $0x10] sm:$0xff] %vm285, %v1497
  %1503 = vst.msk [vmem:[#allocation3 + $0x18] sm:$0xff] %vm285, %v1500
  %v1504 = vld [vmem:[#allocation2 + $0x10] sm:$0xff]
  %v1505 = vld [vmem:[#allocation2 + $0x18] sm:$0xff]
  %1508 = vrot.lane.b32.xlu0 %v1504, 124
  %v1509 = vpop.permute.xlu0 %1508
  %1510 = vrot.lane.b32.xlu0 %v1505, 124
  %v1511 = vpop.permute.xlu0 %1510
  %1512 = vrot.lane.b32.xlu0 %v1504, 92
  %v1513 = vpop.permute.xlu0 %1512
  %1514 = vrot.lane.b32.xlu0 %v1505, 92
  %v1515 = vpop.permute.xlu0 %1514
  %v1516 = vsel %vm285, %v1509, 0
  %v1518 = vsel %vm285, %v1511, 0
  %v1520 = vsel %vm285, %v1513, 0
  %v1522 = vsel %vm285, %v1515, 0
  %1524 = vmatpush.xpose.msra.mxu0 0.0
  %1525 = vmatpush.xpose.msra.mxu0 0.0
  %1526 = vmatpush.xpose.msra.mxu0 0.0
  %1527 = vmatpush.xpose.msra.mxu0 0.0
  %1528 = vmatpush.xpose.msra.mxu0 0.0
  %1529 = vmatpush.xpose.msra.mxu0 0.0
  %1530 = vmatpush.xpose.msra.mxu0 0.0
  %1531 = vmatpush.xpose.msra.mxu0 0.0
  %1532 = vmatpush.xpose.msra.mxu0 0.0
  %1533 = vmatpush.xpose.msra.mxu0 0.0
  %1534 = vmatpush.xpose.msra.mxu0 0.0
  %1535 = vmatpush.xpose.msra.mxu0 0.0
  %1536 = vmatpush.xpose.msra.mxu0 0.0
  %1537 = vmatpush.xpose.msra.mxu0 0.0
  %1538 = vmatpush.xpose.msra.mxu0 %v1522
  %1539 = vmatpush.xpose.msra.mxu0 %v1520
  %1540 = vmatmul.f32.gmra.mxu0 %v1516
  %v1541 = vpop.f32.mrf.mxu0
  %v1542 = vadd.f32 0.0, %v1541
  %1543 = vmatmul.f32.gmra.mxu0 %v1518
  %v1544 = vpop.f32.mrf.mxu0
  %v1545 = vadd.f32 0.0, %v1544
  %1546 = vdwg.mxu0
  %v1547 = vmul.f32 %v1542, 0.5
  %v1548 = vmul.f32 %v1545, 0.5
  %v1549 = vsel %vm319, %v1547, -inf
  %1550 = vmax.xlane.f32.xlu0 %v1549
  %v1551 = vpop.xlane.xlu0 %1550
  %v1552 = vsel %vm319, %v1548, -inf
  %1553 = vmax.xlane.f32.xlu0 %v1552
  %v1554 = vpop.xlane.xlu0 %1553
  %v1555 = vsub.f32 %v1547, %v1551
  %v1556 = vsub.f32 %v1548, %v1554
  %v1557 = vmul.f32 %v1555, 1.442695
  %v1558 = vpow.pop %v1557
  %v1559 = vmul.f32 %v1556, 1.442695
  %v1560 = vpow.pop %v1559
  %v1561 = vsel %vm319, %v1558, 0.0
  %1562 = vadd.xlane.f32.xlu0 %v1561
  %v1563 = vpop.xlane.xlu0 %1562
  %v1564 = vsel %vm319, %v1560, 0.0
  %1565 = vadd.xlane.f32.xlu0 %v1564
  %v1566 = vpop.xlane.xlu0 %1565
  %v1567 = vrcp.pop %v1563
  %v1568 = vmul.f32 %v1563, %v1567
  %v1569 = vsub.f32 1.0, %v1568
  %v1570 = vmul.f32 %v1567, %v1569
  %v1571 = vadd.f32 %v1567, %v1570
  %vm1572 = vweird.f32 %v1563
  %vm1573 = vweird.f32 %v1567
  %vm1574 = vmor %vm1572, %vm1573
  %v1575 = vsel %vm1574, %v1567, %v1571
  %v1576 = vand.u32 2147483647, %v1563
  %vm1577 = vcmp.eq.f32.partialorder %v1576, 8.507059e+37
  %v1578 = vand.u32 %v1563, 2147483648
  %v1579 = vor.u32 1.1754944e-38, %v1578
  %v1580 = vsel %vm1577, %v1579, %v1575
  %v1581 = vmul.f32 %v1558, %v1580
  %v1582 = vrcp.pop %v1566
  %v1583 = vmul.f32 %v1566, %v1582
  %v1584 = vsub.f32 1.0, %v1583
  %v1585 = vmul.f32 %v1582, %v1584
  %v1586 = vadd.f32 %v1582, %v1585
  %vm1587 = vweird.f32 %v1566
  %vm1588 = vweird.f32 %v1582
  %vm1589 = vmor %vm1587, %vm1588
  %v1590 = vsel %vm1589, %v1582, %v1586
  %v1591 = vand.u32 2147483647, %v1566
  %vm1592 = vcmp.eq.f32.partialorder %v1591, 8.507059e+37
  %v1593 = vand.u32 %v1566, 2147483648
  %v1594 = vor.u32 1.1754944e-38, %v1593
  %v1595 = vsel %vm1592, %v1594, %v1590
  %v1596 = vmul.f32 %v1560, %v1595
  %1597 = vrot.lane.b32.xlu0 %v1504, 60
  %v1598 = vpop.permute.xlu0 %1597
  %1599 = vrot.lane.b32.xlu0 %v1505, 60
  %v1600 = vpop.permute.xlu0 %1599
  %v1604 = vsel %vm319, %v1581, 0
  %v1607 = vsel %vm319, %v1596, 0
  %1609 = vmatpush.msra.mxu0 0.0
  %1610 = vmatpush.msra.mxu0 0.0
  %1611 = vmatpush.msra.mxu0 0.0
  %1612 = vmatpush.msra.mxu0 0.0
  %1613 = vmatpush.msra.mxu0 0.0
  %1614 = vmatpush.msra.mxu0 0.0
  %1615 = vmatpush.msra.mxu0 0.0
  %1616 = vmatpush.msra.mxu0 0.0
  %1617 = vmatpush.msra.mxu0 0.0
  %1618 = vmatpush.msra.mxu0 0.0
  %1619 = vmatpush.msra.mxu0 0.0
  %1620 = vmatpush.msra.mxu0 0.0
  %1621 = vmatpush.msra.mxu0 0.0
  %1622 = vmatpush.msra.mxu0 0.0
  %1623 = vmatpush.msra.mxu0 %v1600
  %1624 = vmatpush.msra.mxu0 %v1598
  %1625 = vmatmul.f32.gmra.mxu0 %v1604
  %v1626 = vpop.f32.mrf.mxu0
  %v1627 = vadd.f32 0.0, %v1626
  %1628 = vmatmul.f32.gmra.mxu0 %v1607
  %v1629 = vpop.f32.mrf.mxu0
  %v1630 = vadd.f32 0.0, %v1629
  %1631 = vdwg.mxu0
  %1634 = vrot.lane.b32.xlu0 %v1627, 4
  %v1635 = vpop.permute.xlu0 %1634
  %1636 = vrot.lane.b32.xlu0 %v1630, 4
  %v1637 = vpop.permute.xlu0 %1636
  %1640 = vst.msk [vmem:[#allocation3 + $0x10] sm:$0xff] %vm541, %v1635
  %1641 = vst.msk [vmem:[#allocation3 + $0x18] sm:$0xff] %vm541, %v1637
  %v1642 = vld [vmem:[#allocation2 + $0x10] sm:$0xff]
  %v1643 = vld [vmem:[#allocation2 + $0x18] sm:$0xff]
  %1646 = vrot.lane.b32.xlu0 %v1642, 120
  %v1647 = vpop.permute.xlu0 %1646
  %1648 = vrot.lane.b32.xlu0 %v1643, 120
  %v1649 = vpop.permute.xlu0 %1648
  %1650 = vrot.lane.b32.xlu0 %v1642, 88
  %v1651 = vpop.permute.xlu0 %1650
  %1652 = vrot.lane.b32.xlu0 %v1643, 88
  %v1653 = vpop.permute.xlu0 %1652
  %v1654 = vsel %vm285, %v1647, 0
  %v1656 = vsel %vm285, %v1649, 0
  %v1658 = vsel %vm285, %v1651, 0
  %v1660 = vsel %vm285, %v1653, 0
  %1662 = vmatpush.xpose.msra.mxu0 0.0
  %1663 = vmatpush.xpose.msra.mxu0 0.0
  %1664 = vmatpush.xpose.msra.mxu0 0.0
  %1665 = vmatpush.xpose.msra.mxu0 0.0
  %1666 = vmatpush.xpose.msra.mxu0 0.0
  %1667 = vmatpush.xpose.msra.mxu0 0.0
  %1668 = vmatpush.xpose.msra.mxu0 0.0
  %1669 = vmatpush.xpose.msra.mxu0 0.0
  %1670 = vmatpush.xpose.msra.mxu0 0.0
  %1671 = vmatpush.xpose.msra.mxu0 0.0
  %1672 = vmatpush.xpose.msra.mxu0 0.0
  %1673 = vmatpush.xpose.msra.mxu0 0.0
  %1674 = vmatpush.xpose.msra.mxu0 0.0
  %1675 = vmatpush.xpose.msra.mxu0 0.0
  %1676 = vmatpush.xpose.msra.mxu0 %v1660
  %1677 = vmatpush.xpose.msra.mxu0 %v1658
  %1678 = vmatmul.f32.gmra.mxu0 %v1654
  %v1679 = vpop.f32.mrf.mxu0
  %v1680 = vadd.f32 0.0, %v1679
  %1681 = vmatmul.f32.gmra.mxu0 %v1656
  %v1682 = vpop.f32.mrf.mxu0
  %v1683 = vadd.f32 0.0, %v1682
  %1684 = vdwg.mxu0
  %v1685 = vmul.f32 %v1680, 0.5
  %v1686 = vmul.f32 %v1683, 0.5
  %v1687 = vsel %vm319, %v1685, -inf
  %1688 = vmax.xlane.f32.xlu0 %v1687
  %v1689 = vpop.xlane.xlu0 %1688
  %v1690 = vsel %vm319, %v1686, -inf
  %1691 = vmax.xlane.f32.xlu0 %v1690
  %v1692 = vpop.xlane.xlu0 %1691
  %v1693 = vsub.f32 %v1685, %v1689
  %v1694 = vsub.f32 %v1686, %v1692
  %v1695 = vmul.f32 %v1693, 1.442695
  %v1696 = vpow.pop %v1695
  %v1697 = vmul.f32 %v1694, 1.442695
  %v1698 = vpow.pop %v1697
  %v1699 = vsel %vm319, %v1696, 0.0
  %1700 = vadd.xlane.f32.xlu0 %v1699
  %v1701 = vpop.xlane.xlu0 %1700
  %v1702 = vsel %vm319, %v1698, 0.0
  %1703 = vadd.xlane.f32.xlu0 %v1702
  %v1704 = vpop.xlane.xlu0 %1703
  %v1705 = vrcp.pop %v1701
  %v1706 = vmul.f32 %v1701, %v1705
  %v1707 = vsub.f32 1.0, %v1706
  %v1708 = vmul.f32 %v1705, %v1707
  %v1709 = vadd.f32 %v1705, %v1708
  %vm1710 = vweird.f32 %v1701
  %vm1711 = vweird.f32 %v1705
  %vm1712 = vmor %vm1710, %vm1711
  %v1713 = vsel %vm1712, %v1705, %v1709
  %v1714 = vand.u32 2147483647, %v1701
  %vm1715 = vcmp.eq.f32.partialorder %v1714, 8.507059e+37
  %v1716 = vand.u32 %v1701, 2147483648
  %v1717 = vor.u32 1.1754944e-38, %v1716
  %v1718 = vsel %vm1715, %v1717, %v1713
  %v1719 = vmul.f32 %v1696, %v1718
  %v1720 = vrcp.pop %v1704
  %v1721 = vmul.f32 %v1704, %v1720
  %v1722 = vsub.f32 1.0, %v1721
  %v1723 = vmul.f32 %v1720, %v1722
  %v1724 = vadd.f32 %v1720, %v1723
  %vm1725 = vweird.f32 %v1704
  %vm1726 = vweird.f32 %v1720
  %vm1727 = vmor %vm1725, %vm1726
  %v1728 = vsel %vm1727, %v1720, %v1724
  %v1729 = vand.u32 2147483647, %v1704
  %vm1730 = vcmp.eq.f32.partialorder %v1729, 8.507059e+37
  %v1731 = vand.u32 %v1704, 2147483648
  %v1732 = vor.u32 1.1754944e-38, %v1731
  %v1733 = vsel %vm1730, %v1732, %v1728
  %v1734 = vmul.f32 %v1698, %v1733
  %1735 = vrot.lane.b32.xlu0 %v1642, 56
  %v1736 = vpop.permute.xlu0 %1735
  %1737 = vrot.lane.b32.xlu0 %v1643, 56
  %v1738 = vpop.permute.xlu0 %1737
  %v1742 = vsel %vm319, %v1719, 0
  %v1745 = vsel %vm319, %v1734, 0
  %1747 = vmatpush.msra.mxu0 0.0
  %1748 = vmatpush.msra.mxu0 0.0
  %1749 = vmatpush.msra.mxu0 0.0
  %1750 = vmatpush.msra.mxu0 0.0
  %1751 = vmatpush.msra.mxu0 0.0
  %1752 = vmatpush.msra.mxu0 0.0
  %1753 = vmatpush.msra.mxu0 0.0
  %1754 = vmatpush.msra.mxu0 0.0
  %1755 = vmatpush.msra.mxu0 0.0
  %1756 = vmatpush.msra.mxu0 0.0
  %1757 = vmatpush.msra.mxu0 0.0
  %1758 = vmatpush.msra.mxu0 0.0
  %1759 = vmatpush.msra.mxu0 0.0
  %1760 = vmatpush.msra.mxu0 0.0
  %1761 = vmatpush.msra.mxu0 %v1738
  %1762 = vmatpush.msra.mxu0 %v1736
  %1763 = vmatmul.f32.gmra.mxu0 %v1742
  %v1764 = vpop.f32.mrf.mxu0
  %v1765 = vadd.f32 0.0, %v1764
  %1766 = vmatmul.f32.gmra.mxu0 %v1745
  %v1767 = vpop.f32.mrf.mxu0
  %v1768 = vadd.f32 0.0, %v1767
  %1769 = vdwg.mxu0
  %1772 = vrot.lane.b32.xlu0 %v1765, 8
  %v1773 = vpop.permute.xlu0 %1772
  %1774 = vrot.lane.b32.xlu0 %v1768, 8
  %v1775 = vpop.permute.xlu0 %1774
  %1778 = vst.msk [vmem:[#allocation3 + $0x10] sm:$0xff] %vm680, %v1773
  %1779 = vst.msk [vmem:[#allocation3 + $0x18] sm:$0xff] %vm680, %v1775
  %v1780 = vld [vmem:[#allocation2 + $0x10] sm:$0xff]
  %v1781 = vld [vmem:[#allocation2 + $0x18] sm:$0xff]
  %1784 = vrot.lane.b32.xlu0 %v1780, 116
  %v1785 = vpop.permute.xlu0 %1784
  %1786 = vrot.lane.b32.xlu0 %v1781, 116
  %v1787 = vpop.permute.xlu0 %1786
  %1788 = vrot.lane.b32.xlu0 %v1780, 84
  %v1789 = vpop.permute.xlu0 %1788
  %1790 = vrot.lane.b32.xlu0 %v1781, 84
  %v1791 = vpop.permute.xlu0 %1790
  %v1792 = vsel %vm285, %v1785, 0
  %v1794 = vsel %vm285, %v1787, 0
  %v1796 = vsel %vm285, %v1789, 0
  %v1798 = vsel %vm285, %v1791, 0
  %1800 = vmatpush.xpose.msra.mxu0 0.0
  %1801 = vmatpush.xpose.msra.mxu0 0.0
  %1802 = vmatpush.xpose.msra.mxu0 0.0
  %1803 = vmatpush.xpose.msra.mxu0 0.0
  %1804 = vmatpush.xpose.msra.mxu0 0.0
  %1805 = vmatpush.xpose.msra.mxu0 0.0
  %1806 = vmatpush.xpose.msra.mxu0 0.0
  %1807 = vmatpush.xpose.msra.mxu0 0.0
  %1808 = vmatpush.xpose.msra.mxu0 0.0
  %1809 = vmatpush.xpose.msra.mxu0 0.0
  %1810 = vmatpush.xpose.msra.mxu0 0.0
  %1811 = vmatpush.xpose.msra.mxu0 0.0
  %1812 = vmatpush.xpose.msra.mxu0 0.0
  %1813 = vmatpush.xpose.msra.mxu0 0.0
  %1814 = vmatpush.xpose.msra.mxu0 %v1798
  %1815 = vmatpush.xpose.msra.mxu0 %v1796
  %1816 = vmatmul.f32.gmra.mxu0 %v1792
  %v1817 = vpop.f32.mrf.mxu0
  %v1818 = vadd.f32 0.0, %v1817
  %1819 = vmatmul.f32.gmra.mxu0 %v1794
  %v1820 = vpop.f32.mrf.mxu0
  %v1821 = vadd.f32 0.0, %v1820
  %1822 = vdwg.mxu0
  %v1823 = vmul.f32 %v1818, 0.5
  %v1824 = vmul.f32 %v1821, 0.5
  %v1825 = vsel %vm319, %v1823, -inf
  %1826 = vmax.xlane.f32.xlu0 %v1825
  %v1827 = vpop.xlane.xlu0 %1826
  %v1828 = vsel %vm319, %v1824, -inf
  %1829 = vmax.xlane.f32.xlu0 %v1828
  %v1830 = vpop.xlane.xlu0 %1829
  %v1831 = vsub.f32 %v1823, %v1827
  %v1832 = vsub.f32 %v1824, %v1830
  %v1833 = vmul.f32 %v1831, 1.442695
  %v1834 = vpow.pop %v1833
  %v1835 = vmul.f32 %v1832, 1.442695
  %v1836 = vpow.pop %v1835
  %v1837 = vsel %vm319, %v1834, 0.0
  %1838 = vadd.xlane.f32.xlu0 %v1837
  %v1839 = vpop.xlane.xlu0 %1838
  %v1840 = vsel %vm319, %v1836, 0.0
  %1841 = vadd.xlane.f32.xlu0 %v1840
  %v1842 = vpop.xlane.xlu0 %1841
  %v1843 = vrcp.pop %v1839
  %v1844 = vmul.f32 %v1839, %v1843
  %v1845 = vsub.f32 1.0, %v1844
  %v1846 = vmul.f32 %v1843, %v1845
  %v1847 = vadd.f32 %v1843, %v1846
  %vm1848 = vweird.f32 %v1839
  %vm1849 = vweird.f32 %v1843
  %vm1850 = vmor %vm1848, %vm1849
  %v1851 = vsel %vm1850, %v1843, %v1847
  %v1852 = vand.u32 2147483647, %v1839
  %vm1853 = vcmp.eq.f32.partialorder %v1852, 8.507059e+37
  %v1854 = vand.u32 %v1839, 2147483648
  %v1855 = vor.u32 1.1754944e-38, %v1854
  %v1856 = vsel %vm1853, %v1855, %v1851
  %v1857 = vmul.f32 %v1834, %v1856
  %v1858 = vrcp.pop %v1842
  %v1859 = vmul.f32 %v1842, %v1858
  %v1860 = vsub.f32 1.0, %v1859
  %v1861 = vmul.f32 %v1858, %v1860
  %v1862 = vadd.f32 %v1858, %v1861
  %vm1863 = vweird.f32 %v1842
  %vm1864 = vweird.f32 %v1858
  %vm1865 = vmor %vm1863, %vm1864
  %v1866 = vsel %vm1865, %v1858, %v1862
  %v1867 = vand.u32 2147483647, %v1842
  %vm1868 = vcmp.eq.f32.partialorder %v1867, 8.507059e+37
  %v1869 = vand.u32 %v1842, 2147483648
  %v1870 = vor.u32 1.1754944e-38, %v1869
  %v1871 = vsel %vm1868, %v1870, %v1866
  %v1872 = vmul.f32 %v1836, %v1871
  %1873 = vrot.lane.b32.xlu0 %v1780, 52
  %v1874 = vpop.permute.xlu0 %1873
  %1875 = vrot.lane.b32.xlu0 %v1781, 52
  %v1876 = vpop.permute.xlu0 %1875
  %v1880 = vsel %vm319, %v1857, 0
  %v1883 = vsel %vm319, %v1872, 0
  %1885 = vmatpush.msra.mxu0 0.0
  %1886 = vmatpush.msra.mxu0 0.0
  %1887 = vmatpush.msra.mxu0 0.0
  %1888 = vmatpush.msra.mxu0 0.0
  %1889 = vmatpush.msra.mxu0 0.0
  %1890 = vmatpush.msra.mxu0 0.0
  %1891 = vmatpush.msra.mxu0 0.0
  %1892 = vmatpush.msra.mxu0 0.0
  %1893 = vmatpush.msra.mxu0 0.0
  %1894 = vmatpush.msra.mxu0 0.0
  %1895 = vmatpush.msra.mxu0 0.0
  %1896 = vmatpush.msra.mxu0 0.0
  %1897 = vmatpush.msra.mxu0 0.0
  %1898 = vmatpush.msra.mxu0 0.0
  %1899 = vmatpush.msra.mxu0 %v1876
  %1900 = vmatpush.msra.mxu0 %v1874
  %1901 = vmatmul.f32.gmra.mxu0 %v1880
  %v1902 = vpop.f32.mrf.mxu0
  %v1903 = vadd.f32 0.0, %v1902
  %1904 = vmatmul.f32.gmra.mxu0 %v1883
  %v1905 = vpop.f32.mrf.mxu0
  %v1906 = vadd.f32 0.0, %v1905
  %1907 = vdwg.mxu0
  %1910 = vrot.lane.b32.xlu0 %v1903, 12
  %v1911 = vpop.permute.xlu0 %1910
  %1912 = vrot.lane.b32.xlu0 %v1906, 12
  %v1913 = vpop.permute.xlu0 %1912
  %1916 = vst.msk [vmem:[#allocation3 + $0x10] sm:$0xff] %vm819, %v1911
  %1917 = vst.msk [vmem:[#allocation3 + $0x18] sm:$0xff] %vm819, %v1913
  %v1918 = vld [vmem:[#allocation2 + $0x10] sm:$0xff]
  %v1919 = vld [vmem:[#allocation2 + $0x18] sm:$0xff]
  %1922 = vrot.lane.b32.xlu0 %v1918, 112
  %v1923 = vpop.permute.xlu0 %1922
  %1924 = vrot.lane.b32.xlu0 %v1919, 112
  %v1925 = vpop.permute.xlu0 %1924
  %1926 = vrot.lane.b32.xlu0 %v1918, 80
  %v1927 = vpop.permute.xlu0 %1926
  %1928 = vrot.lane.b32.xlu0 %v1919, 80
  %v1929 = vpop.permute.xlu0 %1928
  %v1930 = vsel %vm285, %v1923, 0
  %v1932 = vsel %vm285, %v1925, 0
  %v1934 = vsel %vm285, %v1927, 0
  %v1936 = vsel %vm285, %v1929, 0
  %1938 = vmatpush.xpose.msra.mxu0 0.0
  %1939 = vmatpush.xpose.msra.mxu0 0.0
  %1940 = vmatpush.xpose.msra.mxu0 0.0
  %1941 = vmatpush.xpose.msra.mxu0 0.0
  %1942 = vmatpush.xpose.msra.mxu0 0.0
  %1943 = vmatpush.xpose.msra.mxu0 0.0
  %1944 = vmatpush.xpose.msra.mxu0 0.0
  %1945 = vmatpush.xpose.msra.mxu0 0.0
  %1946 = vmatpush.xpose.msra.mxu0 0.0
  %1947 = vmatpush.xpose.msra.mxu0 0.0
  %1948 = vmatpush.xpose.msra.mxu0 0.0
  %1949 = vmatpush.xpose.msra.mxu0 0.0
  %1950 = vmatpush.xpose.msra.mxu0 0.0
  %1951 = vmatpush.xpose.msra.mxu0 0.0
  %1952 = vmatpush.xpose.msra.mxu0 %v1936
  %1953 = vmatpush.xpose.msra.mxu0 %v1934
  %1954 = vmatmul.f32.gmra.mxu0 %v1930
  %v1955 = vpop.f32.mrf.mxu0
  %v1956 = vadd.f32 0.0, %v1955
  %1957 = vmatmul.f32.gmra.mxu0 %v1932
  %v1958 = vpop.f32.mrf.mxu0
  %v1959 = vadd.f32 0.0, %v1958
  %1960 = vdwg.mxu0
  %v1961 = vmul.f32 %v1956, 0.5
  %v1962 = vmul.f32 %v1959, 0.5
  %v1963 = vsel %vm319, %v1961, -inf
  %1964 = vmax.xlane.f32.xlu0 %v1963
  %v1965 = vpop.xlane.xlu0 %1964
  %v1966 = vsel %vm319, %v1962, -inf
  %1967 = vmax.xlane.f32.xlu0 %v1966
  %v1968 = vpop.xlane.xlu0 %1967
  %v1969 = vsub.f32 %v1961, %v1965
  %v1970 = vsub.f32 %v1962, %v1968
  %v1971 = vmul.f32 %v1969, 1.442695
  %v1972 = vpow.pop %v1971
  %v1973 = vmul.f32 %v1970, 1.442695
  %v1974 = vpow.pop %v1973
  %v1975 = vsel %vm319, %v1972, 0.0
  %1976 = vadd.xlane.f32.xlu0 %v1975
  %v1977 = vpop.xlane.xlu0 %1976
  %v1978 = vsel %vm319, %v1974, 0.0
  %1979 = vadd.xlane.f32.xlu0 %v1978
  %v1980 = vpop.xlane.xlu0 %1979
  %v1981 = vrcp.pop %v1977
  %v1982 = vmul.f32 %v1977, %v1981
  %v1983 = vsub.f32 1.0, %v1982
  %v1984 = vmul.f32 %v1981, %v1983
  %v1985 = vadd.f32 %v1981, %v1984
  %vm1986 = vweird.f32 %v1977
  %vm1987 = vweird.f32 %v1981
  %vm1988 = vmor %vm1986, %vm1987
  %v1989 = vsel %vm1988, %v1981, %v1985
  %v1990 = vand.u32 2147483647, %v1977
  %vm1991 = vcmp.eq.f32.partialorder %v1990, 8.507059e+37
  %v1992 = vand.u32 %v1977, 2147483648
  %v1993 = vor.u32 1.1754944e-38, %v1992
  %v1994 = vsel %vm1991, %v1993, %v1989
  %v1995 = vmul.f32 %v1972, %v1994
  %v1996 = vrcp.pop %v1980
  %v1997 = vmul.f32 %v1980, %v1996
  %v1998 = vsub.f32 1.0, %v1997
  %v1999 = vmul.f32 %v1996, %v1998
  %v2000 = vadd.f32 %v1996, %v1999
  %vm2001 = vweird.f32 %v1980
  %vm2002 = vweird.f32 %v1996
  %vm2003 = vmor %vm2001, %vm2002
  %v2004 = vsel %vm2003, %v1996, %v2000
  %v2005 = vand.u32 2147483647, %v1980
  %vm2006 = vcmp.eq.f32.partialorder %v2005, 8.507059e+37
  %v2007 = vand.u32 %v1980, 2147483648
  %v2008 = vor.u32 1.1754944e-38, %v2007
  %v2009 = vsel %vm2006, %v2008, %v2004
  %v2010 = vmul.f32 %v1974, %v2009
  %2011 = vrot.lane.b32.xlu0 %v1918, 48
  %v2012 = vpop.permute.xlu0 %2011
  %2013 = vrot.lane.b32.xlu0 %v1919, 48
  %v2014 = vpop.permute.xlu0 %2013
  %v2018 = vsel %vm319, %v1995, 0
  %v2021 = vsel %vm319, %v2010, 0
  %2023 = vmatpush.msra.mxu0 0.0
  %2024 = vmatpush.msra.mxu0 0.0
  %2025 = vmatpush.msra.mxu0 0.0
  %2026 = vmatpush.msra.mxu0 0.0
  %2027 = vmatpush.msra.mxu0 0.0
  %2028 = vmatpush.msra.mxu0 0.0
  %2029 = vmatpush.msra.mxu0 0.0
  %2030 = vmatpush.msra.mxu0 0.0
  %2031 = vmatpush.msra.mxu0 0.0
  %2032 = vmatpush.msra.mxu0 0.0
  %2033 = vmatpush.msra.mxu0 0.0
  %2034 = vmatpush.msra.mxu0 0.0
  %2035 = vmatpush.msra.mxu0 0.0
  %2036 = vmatpush.msra.mxu0 0.0
  %2037 = vmatpush.msra.mxu0 %v2014
  %2038 = vmatpush.msra.mxu0 %v2012
  %2039 = vmatmul.f32.gmra.mxu0 %v2018
  %v2040 = vpop.f32.mrf.mxu0
  %v2041 = vadd.f32 0.0, %v2040
  %2042 = vmatmul.f32.gmra.mxu0 %v2021
  %v2043 = vpop.f32.mrf.mxu0
  %v2044 = vadd.f32 0.0, %v2043
  %2045 = vdwg.mxu0
  %2048 = vrot.lane.b32.xlu0 %v2041, 16
  %v2049 = vpop.permute.xlu0 %2048
  %2050 = vrot.lane.b32.xlu0 %v2044, 16
  %v2051 = vpop.permute.xlu0 %2050
  %2054 = vst.msk [vmem:[#allocation3 + $0x10] sm:$0xff] %vm958, %v2049
  %2055 = vst.msk [vmem:[#allocation3 + $0x18] sm:$0xff] %vm958, %v2051
  %v2056 = vld [vmem:[#allocation2 + $0x10] sm:$0xff]
  %v2057 = vld [vmem:[#allocation2 + $0x18] sm:$0xff]
  %2060 = vrot.lane.b32.xlu0 %v2056, 108
  %v2061 = vpop.permute.xlu0 %2060
  %2062 = vrot.lane.b32.xlu0 %v2057, 108
  %v2063 = vpop.permute.xlu0 %2062
  %2064 = vrot.lane.b32.xlu0 %v2056, 76
  %v2065 = vpop.permute.xlu0 %2064
  %2066 = vrot.lane.b32.xlu0 %v2057, 76
  %v2067 = vpop.permute.xlu0 %2066
  %v2068 = vsel %vm285, %v2061, 0
  %v2070 = vsel %vm285, %v2063, 0
  %v2072 = vsel %vm285, %v2065, 0
  %v2074 = vsel %vm285, %v2067, 0
  %2076 = vmatpush.xpose.msra.mxu0 0.0
  %2077 = vmatpush.xpose.msra.mxu0 0.0
  %2078 = vmatpush.xpose.msra.mxu0 0.0
  %2079 = vmatpush.xpose.msra.mxu0 0.0
  %2080 = vmatpush.xpose.msra.mxu0 0.0
  %2081 = vmatpush.xpose.msra.mxu0 0.0
  %2082 = vmatpush.xpose.msra.mxu0 0.0
  %2083 = vmatpush.xpose.msra.mxu0 0.0
  %2084 = vmatpush.xpose.msra.mxu0 0.0
  %2085 = vmatpush.xpose.msra.mxu0 0.0
  %2086 = vmatpush.xpose.msra.mxu0 0.0
  %2087 = vmatpush.xpose.msra.mxu0 0.0
  %2088 = vmatpush.xpose.msra.mxu0 0.0
  %2089 = vmatpush.xpose.msra.mxu0 0.0
  %2090 = vmatpush.xpose.msra.mxu0 %v2074
  %2091 = vmatpush.xpose.msra.mxu0 %v2072
  %2092 = vmatmul.f32.gmra.mxu0 %v2068
  %v2093 = vpop.f32.mrf.mxu0
  %v2094 = vadd.f32 0.0, %v2093
  %2095 = vmatmul.f32.gmra.mxu0 %v2070
  %v2096 = vpop.f32.mrf.mxu0
  %v2097 = vadd.f32 0.0, %v2096
  %2098 = vdwg.mxu0
  %v2099 = vmul.f32 %v2094, 0.5
  %v2100 = vmul.f32 %v2097, 0.5
  %v2101 = vsel %vm319, %v2099, -inf
  %2102 = vmax.xlane.f32.xlu0 %v2101
  %v2103 = vpop.xlane.xlu0 %2102
  %v2104 = vsel %vm319, %v2100, -inf
  %2105 = vmax.xlane.f32.xlu0 %v2104
  %v2106 = vpop.xlane.xlu0 %2105
  %v2107 = vsub.f32 %v2099, %v2103
  %v2108 = vsub.f32 %v2100, %v2106
  %v2109 = vmul.f32 %v2107, 1.442695
  %v2110 = vpow.pop %v2109
  %v2111 = vmul.f32 %v2108, 1.442695
  %v2112 = vpow.pop %v2111
  %v2113 = vsel %vm319, %v2110, 0.0
  %2114 = vadd.xlane.f32.xlu0 %v2113
  %v2115 = vpop.xlane.xlu0 %2114
  %v2116 = vsel %vm319, %v2112, 0.0
  %2117 = vadd.xlane.f32.xlu0 %v2116
  %v2118 = vpop.xlane.xlu0 %2117
  %v2119 = vrcp.pop %v2115
  %v2120 = vmul.f32 %v2115, %v2119
  %v2121 = vsub.f32 1.0, %v2120
  %v2122 = vmul.f32 %v2119, %v2121
  %v2123 = vadd.f32 %v2119, %v2122
  %vm2124 = vweird.f32 %v2115
  %vm2125 = vweird.f32 %v2119
  %vm2126 = vmor %vm2124, %vm2125
  %v2127 = vsel %vm2126, %v2119, %v2123
  %v2128 = vand.u32 2147483647, %v2115
  %vm2129 = vcmp.eq.f32.partialorder %v2128, 8.507059e+37
  %v2130 = vand.u32 %v2115, 2147483648
  %v2131 = vor.u32 1.1754944e-38, %v2130
  %v2132 = vsel %vm2129, %v2131, %v2127
  %v2133 = vmul.f32 %v2110, %v2132
  %v2134 = vrcp.pop %v2118
  %v2135 = vmul.f32 %v2118, %v2134
  %v2136 = vsub.f32 1.0, %v2135
  %v2137 = vmul.f32 %v2134, %v2136
  %v2138 = vadd.f32 %v2134, %v2137
  %vm2139 = vweird.f32 %v2118
  %vm2140 = vweird.f32 %v2134
  %vm2141 = vmor %vm2139, %vm2140
  %v2142 = vsel %vm2141, %v2134, %v2138
  %v2143 = vand.u32 2147483647, %v2118
  %vm2144 = vcmp.eq.f32.partialorder %v2143, 8.507059e+37
  %v2145 = vand.u32 %v2118, 2147483648
  %v2146 = vor.u32 1.1754944e-38, %v2145
  %v2147 = vsel %vm2144, %v2146, %v2142
  %v2148 = vmul.f32 %v2112, %v2147
  %2149 = vrot.lane.b32.xlu0 %v2056, 44
  %v2150 = vpop.permute.xlu0 %2149
  %2151 = vrot.lane.b32.xlu0 %v2057, 44
  %v2152 = vpop.permute.xlu0 %2151
  %v2156 = vsel %vm319, %v2133, 0
  %v2159 = vsel %vm319, %v2148, 0
  %2161 = vmatpush.msra.mxu0 0.0
  %2162 = vmatpush.msra.mxu0 0.0
  %2163 = vmatpush.msra.mxu0 0.0
  %2164 = vmatpush.msra.mxu0 0.0
  %2165 = vmatpush.msra.mxu0 0.0
  %2166 = vmatpush.msra.mxu0 0.0
  %2167 = vmatpush.msra.mxu0 0.0
  %2168 = vmatpush.msra.mxu0 0.0
  %2169 = vmatpush.msra.mxu0 0.0
  %2170 = vmatpush.msra.mxu0 0.0
  %2171 = vmatpush.msra.mxu0 0.0
  %2172 = vmatpush.msra.mxu0 0.0
  %2173 = vmatpush.msra.mxu0 0.0
  %2174 = vmatpush.msra.mxu0 0.0
  %2175 = vmatpush.msra.mxu0 %v2152
  %2176 = vmatpush.msra.mxu0 %v2150
  %2177 = vmatmul.f32.gmra.mxu0 %v2156
  %v2178 = vpop.f32.mrf.mxu0
  %v2179 = vadd.f32 0.0, %v2178
  %2180 = vmatmul.f32.gmra.mxu0 %v2159
  %v2181 = vpop.f32.mrf.mxu0
  %v2182 = vadd.f32 0.0, %v2181
  %2183 = vdwg.mxu0
  %2186 = vrot.lane.b32.xlu0 %v2179, 20
  %v2187 = vpop.permute.xlu0 %2186
  %2188 = vrot.lane.b32.xlu0 %v2182, 20
  %v2189 = vpop.permute.xlu0 %2188
  %2192 = vst.msk [vmem:[#allocation3 + $0x10] sm:$0xff] %vm1097, %v2187
  %2193 = vst.msk [vmem:[#allocation3 + $0x18] sm:$0xff] %vm1097, %v2189
  %v2194 = vld [vmem:[#allocation2 + $0x10] sm:$0xff]
  %v2195 = vld [vmem:[#allocation2 + $0x18] sm:$0xff]
  %2198 = vrot.lane.b32.xlu0 %v2194, 104
  %v2199 = vpop.permute.xlu0 %2198
  %2200 = vrot.lane.b32.xlu0 %v2195, 104
  %v2201 = vpop.permute.xlu0 %2200
  %2202 = vrot.lane.b32.xlu0 %v2194, 72
  %v2203 = vpop.permute.xlu0 %2202
  %2204 = vrot.lane.b32.xlu0 %v2195, 72
  %v2205 = vpop.permute.xlu0 %2204
  %v2206 = vsel %vm285, %v2199, 0
  %v2208 = vsel %vm285, %v2201, 0
  %v2210 = vsel %vm285, %v2203, 0
  %v2212 = vsel %vm285, %v2205, 0
  %2214 = vmatpush.xpose.msra.mxu0 0.0
  %2215 = vmatpush.xpose.msra.mxu0 0.0
  %2216 = vmatpush.xpose.msra.mxu0 0.0
  %2217 = vmatpush.xpose.msra.mxu0 0.0
  %2218 = vmatpush.xpose.msra.mxu0 0.0
  %2219 = vmatpush.xpose.msra.mxu0 0.0
  %2220 = vmatpush.xpose.msra.mxu0 0.0
  %2221 = vmatpush.xpose.msra.mxu0 0.0
  %2222 = vmatpush.xpose.msra.mxu0 0.0
  %2223 = vmatpush.xpose.msra.mxu0 0.0
  %2224 = vmatpush.xpose.msra.mxu0 0.0
  %2225 = vmatpush.xpose.msra.mxu0 0.0
  %2226 = vmatpush.xpose.msra.mxu0 0.0
  %2227 = vmatpush.xpose.msra.mxu0 0.0
  %2228 = vmatpush.xpose.msra.mxu0 %v2212
  %2229 = vmatpush.xpose.msra.mxu0 %v2210
  %2230 = vmatmul.f32.gmra.mxu0 %v2206
  %v2231 = vpop.f32.mrf.mxu0
  %v2232 = vadd.f32 0.0, %v2231
  %2233 = vmatmul.f32.gmra.mxu0 %v2208
  %v2234 = vpop.f32.mrf.mxu0
  %v2235 = vadd.f32 0.0, %v2234
  %2236 = vdwg.mxu0
  %v2237 = vmul.f32 %v2232, 0.5
  %v2238 = vmul.f32 %v2235, 0.5
  %v2239 = vsel %vm319, %v2237, -inf
  %2240 = vmax.xlane.f32.xlu0 %v2239
  %v2241 = vpop.xlane.xlu0 %2240
  %v2242 = vsel %vm319, %v2238, -inf
  %2243 = vmax.xlane.f32.xlu0 %v2242
  %v2244 = vpop.xlane.xlu0 %2243
  %v2245 = vsub.f32 %v2237, %v2241
  %v2246 = vsub.f32 %v2238, %v2244
  %v2247 = vmul.f32 %v2245, 1.442695
  %v2248 = vpow.pop %v2247
  %v2249 = vmul.f32 %v2246, 1.442695
  %v2250 = vpow.pop %v2249
  %v2251 = vsel %vm319, %v2248, 0.0
  %2252 = vadd.xlane.f32.xlu0 %v2251
  %v2253 = vpop.xlane.xlu0 %2252
  %v2254 = vsel %vm319, %v2250, 0.0
  %2255 = vadd.xlane.f32.xlu0 %v2254
  %v2256 = vpop.xlane.xlu0 %2255
  %v2257 = vrcp.pop %v2253
  %v2258 = vmul.f32 %v2253, %v2257
  %v2259 = vsub.f32 1.0, %v2258
  %v2260 = vmul.f32 %v2257, %v2259
  %v2261 = vadd.f32 %v2257, %v2260
  %vm2262 = vweird.f32 %v2253
  %vm2263 = vweird.f32 %v2257
  %vm2264 = vmor %vm2262, %vm2263
  %v2265 = vsel %vm2264, %v2257, %v2261
  %v2266 = vand.u32 2147483647, %v2253
  %vm2267 = vcmp.eq.f32.partialorder %v2266, 8.507059e+37
  %v2268 = vand.u32 %v2253, 2147483648
  %v2269 = vor.u32 1.1754944e-38, %v2268
  %v2270 = vsel %vm2267, %v2269, %v2265
  %v2271 = vmul.f32 %v2248, %v2270
  %v2272 = vrcp.pop %v2256
  %v2273 = vmul.f32 %v2256, %v2272
  %v2274 = vsub.f32 1.0, %v2273
  %v2275 = vmul.f32 %v2272, %v2274
  %v2276 = vadd.f32 %v2272, %v2275
  %vm2277 = vweird.f32 %v2256
  %vm2278 = vweird.f32 %v2272
  %vm2279 = vmor %vm2277, %vm2278
  %v2280 = vsel %vm2279, %v2272, %v2276
  %v2281 = vand.u32 2147483647, %v2256
  %vm2282 = vcmp.eq.f32.partialorder %v2281, 8.507059e+37
  %v2283 = vand.u32 %v2256, 2147483648
  %v2284 = vor.u32 1.1754944e-38, %v2283
  %v2285 = vsel %vm2282, %v2284, %v2280
  %v2286 = vmul.f32 %v2250, %v2285
  %2287 = vrot.lane.b32.xlu0 %v2194, 40
  %v2288 = vpop.permute.xlu0 %2287
  %2289 = vrot.lane.b32.xlu0 %v2195, 40
  %v2290 = vpop.permute.xlu0 %2289
  %v2294 = vsel %vm319, %v2271, 0
  %v2297 = vsel %vm319, %v2286, 0
  %2299 = vmatpush.msra.mxu0 0.0
  %2300 = vmatpush.msra.mxu0 0.0
  %2301 = vmatpush.msra.mxu0 0.0
  %2302 = vmatpush.msra.mxu0 0.0
  %2303 = vmatpush.msra.mxu0 0.0
  %2304 = vmatpush.msra.mxu0 0.0
  %2305 = vmatpush.msra.mxu0 0.0
  %2306 = vmatpush.msra.mxu0 0.0
  %2307 = vmatpush.msra.mxu0 0.0
  %2308 = vmatpush.msra.mxu0 0.0
  %2309 = vmatpush.msra.mxu0 0.0
  %2310 = vmatpush.msra.mxu0 0.0
  %2311 = vmatpush.msra.mxu0 0.0
  %2312 = vmatpush.msra.mxu0 0.0
  %2313 = vmatpush.msra.mxu0 %v2290
  %2314 = vmatpush.msra.mxu0 %v2288
  %2315 = vmatmul.f32.gmra.mxu0 %v2294
  %v2316 = vpop.f32.mrf.mxu0
  %v2317 = vadd.f32 0.0, %v2316
  %2318 = vmatmul.f32.gmra.mxu0 %v2297
  %v2319 = vpop.f32.mrf.mxu0
  %v2320 = vadd.f32 0.0, %v2319
  %2321 = vdwg.mxu0
  %2324 = vrot.lane.b32.xlu0 %v2317, 24
  %v2325 = vpop.permute.xlu0 %2324
  %2326 = vrot.lane.b32.xlu0 %v2320, 24
  %v2327 = vpop.permute.xlu0 %2326
  %2330 = vst.msk [vmem:[#allocation3 + $0x10] sm:$0xff] %vm1236, %v2325
  %2331 = vst.msk [vmem:[#allocation3 + $0x18] sm:$0xff] %vm1236, %v2327
  %v2332 = vld [vmem:[#allocation2 + $0x10] sm:$0xff]
  %v2333 = vld [vmem:[#allocation2 + $0x18] sm:$0xff]
  %2336 = vrot.lane.b32.xlu0 %v2332, 100
  %v2337 = vpop.permute.xlu0 %2336
  %2338 = vrot.lane.b32.xlu0 %v2333, 100
  %v2339 = vpop.permute.xlu0 %2338
  %2340 = vrot.lane.b32.xlu0 %v2332, 68
  %v2341 = vpop.permute.xlu0 %2340
  %2342 = vrot.lane.b32.xlu0 %v2333, 68
  %v2343 = vpop.permute.xlu0 %2342
  %v2344 = vsel %vm285, %v2337, 0
  %v2346 = vsel %vm285, %v2339, 0
  %v2348 = vsel %vm285, %v2341, 0
  %v2350 = vsel %vm285, %v2343, 0
  %2352 = vmatpush.xpose.msra.mxu0 0.0
  %2353 = vmatpush.xpose.msra.mxu0 0.0
  %2354 = vmatpush.xpose.msra.mxu0 0.0
  %2355 = vmatpush.xpose.msra.mxu0 0.0
  %2356 = vmatpush.xpose.msra.mxu0 0.0
  %2357 = vmatpush.xpose.msra.mxu0 0.0
  %2358 = vmatpush.xpose.msra.mxu0 0.0
  %2359 = vmatpush.xpose.msra.mxu0 0.0
  %2360 = vmatpush.xpose.msra.mxu0 0.0
  %2361 = vmatpush.xpose.msra.mxu0 0.0
  %2362 = vmatpush.xpose.msra.mxu0 0.0
  %2363 = vmatpush.xpose.msra.mxu0 0.0
  %2364 = vmatpush.xpose.msra.mxu0 0.0
  %2365 = vmatpush.xpose.msra.mxu0 0.0
  %2366 = vmatpush.xpose.msra.mxu0 %v2350
  %2367 = vmatpush.xpose.msra.mxu0 %v2348
  %2368 = vmatmul.f32.gmra.mxu0 %v2344
  %v2369 = vpop.f32.mrf.mxu0
  %v2370 = vadd.f32 0.0, %v2369
  %2371 = vmatmul.f32.gmra.mxu0 %v2346
  %v2372 = vpop.f32.mrf.mxu0
  %v2373 = vadd.f32 0.0, %v2372
  %2374 = vdwg.mxu0
  %v2375 = vmul.f32 %v2370, 0.5
  %v2376 = vmul.f32 %v2373, 0.5
  %v2377 = vsel %vm319, %v2375, -inf
  %2378 = vmax.xlane.f32.xlu0 %v2377
  %v2379 = vpop.xlane.xlu0 %2378
  %v2380 = vsel %vm319, %v2376, -inf
  %2381 = vmax.xlane.f32.xlu0 %v2380
  %v2382 = vpop.xlane.xlu0 %2381
  %v2383 = vsub.f32 %v2375, %v2379
  %v2384 = vsub.f32 %v2376, %v2382
  %v2385 = vmul.f32 %v2383, 1.442695
  %v2386 = vpow.pop %v2385
  %v2387 = vmul.f32 %v2384, 1.442695
  %v2388 = vpow.pop %v2387
  %v2389 = vsel %vm319, %v2386, 0.0
  %2390 = vadd.xlane.f32.xlu0 %v2389
  %v2391 = vpop.xlane.xlu0 %2390
  %v2392 = vsel %vm319, %v2388, 0.0
  %2393 = vadd.xlane.f32.xlu0 %v2392
  %v2394 = vpop.xlane.xlu0 %2393
  %v2395 = vrcp.pop %v2391
  %v2396 = vmul.f32 %v2391, %v2395
  %v2397 = vsub.f32 1.0, %v2396
  %v2398 = vmul.f32 %v2395, %v2397
  %v2399 = vadd.f32 %v2395, %v2398
  %vm2400 = vweird.f32 %v2391
  %vm2401 = vweird.f32 %v2395
  %vm2402 = vmor %vm2400, %vm2401
  %v2403 = vsel %vm2402, %v2395, %v2399
  %v2404 = vand.u32 2147483647, %v2391
  %vm2405 = vcmp.eq.f32.partialorder %v2404, 8.507059e+37
  %v2406 = vand.u32 %v2391, 2147483648
  %v2407 = vor.u32 1.1754944e-38, %v2406
  %v2408 = vsel %vm2405, %v2407, %v2403
  %v2409 = vmul.f32 %v2386, %v2408
  %v2410 = vrcp.pop %v2394
  %v2411 = vmul.f32 %v2394, %v2410
  %v2412 = vsub.f32 1.0, %v2411
  %v2413 = vmul.f32 %v2410, %v2412
  %v2414 = vadd.f32 %v2410, %v2413
  %vm2415 = vweird.f32 %v2394
  %vm2416 = vweird.f32 %v2410
  %vm2417 = vmor %vm2415, %vm2416
  %v2418 = vsel %vm2417, %v2410, %v2414
  %v2419 = vand.u32 2147483647, %v2394
  %vm2420 = vcmp.eq.f32.partialorder %v2419, 8.507059e+37
  %v2421 = vand.u32 %v2394, 2147483648
  %v2422 = vor.u32 1.1754944e-38, %v2421
  %v2423 = vsel %vm2420, %v2422, %v2418
  %v2424 = vmul.f32 %v2388, %v2423
  %2425 = vrot.lane.b32.xlu0 %v2332, 36
  %v2426 = vpop.permute.xlu0 %2425
  %2427 = vrot.lane.b32.xlu0 %v2333, 36
  %v2428 = vpop.permute.xlu0 %2427
  %v2432 = vsel %vm319, %v2409, 0
  %v2435 = vsel %vm319, %v2424, 0
  %2437 = vmatpush.msra.mxu0 0.0
  %2438 = vmatpush.msra.mxu0 0.0
  %2439 = vmatpush.msra.mxu0 0.0
  %2440 = vmatpush.msra.mxu0 0.0
  %2441 = vmatpush.msra.mxu0 0.0
  %2442 = vmatpush.msra.mxu0 0.0
  %2443 = vmatpush.msra.mxu0 0.0
  %2444 = vmatpush.msra.mxu0 0.0
  %2445 = vmatpush.msra.mxu0 0.0
  %2446 = vmatpush.msra.mxu0 0.0
  %2447 = vmatpush.msra.mxu0 0.0
  %2448 = vmatpush.msra.mxu0 0.0
  %2449 = vmatpush.msra.mxu0 0.0
  %2450 = vmatpush.msra.mxu0 0.0
  %2451 = vmatpush.msra.mxu0 %v2428
  %2452 = vmatpush.msra.mxu0 %v2426
  %2453 = vmatmul.f32.gmra.mxu0 %v2432
  %v2454 = vpop.f32.mrf.mxu0
  %v2455 = vadd.f32 0.0, %v2454
  %2456 = vmatmul.f32.gmra.mxu0 %v2435
  %v2457 = vpop.f32.mrf.mxu0
  %v2458 = vadd.f32 0.0, %v2457
  %2459 = vdwg.mxu0
  %2462 = vrot.lane.b32.xlu0 %v2455, 28
  %v2463 = vpop.permute.xlu0 %2462
  %2464 = vrot.lane.b32.xlu0 %v2458, 28
  %v2465 = vpop.permute.xlu0 %2464
  %2468 = vst.msk [vmem:[#allocation3 + $0x10] sm:$0xff] %vm1375, %v2463
  %2469 = vst.msk [vmem:[#allocation3 + $0x18] sm:$0xff] %vm1375, %v2465
  %v2470 = vld [vmem:[#allocation3] sm:$0xff]
  %v2471 = vld [vmem:[#allocation3 + $0x8] sm:$0xff]
  %v2472 = vld [vmem:[#allocation3 + $0x10] sm:$0xff]
  %v2473 = vld [vmem:[#allocation3 + $0x18] sm:$0xff]
  %v2474 = vld [vmem:[%s4] sm:$0xff]
  %v2475 = vld [vmem:[%s4 + $0x8] sm:$0xff]
  %v2476 = vld [vmem:[%s4 + $0x10] sm:$0xff]
  %v2477 = vld [vmem:[%s4 + $0x18] sm:$0xff]
  %v2479 = vsel %vm53, %v2470, 0
  %v2482 = vsel %vm53, %v2471, 0
  %v2485 = vsel %vm53, %v2472, 0
  %v2488 = vsel %vm53, %v2473, 0
  %2490 = vmatpush.msra.mxu0 0.0
  %2491 = vmatpush.msra.mxu0 0.0
  %2492 = vmatpush.msra.mxu0 0.0
  %2493 = vmatpush.msra.mxu0 0.0
  %2494 = vmatpush.msra.mxu0 0.0
  %2495 = vmatpush.msra.mxu0 0.0
  %2496 = vmatpush.msra.mxu0 0.0
  %2497 = vmatpush.msra.mxu0 0.0
  %2498 = vmatpush.msra.mxu0 0.0
  %2499 = vmatpush.msra.mxu0 0.0
  %2500 = vmatpush.msra.mxu0 0.0
  %2501 = vmatpush.msra.mxu0 0.0
  %2502 = vmatpush.msra.mxu0 %v2477
  %2503 = vmatpush.msra.mxu0 %v2476
  %2504 = vmatpush.msra.mxu0 %v2475
  %2505 = vmatpush.msra.mxu0 %v2474
  %2506 = vmatmul.f32.gmra.mxu0 %v2479
  %v2507 = vpop.f32.mrf.mxu0
  %v2508 = vadd.f32 0.0, %v2507
  %2509 = vmatmul.f32.gmra.mxu0 %v2482
  %v2510 = vpop.f32.mrf.mxu0
  %v2511 = vadd.f32 0.0, %v2510
  %2512 = vmatmul.f32.gmra.mxu0 %v2485
  %v2513 = vpop.f32.mrf.mxu0
  %v2514 = vadd.f32 0.0, %v2513
  %2515 = vmatmul.f32.gmra.mxu0 %v2488
  %v2516 = vpop.f32.mrf.mxu0
  %v2517 = vadd.f32 0.0, %v2516
  %2518 = vdwg.mxu0
  %v2519 = vadd.f32 %v47, %v2508
  %v2520 = vadd.f32 %v48, %v2511
  %v2521 = vadd.f32 %v49, %v2514
  %v2522 = vadd.f32 %v50, %v2517
  %v2523 = vld [vmem:[%s5] sm:$0x1]
  %v2525 = vperm.slane %v2523, 0
  %v2527 = vadd.f32 %v2519, %v2525
  %v2528 = vadd.f32 %v2520, %v2525
  %v2529 = vadd.f32 %v2521, %v2525
  %v2530 = vadd.f32 %v2522, %v2525
  %v2531 = vld [vmem:[%s6] sm:$0x1]
  %v2532 = vld [vmem:[%s7] sm:$0x1]
  %v2533 = vsel %vm53, %v2527, 0.0
  %2534 = vadd.xlane.f32.xlu0 %v2533
  %v2535 = vpop.xlane.xlu0 %2534
  %v2536 = vsel %vm53, %v2528, 0.0
  %2537 = vadd.xlane.f32.xlu0 %v2536
  %v2538 = vpop.xlane.xlu0 %2537
  %v2539 = vsel %vm53, %v2529, 0.0
  %2540 = vadd.xlane.f32.xlu0 %v2539
  %v2541 = vpop.xlane.xlu0 %2540
  %v2542 = vsel %vm53, %v2530, 0.0
  %2543 = vadd.xlane.f32.xlu0 %v2542
  %v2544 = vpop.xlane.xlu0 %2543
  %v2545 = vmul.f32 %v2535, %v72
  %v2546 = vmul.f32 %v2538, %v72
  %v2547 = vmul.f32 %v2541, %v72
  %v2548 = vmul.f32 %v2544, %v72
  %v2549 = vsub.f32 %v2527, %v2545
  %v2550 = vsub.f32 %v2528, %v2546
  %v2551 = vsub.f32 %v2529, %v2547
  %v2552 = vsub.f32 %v2530, %v2548
  %v2553 = vmul.f32 %v2549, %v2549
  %v2554 = vmul.f32 %v2550, %v2550
  %v2555 = vmul.f32 %v2551, %v2551
  %v2556 = vmul.f32 %v2552, %v2552
  %v2557 = vsel %vm53, %v2553, 0.0
  %2558 = vadd.xlane.f32.xlu0 %v2557
  %v2559 = vpop.xlane.xlu0 %2558
  %v2560 = vsel %vm53, %v2554, 0.0
  %2561 = vadd.xlane.f32.xlu0 %v2560
  %v2562 = vpop.xlane.xlu0 %2561
  %v2563 = vsel %vm53, %v2555, 0.0
  %2564 = vadd.xlane.f32.xlu0 %v2563
  %v2565 = vpop.xlane.xlu0 %2564
  %v2566 = vsel %vm53, %v2556, 0.0
  %2567 = vadd.xlane.f32.xlu0 %v2566
  %v2568 = vpop.xlane.xlu0 %2567
  %v2569 = vmul.f32 %v2559, %v72
  %v2570 = vmul.f32 %v2562, %v72
  %v2571 = vmul.f32 %v2565, %v72
  %v2572 = vmul.f32 %v2568, %v72
  %v2573 = vadd.f32 %v2569, 1e-05
  %v2574 = vadd.f32 %v2570, 1e-05
  %v2575 = vadd.f32 %v2571, 1e-05
  %v2576 = vadd.f32 %v2572, 1e-05
  %v2577 = vrsqrt.pop %v2573
  %v2578 = vmul.f32 %v2577, %v2573
  %v2579 = vmul.f32 %v2578, %v2577
  %v2580 = vmul.f32 0.5, %v2579
  %v2581 = vsub.f32 1.5, %v2580
  %v2582 = vmul.f32 %v2577, %v2581
  %v2583 = vmul.f32 %v2573, %v2582
  %vm2584 = vcmp.eq.f32.partialorder %v2573, inf
  %v2585 = vsel %vm2584, %v2573, %v2583
  %vm2586 = vcmp.eq.f32.partialorder %v2573, 0.0
  %v2587 = vand.u32 %v2573, 2147483648
  %v2588 = vsel %vm2586, %v2587, %v2585
  %v2589 = vrsqrt.pop %v2574
  %v2590 = vmul.f32 %v2589, %v2574
  %v2591 = vmul.f32 %v2590, %v2589
  %v2592 = vmul.f32 0.5, %v2591
  %v2593 = vsub.f32 1.5, %v2592
  %v2594 = vmul.f32 %v2589, %v2593
  %v2595 = vmul.f32 %v2574, %v2594
  %vm2596 = vcmp.eq.f32.partialorder %v2574, inf
  %v2597 = vsel %vm2596, %v2574, %v2595
  %vm2598 = vcmp.eq.f32.partialorder %v2574, 0.0
  %v2599 = vand.u32 %v2574, 2147483648
  %v2600 = vsel %vm2598, %v2599, %v2597
  %v2601 = vrsqrt.pop %v2575
  %v2602 = vmul.f32 %v2601, %v2575
  %v2603 = vmul.f32 %v2602, %v2601
  %v2604 = vmul.f32 0.5, %v2603
  %v2605 = vsub.f32 1.5, %v2604
  %v2606 = vmul.f32 %v2601, %v2605
  %v2607 = vmul.f32 %v2575, %v2606
  %vm2608 = vcmp.eq.f32.partialorder %v2575, inf
  %v2609 = vsel %vm2608, %v2575, %v2607
  %vm2610 = vcmp.eq.f32.partialorder %v2575, 0.0
  %v2611 = vand.u32 %v2575, 2147483648
  %v2612 = vsel %vm2610, %v2611, %v2609
  %v2613 = vrsqrt.pop %v2576
  %v2614 = vmul.f32 %v2613, %v2576
  %v2615 = vmul.f32 %v2614, %v2613
  %v2616 = vmul.f32 0.5, %v2615
  %v2617 = vsub.f32 1.5, %v2616
  %v2618 = vmul.f32 %v2613, %v2617
  %v2619 = vmul.f32 %v2576, %v2618
  %vm2620 = vcmp.eq.f32.partialorder %v2576, inf
  %v2621 = vsel %vm2620, %v2576, %v2619
  %vm2622 = vcmp.eq.f32.partialorder %v2576, 0.0
  %v2623 = vand.u32 %v2576, 2147483648
  %v2624 = vsel %vm2622, %v2623, %v2621
  %v2625 = vrcp.pop %v2588
  %v2626 = vmul.f32 %v2588, %v2625
  %v2627 = vsub.f32 1.0, %v2626
  %v2628 = vmul.f32 %v2625, %v2627
  %v2629 = vadd.f32 %v2625, %v2628
  %vm2630 = vweird.f32 %v2588
  %vm2631 = vweird.f32 %v2625
  %vm2632 = vmor %vm2630, %vm2631
  %v2633 = vsel %vm2632, %v2625, %v2629
  %v2634 = vand.u32 2147483647, %v2588
  %vm2635 = vcmp.eq.f32.partialorder %v2634, 8.507059e+37
  %v2636 = vand.u32 %v2588, 2147483648
  %v2637 = vor.u32 1.1754944e-38, %v2636
  %v2638 = vsel %vm2635, %v2637, %v2633
  %v2639 = vmul.f32 %v2549, %v2638
  %v2640 = vrcp.pop %v2600
  %v2641 = vmul.f32 %v2600, %v2640
  %v2642 = vsub.f32 1.0, %v2641
  %v2643 = vmul.f32 %v2640, %v2642
  %v2644 = vadd.f32 %v2640, %v2643
  %vm2645 = vweird.f32 %v2600
  %vm2646 = vweird.f32 %v2640
  %vm2647 = vmor %vm2645, %vm2646
  %v2648 = vsel %vm2647, %v2640, %v2644
  %v2649 = vand.u32 2147483647, %v2600
  %vm2650 = vcmp.eq.f32.partialorder %v2649, 8.507059e+37
  %v2651 = vand.u32 %v2600, 2147483648
  %v2652 = vor.u32 1.1754944e-38, %v2651
  %v2653 = vsel %vm2650, %v2652, %v2648
  %v2654 = vmul.f32 %v2550, %v2653
  %v2655 = vrcp.pop %v2612
  %v2656 = vmul.f32 %v2612, %v2655
  %v2657 = vsub.f32 1.0, %v2656
  %v2658 = vmul.f32 %v2655, %v2657
  %v2659 = vadd.f32 %v2655, %v2658
  %vm2660 = vweird.f32 %v2612
  %vm2661 = vweird.f32 %v2655
  %vm2662 = vmor %vm2660, %vm2661
  %v2663 = vsel %vm2662, %v2655, %v2659
  %v2664 = vand.u32 2147483647, %v2612
  %vm2665 = vcmp.eq.f32.partialorder %v2664, 8.507059e+37
  %v2666 = vand.u32 %v2612, 2147483648
  %v2667 = vor.u32 1.1754944e-38, %v2666
  %v2668 = vsel %vm2665, %v2667, %v2663
  %v2669 = vmul.f32 %v2551, %v2668
  %v2670 = vrcp.pop %v2624
  %v2671 = vmul.f32 %v2624, %v2670
  %v2672 = vsub.f32 1.0, %v2671
  %v2673 = vmul.f32 %v2670, %v2672
  %v2674 = vadd.f32 %v2670, %v2673
  %vm2675 = vweird.f32 %v2624
  %vm2676 = vweird.f32 %v2670
  %vm2677 = vmor %vm2675, %vm2676
  %v2678 = vsel %vm2677, %v2670, %v2674
  %v2679 = vand.u32 2147483647, %v2624
  %vm2680 = vcmp.eq.f32.partialorder %v2679, 8.507059e+37
  %v2681 = vand.u32 %v2624, 2147483648
  %v2682 = vor.u32 1.1754944e-38, %v2681
  %v2683 = vsel %vm2680, %v2682, %v2678
  %v2684 = vmul.f32 %v2552, %v2683
  %v2686 = vperm.slane %v2531, 0
  %v2688 = vmul.f32 %v2639, %v2686
  %v2689 = vmul.f32 %v2654, %v2686
  %v2690 = vmul.f32 %v2669, %v2686
  %v2691 = vmul.f32 %v2684, %v2686
  %v2693 = vperm.slane %v2532, 0
  %v2695 = vadd.f32 %v2688, %v2693
  %v2696 = vadd.f32 %v2689, %v2693
  %v2697 = vadd.f32 %v2690, %v2693
  %v2698 = vadd.f32 %v2691, %v2693
  %v2699 = vld [vmem:[%s8] sm:$0xff]
  %v2700 = vld [vmem:[%s8 + $0x8] sm:$0xff]
  %v2701 = vld [vmem:[%s8 + $0x10] sm:$0xff]
  %v2702 = vld [vmem:[%s8 + $0x18] sm:$0xff]
  %v2703 = vld [vmem:[%s9] sm:$0x1]
  %v2705 = vperm.slane %v2703, 0
  %v2708 = vsel %vm53, %v2695, 0
  %v2711 = vsel %vm53, %v2696, 0
  %v2714 = vsel %vm53, %v2697, 0
  %v2717 = vsel %vm53, %v2698, 0
  %2719 = vmatpush.msra.mxu0 0.0
  %2720 = vmatpush.msra.mxu0 0.0
  %2721 = vmatpush.msra.mxu0 0.0
  %2722 = vmatpush.msra.mxu0 0.0
  %2723 = vmatpush.msra.mxu0 0.0
  %2724 = vmatpush.msra.mxu0 0.0
  %2725 = vmatpush.msra.mxu0 0.0
  %2726 = vmatpush.msra.mxu0 0.0
  %2727 = vmatpush.msra.mxu0 0.0
  %2728 = vmatpush.msra.mxu0 0.0
  %2729 = vmatpush.msra.mxu0 0.0
  %2730 = vmatpush.msra.mxu0 0.0
  %2731 = vmatpush.msra.mxu0 %v2702
  %2732 = vmatpush.msra.mxu0 %v2701
  %2733 = vmatpush.msra.mxu0 %v2700
  %2734 = vmatpush.msra.mxu0 %v2699
  %2735 = vmatmul.f32.gmra.mxu0 %v2708
  %v2736 = vpop.f32.mrf.mxu0
  %v2737 = vadd.f32 %v2705, %v2736
  %2738 = vmatmul.f32.gmra.mxu0 %v2711
  %v2739 = vpop.f32.mrf.mxu0
  %v2740 = vadd.f32 %v2705, %v2739
  %2741 = vmatmul.f32.gmra.mxu0 %v2714
  %v2742 = vpop.f32.mrf.mxu0
  %v2743 = vadd.f32 %v2705, %v2742
  %2744 = vmatmul.f32.gmra.mxu0 %v2717
  %v2745 = vpop.f32.mrf.mxu0
  %v2746 = vadd.f32 %v2705, %v2745
  %2747 = vdwg.mxu0
  %v2748 = vmul.f32 %v2737, 0.5
  %v2749 = vmul.f32 %v2740, 0.5
  %v2750 = vmul.f32 %v2743, 0.5
  %v2751 = vmul.f32 %v2746, 0.5
  %v2752 = vmul.f32 %v2737, 0.70710677
  %v2753 = vmul.f32 %v2740, 0.70710677
  %v2754 = vmul.f32 %v2743, 0.70710677
  %v2755 = vmul.f32 %v2746, 0.70710677
  %v2756 = vand.u32 2147483647, %v2752
  %v2757 = vand.u32 2147483647, %v2753
  %v2758 = vand.u32 2147483647, %v2754
  %v2759 = vand.u32 2147483647, %v2755
  %v2760 = vmul.f32 %v2756, 0.3275911
  %v2761 = vmul.f32 %v2757, 0.3275911
  %v2762 = vmul.f32 %v2758, 0.3275911
  %v2763 = vmul.f32 %v2759, 0.3275911
  %v2764 = vadd.f32 %v2760, 1.0
  %v2765 = vadd.f32 %v2761, 1.0
  %v2766 = vadd.f32 %v2762, 1.0
  %v2767 = vadd.f32 %v2763, 1.0
  %v2768 = vrcp.pop %v2764
  %v2769 = vmul.f32 %v2764, %v2768
  %v2770 = vsub.f32 1.0, %v2769
  %v2771 = vmul.f32 %v2768, %v2770
  %v2772 = vadd.f32 %v2768, %v2771
  %vm2773 = vweird.f32 %v2764
  %vm2774 = vweird.f32 %v2768
  %vm2775 = vmor %vm2773, %vm2774
  %v2776 = vsel %vm2775, %v2768, %v2772
  %v2777 = vand.u32 2147483647, %v2764
  %vm2778 = vcmp.eq.f32.partialorder %v2777, 8.507059e+37
  %v2779 = vand.u32 %v2764, 2147483648
  %v2780 = vor.u32 1.1754944e-38, %v2779
  %v2781 = vsel %vm2778, %v2780, %v2776
  %v2782 = vmul.f32 1.0, %v2781
  %v2783 = vrcp.pop %v2765
  %v2784 = vmul.f32 %v2765, %v2783
  %v2785 = vsub.f32 1.0, %v2784
  %v2786 = vmul.f32 %v2783, %v2785
  %v2787 = vadd.f32 %v2783, %v2786
  %vm2788 = vweird.f32 %v2765
  %vm2789 = vweird.f32 %v2783
  %vm2790 = vmor %vm2788, %vm2789
  %v2791 = vsel %vm2790, %v2783, %v2787
  %v2792 = vand.u32 2147483647, %v2765
  %vm2793 = vcmp.eq.f32.partialorder %v2792, 8.507059e+37
  %v2794 = vand.u32 %v2765, 2147483648
  %v2795 = vor.u32 1.1754944e-38, %v2794
  %v2796 = vsel %vm2793, %v2795, %v2791
  %v2797 = vmul.f32 1.0, %v2796
  %v2798 = vrcp.pop %v2766
  %v2799 = vmul.f32 %v2766, %v2798
  %v2800 = vsub.f32 1.0, %v2799
  %v2801 = vmul.f32 %v2798, %v2800
  %v2802 = vadd.f32 %v2798, %v2801
  %vm2803 = vweird.f32 %v2766
  %vm2804 = vweird.f32 %v2798
  %vm2805 = vmor %vm2803, %vm2804
  %v2806 = vsel %vm2805, %v2798, %v2802
  %v2807 = vand.u32 2147483647, %v2766
  %vm2808 = vcmp.eq.f32.partialorder %v2807, 8.507059e+37
  %v2809 = vand.u32 %v2766, 2147483648
  %v2810 = vor.u32 1.1754944e-38, %v2809
  %v2811 = vsel %vm2808, %v2810, %v2806
  %v2812 = vmul.f32 1.0, %v2811
  %v2813 = vrcp.pop %v2767
  %v2814 = vmul.f32 %v2767, %v2813
  %v2815 = vsub.f32 1.0, %v2814
  %v2816 = vmul.f32 %v2813, %v2815
  %v2817 = vadd.f32 %v2813, %v2816
  %vm2818 = vweird.f32 %v2767
  %vm2819 = vweird.f32 %v2813
  %vm2820 = vmor %vm2818, %vm2819
  %v2821 = vsel %vm2820, %v2813, %v2817
  %v2822 = vand.u32 2147483647, %v2767
  %vm2823 = vcmp.eq.f32.partialorder %v2822, 8.507059e+37
  %v2824 = vand.u32 %v2767, 2147483648
  %v2825 = vor.u32 1.1754944e-38, %v2824
  %v2826 = vsel %vm2823, %v2825, %v2821
  %v2827 = vmul.f32 1.0, %v2826
  %v2828 = vmul.f32 %v2782, 1.0614054
  %v2829 = vmul.f32 %v2797, 1.0614054
  %v2830 = vmul.f32 %v2812, 1.0614054
  %v2831 = vmul.f32 %v2827, 1.0614054
  %v2832 = vadd.f32 %v2828, -1.4531521
  %v2833 = vadd.f32 %v2829, -1.4531521
  %v2834 = vadd.f32 %v2830, -1.4531521
  %v2835 = vadd.f32 %v2831, -1.4531521
  %v2836 = vmul.f32 %v2832, %v2782
  %v2837 = vmul.f32 %v2833, %v2797
  %v2838 = vmul.f32 %v2834, %v2812
  %v2839 = vmul.f32 %v2835, %v2827
  %v2840 = vadd.f32 %v2836, 1.4214138
  %v2841 = vadd.f32 %v2837, 1.4214138
  %v2842 = vadd.f32 %v2838, 1.4214138
  %v2843 = vadd.f32 %v2839, 1.4214138
  %v2844 = vmul.f32 %v2840, %v2782
  %v2845 = vmul.f32 %v2841, %v2797
  %v2846 = vmul.f32 %v2842, %v2812
  %v2847 = vmul.f32 %v2843, %v2827
  %v2848 = vadd.f32 %v2844, -0.28449672
  %v2849 = vadd.f32 %v2845, -0.28449672
  %v2850 = vadd.f32 %v2846, -0.28449672
  %v2851 = vadd.f32 %v2847, -0.28449672
  %v2852 = vmul.f32 %v2848, %v2782
  %v2853 = vmul.f32 %v2849, %v2797
  %v2854 = vmul.f32 %v2850, %v2812
  %v2855 = vmul.f32 %v2851, %v2827
  %v2856 = vadd.f32 %v2852, 0.2548296
  %v2857 = vadd.f32 %v2853, 0.2548296
  %v2858 = vadd.f32 %v2854, 0.2548296
  %v2859 = vadd.f32 %v2855, 0.2548296
  %v2860 = vmul.f32 %v2856, %v2782
  %v2861 = vmul.f32 %v2857, %v2797
  %v2862 = vmul.f32 %v2858, %v2812
  %v2863 = vmul.f32 %v2859, %v2827
  %v2864 = vsub.f32 0.0, %v2756
  %v2865 = vsub.f32 0.0, %v2757
  %v2866 = vsub.f32 0.0, %v2758
  %v2867 = vsub.f32 0.0, %v2759
  %v2868 = vmul.f32 %v2864, %v2756
  %v2869 = vmul.f32 %v2865, %v2757
  %v2870 = vmul.f32 %v2866, %v2758
  %v2871 = vmul.f32 %v2867, %v2759
  %v2872 = vmul.f32 %v2868, 1.442695
  %v2873 = vpow.pop %v2872
  %v2874 = vmul.f32 %v2869, 1.442695
  %v2875 = vpow.pop %v2874
  %v2876 = vmul.f32 %v2870, 1.442695
  %v2877 = vpow.pop %v2876
  %v2878 = vmul.f32 %v2871, 1.442695
  %v2879 = vpow.pop %v2878
  %v2880 = vmul.f32 %v2860, %v2873
  %v2881 = vmul.f32 %v2861, %v2875
  %v2882 = vmul.f32 %v2862, %v2877
  %v2883 = vmul.f32 %v2863, %v2879
  %v2884 = vsub.f32 1.0, %v2880
  %v2885 = vsub.f32 1.0, %v2881
  %v2886 = vsub.f32 1.0, %v2882
  %v2887 = vsub.f32 1.0, %v2883
  %vm2888 = vcmp.lt.f32.partialorder %v2752, 0.0
  %vm2889 = vcmp.lt.f32.partialorder %v2753, 0.0
  %vm2890 = vcmp.lt.f32.partialorder %v2754, 0.0
  %vm2891 = vcmp.lt.f32.partialorder %v2755, 0.0
  %v2892 = vsub.f32 0.0, %v2884
  %v2893 = vsub.f32 0.0, %v2885
  %v2894 = vsub.f32 0.0, %v2886
  %v2895 = vsub.f32 0.0, %v2887
  %v2896 = vsel %vm2888, %v2892, %v2884
  %v2897 = vsel %vm2889, %v2893, %v2885
  %v2898 = vsel %vm2890, %v2894, %v2886
  %v2899 = vsel %vm2891, %v2895, %v2887
  %v2900 = vadd.f32 %v2896, 1.0
  %v2901 = vadd.f32 %v2897, 1.0
  %v2902 = vadd.f32 %v2898, 1.0
  %v2903 = vadd.f32 %v2899, 1.0
  %v2904 = vmul.f32 %v2748, %v2900
  %v2905 = vmul.f32 %v2749, %v2901
  %v2906 = vmul.f32 %v2750, %v2902
  %v2907 = vmul.f32 %v2751, %v2903
  %v2908 = vld [vmem:[%s10] sm:$0xff]
  %v2909 = vld [vmem:[%s10 + $0x8] sm:$0xff]
  %v2910 = vld [vmem:[%s10 + $0x10] sm:$0xff]
  %v2911 = vld [vmem:[%s10 + $0x18] sm:$0xff]
  %v2912 = vld [vmem:[%s10 + $0x20] sm:$0xff]
  %v2913 = vld [vmem:[%s10 + $0x28] sm:$0xff]
  %v2914 = vld [vmem:[%s10 + $0x30] sm:$0xff]
  %v2915 = vld [vmem:[%s10 + $0x38] sm:$0xff]
  %v2916 = vld [vmem:[%s10 + $0x40] sm:$0xff]
  %v2917 = vld [vmem:[%s10 + $0x48] sm:$0xff]
  %v2918 = vld [vmem:[%s10 + $0x50] sm:$0xff]
  %v2919 = vld [vmem:[%s10 + $0x58] sm:$0xff]
  %v2920 = vld [vmem:[%s10 + $0x60] sm:$0xff]
  %v2921 = vld [vmem:[%s10 + $0x68] sm:$0xff]
  %v2922 = vld [vmem:[%s10 + $0x70] sm:$0xff]
  %v2923 = vld [vmem:[%s10 + $0x78] sm:$0xff]
  %2924 = vmatpush.msra.mxu0 %v2923
  %2925 = vmatpush.msra.mxu0 %v2922
  %2926 = vmatpush.msra.mxu0 %v2921
  %2927 = vmatpush.msra.mxu0 %v2920
  %2928 = vmatpush.msra.mxu0 %v2919
  %2929 = vmatpush.msra.mxu0 %v2918
  %2930 = vmatpush.msra.mxu0 %v2917
  %2931 = vmatpush.msra.mxu0 %v2916
  %2932 = vmatpush.msra.mxu0 %v2915
  %2933 = vmatpush.msra.mxu0 %v2914
  %2934 = vmatpush.msra.mxu0 %v2913
  %2935 = vmatpush.msra.mxu0 %v2912
  %2936 = vmatpush.msra.mxu0 %v2911
  %2937 = vmatpush.msra.mxu0 %v2910
  %2938 = vmatpush.msra.mxu0 %v2909
  %2939 = vmatpush.msra.mxu0 %v2908
  %2940 = vmatmul.f32.gmra.mxu0 %v2904
  %v2941 = vpop.f32.mrf.mxu0
  %v2942 = vadd.f32 0.0, %v2941
  %2943 = vmatmul.f32.gmra.mxu0 %v2905
  %v2944 = vpop.f32.mrf.mxu0
  %v2945 = vadd.f32 0.0, %v2944
  %2946 = vmatmul.f32.gmra.mxu0 %v2906
  %v2947 = vpop.f32.mrf.mxu0
  %v2948 = vadd.f32 0.0, %v2947
  %2949 = vmatmul.f32.gmra.mxu0 %v2907
  %v2950 = vpop.f32.mrf.mxu0
  %v2951 = vadd.f32 0.0, %v2950
  %2952 = vdwg.mxu0
  %v2953 = vadd.f32 %v2527, %v2942
  %v2954 = vadd.f32 %v2528, %v2945
  %v2955 = vadd.f32 %v2529, %v2948
  %v2956 = vadd.f32 %v2530, %v2951
  %v2957 = vld [vmem:[%s11] sm:$0x1]
  %v2959 = vperm.slane %v2957, 0
  %v2961 = vadd.f32 %v2953, %v2959
  %v2962 = vadd.f32 %v2954, %v2959
  %v2963 = vadd.f32 %v2955, %v2959
  %v2964 = vadd.f32 %v2956, %v2959
  %v2965 = vld [vmem:[%s12] sm:$0x1]
  %v2966 = vld [vmem:[%s13] sm:$0x1]
  %v2967 = vsel %vm53, %v2961, 0.0
  %2968 = vadd.xlane.f32.xlu0 %v2967
  %v2969 = vpop.xlane.xlu0 %2968
  %v2970 = vsel %vm53, %v2962, 0.0
  %2971 = vadd.xlane.f32.xlu0 %v2970
  %v2972 = vpop.xlane.xlu0 %2971
  %v2973 = vsel %vm53, %v2963, 0.0
  %2974 = vadd.xlane.f32.xlu0 %v2973
  %v2975 = vpop.xlane.xlu0 %2974
  %v2976 = vsel %vm53, %v2964, 0.0
  %2977 = vadd.xlane.f32.xlu0 %v2976
  %v2978 = vpop.xlane.xlu0 %2977
  %v2979 = vmul.f32 %v2969, %v72
  %v2980 = vmul.f32 %v2972, %v72
  %v2981 = vmul.f32 %v2975, %v72
  %v2982 = vmul.f32 %v2978, %v72
  %v2983 = vsub.f32 %v2961, %v2979
  %v2984 = vsub.f32 %v2962, %v2980
  %v2985 = vsub.f32 %v2963, %v2981
  %v2986 = vsub.f32 %v2964, %v2982
  %v2987 = vmul.f32 %v2983, %v2983
  %v2988 = vmul.f32 %v2984, %v2984
  %v2989 = vmul.f32 %v2985, %v2985
  %v2990 = vmul.f32 %v2986, %v2986
  %v2991 = vsel %vm53, %v2987, 0.0
  %2992 = vadd.xlane.f32.xlu0 %v2991
  %v2993 = vpop.xlane.xlu0 %2992
  %v2994 = vsel %vm53, %v2988, 0.0
  %2995 = vadd.xlane.f32.xlu0 %v2994
  %v2996 = vpop.xlane.xlu0 %2995
  %v2997 = vsel %vm53, %v2989, 0.0
  %2998 = vadd.xlane.f32.xlu0 %v2997
  %v2999 = vpop.xlane.xlu0 %2998
  %v3000 = vsel %vm53, %v2990, 0.0
  %3001 = vadd.xlane.f32.xlu0 %v3000
  %v3002 = vpop.xlane.xlu0 %3001
  %v3003 = vmul.f32 %v2993, %v72
  %v3004 = vmul.f32 %v2996, %v72
  %v3005 = vmul.f32 %v2999, %v72
  %v3006 = vmul.f32 %v3002, %v72
  %v3007 = vadd.f32 %v3003, 1e-05
  %v3008 = vadd.f32 %v3004, 1e-05
  %v3009 = vadd.f32 %v3005, 1e-05
  %v3010 = vadd.f32 %v3006, 1e-05
  %v3011 = vrsqrt.pop %v3007
  %v3012 = vmul.f32 %v3011, %v3007
  %v3013 = vmul.f32 %v3012, %v3011
  %v3014 = vmul.f32 0.5, %v3013
  %v3015 = vsub.f32 1.5, %v3014
  %v3016 = vmul.f32 %v3011, %v3015
  %v3017 = vmul.f32 %v3007, %v3016
  %vm3018 = vcmp.eq.f32.partialorder %v3007, inf
  %v3019 = vsel %vm3018, %v3007, %v3017
  %vm3020 = vcmp.eq.f32.partialorder %v3007, 0.0
  %v3021 = vand.u32 %v3007, 2147483648
  %v3022 = vsel %vm3020, %v3021, %v3019
  %v3023 = vrsqrt.pop %v3008
  %v3024 = vmul.f32 %v3023, %v3008
  %v3025 = vmul.f32 %v3024, %v3023
  %v3026 = vmul.f32 0.5, %v3025
  %v3027 = vsub.f32 1.5, %v3026
  %v3028 = vmul.f32 %v3023, %v3027
  %v3029 = vmul.f32 %v3008, %v3028
  %vm3030 = vcmp.eq.f32.partialorder %v3008, inf
  %v3031 = vsel %vm3030, %v3008, %v3029
  %vm3032 = vcmp.eq.f32.partialorder %v3008, 0.0
  %v3033 = vand.u32 %v3008, 2147483648
  %v3034 = vsel %vm3032, %v3033, %v3031
  %v3035 = vrsqrt.pop %v3009
  %v3036 = vmul.f32 %v3035, %v3009
  %v3037 = vmul.f32 %v3036, %v3035
  %v3038 = vmul.f32 0.5, %v3037
  %v3039 = vsub.f32 1.5, %v3038
  %v3040 = vmul.f32 %v3035, %v3039
  %v3041 = vmul.f32 %v3009, %v3040
  %vm3042 = vcmp.eq.f32.partialorder %v3009, inf
  %v3043 = vsel %vm3042, %v3009, %v3041
  %vm3044 = vcmp.eq.f32.partialorder %v3009, 0.0
  %v3045 = vand.u32 %v3009, 2147483648
  %v3046 = vsel %vm3044, %v3045, %v3043
  %v3047 = vrsqrt.pop %v3010
  %v3048 = vmul.f32 %v3047, %v3010
  %v3049 = vmul.f32 %v3048, %v3047
  %v3050 = vmul.f32 0.5, %v3049
  %v3051 = vsub.f32 1.5, %v3050
  %v3052 = vmul.f32 %v3047, %v3051
  %v3053 = vmul.f32 %v3010, %v3052
  %vm3054 = vcmp.eq.f32.partialorder %v3010, inf
  %v3055 = vsel %vm3054, %v3010, %v3053
  %vm3056 = vcmp.eq.f32.partialorder %v3010, 0.0
  %v3057 = vand.u32 %v3010, 2147483648
  %v3058 = vsel %vm3056, %v3057, %v3055
  %v3059 = vrcp.pop %v3022
  %v3060 = vmul.f32 %v3022, %v3059
  %v3061 = vsub.f32 1.0, %v3060
  %v3062 = vmul.f32 %v3059, %v3061
  %v3063 = vadd.f32 %v3059, %v3062
  %vm3064 = vweird.f32 %v3022
  %vm3065 = vweird.f32 %v3059
  %vm3066 = vmor %vm3064, %vm3065
  %v3067 = vsel %vm3066, %v3059, %v3063
  %v3068 = vand.u32 2147483647, %v3022
  %vm3069 = vcmp.eq.f32.partialorder %v3068, 8.507059e+37
  %v3070 = vand.u32 %v3022, 2147483648
  %v3071 = vor.u32 1.1754944e-38, %v3070
  %v3072 = vsel %vm3069, %v3071, %v3067
  %v3073 = vmul.f32 %v2983, %v3072
  %v3074 = vrcp.pop %v3034
  %v3075 = vmul.f32 %v3034, %v3074
  %v3076 = vsub.f32 1.0, %v3075
  %v3077 = vmul.f32 %v3074, %v3076
  %v3078 = vadd.f32 %v3074, %v3077
  %vm3079 = vweird.f32 %v3034
  %vm3080 = vweird.f32 %v3074
  %vm3081 = vmor %vm3079, %vm3080
  %v3082 = vsel %vm3081, %v3074, %v3078
  %v3083 = vand.u32 2147483647, %v3034
  %vm3084 = vcmp.eq.f32.partialorder %v3083, 8.507059e+37
  %v3085 = vand.u32 %v3034, 2147483648
  %v3086 = vor.u32 1.1754944e-38, %v3085
  %v3087 = vsel %vm3084, %v3086, %v3082
  %v3088 = vmul.f32 %v2984, %v3087
  %v3089 = vrcp.pop %v3046
  %v3090 = vmul.f32 %v3046, %v3089
  %v3091 = vsub.f32 1.0, %v3090
  %v3092 = vmul.f32 %v3089, %v3091
  %v3093 = vadd.f32 %v3089, %v3092
  %vm3094 = vweird.f32 %v3046
  %vm3095 = vweird.f32 %v3089
  %vm3096 = vmor %vm3094, %vm3095
  %v3097 = vsel %vm3096, %v3089, %v3093
  %v3098 = vand.u32 2147483647, %v3046
  %vm3099 = vcmp.eq.f32.partialorder %v3098, 8.507059e+37
  %v3100 = vand.u32 %v3046, 2147483648
  %v3101 = vor.u32 1.1754944e-38, %v3100
  %v3102 = vsel %vm3099, %v3101, %v3097
  %v3103 = vmul.f32 %v2985, %v3102
  %v3104 = vrcp.pop %v3058
  %v3105 = vmul.f32 %v3058, %v3104
  %v3106 = vsub.f32 1.0, %v3105
  %v3107 = vmul.f32 %v3104, %v3106
  %v3108 = vadd.f32 %v3104, %v3107
  %vm3109 = vweird.f32 %v3058
  %vm3110 = vweird.f32 %v3104
  %vm3111 = vmor %vm3109, %vm3110
  %v3112 = vsel %vm3111, %v3104, %v3108
  %v3113 = vand.u32 2147483647, %v3058
  %vm3114 = vcmp.eq.f32.partialorder %v3113, 8.507059e+37
  %v3115 = vand.u32 %v3058, 2147483648
  %v3116 = vor.u32 1.1754944e-38, %v3115
  %v3117 = vsel %vm3114, %v3116, %v3112
  %v3118 = vmul.f32 %v2986, %v3117
  %v3120 = vperm.slane %v2965, 0
  %v3122 = vmul.f32 %v3073, %v3120
  %v3123 = vmul.f32 %v3088, %v3120
  %v3124 = vmul.f32 %v3103, %v3120
  %v3125 = vmul.f32 %v3118, %v3120
  %v3127 = vperm.slane %v2966, 0
  %v3129 = vadd.f32 %v3122, %v3127
  %v3130 = vadd.f32 %v3123, %v3127
  %v3131 = vadd.f32 %v3124, %v3127
  %v3132 = vadd.f32 %v3125, %v3127
  %3133 = vst.msk [vmem:[%s14] sm:$0xff] %vm53, %v3129
  %3134 = vst.msk [vmem:[%s14 + $0x8] sm:$0xff] %vm53, %v3130
  %3135 = vst.msk [vmem:[%s14 + $0x10] sm:$0xff] %vm53, %v3131
  %3136 = vst.msk [vmem:[%s14 + $0x18] sm:$0xff] %vm53, %v3132
  // Predicated region
  $region58: #{croma_forward.8} parent=0 // pred_check
    _
  $region59: #{croma_forward.8} parent=0 // pred_check_branch
    %3138 = sbr.rel (0) target = $region61
  $region60: #{croma_forward.8} parent=0 // pred_region
    _
  $region61: #{croma_forward.8} parent=0 // pred_fallthru
    _
  // Predicated region
  $region62: #{croma_forward.8} parent=0 // pred_check
    _
  $region63: #{croma_forward.8} parent=0 // pred_check_branch
    %3140 = sbr.rel (0) target = $region65
  $region64: #{croma_forward.8} parent=0 // pred_region
    _
  $region65: #{croma_forward.8} parent=0 // pred_fallthru
    _

</llo_original>
